<compile_context>
chip_gen: v6e
topology: v6e:2x2x1
jax: 0.10.0
libtpu: 0.0.40
codegen_flags: <defaults>
</compile_context>

<pallas_src>
import math

import jax
import jax.numpy as jnp
import numpy as np
from jax.experimental import pallas as pl
from jax.experimental.pallas import tpu as pltpu

# ----------------------------- small config ---------------------------------
B = 2                  # batch
C = 4                  # max_num_embodiments
STATE_DIM = 24         # max_state_dim
STATE_SEQ = 1          # state tokens
ACTION_DIM = 8
ACTION_HORIZON = 8
HIDDEN = 64            # config.hidden_size (CategorySpecificMLP hidden dim)
EMB_DIM = 32           # input_embedding_dim == transformer inner_dim
NUM_HEADS = 2
HEAD_DIM = 16          # NUM_HEADS * HEAD_DIM == EMB_DIM
NUM_LAYERS = 2         # layer 0: cross-attn, layer 1: self-attn
FF_DIM = 4 * EMB_DIM
VL_SEQ = 16
MAX_SEQ_LEN = 64
EPS = 1e-5
SEQ = STATE_SEQ + ACTION_HORIZON


# ----------------------------- math helpers ---------------------------------
def _layernorm(x, eps=EPS):
    # LayerNorm with elementwise_affine=False
    mu = jnp.mean(x, axis=-1, keepdims=True)
    xc = x - mu
    var = jnp.mean(xc * xc, axis=-1, keepdims=True)
    return xc * jax.lax.rsqrt(var + eps)


def _gelu_tanh(x):
    # activation_fn='gelu-approximate'
    c = math.sqrt(2.0 / math.pi)
    return 0.5 * x * (1.0 + jnp.tanh(c * (x + 0.044715 * x * x * x)))


# ----------------------- the single fused Pallas kernel ----------------------
def _fused_l1_kernel(
    # inputs (27)
    emb_id_ref, state_ref, vl_ref, gt_ref, mask_ref, aemb_ref, pos_ref,
    se_w1_ref, se_b1_ref, se_w2_ref, se_b2_ref,
    de_w1_ref, de_b1_ref, de_w2_ref, de_b2_ref,
    wq_ref, bq_ref, wk_ref, bk_ref, wv_ref, bv_ref, wo_ref, bo_ref,
    wf1_ref, bf1_ref, wf2_ref, bf2_ref,
    # outputs (1)
    loss_ref,
    # scratch (1)
    seq_ref,
):
    scale = 1.0 / math.sqrt(HEAD_DIM)
    vl_flat = vl_ref[...]                                  # (B*L, D), VMEM resident

    # ---- encode: category-specific state MLP + action embedding + pos embed ----
    xs = []
    for b in range(B):
        eid = emb_id_ref[b]                                # SMEM scalar
        st = state_ref[b]                                  # (Ts, STATE_DIM)
        h = jnp.dot(st, se_w1_ref[eid],
                    preferred_element_type=jnp.float32) + se_b1_ref[eid]
        h = jnp.maximum(h, 0.0)                            # ReLU
        sf = jnp.dot(h, se_w2_ref[eid],
                     preferred_element_type=jnp.float32) + se_b2_ref[eid]   # (Ts, D)
        af = aemb_ref[eid] + pos_ref[...]                  # (1,D)+(AH,D) -> (AH,D)
        # assemble the token sequence through VMEM scratch (concat via row stores)
        seq_ref[b, pl.ds(0, STATE_SEQ), :] = sf
        seq_ref[b, pl.ds(STATE_SEQ, ACTION_HORIZON), :] = af
        xs.append(seq_ref[b])                              # (S, D)

    # ---- transformer blocks (even: cross-attn to vl, odd: self-attn) ----
    for lidx in range(NUM_LAYERS):
        is_self = (lidx % 2 == 1)

        # cross K/V computed once per layer on the batch-flattened vl slab
        kv_cross = []
        if not is_self:
            for hh in range(NUM_HEADS):
                kh_all = jnp.dot(vl_flat, wk_ref[lidx, hh],
                                 preferred_element_type=jnp.float32) + bk_ref[lidx, hh]
                vh_all = jnp.dot(vl_flat, wv_ref[lidx, hh],
                                 preferred_element_type=jnp.float32) + bv_ref[lidx, hh]
                kv_cross.append((kh_all, vh_all))

        new_xs = []
        for b in range(B):
            x = xs[b]                                      # (S, D)
            xn = _layernorm(x)
            attn = None
            for hh in range(NUM_HEADS):
                qh = (jnp.dot(xn, wq_ref[lidx, hh],
                              preferred_element_type=jnp.float32)
                      + bq_ref[lidx, hh]) * scale          # pre-scaled q
                if is_self:
                    kh = jnp.dot(xn, wk_ref[lidx, hh],
                                 preferred_element_type=jnp.float32) + bk_ref[lidx, hh]
                    vh = jnp.dot(xn, wv_ref[lidx, hh],
                                 preferred_element_type=jnp.float32) + bv_ref[lidx, hh]
                else:
                    kh_all, vh_all = kv_cross[hh]
                    kh = kh_all[b * VL_SEQ:(b + 1) * VL_SEQ, :]   # aligned slice
                    vh = vh_all[b * VL_SEQ:(b + 1) * VL_SEQ, :]
                s = jax.lax.dot_general(qh, kh, (((1,), (1,)), ((), ())),
                                        preferred_element_type=jnp.float32)
                s = s - jnp.max(s, axis=-1, keepdims=True)
                p = jnp.exp(s)
                p = p / jnp.sum(p, axis=-1, keepdims=True)
                oh = jnp.dot(p, vh, preferred_element_type=jnp.float32)
                contrib = jnp.dot(oh, wo_ref[lidx, hh],
                                  preferred_element_type=jnp.float32)
                attn = contrib if attn is None else attn + contrib
            x = x + attn + bo_ref[lidx]

            # feed-forward: Linear -> GELU(tanh) -> Linear
            xn2 = _layernorm(x)
            hmid = _gelu_tanh(
                jnp.dot(xn2, wf1_ref[lidx],
                        preferred_element_type=jnp.float32) + bf1_ref[lidx])
            x = x + jnp.dot(hmid, wf2_ref[lidx],
                            preferred_element_type=jnp.float32) + bf2_ref[lidx]
            new_xs.append(x)
        xs = new_xs

    # ---- norm_out + category-specific action decoder + masked-MSE (fused) ----
    lsum = jnp.zeros((), jnp.float32)
    msum = jnp.zeros((), jnp.float32)
    for b in range(B):
        eid = emb_id_ref[b]
        seq_ref[b] = xs[b]                                 # store, then sliced read
        h_act = seq_ref[b, pl.ds(STATE_SEQ, ACTION_HORIZON), :]   # (AH, D) action rows
        xn = _layernorm(h_act)                             # norm_out (no affine)
        h = jnp.maximum(
            jnp.dot(xn, de_w1_ref[eid],
                    preferred_element_type=jnp.float32) + de_b1_ref[eid], 0.0)
        pred = jnp.dot(h, de_w2_ref[eid],
                       preferred_element_type=jnp.float32) + de_b2_ref[eid]  # (AH, A)
        d = pred - gt_ref[b]
        m = mask_ref[b]
        lsum = lsum + jnp.sum(d * d * m)
        msum = msum + jnp.sum(m)
    loss_ref[0, 0] = lsum / msum


# -------------------- host-side weight layout preparation --------------------
def _prep_kernel_params(params):
    """Free, one-time weight layout transforms: split heads onto a leading axis so
    the kernel only ever indexes leading dims of the weight refs."""
    blk = params['blocks']

    def heads_in(w):    # (L, D, H*Dh) -> (L, H, D, Dh)
        return w.reshape(NUM_LAYERS, EMB_DIM, NUM_HEADS, HEAD_DIM).transpose(0, 2, 1, 3)

    def heads_bias(b):  # (L, 1, H*Dh) -> (L, H, 1, Dh)
        return b.reshape(NUM_LAYERS, 1, NUM_HEADS, HEAD_DIM).transpose(0, 2, 1, 3)

    def heads_out(w):   # (L, H*Dh, D) -> (L, H, Dh, D)
        return w.reshape(NUM_LAYERS, NUM_HEADS, HEAD_DIM, EMB_DIM)

    se, de = params['state_encoder'], params['action_decoder']
    return dict(
        aemb=params['action_embedding'].reshape(C, 1, EMB_DIM),
        pos=params['pos_embed'][:ACTION_HORIZON, :],
        se_w1=se['w1'], se_b1=se['b1'], se_w2=se['w2'], se_b2=se['b2'],
        de_w1=de['w1'], de_b1=de['b1'], de_w2=de['w2'], de_b2=de['b2'],
        wq=heads_in(blk['wq']), bq=heads_bias(blk['bq']),
        wk=heads_in(blk['wk']), bk=heads_bias(blk['bk']),
        wv=heads_in(blk['wv']), bv=heads_bias(blk['bv']),
        wo=heads_out(blk['wo']), bo=blk['bo'],
        wf1=blk['wf1'], bf1=blk['bf1'], wf2=blk['wf2'], bf2=blk['bf2'],
    )


# ----------------------------- full forward ---------------------------------
def l1_action_generator_forward(params, backbone_output, action_input):
    kp = _prep_kernel_params(params)

    emb_id = action_input['embodiment_id'].astype(jnp.int32)              # (B,)
    state = action_input['state']                                          # (B, Ts, S)
    vl_flat = backbone_output['backbone_features'].reshape(B * VL_SEQ, EMB_DIM)
    gt = action_input['action'][:, -ACTION_HORIZON:, :]
    mask = action_input['action_mask'][:, -ACTION_HORIZON:, :]

    smem = pl.BlockSpec(memory_space=pltpu.MemorySpace.SMEM)
    vmem = pl.BlockSpec(memory_space=pltpu.MemorySpace.VMEM)

    inputs = (
        emb_id, state, vl_flat, gt, mask, kp['aemb'], kp['pos'],
        kp['se_w1'], kp['se_b1'], kp['se_w2'], kp['se_b2'],
        kp['de_w1'], kp['de_b1'], kp['de_w2'], kp['de_b2'],
        kp['wq'], kp['bq'], kp['wk'], kp['bk'], kp['wv'], kp['bv'],
        kp['wo'], kp['bo'], kp['wf1'], kp['bf1'], kp['wf2'], kp['bf2'],
    )

    loss = pl.pallas_call(
        _fused_l1_kernel,
        out_shape=jax.ShapeDtypeStruct((1, 1), jnp.float32),
        in_specs=[smem] + [vmem] * (len(inputs) - 1),
        out_specs=smem,
        scratch_shapes=[pltpu.VMEM((B, SEQ, EMB_DIM), jnp.float32)],
    )(*inputs)
    return loss[0, 0]


# -------------------------- pure-JAX reference -------------------------------
def _ref_forward(params, backbone_output, action_input):
    vl = backbone_output['backbone_features']
    eid = action_input['embodiment_id']
    st = action_input['state']

    def catmlp(x, p):
        w1, b1, w2, b2 = p['w1'][eid], p['b1'][eid], p['w2'][eid], p['b2'][eid]
        h = jax.nn.relu(jnp.einsum('btd,bdh->bth', x, w1) + b1)
        return jnp.einsum('bth,bho->bto', h, w2) + b2

    sf = catmlp(st, params['state_encoder'])
    af = jnp.broadcast_to(params['action_embedding'][eid][:, None, :],
                          (B, ACTION_HORIZON, EMB_DIM))
    af = af + params['pos_embed'][None, :ACTION_HORIZON, :]
    x = jnp.concatenate([sf, af], axis=1)

    blk = params['blocks']
    for lidx in range(NUM_LAYERS):
        wq, bq = blk['wq'][lidx], blk['bq'][lidx]
        wk, bk = blk['wk'][lidx], blk['bk'][lidx]
        wv, bv = blk['wv'][lidx], blk['bv'][lidx]
        wo, bo = blk['wo'][lidx], blk['bo'][lidx]
        wf1, bf1 = blk['wf1'][lidx], blk['bf1'][lidx]
        wf2, bf2 = blk['wf2'][lidx], blk['bf2'][lidx]

        xn = _layernorm(x)
        ctx = xn if lidx % 2 == 1 else vl       # self: K/V from norm1(hidden)
        q = xn @ wq + bq
        k = ctx @ wk + bk
        v = ctx @ wv + bv
        Bx, S, D = q.shape
        L = k.shape[1]
        qh = q.reshape(Bx, S, NUM_HEADS, HEAD_DIM).transpose(0, 2, 1, 3)
        kh = k.reshape(Bx, L, NUM_HEADS, HEAD_DIM).transpose(0, 2, 1, 3)
        vh = v.reshape(Bx, L, NUM_HEADS, HEAD_DIM).transpose(0, 2, 1, 3)
        s = jnp.einsum('bhsd,bhld->bhsl', qh, kh) / math.sqrt(HEAD_DIM)
        p = jax.nn.softmax(s, axis=-1)
        o = jnp.einsum('bhsl,bhld->bhsd', p, vh).transpose(0, 2, 1, 3).reshape(Bx, S, D)
        x = x + (o @ wo + bo)
        xn2 = _layernorm(x)
        x = x + (_gelu_tanh(xn2 @ wf1 + bf1) @ wf2 + bf2)

    x = _layernorm(x)
    pred = catmlp(x, params['action_decoder'])
    pa = pred[:, -ACTION_HORIZON:, :]
    gt = action_input['action'][:, -ACTION_HORIZON:, :]
    m = action_input['action_mask'][:, -ACTION_HORIZON:, :]
    return jnp.sum((pa - gt) ** 2 * m) / jnp.sum(m)


# ------------------------------ parameters -----------------------------------
def sinusoidal_pe(max_len, dim):
    pos = np.arange(max_len)[:, None].astype(np.float64)
    div = np.exp(np.arange(0, dim, 2).astype(np.float64) * (-math.log(10000.0) / dim))
    pe = np.zeros((max_len, dim), dtype=np.float32)
    pe[:, 0::2] = np.sin(pos * div)
    pe[:, 1::2] = np.cos(pos * div)
    return jnp.asarray(pe)


def init_params(key):
    keys = iter(jax.random.split(key, 64))

    def nrm(shape, std=0.02):
        return (std * jax.random.normal(next(keys), shape)).astype(jnp.float32)

    return {
        'state_encoder': dict(w1=nrm((C, STATE_DIM, HIDDEN)), b1=nrm((C, 1, HIDDEN)),
                              w2=nrm((C, HIDDEN, EMB_DIM)), b2=nrm((C, 1, EMB_DIM))),
        'action_decoder': dict(w1=nrm((C, EMB_DIM, HIDDEN)), b1=nrm((C, 1, HIDDEN)),
                               w2=nrm((C, HIDDEN, ACTION_DIM)), b2=nrm((C, 1, ACTION_DIM))),
        'action_embedding': nrm((C, EMB_DIM)),          # nn.Embedding, std=0.02
        'pos_embed': sinusoidal_pe(MAX_SEQ_LEN, EMB_DIM),
        'blocks': dict(
            wq=nrm((NUM_LAYERS, EMB_DIM, EMB_DIM)), bq=nrm((NUM_LAYERS, 1, EMB_DIM)),
            wk=nrm((NUM_LAYERS, EMB_DIM, EMB_DIM)), bk=nrm((NUM_LAYERS, 1, EMB_DIM)),
            wv=nrm((NUM_LAYERS, EMB_DIM, EMB_DIM)), bv=nrm((NUM_LAYERS, 1, EMB_DIM)),
            wo=nrm((NUM_LAYERS, EMB_DIM, EMB_DIM)), bo=nrm((NUM_LAYERS, 1, EMB_DIM)),
            wf1=nrm((NUM_LAYERS, EMB_DIM, FF_DIM)), bf1=nrm((NUM_LAYERS, 1, FF_DIM)),
            wf2=nrm((NUM_LAYERS, FF_DIM, EMB_DIM)), bf2=nrm((NUM_LAYERS, 1, EMB_DIM)),
        ),
    }


# --------------------------------- main --------------------------------------
if __name__ == "__main__":
    key = jax.random.PRNGKey(0)
    pkey, dkey = jax.random.split(key)
    params = init_params(pkey)
    dk = jax.random.split(dkey, 4)

    backbone_output = {
        'backbone_features': jax.random.normal(dk[0], (B, VL_SEQ, EMB_DIM), jnp.float32),
        'backbone_attention_mask': jnp.ones((B, VL_SEQ), jnp.float32),  # unused by backbone
    }
    action_input = {
        'state': jax.random.normal(dk[1], (B, STATE_SEQ, STATE_DIM), jnp.float32),
        'embodiment_id': jnp.array([1, 3], dtype=jnp.int32),
        'action': jax.random.normal(dk[2], (B, ACTION_HORIZON, ACTION_DIM), jnp.float32),
        'action_mask': (jax.random.uniform(dk[3], (B, ACTION_HORIZON, ACTION_DIM)) > 0.3
                        ).astype(jnp.float32),
    }

    loss = l1_action_generator_forward(params, backbone_output, action_input)
    loss = jax.block_until_ready(loss)

    ref = jax.block_until_ready(_ref_forward(params, backbone_output, action_input))
    assert np.isfinite(float(loss))
    np.testing.assert_allclose(float(loss), float(ref), rtol=1e-2, atol=1e-5)

    print("KERNEL_OK")
</pallas_src>

<mosaic_0001>
module attributes {stable_mosaic.version = 11 : i64} {
  func.func @_fused_l1_kernel(%arg0: memref<2xi32, #tpu.memory_space<smem>>, %arg1: memref<2x1x24xf32, #tpu.memory_space<vmem>>, %arg2: memref<32x32xf32, #tpu.memory_space<vmem>>, %arg3: memref<2x8x8xf32, #tpu.memory_space<vmem>>, %arg4: memref<2x8x8xf32, #tpu.memory_space<vmem>>, %arg5: memref<4x1x32xf32, #tpu.memory_space<vmem>>, %arg6: memref<8x32xf32, #tpu.memory_space<vmem>>, %arg7: memref<4x24x64xf32, #tpu.memory_space<vmem>>, %arg8: memref<4x1x64xf32, #tpu.memory_space<vmem>>, %arg9: memref<4x64x32xf32, #tpu.memory_space<vmem>>, %arg10: memref<4x1x32xf32, #tpu.memory_space<vmem>>, %arg11: memref<4x32x64xf32, #tpu.memory_space<vmem>>, %arg12: memref<4x1x64xf32, #tpu.memory_space<vmem>>, %arg13: memref<4x64x8xf32, #tpu.memory_space<vmem>>, %arg14: memref<4x1x8xf32, #tpu.memory_space<vmem>>, %arg15: memref<2x2x32x16xf32, #tpu.memory_space<vmem>>, %arg16: memref<2x2x1x16xf32, #tpu.memory_space<vmem>>, %arg17: memref<2x2x32x16xf32, #tpu.memory_space<vmem>>, %arg18: memref<2x2x1x16xf32, #tpu.memory_space<vmem>>, %arg19: memref<2x2x32x16xf32, #tpu.memory_space<vmem>>, %arg20: memref<2x2x1x16xf32, #tpu.memory_space<vmem>>, %arg21: memref<2x2x16x32xf32, #tpu.memory_space<vmem>>, %arg22: memref<2x1x32xf32, #tpu.memory_space<vmem>>, %arg23: memref<2x32x128xf32, #tpu.memory_space<vmem>>, %arg24: memref<2x1x128xf32, #tpu.memory_space<vmem>>, %arg25: memref<2x128x32xf32, #tpu.memory_space<vmem>>, %arg26: memref<2x1x32xf32, #tpu.memory_space<vmem>>, %arg27: memref<1x1xf32, #tpu.memory_space<smem>>, %arg28: memref<2x9x32xf32, #tpu.memory_space<vmem>>) attributes {dimension_semantics = [], scalar_prefetch = 0 : i64, scratch_operands = 1 : i64, tpu.core_type = #tpu.core_type<tc>} {
    %c0 = arith.constant 0 : index
    %c0_0 = arith.constant 0 : index
    %0 = vector.load %arg2[%c0, %c0_0] : memref<32x32xf32, #tpu.memory_space<vmem>>, vector<32x32xf32>
    %c0_1 = arith.constant 0 : index
    %1 = memref.load %arg0[%c0_1] : memref<2xi32, #tpu.memory_space<smem>>
    %c0_2 = arith.constant 0 : index
    %c0_3 = arith.constant 0 : index
    %c0_4 = arith.constant 0 : index
    %2 = vector.load %arg1[%c0_2, %c0_3, %c0_4] : memref<2x1x24xf32, #tpu.memory_space<vmem>>, vector<1x1x24xf32>
    %3 = vector.shape_cast %2 : vector<1x1x24xf32> to vector<1x24xf32>
    %4 = arith.index_cast %1 : i32 to index
    %c0_5 = arith.constant 0 : index
    %c0_6 = arith.constant 0 : index
    %5 = vector.load %arg7[%4, %c0_5, %c0_6] : memref<4x24x64xf32, #tpu.memory_space<vmem>>, vector<1x24x64xf32>
    %6 = vector.shape_cast %5 : vector<1x24x64xf32> to vector<24x64xf32>
    %cst = arith.constant dense<0.000000e+00> : vector<1x64xf32>
    %7 = tpu.matmul %3, %6, %cst {dimension_numbers = #tpu.dot_dimension_numbers<[1], [0], [0], [1], [0, 0, 1, 1], [], []>} : vector<1x24xf32>, vector<24x64xf32>, vector<1x64xf32> -> vector<1x64xf32>
    %8 = arith.index_cast %1 : i32 to index
    %c0_7 = arith.constant 0 : index
    %c0_8 = arith.constant 0 : index
    %9 = vector.load %arg8[%8, %c0_7, %c0_8] : memref<4x1x64xf32, #tpu.memory_space<vmem>>, vector<1x1x64xf32>
    %10 = vector.shape_cast %9 : vector<1x1x64xf32> to vector<1x64xf32>
    %11 = arith.addf %7, %10 : vector<1x64xf32>
    %cst_9 = arith.constant 0.000000e+00 : f32
    %12 = vector.broadcast %cst_9 : f32 to vector<1x64xf32>
    %13 = arith.maximumf %11, %12 : vector<1x64xf32>
    %14 = arith.index_cast %1 : i32 to index
    %c0_10 = arith.constant 0 : index
    %c0_11 = arith.constant 0 : index
    %15 = vector.load %arg9[%14, %c0_10, %c0_11] : memref<4x64x32xf32, #tpu.memory_space<vmem>>, vector<1x64x32xf32>
    %16 = vector.shape_cast %15 : vector<1x64x32xf32> to vector<64x32xf32>
    %cst_12 = arith.constant dense<0.000000e+00> : vector<1x32xf32>
    %17 = tpu.matmul %13, %16, %cst_12 {dimension_numbers = #tpu.dot_dimension_numbers<[1], [0], [0], [1], [0, 0, 1, 1], [], []>} : vector<1x64xf32>, vector<64x32xf32>, vector<1x32xf32> -> vector<1x32xf32>
    %18 = arith.index_cast %1 : i32 to index
    %c0_13 = arith.constant 0 : index
    %c0_14 = arith.constant 0 : index
    %19 = vector.load %arg10[%18, %c0_13, %c0_14] : memref<4x1x32xf32, #tpu.memory_space<vmem>>, vector<1x1x32xf32>
    %20 = vector.shape_cast %19 : vector<1x1x32xf32> to vector<1x32xf32>
    %21 = arith.addf %17, %20 : vector<1x32xf32>
    %22 = arith.index_cast %1 : i32 to index
    %c0_15 = arith.constant 0 : index
    %c0_16 = arith.constant 0 : index
    %23 = vector.load %arg5[%22, %c0_15, %c0_16] : memref<4x1x32xf32, #tpu.memory_space<vmem>>, vector<1x1x32xf32>
    %24 = vector.shape_cast %23 : vector<1x1x32xf32> to vector<1x32xf32>
    %c0_17 = arith.constant 0 : index
    %c0_18 = arith.constant 0 : index
    %25 = vector.load %arg6[%c0_17, %c0_18] : memref<8x32xf32, #tpu.memory_space<vmem>>, vector<8x32xf32>
    %26 = vector.broadcast %24 : vector<1x32xf32> to vector<8x32xf32>
    %27 = arith.addf %26, %25 : vector<8x32xf32>
    %c0_19 = arith.constant 0 : index
    %c0_20 = arith.constant 0 : index
    %c0_21 = arith.constant 0 : index
    %28 = vector.load %arg28[%c0_19, %c0_20, %c0_21] : memref<2x9x32xf32, #tpu.memory_space<vmem>>, vector<1x1x32xf32>
    %29 = vector.shape_cast %28 : vector<1x1x32xf32> to vector<1x32xf32>
    %30 = vector.shape_cast %21 : vector<1x32xf32> to vector<1x1x32xf32>
    tpu.vector_store %arg28[%c0_19, %c0_20, %c0_21], %30 {strides = array<i32>} : memref<2x9x32xf32, #tpu.memory_space<vmem>>, vector<1x1x32xf32>,
    %c0_22 = arith.constant 0 : index
    %c1 = arith.constant 1 : index
    %c0_23 = arith.constant 0 : index
    %31 = vector.load %arg28[%c0_22, %c1, %c0_23] : memref<2x9x32xf32, #tpu.memory_space<vmem>>, vector<1x8x32xf32>
    %32 = vector.shape_cast %31 : vector<1x8x32xf32> to vector<8x32xf32>
    %33 = vector.shape_cast %27 : vector<8x32xf32> to vector<1x8x32xf32>
    tpu.vector_store %arg28[%c0_22, %c1, %c0_23], %33 {strides = array<i32>} : memref<2x9x32xf32, #tpu.memory_space<vmem>>, vector<1x8x32xf32>,
    %c0_24 = arith.constant 0 : index
    %c0_25 = arith.constant 0 : index
    %c0_26 = arith.constant 0 : index
    %34 = vector.load %arg28[%c0_24, %c0_25, %c0_26] : memref<2x9x32xf32, #tpu.memory_space<vmem>>, vector<1x9x32xf32>
    %35 = vector.shape_cast %34 : vector<1x9x32xf32> to vector<9x32xf32>
    %c1_27 = arith.constant 1 : index
    %36 = memref.load %arg0[%c1_27] : memref<2xi32, #tpu.memory_space<smem>>
    %c1_28 = arith.constant 1 : index
    %c0_29 = arith.constant 0 : index
    %c0_30 = arith.constant 0 : index
    %37 = vector.load %arg1[%c1_28, %c0_29, %c0_30] : memref<2x1x24xf32, #tpu.memory_space<vmem>>, vector<1x1x24xf32>
    %38 = vector.shape_cast %37 : vector<1x1x24xf32> to vector<1x24xf32>
    %39 = arith.index_cast %36 : i32 to index
    %c0_31 = arith.constant 0 : index
    %c0_32 = arith.constant 0 : index
    %40 = vector.load %arg7[%39, %c0_31, %c0_32] : memref<4x24x64xf32, #tpu.memory_space<vmem>>, vector<1x24x64xf32>
    %41 = vector.shape_cast %40 : vector<1x24x64xf32> to vector<24x64xf32>
    %cst_33 = arith.constant dense<0.000000e+00> : vector<1x64xf32>
    %42 = tpu.matmul %38, %41, %cst_33 {dimension_numbers = #tpu.dot_dimension_numbers<[1], [0], [0], [1], [0, 0, 1, 1], [], []>} : vector<1x24xf32>, vector<24x64xf32>, vector<1x64xf32> -> vector<1x64xf32>
    %43 = arith.index_cast %36 : i32 to index
    %c0_34 = arith.constant 0 : index
    %c0_35 = arith.constant 0 : index
    %44 = vector.load %arg8[%43, %c0_34, %c0_35] : memref<4x1x64xf32, #tpu.memory_space<vmem>>, vector<1x1x64xf32>
    %45 = vector.shape_cast %44 : vector<1x1x64xf32> to vector<1x64xf32>
    %46 = arith.addf %42, %45 : vector<1x64xf32>
    %cst_36 = arith.constant 0.000000e+00 : f32
    %47 = vector.broadcast %cst_36 : f32 to vector<1x64xf32>
    %48 = arith.maximumf %46, %47 : vector<1x64xf32>
    %49 = arith.index_cast %36 : i32 to index
    %c0_37 = arith.constant 0 : index
    %c0_38 = arith.constant 0 : index
    %50 = vector.load %arg9[%49, %c0_37, %c0_38] : memref<4x64x32xf32, #tpu.memory_space<vmem>>, vector<1x64x32xf32>
    %51 = vector.shape_cast %50 : vector<1x64x32xf32> to vector<64x32xf32>
    %cst_39 = arith.constant dense<0.000000e+00> : vector<1x32xf32>
    %52 = tpu.matmul %48, %51, %cst_39 {dimension_numbers = #tpu.dot_dimension_numbers<[1], [0], [0], [1], [0, 0, 1, 1], [], []>} : vector<1x64xf32>, vector<64x32xf32>, vector<1x32xf32> -> vector<1x32xf32>
    %53 = arith.index_cast %36 : i32 to index
    %c0_40 = arith.constant 0 : index
    %c0_41 = arith.constant 0 : index
    %54 = vector.load %arg10[%53, %c0_40, %c0_41] : memref<4x1x32xf32, #tpu.memory_space<vmem>>, vector<1x1x32xf32>
    %55 = vector.shape_cast %54 : vector<1x1x32xf32> to vector<1x32xf32>
    %56 = arith.addf %52, %55 : vector<1x32xf32>
    %57 = arith.index_cast %36 : i32 to index
    %c0_42 = arith.constant 0 : index
    %c0_43 = arith.constant 0 : index
    %58 = vector.load %arg5[%57, %c0_42, %c0_43] : memref<4x1x32xf32, #tpu.memory_space<vmem>>, vector<1x1x32xf32>
    %59 = vector.shape_cast %58 : vector<1x1x32xf32> to vector<1x32xf32>
    %c0_44 = arith.constant 0 : index
    %c0_45 = arith.constant 0 : index
    %60 = vector.load %arg6[%c0_44, %c0_45] : memref<8x32xf32, #tpu.memory_space<vmem>>, vector<8x32xf32>
    %61 = vector.broadcast %59 : vector<1x32xf32> to vector<8x32xf32>
    %62 = arith.addf %61, %60 : vector<8x32xf32>
    %c1_46 = arith.constant 1 : index
    %c0_47 = arith.constant 0 : index
    %c0_48 = arith.constant 0 : index
    %63 = vector.load %arg28[%c1_46, %c0_47, %c0_48] : memref<2x9x32xf32, #tpu.memory_space<vmem>>, vector<1x1x32xf32>
    %64 = vector.shape_cast %63 : vector<1x1x32xf32> to vector<1x32xf32>
    %65 = vector.shape_cast %56 : vector<1x32xf32> to vector<1x1x32xf32>
    tpu.vector_store %arg28[%c1_46, %c0_47, %c0_48], %65 {strides = array<i32>} : memref<2x9x32xf32, #tpu.memory_space<vmem>>, vector<1x1x32xf32>,
    %c1_49 = arith.constant 1 : index
    %c1_50 = arith.constant 1 : index
    %c0_51 = arith.constant 0 : index
    %66 = vector.load %arg28[%c1_49, %c1_50, %c0_51] : memref<2x9x32xf32, #tpu.memory_space<vmem>>, vector<1x8x32xf32>
    %67 = vector.shape_cast %66 : vector<1x8x32xf32> to vector<8x32xf32>
    %68 = vector.shape_cast %62 : vector<8x32xf32> to vector<1x8x32xf32>
    tpu.vector_store %arg28[%c1_49, %c1_50, %c0_51], %68 {strides = array<i32>} : memref<2x9x32xf32, #tpu.memory_space<vmem>>, vector<1x8x32xf32>,
    %c1_52 = arith.constant 1 : index
    %c0_53 = arith.constant 0 : index
    %c0_54 = arith.constant 0 : index
    %69 = vector.load %arg28[%c1_52, %c0_53, %c0_54] : memref<2x9x32xf32, #tpu.memory_space<vmem>>, vector<1x9x32xf32>
    %70 = vector.shape_cast %69 : vector<1x9x32xf32> to vector<9x32xf32>
    %c0_55 = arith.constant 0 : index
    %c0_56 = arith.constant 0 : index
    %c0_57 = arith.constant 0 : index
    %c0_58 = arith.constant 0 : index
    %71 = vector.load %arg17[%c0_55, %c0_56, %c0_57, %c0_58] : memref<2x2x32x16xf32, #tpu.memory_space<vmem>>, vector<1x1x32x16xf32>
    %72 = vector.shape_cast %71 : vector<1x1x32x16xf32> to vector<32x16xf32>
    %cst_59 = arith.constant dense<0.000000e+00> : vector<32x16xf32>
    %73 = tpu.matmul %0, %72, %cst_59 {dimension_numbers = #tpu.dot_dimension_numbers<[1], [0], [0], [1], [0, 0, 1, 1], [], []>} : vector<32x32xf32>, vector<32x16xf32>, vector<32x16xf32> -> vector<32x16xf32>
    %c0_60 = arith.constant 0 : index
    %c0_61 = arith.constant 0 : index
    %c0_62 = arith.constant 0 : index
    %c0_63 = arith.constant 0 : index
    %74 = vector.load %arg18[%c0_60, %c0_61, %c0_62, %c0_63] : memref<2x2x1x16xf32, #tpu.memory_space<vmem>>, vector<1x1x1x16xf32>
    %75 = vector.shape_cast %74 : vector<1x1x1x16xf32> to vector<1x16xf32>
    %76 = vector.broadcast %75 : vector<1x16xf32> to vector<32x16xf32>
    %77 = arith.addf %73, %76 : vector<32x16xf32>
    %c0_64 = arith.constant 0 : index
    %c0_65 = arith.constant 0 : index
    %c0_66 = arith.constant 0 : index
    %c0_67 = arith.constant 0 : index
    %78 = vector.load %arg19[%c0_64, %c0_65, %c0_66, %c0_67] : memref<2x2x32x16xf32, #tpu.memory_space<vmem>>, vector<1x1x32x16xf32>
    %79 = vector.shape_cast %78 : vector<1x1x32x16xf32> to vector<32x16xf32>
    %cst_68 = arith.constant dense<0.000000e+00> : vector<32x16xf32>
    %80 = tpu.matmul %0, %79, %cst_68 {dimension_numbers = #tpu.dot_dimension_numbers<[1], [0], [0], [1], [0, 0, 1, 1], [], []>} : vector<32x32xf32>, vector<32x16xf32>, vector<32x16xf32> -> vector<32x16xf32>
    %c0_69 = arith.constant 0 : index
    %c0_70 = arith.constant 0 : index
    %c0_71 = arith.constant 0 : index
    %c0_72 = arith.constant 0 : index
    %81 = vector.load %arg20[%c0_69, %c0_70, %c0_71, %c0_72] : memref<2x2x1x16xf32, #tpu.memory_space<vmem>>, vector<1x1x1x16xf32>
    %82 = vector.shape_cast %81 : vector<1x1x1x16xf32> to vector<1x16xf32>
    %83 = vector.broadcast %82 : vector<1x16xf32> to vector<32x16xf32>
    %84 = arith.addf %80, %83 : vector<32x16xf32>
    %c0_73 = arith.constant 0 : index
    %c1_74 = arith.constant 1 : index
    %c0_75 = arith.constant 0 : index
    %c0_76 = arith.constant 0 : index
    %85 = vector.load %arg17[%c0_73, %c1_74, %c0_75, %c0_76] : memref<2x2x32x16xf32, #tpu.memory_space<vmem>>, vector<1x1x32x16xf32>
    %86 = vector.shape_cast %85 : vector<1x1x32x16xf32> to vector<32x16xf32>
    %cst_77 = arith.constant dense<0.000000e+00> : vector<32x16xf32>
    %87 = tpu.matmul %0, %86, %cst_77 {dimension_numbers = #tpu.dot_dimension_numbers<[1], [0], [0], [1], [0, 0, 1, 1], [], []>} : vector<32x32xf32>, vector<32x16xf32>, vector<32x16xf32> -> vector<32x16xf32>
    %c0_78 = arith.constant 0 : index
    %c1_79 = arith.constant 1 : index
    %c0_80 = arith.constant 0 : index
    %c0_81 = arith.constant 0 : index
    %88 = vector.load %arg18[%c0_78, %c1_79, %c0_80, %c0_81] : memref<2x2x1x16xf32, #tpu.memory_space<vmem>>, vector<1x1x1x16xf32>
    %89 = vector.shape_cast %88 : vector<1x1x1x16xf32> to vector<1x16xf32>
    %90 = vector.broadcast %89 : vector<1x16xf32> to vector<32x16xf32>
    %91 = arith.addf %87, %90 : vector<32x16xf32>
    %c0_82 = arith.constant 0 : index
    %c1_83 = arith.constant 1 : index
    %c0_84 = arith.constant 0 : index
    %c0_85 = arith.constant 0 : index
    %92 = vector.load %arg19[%c0_82, %c1_83, %c0_84, %c0_85] : memref<2x2x32x16xf32, #tpu.memory_space<vmem>>, vector<1x1x32x16xf32>
    %93 = vector.shape_cast %92 : vector<1x1x32x16xf32> to vector<32x16xf32>
    %cst_86 = arith.constant dense<0.000000e+00> : vector<32x16xf32>
    %94 = tpu.matmul %0, %93, %cst_86 {dimension_numbers = #tpu.dot_dimension_numbers<[1], [0], [0], [1], [0, 0, 1, 1], [], []>} : vector<32x32xf32>, vector<32x16xf32>, vector<32x16xf32> -> vector<32x16xf32>
    %c0_87 = arith.constant 0 : index
    %c1_88 = arith.constant 1 : index
    %c0_89 = arith.constant 0 : index
    %c0_90 = arith.constant 0 : index
    %95 = vector.load %arg20[%c0_87, %c1_88, %c0_89, %c0_90] : memref<2x2x1x16xf32, #tpu.memory_space<vmem>>, vector<1x1x1x16xf32>
    %96 = vector.shape_cast %95 : vector<1x1x1x16xf32> to vector<1x16xf32>
    %97 = vector.broadcast %96 : vector<1x16xf32> to vector<32x16xf32>
    %98 = arith.addf %94, %97 : vector<32x16xf32>
    %cst_91 = arith.constant dense<0.000000e+00> : vector<9xf32>
    %99 = vector.multi_reduction <add>, %35, %cst_91 [1] : vector<9x32xf32> to vector<9xf32>
    %100 = vector.shape_cast %99 : vector<9xf32> to vector<9x1xf32>
    %cst_92 = arith.constant 3.200000e+01 : f32
    %101 = vector.broadcast %cst_92 : f32 to vector<9x1xf32>
    %102 = arith.divf %100, %101 : vector<9x1xf32>
    %103 = vector.broadcast %102 : vector<9x1xf32> to vector<9x32xf32>
    %104 = arith.subf %35, %103 : vector<9x32xf32>
    %105 = arith.mulf %104, %104 : vector<9x32xf32>
    %cst_93 = arith.constant dense<0.000000e+00> : vector<9xf32>
    %106 = vector.multi_reduction <add>, %105, %cst_93 [1] : vector<9x32xf32> to vector<9xf32>
    %107 = vector.shape_cast %106 : vector<9xf32> to vector<9x1xf32>
    %cst_94 = arith.constant 3.200000e+01 : f32
    %108 = vector.broadcast %cst_94 : f32 to vector<9x1xf32>
    %109 = arith.divf %107, %108 : vector<9x1xf32>
    %cst_95 = arith.constant 9.99999974E-6 : f32
    %110 = vector.broadcast %cst_95 : f32 to vector<9x1xf32>
    %111 = arith.addf %109, %110 : vector<9x1xf32>
    %112 = math.rsqrt %111 : vector<9x1xf32>
    %113 = vector.broadcast %112 : vector<9x1xf32> to vector<9x32xf32>
    %114 = arith.mulf %104, %113 : vector<9x32xf32>
    %c0_96 = arith.constant 0 : index
    %c0_97 = arith.constant 0 : index
    %c0_98 = arith.constant 0 : index
    %c0_99 = arith.constant 0 : index
    %115 = vector.load %arg15[%c0_96, %c0_97, %c0_98, %c0_99] : memref<2x2x32x16xf32, #tpu.memory_space<vmem>>, vector<1x1x32x16xf32>
    %116 = vector.shape_cast %115 : vector<1x1x32x16xf32> to vector<32x16xf32>
    %cst_100 = arith.constant dense<0.000000e+00> : vector<9x16xf32>
    %117 = tpu.matmul %114, %116, %cst_100 {dimension_numbers = #tpu.dot_dimension_numbers<[1], [0], [0], [1], [0, 0, 1, 1], [], []>} : vector<9x32xf32>, vector<32x16xf32>, vector<9x16xf32> -> vector<9x16xf32>
    %c0_101 = arith.constant 0 : index
    %c0_102 = arith.constant 0 : index
    %c0_103 = arith.constant 0 : index
    %c0_104 = arith.constant 0 : index
    %118 = vector.load %arg16[%c0_101, %c0_102, %c0_103, %c0_104] : memref<2x2x1x16xf32, #tpu.memory_space<vmem>>, vector<1x1x1x16xf32>
    %119 = vector.shape_cast %118 : vector<1x1x1x16xf32> to vector<1x16xf32>
    %120 = vector.broadcast %119 : vector<1x16xf32> to vector<9x16xf32>
    %121 = arith.addf %117, %120 : vector<9x16xf32>
    %cst_105 = arith.constant 2.500000e-01 : f32
    %122 = vector.broadcast %cst_105 : f32 to vector<9x16xf32>
    %123 = arith.mulf %121, %122 : vector<9x16xf32>
    %124 = vector.extract_strided_slice %77 {offsets = [0, 0], sizes = [16, 16], strides = [1, 1]} : vector<32x16xf32> to vector<16x16xf32>
    %125 = vector.extract_strided_slice %84 {offsets = [0, 0], sizes = [16, 16], strides = [1, 1]} : vector<32x16xf32> to vector<16x16xf32>
    %cst_106 = arith.constant dense<0.000000e+00> : vector<9x16xf32>
    %126 = tpu.matmul %123, %124, %cst_106 {dimension_numbers = #tpu.dot_dimension_numbers<[1], [1], [0], [0], [0, 0, 1, 0], [], []>} : vector<9x16xf32>, vector<16x16xf32>, vector<9x16xf32> -> vector<9x16xf32>
    %cst_107 = arith.constant dense<0xFF800000> : vector<9xf32>
    %127 = vector.multi_reduction <maximumf>, %126, %cst_107 [1] : vector<9x16xf32> to vector<9xf32>
    %128 = vector.shape_cast %127 : vector<9xf32> to vector<9x1xf32>
    %129 = vector.broadcast %128 : vector<9x1xf32> to vector<9x16xf32>
    %130 = arith.subf %126, %129 : vector<9x16xf32>
    %131 = math.exp %130 : vector<9x16xf32>
    %cst_108 = arith.constant dense<0.000000e+00> : vector<9xf32>
    %132 = vector.multi_reduction <add>, %131, %cst_108 [1] : vector<9x16xf32> to vector<9xf32>
    %133 = vector.shape_cast %132 : vector<9xf32> to vector<9x1xf32>
    %134 = vector.broadcast %133 : vector<9x1xf32> to vector<9x16xf32>
    %135 = arith.divf %131, %134 : vector<9x16xf32>
    %cst_109 = arith.constant dense<0.000000e+00> : vector<9x16xf32>
    %136 = tpu.matmul %135, %125, %cst_109 {dimension_numbers = #tpu.dot_dimension_numbers<[1], [0], [0], [1], [0, 0, 1, 1], [], []>} : vector<9x16xf32>, vector<16x16xf32>, vector<9x16xf32> -> vector<9x16xf32>
    %c0_110 = arith.constant 0 : index
    %c0_111 = arith.constant 0 : index
    %c0_112 = arith.constant 0 : index
    %c0_113 = arith.constant 0 : index
    %137 = vector.load %arg21[%c0_110, %c0_111, %c0_112, %c0_113] : memref<2x2x16x32xf32, #tpu.memory_space<vmem>>, vector<1x1x16x32xf32>
    %138 = vector.shape_cast %137 : vector<1x1x16x32xf32> to vector<16x32xf32>
    %cst_114 = arith.constant dense<0.000000e+00> : vector<9x32xf32>
    %139 = tpu.matmul %136, %138, %cst_114 {dimension_numbers = #tpu.dot_dimension_numbers<[1], [0], [0], [1], [0, 0, 1, 1], [], []>} : vector<9x16xf32>, vector<16x32xf32>, vector<9x32xf32> -> vector<9x32xf32>
    %c0_115 = arith.constant 0 : index
    %c1_116 = arith.constant 1 : index
    %c0_117 = arith.constant 0 : index
    %c0_118 = arith.constant 0 : index
    %140 = vector.load %arg15[%c0_115, %c1_116, %c0_117, %c0_118] : memref<2x2x32x16xf32, #tpu.memory_space<vmem>>, vector<1x1x32x16xf32>
    %141 = vector.shape_cast %140 : vector<1x1x32x16xf32> to vector<32x16xf32>
    %cst_119 = arith.constant dense<0.000000e+00> : vector<9x16xf32>
    %142 = tpu.matmul %114, %141, %cst_119 {dimension_numbers = #tpu.dot_dimension_numbers<[1], [0], [0], [1], [0, 0, 1, 1], [], []>} : vector<9x32xf32>, vector<32x16xf32>, vector<9x16xf32> -> vector<9x16xf32>
    %c0_120 = arith.constant 0 : index
    %c1_121 = arith.constant 1 : index
    %c0_122 = arith.constant 0 : index
    %c0_123 = arith.constant 0 : index
    %143 = vector.load %arg16[%c0_120, %c1_121, %c0_122, %c0_123] : memref<2x2x1x16xf32, #tpu.memory_space<vmem>>, vector<1x1x1x16xf32>
    %144 = vector.shape_cast %143 : vector<1x1x1x16xf32> to vector<1x16xf32>
    %145 = vector.broadcast %144 : vector<1x16xf32> to vector<9x16xf32>
    %146 = arith.addf %142, %145 : vector<9x16xf32>
    %cst_124 = arith.constant 2.500000e-01 : f32
    %147 = vector.broadcast %cst_124 : f32 to vector<9x16xf32>
    %148 = arith.mulf %146, %147 : vector<9x16xf32>
    %149 = vector.extract_strided_slice %91 {offsets = [0, 0], sizes = [16, 16], strides = [1, 1]} : vector<32x16xf32> to vector<16x16xf32>
    %150 = vector.extract_strided_slice %98 {offsets = [0, 0], sizes = [16, 16], strides = [1, 1]} : vector<32x16xf32> to vector<16x16xf32>
    %cst_125 = arith.constant dense<0.000000e+00> : vector<9x16xf32>
    %151 = tpu.matmul %148, %149, %cst_125 {dimension_numbers = #tpu.dot_dimension_numbers<[1], [1], [0], [0], [0, 0, 1, 0], [], []>} : vector<9x16xf32>, vector<16x16xf32>, vector<9x16xf32> -> vector<9x16xf32>
    %cst_126 = arith.constant dense<0xFF800000> : vector<9xf32>
    %152 = vector.multi_reduction <maximumf>, %151, %cst_126 [1] : vector<9x16xf32> to vector<9xf32>
    %153 = vector.shape_cast %152 : vector<9xf32> to vector<9x1xf32>
    %154 = vector.broadcast %153 : vector<9x1xf32> to vector<9x16xf32>
    %155 = arith.subf %151, %154 : vector<9x16xf32>
    %156 = math.exp %155 : vector<9x16xf32>
    %cst_127 = arith.constant dense<0.000000e+00> : vector<9xf32>
    %157 = vector.multi_reduction <add>, %156, %cst_127 [1] : vector<9x16xf32> to vector<9xf32>
    %158 = vector.shape_cast %157 : vector<9xf32> to vector<9x1xf32>
    %159 = vector.broadcast %158 : vector<9x1xf32> to vector<9x16xf32>
    %160 = arith.divf %156, %159 : vector<9x16xf32>
    %cst_128 = arith.constant dense<0.000000e+00> : vector<9x16xf32>
    %161 = tpu.matmul %160, %150, %cst_128 {dimension_numbers = #tpu.dot_dimension_numbers<[1], [0], [0], [1], [0, 0, 1, 1], [], []>} : vector<9x16xf32>, vector<16x16xf32>, vector<9x16xf32> -> vector<9x16xf32>
    %c0_129 = arith.constant 0 : index
    %c1_130 = arith.constant 1 : index
    %c0_131 = arith.constant 0 : index
    %c0_132 = arith.constant 0 : index
    %162 = vector.load %arg21[%c0_129, %c1_130, %c0_131, %c0_132] : memref<2x2x16x32xf32, #tpu.memory_space<vmem>>, vector<1x1x16x32xf32>
    %163 = vector.shape_cast %162 : vector<1x1x16x32xf32> to vector<16x32xf32>
    %cst_133 = arith.constant dense<0.000000e+00> : vector<9x32xf32>
    %164 = tpu.matmul %161, %163, %cst_133 {dimension_numbers = #tpu.dot_dimension_numbers<[1], [0], [0], [1], [0, 0, 1, 1], [], []>} : vector<9x16xf32>, vector<16x32xf32>, vector<9x32xf32> -> vector<9x32xf32>
    %165 = arith.addf %139, %164 : vector<9x32xf32>
    %166 = arith.addf %35, %165 : vector<9x32xf32>
    %c0_134 = arith.constant 0 : index
    %c0_135 = arith.constant 0 : index
    %c0_136 = arith.constant 0 : index
    %167 = vector.load %arg22[%c0_134, %c0_135, %c0_136] : memref<2x1x32xf32, #tpu.memory_space<vmem>>, vector<1x1x32xf32>
    %168 = vector.shape_cast %167 : vector<1x1x32xf32> to vector<1x32xf32>
    %169 = vector.broadcast %168 : vector<1x32xf32> to vector<9x32xf32>
    %170 = arith.addf %166, %169 : vector<9x32xf32>
    %cst_137 = arith.constant dense<0.000000e+00> : vector<9xf32>
    %171 = vector.multi_reduction <add>, %170, %cst_137 [1] : vector<9x32xf32> to vector<9xf32>
    %172 = vector.shape_cast %171 : vector<9xf32> to vector<9x1xf32>
    %cst_138 = arith.constant 3.200000e+01 : f32
    %173 = vector.broadcast %cst_138 : f32 to vector<9x1xf32>
    %174 = arith.divf %172, %173 : vector<9x1xf32>
    %175 = vector.broadcast %174 : vector<9x1xf32> to vector<9x32xf32>
    %176 = arith.subf %170, %175 : vector<9x32xf32>
    %177 = arith.mulf %176, %176 : vector<9x32xf32>
    %cst_139 = arith.constant dense<0.000000e+00> : vector<9xf32>
    %178 = vector.multi_reduction <add>, %177, %cst_139 [1] : vector<9x32xf32> to vector<9xf32>
    %179 = vector.shape_cast %178 : vector<9xf32> to vector<9x1xf32>
    %cst_140 = arith.constant 3.200000e+01 : f32
    %180 = vector.broadcast %cst_140 : f32 to vector<9x1xf32>
    %181 = arith.divf %179, %180 : vector<9x1xf32>
    %cst_141 = arith.constant 9.99999974E-6 : f32
    %182 = vector.broadcast %cst_141 : f32 to vector<9x1xf32>
    %183 = arith.addf %181, %182 : vector<9x1xf32>
    %184 = math.rsqrt %183 : vector<9x1xf32>
    %185 = vector.broadcast %184 : vector<9x1xf32> to vector<9x32xf32>
    %186 = arith.mulf %176, %185 : vector<9x32xf32>
    %c0_142 = arith.constant 0 : index
    %c0_143 = arith.constant 0 : index
    %c0_144 = arith.constant 0 : index
    %187 = vector.load %arg23[%c0_142, %c0_143, %c0_144] : memref<2x32x128xf32, #tpu.memory_space<vmem>>, vector<1x32x128xf32>
    %188 = vector.shape_cast %187 : vector<1x32x128xf32> to vector<32x128xf32>
    %cst_145 = arith.constant dense<0.000000e+00> : vector<9x128xf32>
    %189 = tpu.matmul %186, %188, %cst_145 {dimension_numbers = #tpu.dot_dimension_numbers<[1], [0], [0], [1], [0, 0, 1, 1], [], []>} : vector<9x32xf32>, vector<32x128xf32>, vector<9x128xf32> -> vector<9x128xf32>
    %c0_146 = arith.constant 0 : index
    %c0_147 = arith.constant 0 : index
    %c0_148 = arith.constant 0 : index
    %190 = vector.load %arg24[%c0_146, %c0_147, %c0_148] : memref<2x1x128xf32, #tpu.memory_space<vmem>>, vector<1x1x128xf32>
    %191 = vector.shape_cast %190 : vector<1x1x128xf32> to vector<1x128xf32>
    %192 = vector.broadcast %191 : vector<1x128xf32> to vector<9x128xf32>
    %193 = arith.addf %189, %192 : vector<9x128xf32>
    %cst_149 = arith.constant 5.000000e-01 : f32
    %194 = vector.broadcast %cst_149 : f32 to vector<9x128xf32>
    %195 = arith.mulf %194, %193 : vector<9x128xf32>
    %cst_150 = arith.constant 4.471500e-02 : f32
    %196 = vector.broadcast %cst_150 : f32 to vector<9x128xf32>
    %197 = arith.mulf %196, %193 : vector<9x128xf32>
    %198 = arith.mulf %197, %193 : vector<9x128xf32>
    %199 = arith.mulf %198, %193 : vector<9x128xf32>
    %200 = arith.addf %193, %199 : vector<9x128xf32>
    %cst_151 = arith.constant 0.797884583 : f32
    %201 = vector.broadcast %cst_151 : f32 to vector<9x128xf32>
    %202 = arith.mulf %201, %200 : vector<9x128xf32>
    %203 = math.tanh %202 : vector<9x128xf32>
    %cst_152 = arith.constant 1.000000e+00 : f32
    %204 = vector.broadcast %cst_152 : f32 to vector<9x128xf32>
    %205 = arith.addf %204, %203 : vector<9x128xf32>
    %206 = arith.mulf %195, %205 : vector<9x128xf32>
    %c0_153 = arith.constant 0 : index
    %c0_154 = arith.constant 0 : index
    %c0_155 = arith.constant 0 : index
    %207 = vector.load %arg25[%c0_153, %c0_154, %c0_155] : memref<2x128x32xf32, #tpu.memory_space<vmem>>, vector<1x128x32xf32>
    %208 = vector.shape_cast %207 : vector<1x128x32xf32> to vector<128x32xf32>
    %cst_156 = arith.constant dense<0.000000e+00> : vector<9x32xf32>
    %209 = tpu.matmul %206, %208, %cst_156 {dimension_numbers = #tpu.dot_dimension_numbers<[1], [0], [0], [1], [0, 0, 1, 1], [], []>} : vector<9x128xf32>, vector<128x32xf32>, vector<9x32xf32> -> vector<9x32xf32>
    %210 = arith.addf %170, %209 : vector<9x32xf32>
    %c0_157 = arith.constant 0 : index
    %c0_158 = arith.constant 0 : index
    %c0_159 = arith.constant 0 : index
    %211 = vector.load %arg26[%c0_157, %c0_158, %c0_159] : memref<2x1x32xf32, #tpu.memory_space<vmem>>, vector<1x1x32xf32>
    %212 = vector.shape_cast %211 : vector<1x1x32xf32> to vector<1x32xf32>
    %213 = vector.broadcast %212 : vector<1x32xf32> to vector<9x32xf32>
    %214 = arith.addf %210, %213 : vector<9x32xf32>
    %cst_160 = arith.constant dense<0.000000e+00> : vector<9xf32>
    %215 = vector.multi_reduction <add>, %70, %cst_160 [1] : vector<9x32xf32> to vector<9xf32>
    %216 = vector.shape_cast %215 : vector<9xf32> to vector<9x1xf32>
    %cst_161 = arith.constant 3.200000e+01 : f32
    %217 = vector.broadcast %cst_161 : f32 to vector<9x1xf32>
    %218 = arith.divf %216, %217 : vector<9x1xf32>
    %219 = vector.broadcast %218 : vector<9x1xf32> to vector<9x32xf32>
    %220 = arith.subf %70, %219 : vector<9x32xf32>
    %221 = arith.mulf %220, %220 : vector<9x32xf32>
    %cst_162 = arith.constant dense<0.000000e+00> : vector<9xf32>
    %222 = vector.multi_reduction <add>, %221, %cst_162 [1] : vector<9x32xf32> to vector<9xf32>
    %223 = vector.shape_cast %222 : vector<9xf32> to vector<9x1xf32>
    %cst_163 = arith.constant 3.200000e+01 : f32
    %224 = vector.broadcast %cst_163 : f32 to vector<9x1xf32>
    %225 = arith.divf %223, %224 : vector<9x1xf32>
    %cst_164 = arith.constant 9.99999974E-6 : f32
    %226 = vector.broadcast %cst_164 : f32 to vector<9x1xf32>
    %227 = arith.addf %225, %226 : vector<9x1xf32>
    %228 = math.rsqrt %227 : vector<9x1xf32>
    %229 = vector.broadcast %228 : vector<9x1xf32> to vector<9x32xf32>
    %230 = arith.mulf %220, %229 : vector<9x32xf32>
    %c0_165 = arith.constant 0 : index
    %c0_166 = arith.constant 0 : index
    %c0_167 = arith.constant 0 : index
    %c0_168 = arith.constant 0 : index
    %231 = vector.load %arg15[%c0_165, %c0_166, %c0_167, %c0_168] : memref<2x2x32x16xf32, #tpu.memory_space<vmem>>, vector<1x1x32x16xf32>
    %232 = vector.shape_cast %231 : vector<1x1x32x16xf32> to vector<32x16xf32>
    %cst_169 = arith.constant dense<0.000000e+00> : vector<9x16xf32>
    %233 = tpu.matmul %230, %232, %cst_169 {dimension_numbers = #tpu.dot_dimension_numbers<[1], [0], [0], [1], [0, 0, 1, 1], [], []>} : vector<9x32xf32>, vector<32x16xf32>, vector<9x16xf32> -> vector<9x16xf32>
    %c0_170 = arith.constant 0 : index
    %c0_171 = arith.constant 0 : index
    %c0_172 = arith.constant 0 : index
    %c0_173 = arith.constant 0 : index
    %234 = vector.load %arg16[%c0_170, %c0_171, %c0_172, %c0_173] : memref<2x2x1x16xf32, #tpu.memory_space<vmem>>, vector<1x1x1x16xf32>
    %235 = vector.shape_cast %234 : vector<1x1x1x16xf32> to vector<1x16xf32>
    %236 = vector.broadcast %235 : vector<1x16xf32> to vector<9x16xf32>
    %237 = arith.addf %233, %236 : vector<9x16xf32>
    %cst_174 = arith.constant 2.500000e-01 : f32
    %238 = vector.broadcast %cst_174 : f32 to vector<9x16xf32>
    %239 = arith.mulf %237, %238 : vector<9x16xf32>
    %240 = vector.extract_strided_slice %77 {offsets = [16, 0], sizes = [16, 16], strides = [1, 1]} : vector<32x16xf32> to vector<16x16xf32>
    %241 = vector.extract_strided_slice %84 {offsets = [16, 0], sizes = [16, 16], strides = [1, 1]} : vector<32x16xf32> to vector<16x16xf32>
    %cst_175 = arith.constant dense<0.000000e+00> : vector<9x16xf32>
    %242 = tpu.matmul %239, %240, %cst_175 {dimension_numbers = #tpu.dot_dimension_numbers<[1], [1], [0], [0], [0, 0, 1, 0], [], []>} : vector<9x16xf32>, vector<16x16xf32>, vector<9x16xf32> -> vector<9x16xf32>
    %cst_176 = arith.constant dense<0xFF800000> : vector<9xf32>
    %243 = vector.multi_reduction <maximumf>, %242, %cst_176 [1] : vector<9x16xf32> to vector<9xf32>
    %244 = vector.shape_cast %243 : vector<9xf32> to vector<9x1xf32>
    %245 = vector.broadcast %244 : vector<9x1xf32> to vector<9x16xf32>
    %246 = arith.subf %242, %245 : vector<9x16xf32>
    %247 = math.exp %246 : vector<9x16xf32>
    %cst_177 = arith.constant dense<0.000000e+00> : vector<9xf32>
    %248 = vector.multi_reduction <add>, %247, %cst_177 [1] : vector<9x16xf32> to vector<9xf32>
    %249 = vector.shape_cast %248 : vector<9xf32> to vector<9x1xf32>
    %250 = vector.broadcast %249 : vector<9x1xf32> to vector<9x16xf32>
    %251 = arith.divf %247, %250 : vector<9x16xf32>
    %cst_178 = arith.constant dense<0.000000e+00> : vector<9x16xf32>
    %252 = tpu.matmul %251, %241, %cst_178 {dimension_numbers = #tpu.dot_dimension_numbers<[1], [0], [0], [1], [0, 0, 1, 1], [], []>} : vector<9x16xf32>, vector<16x16xf32>, vector<9x16xf32> -> vector<9x16xf32>
    %c0_179 = arith.constant 0 : index
    %c0_180 = arith.constant 0 : index
    %c0_181 = arith.constant 0 : index
    %c0_182 = arith.constant 0 : index
    %253 = vector.load %arg21[%c0_179, %c0_180, %c0_181, %c0_182] : memref<2x2x16x32xf32, #tpu.memory_space<vmem>>, vector<1x1x16x32xf32>
    %254 = vector.shape_cast %253 : vector<1x1x16x32xf32> to vector<16x32xf32>
    %cst_183 = arith.constant dense<0.000000e+00> : vector<9x32xf32>
    %255 = tpu.matmul %252, %254, %cst_183 {dimension_numbers = #tpu.dot_dimension_numbers<[1], [0], [0], [1], [0, 0, 1, 1], [], []>} : vector<9x16xf32>, vector<16x32xf32>, vector<9x32xf32> -> vector<9x32xf32>
    %c0_184 = arith.constant 0 : index
    %c1_185 = arith.constant 1 : index
    %c0_186 = arith.constant 0 : index
    %c0_187 = arith.constant 0 : index
    %256 = vector.load %arg15[%c0_184, %c1_185, %c0_186, %c0_187] : memref<2x2x32x16xf32, #tpu.memory_space<vmem>>, vector<1x1x32x16xf32>
    %257 = vector.shape_cast %256 : vector<1x1x32x16xf32> to vector<32x16xf32>
    %cst_188 = arith.constant dense<0.000000e+00> : vector<9x16xf32>
    %258 = tpu.matmul %230, %257, %cst_188 {dimension_numbers = #tpu.dot_dimension_numbers<[1], [0], [0], [1], [0, 0, 1, 1], [], []>} : vector<9x32xf32>, vector<32x16xf32>, vector<9x16xf32> -> vector<9x16xf32>
    %c0_189 = arith.constant 0 : index
    %c1_190 = arith.constant 1 : index
    %c0_191 = arith.constant 0 : index
    %c0_192 = arith.constant 0 : index
    %259 = vector.load %arg16[%c0_189, %c1_190, %c0_191, %c0_192] : memref<2x2x1x16xf32, #tpu.memory_space<vmem>>, vector<1x1x1x16xf32>
    %260 = vector.shape_cast %259 : vector<1x1x1x16xf32> to vector<1x16xf32>
    %261 = vector.broadcast %260 : vector<1x16xf32> to vector<9x16xf32>
    %262 = arith.addf %258, %261 : vector<9x16xf32>
    %cst_193 = arith.constant 2.500000e-01 : f32
    %263 = vector.broadcast %cst_193 : f32 to vector<9x16xf32>
    %264 = arith.mulf %262, %263 : vector<9x16xf32>
    %265 = vector.extract_strided_slice %91 {offsets = [16, 0], sizes = [16, 16], strides = [1, 1]} : vector<32x16xf32> to vector<16x16xf32>
    %266 = vector.extract_strided_slice %98 {offsets = [16, 0], sizes = [16, 16], strides = [1, 1]} : vector<32x16xf32> to vector<16x16xf32>
    %cst_194 = arith.constant dense<0.000000e+00> : vector<9x16xf32>
    %267 = tpu.matmul %264, %265, %cst_194 {dimension_numbers = #tpu.dot_dimension_numbers<[1], [1], [0], [0], [0, 0, 1, 0], [], []>} : vector<9x16xf32>, vector<16x16xf32>, vector<9x16xf32> -> vector<9x16xf32>
    %cst_195 = arith.constant dense<0xFF800000> : vector<9xf32>
    %268 = vector.multi_reduction <maximumf>, %267, %cst_195 [1] : vector<9x16xf32> to vector<9xf32>
    %269 = vector.shape_cast %268 : vector<9xf32> to vector<9x1xf32>
    %270 = vector.broadcast %269 : vector<9x1xf32> to vector<9x16xf32>
    %271 = arith.subf %267, %270 : vector<9x16xf32>
    %272 = math.exp %271 : vector<9x16xf32>
    %cst_196 = arith.constant dense<0.000000e+00> : vector<9xf32>
    %273 = vector.multi_reduction <add>, %272, %cst_196 [1] : vector<9x16xf32> to vector<9xf32>
    %274 = vector.shape_cast %273 : vector<9xf32> to vector<9x1xf32>
    %275 = vector.broadcast %274 : vector<9x1xf32> to vector<9x16xf32>
    %276 = arith.divf %272, %275 : vector<9x16xf32>
    %cst_197 = arith.constant dense<0.000000e+00> : vector<9x16xf32>
    %277 = tpu.matmul %276, %266, %cst_197 {dimension_numbers = #tpu.dot_dimension_numbers<[1], [0], [0], [1], [0, 0, 1, 1], [], []>} : vector<9x16xf32>, vector<16x16xf32>, vector<9x16xf32> -> vector<9x16xf32>
    %c0_198 = arith.constant 0 : index
    %c1_199 = arith.constant 1 : index
    %c0_200 = arith.constant 0 : index
    %c0_201 = arith.constant 0 : index
    %278 = vector.load %arg21[%c0_198, %c1_199, %c0_200, %c0_201] : memref<2x2x16x32xf32, #tpu.memory_space<vmem>>, vector<1x1x16x32xf32>
    %279 = vector.shape_cast %278 : vector<1x1x16x32xf32> to vector<16x32xf32>
    %cst_202 = arith.constant dense<0.000000e+00> : vector<9x32xf32>
    %280 = tpu.matmul %277, %279, %cst_202 {dimension_numbers = #tpu.dot_dimension_numbers<[1], [0], [0], [1], [0, 0, 1, 1], [], []>} : vector<9x16xf32>, vector<16x32xf32>, vector<9x32xf32> -> vector<9x32xf32>
    %281 = arith.addf %255, %280 : vector<9x32xf32>
    %282 = arith.addf %70, %281 : vector<9x32xf32>
    %c0_203 = arith.constant 0 : index
    %c0_204 = arith.constant 0 : index
    %c0_205 = arith.constant 0 : index
    %283 = vector.load %arg22[%c0_203, %c0_204, %c0_205] : memref<2x1x32xf32, #tpu.memory_space<vmem>>, vector<1x1x32xf32>
    %284 = vector.shape_cast %283 : vector<1x1x32xf32> to vector<1x32xf32>
    %285 = vector.broadcast %284 : vector<1x32xf32> to vector<9x32xf32>
    %286 = arith.addf %282, %285 : vector<9x32xf32>
    %cst_206 = arith.constant dense<0.000000e+00> : vector<9xf32>
    %287 = vector.multi_reduction <add>, %286, %cst_206 [1] : vector<9x32xf32> to vector<9xf32>
    %288 = vector.shape_cast %287 : vector<9xf32> to vector<9x1xf32>
    %cst_207 = arith.constant 3.200000e+01 : f32
    %289 = vector.broadcast %cst_207 : f32 to vector<9x1xf32>
    %290 = arith.divf %288, %289 : vector<9x1xf32>
    %291 = vector.broadcast %290 : vector<9x1xf32> to vector<9x32xf32>
    %292 = arith.subf %286, %291 : vector<9x32xf32>
    %293 = arith.mulf %292, %292 : vector<9x32xf32>
    %cst_208 = arith.constant dense<0.000000e+00> : vector<9xf32>
    %294 = vector.multi_reduction <add>, %293, %cst_208 [1] : vector<9x32xf32> to vector<9xf32>
    %295 = vector.shape_cast %294 : vector<9xf32> to vector<9x1xf32>
    %cst_209 = arith.constant 3.200000e+01 : f32
    %296 = vector.broadcast %cst_209 : f32 to vector<9x1xf32>
    %297 = arith.divf %295, %296 : vector<9x1xf32>
    %cst_210 = arith.constant 9.99999974E-6 : f32
    %298 = vector.broadcast %cst_210 : f32 to vector<9x1xf32>
    %299 = arith.addf %297, %298 : vector<9x1xf32>
    %300 = math.rsqrt %299 : vector<9x1xf32>
    %301 = vector.broadcast %300 : vector<9x1xf32> to vector<9x32xf32>
    %302 = arith.mulf %292, %301 : vector<9x32xf32>
    %c0_211 = arith.constant 0 : index
    %c0_212 = arith.constant 0 : index
    %c0_213 = arith.constant 0 : index
    %303 = vector.load %arg23[%c0_211, %c0_212, %c0_213] : memref<2x32x128xf32, #tpu.memory_space<vmem>>, vector<1x32x128xf32>
    %304 = vector.shape_cast %303 : vector<1x32x128xf32> to vector<32x128xf32>
    %cst_214 = arith.constant dense<0.000000e+00> : vector<9x128xf32>
    %305 = tpu.matmul %302, %304, %cst_214 {dimension_numbers = #tpu.dot_dimension_numbers<[1], [0], [0], [1], [0, 0, 1, 1], [], []>} : vector<9x32xf32>, vector<32x128xf32>, vector<9x128xf32> -> vector<9x128xf32>
    %c0_215 = arith.constant 0 : index
    %c0_216 = arith.constant 0 : index
    %c0_217 = arith.constant 0 : index
    %306 = vector.load %arg24[%c0_215, %c0_216, %c0_217] : memref<2x1x128xf32, #tpu.memory_space<vmem>>, vector<1x1x128xf32>
    %307 = vector.shape_cast %306 : vector<1x1x128xf32> to vector<1x128xf32>
    %308 = vector.broadcast %307 : vector<1x128xf32> to vector<9x128xf32>
    %309 = arith.addf %305, %308 : vector<9x128xf32>
    %cst_218 = arith.constant 5.000000e-01 : f32
    %310 = vector.broadcast %cst_218 : f32 to vector<9x128xf32>
    %311 = arith.mulf %310, %309 : vector<9x128xf32>
    %cst_219 = arith.constant 4.471500e-02 : f32
    %312 = vector.broadcast %cst_219 : f32 to vector<9x128xf32>
    %313 = arith.mulf %312, %309 : vector<9x128xf32>
    %314 = arith.mulf %313, %309 : vector<9x128xf32>
    %315 = arith.mulf %314, %309 : vector<9x128xf32>
    %316 = arith.addf %309, %315 : vector<9x128xf32>
    %cst_220 = arith.constant 0.797884583 : f32
    %317 = vector.broadcast %cst_220 : f32 to vector<9x128xf32>
    %318 = arith.mulf %317, %316 : vector<9x128xf32>
    %319 = math.tanh %318 : vector<9x128xf32>
    %cst_221 = arith.constant 1.000000e+00 : f32
    %320 = vector.broadcast %cst_221 : f32 to vector<9x128xf32>
    %321 = arith.addf %320, %319 : vector<9x128xf32>
    %322 = arith.mulf %311, %321 : vector<9x128xf32>
    %c0_222 = arith.constant 0 : index
    %c0_223 = arith.constant 0 : index
    %c0_224 = arith.constant 0 : index
    %323 = vector.load %arg25[%c0_222, %c0_223, %c0_224] : memref<2x128x32xf32, #tpu.memory_space<vmem>>, vector<1x128x32xf32>
    %324 = vector.shape_cast %323 : vector<1x128x32xf32> to vector<128x32xf32>
    %cst_225 = arith.constant dense<0.000000e+00> : vector<9x32xf32>
    %325 = tpu.matmul %322, %324, %cst_225 {dimension_numbers = #tpu.dot_dimension_numbers<[1], [0], [0], [1], [0, 0, 1, 1], [], []>} : vector<9x128xf32>, vector<128x32xf32>, vector<9x32xf32> -> vector<9x32xf32>
    %326 = arith.addf %286, %325 : vector<9x32xf32>
    %c0_226 = arith.constant 0 : index
    %c0_227 = arith.constant 0 : index
    %c0_228 = arith.constant 0 : index
    %327 = vector.load %arg26[%c0_226, %c0_227, %c0_228] : memref<2x1x32xf32, #tpu.memory_space<vmem>>, vector<1x1x32xf32>
    %328 = vector.shape_cast %327 : vector<1x1x32xf32> to vector<1x32xf32>
    %329 = vector.broadcast %328 : vector<1x32xf32> to vector<9x32xf32>
    %330 = arith.addf %326, %329 : vector<9x32xf32>
    %cst_229 = arith.constant dense<0.000000e+00> : vector<9xf32>
    %331 = vector.multi_reduction <add>, %214, %cst_229 [1] : vector<9x32xf32> to vector<9xf32>
    %332 = vector.shape_cast %331 : vector<9xf32> to vector<9x1xf32>
    %cst_230 = arith.constant 3.200000e+01 : f32
    %333 = vector.broadcast %cst_230 : f32 to vector<9x1xf32>
    %334 = arith.divf %332, %333 : vector<9x1xf32>
    %335 = vector.broadcast %334 : vector<9x1xf32> to vector<9x32xf32>
    %336 = arith.subf %214, %335 : vector<9x32xf32>
    %337 = arith.mulf %336, %336 : vector<9x32xf32>
    %cst_231 = arith.constant dense<0.000000e+00> : vector<9xf32>
    %338 = vector.multi_reduction <add>, %337, %cst_231 [1] : vector<9x32xf32> to vector<9xf32>
    %339 = vector.shape_cast %338 : vector<9xf32> to vector<9x1xf32>
    %cst_232 = arith.constant 3.200000e+01 : f32
    %340 = vector.broadcast %cst_232 : f32 to vector<9x1xf32>
    %341 = arith.divf %339, %340 : vector<9x1xf32>
    %cst_233 = arith.constant 9.99999974E-6 : f32
    %342 = vector.broadcast %cst_233 : f32 to vector<9x1xf32>
    %343 = arith.addf %341, %342 : vector<9x1xf32>
    %344 = math.rsqrt %343 : vector<9x1xf32>
    %345 = vector.broadcast %344 : vector<9x1xf32> to vector<9x32xf32>
    %346 = arith.mulf %336, %345 : vector<9x32xf32>
    %c1_234 = arith.constant 1 : index
    %c0_235 = arith.constant 0 : index
    %c0_236 = arith.constant 0 : index
    %c0_237 = arith.constant 0 : index
    %347 = vector.load %arg15[%c1_234, %c0_235, %c0_236, %c0_237] : memref<2x2x32x16xf32, #tpu.memory_space<vmem>>, vector<1x1x32x16xf32>
    %348 = vector.shape_cast %347 : vector<1x1x32x16xf32> to vector<32x16xf32>
    %cst_238 = arith.constant dense<0.000000e+00> : vector<9x16xf32>
    %349 = tpu.matmul %346, %348, %cst_238 {dimension_numbers = #tpu.dot_dimension_numbers<[1], [0], [0], [1], [0, 0, 1, 1], [], []>} : vector<9x32xf32>, vector<32x16xf32>, vector<9x16xf32> -> vector<9x16xf32>
    %c1_239 = arith.constant 1 : index
    %c0_240 = arith.constant 0 : index
    %c0_241 = arith.constant 0 : index
    %c0_242 = arith.constant 0 : index
    %350 = vector.load %arg16[%c1_239, %c0_240, %c0_241, %c0_242] : memref<2x2x1x16xf32, #tpu.memory_space<vmem>>, vector<1x1x1x16xf32>
    %351 = vector.shape_cast %350 : vector<1x1x1x16xf32> to vector<1x16xf32>
    %352 = vector.broadcast %351 : vector<1x16xf32> to vector<9x16xf32>
    %353 = arith.addf %349, %352 : vector<9x16xf32>
    %cst_243 = arith.constant 2.500000e-01 : f32
    %354 = vector.broadcast %cst_243 : f32 to vector<9x16xf32>
    %355 = arith.mulf %353, %354 : vector<9x16xf32>
    %c1_244 = arith.constant 1 : index
    %c0_245 = arith.constant 0 : index
    %c0_246 = arith.constant 0 : index
    %c0_247 = arith.constant 0 : index
    %356 = vector.load %arg17[%c1_244, %c0_245, %c0_246, %c0_247] : memref<2x2x32x16xf32, #tpu.memory_space<vmem>>, vector<1x1x32x16xf32>
    %357 = vector.shape_cast %356 : vector<1x1x32x16xf32> to vector<32x16xf32>
    %cst_248 = arith.constant dense<0.000000e+00> : vector<9x16xf32>
    %358 = tpu.matmul %346, %357, %cst_248 {dimension_numbers = #tpu.dot_dimension_numbers<[1], [0], [0], [1], [0, 0, 1, 1], [], []>} : vector<9x32xf32>, vector<32x16xf32>, vector<9x16xf32> -> vector<9x16xf32>
    %c1_249 = arith.constant 1 : index
    %c0_250 = arith.constant 0 : index
    %c0_251 = arith.constant 0 : index
    %c0_252 = arith.constant 0 : index
    %359 = vector.load %arg18[%c1_249, %c0_250, %c0_251, %c0_252] : memref<2x2x1x16xf32, #tpu.memory_space<vmem>>, vector<1x1x1x16xf32>
    %360 = vector.shape_cast %359 : vector<1x1x1x16xf32> to vector<1x16xf32>
    %361 = vector.broadcast %360 : vector<1x16xf32> to vector<9x16xf32>
    %362 = arith.addf %358, %361 : vector<9x16xf32>
    %c1_253 = arith.constant 1 : index
    %c0_254 = arith.constant 0 : index
    %c0_255 = arith.constant 0 : index
    %c0_256 = arith.constant 0 : index
    %363 = vector.load %arg19[%c1_253, %c0_254, %c0_255, %c0_256] : memref<2x2x32x16xf32, #tpu.memory_space<vmem>>, vector<1x1x32x16xf32>
    %364 = vector.shape_cast %363 : vector<1x1x32x16xf32> to vector<32x16xf32>
    %cst_257 = arith.constant dense<0.000000e+00> : vector<9x16xf32>
    %365 = tpu.matmul %346, %364, %cst_257 {dimension_numbers = #tpu.dot_dimension_numbers<[1], [0], [0], [1], [0, 0, 1, 1], [], []>} : vector<9x32xf32>, vector<32x16xf32>, vector<9x16xf32> -> vector<9x16xf32>
    %c1_258 = arith.constant 1 : index
    %c0_259 = arith.constant 0 : index
    %c0_260 = arith.constant 0 : index
    %c0_261 = arith.constant 0 : index
    %366 = vector.load %arg20[%c1_258, %c0_259, %c0_260, %c0_261] : memref<2x2x1x16xf32, #tpu.memory_space<vmem>>, vector<1x1x1x16xf32>
    %367 = vector.shape_cast %366 : vector<1x1x1x16xf32> to vector<1x16xf32>
    %368 = vector.broadcast %367 : vector<1x16xf32> to vector<9x16xf32>
    %369 = arith.addf %365, %368 : vector<9x16xf32>
    %cst_262 = arith.constant dense<0.000000e+00> : vector<9x9xf32>
    %370 = tpu.matmul %355, %362, %cst_262 {dimension_numbers = #tpu.dot_dimension_numbers<[1], [1], [0], [0], [0, 0, 1, 0], [], []>} : vector<9x16xf32>, vector<9x16xf32>, vector<9x9xf32> -> vector<9x9xf32>
    %cst_263 = arith.constant dense<0xFF800000> : vector<9xf32>
    %371 = vector.multi_reduction <maximumf>, %370, %cst_263 [1] : vector<9x9xf32> to vector<9xf32>
    %372 = vector.shape_cast %371 : vector<9xf32> to vector<9x1xf32>
    %373 = vector.broadcast %372 : vector<9x1xf32> to vector<9x9xf32>
    %374 = arith.subf %370, %373 : vector<9x9xf32>
    %375 = math.exp %374 : vector<9x9xf32>
    %cst_264 = arith.constant dense<0.000000e+00> : vector<9xf32>
    %376 = vector.multi_reduction <add>, %375, %cst_264 [1] : vector<9x9xf32> to vector<9xf32>
    %377 = vector.shape_cast %376 : vector<9xf32> to vector<9x1xf32>
    %378 = vector.broadcast %377 : vector<9x1xf32> to vector<9x9xf32>
    %379 = arith.divf %375, %378 : vector<9x9xf32>
    %cst_265 = arith.constant dense<0.000000e+00> : vector<9x16xf32>
    %380 = tpu.matmul %379, %369, %cst_265 {dimension_numbers = #tpu.dot_dimension_numbers<[1], [0], [0], [1], [0, 0, 1, 1], [], []>} : vector<9x9xf32>, vector<9x16xf32>, vector<9x16xf32> -> vector<9x16xf32>
    %c1_266 = arith.constant 1 : index
    %c0_267 = arith.constant 0 : index
    %c0_268 = arith.constant 0 : index
    %c0_269 = arith.constant 0 : index
    %381 = vector.load %arg21[%c1_266, %c0_267, %c0_268, %c0_269] : memref<2x2x16x32xf32, #tpu.memory_space<vmem>>, vector<1x1x16x32xf32>
    %382 = vector.shape_cast %381 : vector<1x1x16x32xf32> to vector<16x32xf32>
    %cst_270 = arith.constant dense<0.000000e+00> : vector<9x32xf32>
    %383 = tpu.matmul %380, %382, %cst_270 {dimension_numbers = #tpu.dot_dimension_numbers<[1], [0], [0], [1], [0, 0, 1, 1], [], []>} : vector<9x16xf32>, vector<16x32xf32>, vector<9x32xf32> -> vector<9x32xf32>
    %c1_271 = arith.constant 1 : index
    %c1_272 = arith.constant 1 : index
    %c0_273 = arith.constant 0 : index
    %c0_274 = arith.constant 0 : index
    %384 = vector.load %arg15[%c1_271, %c1_272, %c0_273, %c0_274] : memref<2x2x32x16xf32, #tpu.memory_space<vmem>>, vector<1x1x32x16xf32>
    %385 = vector.shape_cast %384 : vector<1x1x32x16xf32> to vector<32x16xf32>
    %cst_275 = arith.constant dense<0.000000e+00> : vector<9x16xf32>
    %386 = tpu.matmul %346, %385, %cst_275 {dimension_numbers = #tpu.dot_dimension_numbers<[1], [0], [0], [1], [0, 0, 1, 1], [], []>} : vector<9x32xf32>, vector<32x16xf32>, vector<9x16xf32> -> vector<9x16xf32>
    %c1_276 = arith.constant 1 : index
    %c1_277 = arith.constant 1 : index
    %c0_278 = arith.constant 0 : index
    %c0_279 = arith.constant 0 : index
    %387 = vector.load %arg16[%c1_276, %c1_277, %c0_278, %c0_279] : memref<2x2x1x16xf32, #tpu.memory_space<vmem>>, vector<1x1x1x16xf32>
    %388 = vector.shape_cast %387 : vector<1x1x1x16xf32> to vector<1x16xf32>
    %389 = vector.broadcast %388 : vector<1x16xf32> to vector<9x16xf32>
    %390 = arith.addf %386, %389 : vector<9x16xf32>
    %cst_280 = arith.constant 2.500000e-01 : f32
    %391 = vector.broadcast %cst_280 : f32 to vector<9x16xf32>
    %392 = arith.mulf %390, %391 : vector<9x16xf32>
    %c1_281 = arith.constant 1 : index
    %c1_282 = arith.constant 1 : index
    %c0_283 = arith.constant 0 : index
    %c0_284 = arith.constant 0 : index
    %393 = vector.load %arg17[%c1_281, %c1_282, %c0_283, %c0_284] : memref<2x2x32x16xf32, #tpu.memory_space<vmem>>, vector<1x1x32x16xf32>
    %394 = vector.shape_cast %393 : vector<1x1x32x16xf32> to vector<32x16xf32>
    %cst_285 = arith.constant dense<0.000000e+00> : vector<9x16xf32>
    %395 = tpu.matmul %346, %394, %cst_285 {dimension_numbers = #tpu.dot_dimension_numbers<[1], [0], [0], [1], [0, 0, 1, 1], [], []>} : vector<9x32xf32>, vector<32x16xf32>, vector<9x16xf32> -> vector<9x16xf32>
    %c1_286 = arith.constant 1 : index
    %c1_287 = arith.constant 1 : index
    %c0_288 = arith.constant 0 : index
    %c0_289 = arith.constant 0 : index
    %396 = vector.load %arg18[%c1_286, %c1_287, %c0_288, %c0_289] : memref<2x2x1x16xf32, #tpu.memory_space<vmem>>, vector<1x1x1x16xf32>
    %397 = vector.shape_cast %396 : vector<1x1x1x16xf32> to vector<1x16xf32>
    %398 = vector.broadcast %397 : vector<1x16xf32> to vector<9x16xf32>
    %399 = arith.addf %395, %398 : vector<9x16xf32>
    %c1_290 = arith.constant 1 : index
    %c1_291 = arith.constant 1 : index
    %c0_292 = arith.constant 0 : index
    %c0_293 = arith.constant 0 : index
    %400 = vector.load %arg19[%c1_290, %c1_291, %c0_292, %c0_293] : memref<2x2x32x16xf32, #tpu.memory_space<vmem>>, vector<1x1x32x16xf32>
    %401 = vector.shape_cast %400 : vector<1x1x32x16xf32> to vector<32x16xf32>
    %cst_294 = arith.constant dense<0.000000e+00> : vector<9x16xf32>
    %402 = tpu.matmul %346, %401, %cst_294 {dimension_numbers = #tpu.dot_dimension_numbers<[1], [0], [0], [1], [0, 0, 1, 1], [], []>} : vector<9x32xf32>, vector<32x16xf32>, vector<9x16xf32> -> vector<9x16xf32>
    %c1_295 = arith.constant 1 : index
    %c1_296 = arith.constant 1 : index
    %c0_297 = arith.constant 0 : index
    %c0_298 = arith.constant 0 : index
    %403 = vector.load %arg20[%c1_295, %c1_296, %c0_297, %c0_298] : memref<2x2x1x16xf32, #tpu.memory_space<vmem>>, vector<1x1x1x16xf32>
    %404 = vector.shape_cast %403 : vector<1x1x1x16xf32> to vector<1x16xf32>
    %405 = vector.broadcast %404 : vector<1x16xf32> to vector<9x16xf32>
    %406 = arith.addf %402, %405 : vector<9x16xf32>
    %cst_299 = arith.constant dense<0.000000e+00> : vector<9x9xf32>
    %407 = tpu.matmul %392, %399, %cst_299 {dimension_numbers = #tpu.dot_dimension_numbers<[1], [1], [0], [0], [0, 0, 1, 0], [], []>} : vector<9x16xf32>, vector<9x16xf32>, vector<9x9xf32> -> vector<9x9xf32>
    %cst_300 = arith.constant dense<0xFF800000> : vector<9xf32>
    %408 = vector.multi_reduction <maximumf>, %407, %cst_300 [1] : vector<9x9xf32> to vector<9xf32>
    %409 = vector.shape_cast %408 : vector<9xf32> to vector<9x1xf32>
    %410 = vector.broadcast %409 : vector<9x1xf32> to vector<9x9xf32>
    %411 = arith.subf %407, %410 : vector<9x9xf32>
    %412 = math.exp %411 : vector<9x9xf32>
    %cst_301 = arith.constant dense<0.000000e+00> : vector<9xf32>
    %413 = vector.multi_reduction <add>, %412, %cst_301 [1] : vector<9x9xf32> to vector<9xf32>
    %414 = vector.shape_cast %413 : vector<9xf32> to vector<9x1xf32>
    %415 = vector.broadcast %414 : vector<9x1xf32> to vector<9x9xf32>
    %416 = arith.divf %412, %415 : vector<9x9xf32>
    %cst_302 = arith.constant dense<0.000000e+00> : vector<9x16xf32>
    %417 = tpu.matmul %416, %406, %cst_302 {dimension_numbers = #tpu.dot_dimension_numbers<[1], [0], [0], [1], [0, 0, 1, 1], [], []>} : vector<9x9xf32>, vector<9x16xf32>, vector<9x16xf32> -> vector<9x16xf32>
    %c1_303 = arith.constant 1 : index
    %c1_304 = arith.constant 1 : index
    %c0_305 = arith.constant 0 : index
    %c0_306 = arith.constant 0 : index
    %418 = vector.load %arg21[%c1_303, %c1_304, %c0_305, %c0_306] : memref<2x2x16x32xf32, #tpu.memory_space<vmem>>, vector<1x1x16x32xf32>
    %419 = vector.shape_cast %418 : vector<1x1x16x32xf32> to vector<16x32xf32>
    %cst_307 = arith.constant dense<0.000000e+00> : vector<9x32xf32>
    %420 = tpu.matmul %417, %419, %cst_307 {dimension_numbers = #tpu.dot_dimension_numbers<[1], [0], [0], [1], [0, 0, 1, 1], [], []>} : vector<9x16xf32>, vector<16x32xf32>, vector<9x32xf32> -> vector<9x32xf32>
    %421 = arith.addf %383, %420 : vector<9x32xf32>
    %422 = arith.addf %214, %421 : vector<9x32xf32>
    %c1_308 = arith.constant 1 : index
    %c0_309 = arith.constant 0 : index
    %c0_310 = arith.constant 0 : index
    %423 = vector.load %arg22[%c1_308, %c0_309, %c0_310] : memref<2x1x32xf32, #tpu.memory_space<vmem>>, vector<1x1x32xf32>
    %424 = vector.shape_cast %423 : vector<1x1x32xf32> to vector<1x32xf32>
    %425 = vector.broadcast %424 : vector<1x32xf32> to vector<9x32xf32>
    %426 = arith.addf %422, %425 : vector<9x32xf32>
    %cst_311 = arith.constant dense<0.000000e+00> : vector<9xf32>
    %427 = vector.multi_reduction <add>, %426, %cst_311 [1] : vector<9x32xf32> to vector<9xf32>
    %428 = vector.shape_cast %427 : vector<9xf32> to vector<9x1xf32>
    %cst_312 = arith.constant 3.200000e+01 : f32
    %429 = vector.broadcast %cst_312 : f32 to vector<9x1xf32>
    %430 = arith.divf %428, %429 : vector<9x1xf32>
    %431 = vector.broadcast %430 : vector<9x1xf32> to vector<9x32xf32>
    %432 = arith.subf %426, %431 : vector<9x32xf32>
    %433 = arith.mulf %432, %432 : vector<9x32xf32>
    %cst_313 = arith.constant dense<0.000000e+00> : vector<9xf32>
    %434 = vector.multi_reduction <add>, %433, %cst_313 [1] : vector<9x32xf32> to vector<9xf32>
    %435 = vector.shape_cast %434 : vector<9xf32> to vector<9x1xf32>
    %cst_314 = arith.constant 3.200000e+01 : f32
    %436 = vector.broadcast %cst_314 : f32 to vector<9x1xf32>
    %437 = arith.divf %435, %436 : vector<9x1xf32>
    %cst_315 = arith.constant 9.99999974E-6 : f32
    %438 = vector.broadcast %cst_315 : f32 to vector<9x1xf32>
    %439 = arith.addf %437, %438 : vector<9x1xf32>
    %440 = math.rsqrt %439 : vector<9x1xf32>
    %441 = vector.broadcast %440 : vector<9x1xf32> to vector<9x32xf32>
    %442 = arith.mulf %432, %441 : vector<9x32xf32>
    %c1_316 = arith.constant 1 : index
    %c0_317 = arith.constant 0 : index
    %c0_318 = arith.constant 0 : index
    %443 = vector.load %arg23[%c1_316, %c0_317, %c0_318] : memref<2x32x128xf32, #tpu.memory_space<vmem>>, vector<1x32x128xf32>
    %444 = vector.shape_cast %443 : vector<1x32x128xf32> to vector<32x128xf32>
    %cst_319 = arith.constant dense<0.000000e+00> : vector<9x128xf32>
    %445 = tpu.matmul %442, %444, %cst_319 {dimension_numbers = #tpu.dot_dimension_numbers<[1], [0], [0], [1], [0, 0, 1, 1], [], []>} : vector<9x32xf32>, vector<32x128xf32>, vector<9x128xf32> -> vector<9x128xf32>
    %c1_320 = arith.constant 1 : index
    %c0_321 = arith.constant 0 : index
    %c0_322 = arith.constant 0 : index
    %446 = vector.load %arg24[%c1_320, %c0_321, %c0_322] : memref<2x1x128xf32, #tpu.memory_space<vmem>>, vector<1x1x128xf32>
    %447 = vector.shape_cast %446 : vector<1x1x128xf32> to vector<1x128xf32>
    %448 = vector.broadcast %447 : vector<1x128xf32> to vector<9x128xf32>
    %449 = arith.addf %445, %448 : vector<9x128xf32>
    %cst_323 = arith.constant 5.000000e-01 : f32
    %450 = vector.broadcast %cst_323 : f32 to vector<9x128xf32>
    %451 = arith.mulf %450, %449 : vector<9x128xf32>
    %cst_324 = arith.constant 4.471500e-02 : f32
    %452 = vector.broadcast %cst_324 : f32 to vector<9x128xf32>
    %453 = arith.mulf %452, %449 : vector<9x128xf32>
    %454 = arith.mulf %453, %449 : vector<9x128xf32>
    %455 = arith.mulf %454, %449 : vector<9x128xf32>
    %456 = arith.addf %449, %455 : vector<9x128xf32>
    %cst_325 = arith.constant 0.797884583 : f32
    %457 = vector.broadcast %cst_325 : f32 to vector<9x128xf32>
    %458 = arith.mulf %457, %456 : vector<9x128xf32>
    %459 = math.tanh %458 : vector<9x128xf32>
    %cst_326 = arith.constant 1.000000e+00 : f32
    %460 = vector.broadcast %cst_326 : f32 to vector<9x128xf32>
    %461 = arith.addf %460, %459 : vector<9x128xf32>
    %462 = arith.mulf %451, %461 : vector<9x128xf32>
    %c1_327 = arith.constant 1 : index
    %c0_328 = arith.constant 0 : index
    %c0_329 = arith.constant 0 : index
    %463 = vector.load %arg25[%c1_327, %c0_328, %c0_329] : memref<2x128x32xf32, #tpu.memory_space<vmem>>, vector<1x128x32xf32>
    %464 = vector.shape_cast %463 : vector<1x128x32xf32> to vector<128x32xf32>
    %cst_330 = arith.constant dense<0.000000e+00> : vector<9x32xf32>
    %465 = tpu.matmul %462, %464, %cst_330 {dimension_numbers = #tpu.dot_dimension_numbers<[1], [0], [0], [1], [0, 0, 1, 1], [], []>} : vector<9x128xf32>, vector<128x32xf32>, vector<9x32xf32> -> vector<9x32xf32>
    %466 = arith.addf %426, %465 : vector<9x32xf32>
    %c1_331 = arith.constant 1 : index
    %c0_332 = arith.constant 0 : index
    %c0_333 = arith.constant 0 : index
    %467 = vector.load %arg26[%c1_331, %c0_332, %c0_333] : memref<2x1x32xf32, #tpu.memory_space<vmem>>, vector<1x1x32xf32>
    %468 = vector.shape_cast %467 : vector<1x1x32xf32> to vector<1x32xf32>
    %469 = vector.broadcast %468 : vector<1x32xf32> to vector<9x32xf32>
    %470 = arith.addf %466, %469 : vector<9x32xf32>
    %cst_334 = arith.constant dense<0.000000e+00> : vector<9xf32>
    %471 = vector.multi_reduction <add>, %330, %cst_334 [1] : vector<9x32xf32> to vector<9xf32>
    %472 = vector.shape_cast %471 : vector<9xf32> to vector<9x1xf32>
    %cst_335 = arith.constant 3.200000e+01 : f32
    %473 = vector.broadcast %cst_335 : f32 to vector<9x1xf32>
    %474 = arith.divf %472, %473 : vector<9x1xf32>
    %475 = vector.broadcast %474 : vector<9x1xf32> to vector<9x32xf32>
    %476 = arith.subf %330, %475 : vector<9x32xf32>
    %477 = arith.mulf %476, %476 : vector<9x32xf32>
    %cst_336 = arith.constant dense<0.000000e+00> : vector<9xf32>
    %478 = vector.multi_reduction <add>, %477, %cst_336 [1] : vector<9x32xf32> to vector<9xf32>
    %479 = vector.shape_cast %478 : vector<9xf32> to vector<9x1xf32>
    %cst_337 = arith.constant 3.200000e+01 : f32
    %480 = vector.broadcast %cst_337 : f32 to vector<9x1xf32>
    %481 = arith.divf %479, %480 : vector<9x1xf32>
    %cst_338 = arith.constant 9.99999974E-6 : f32
    %482 = vector.broadcast %cst_338 : f32 to vector<9x1xf32>
    %483 = arith.addf %481, %482 : vector<9x1xf32>
    %484 = math.rsqrt %483 : vector<9x1xf32>
    %485 = vector.broadcast %484 : vector<9x1xf32> to vector<9x32xf32>
    %486 = arith.mulf %476, %485 : vector<9x32xf32>
    %c1_339 = arith.constant 1 : index
    %c0_340 = arith.constant 0 : index
    %c0_341 = arith.constant 0 : index
    %c0_342 = arith.constant 0 : index
    %487 = vector.load %arg15[%c1_339, %c0_340, %c0_341, %c0_342] : memref<2x2x32x16xf32, #tpu.memory_space<vmem>>, vector<1x1x32x16xf32>
    %488 = vector.shape_cast %487 : vector<1x1x32x16xf32> to vector<32x16xf32>
    %cst_343 = arith.constant dense<0.000000e+00> : vector<9x16xf32>
    %489 = tpu.matmul %486, %488, %cst_343 {dimension_numbers = #tpu.dot_dimension_numbers<[1], [0], [0], [1], [0, 0, 1, 1], [], []>} : vector<9x32xf32>, vector<32x16xf32>, vector<9x16xf32> -> vector<9x16xf32>
    %c1_344 = arith.constant 1 : index
    %c0_345 = arith.constant 0 : index
    %c0_346 = arith.constant 0 : index
    %c0_347 = arith.constant 0 : index
    %490 = vector.load %arg16[%c1_344, %c0_345, %c0_346, %c0_347] : memref<2x2x1x16xf32, #tpu.memory_space<vmem>>, vector<1x1x1x16xf32>
    %491 = vector.shape_cast %490 : vector<1x1x1x16xf32> to vector<1x16xf32>
    %492 = vector.broadcast %491 : vector<1x16xf32> to vector<9x16xf32>
    %493 = arith.addf %489, %492 : vector<9x16xf32>
    %cst_348 = arith.constant 2.500000e-01 : f32
    %494 = vector.broadcast %cst_348 : f32 to vector<9x16xf32>
    %495 = arith.mulf %493, %494 : vector<9x16xf32>
    %c1_349 = arith.constant 1 : index
    %c0_350 = arith.constant 0 : index
    %c0_351 = arith.constant 0 : index
    %c0_352 = arith.constant 0 : index
    %496 = vector.load %arg17[%c1_349, %c0_350, %c0_351, %c0_352] : memref<2x2x32x16xf32, #tpu.memory_space<vmem>>, vector<1x1x32x16xf32>
    %497 = vector.shape_cast %496 : vector<1x1x32x16xf32> to vector<32x16xf32>
    %cst_353 = arith.constant dense<0.000000e+00> : vector<9x16xf32>
    %498 = tpu.matmul %486, %497, %cst_353 {dimension_numbers = #tpu.dot_dimension_numbers<[1], [0], [0], [1], [0, 0, 1, 1], [], []>} : vector<9x32xf32>, vector<32x16xf32>, vector<9x16xf32> -> vector<9x16xf32>
    %c1_354 = arith.constant 1 : index
    %c0_355 = arith.constant 0 : index
    %c0_356 = arith.constant 0 : index
    %c0_357 = arith.constant 0 : index
    %499 = vector.load %arg18[%c1_354, %c0_355, %c0_356, %c0_357] : memref<2x2x1x16xf32, #tpu.memory_space<vmem>>, vector<1x1x1x16xf32>
    %500 = vector.shape_cast %499 : vector<1x1x1x16xf32> to vector<1x16xf32>
    %501 = vector.broadcast %500 : vector<1x16xf32> to vector<9x16xf32>
    %502 = arith.addf %498, %501 : vector<9x16xf32>
    %c1_358 = arith.constant 1 : index
    %c0_359 = arith.constant 0 : index
    %c0_360 = arith.constant 0 : index
    %c0_361 = arith.constant 0 : index
    %503 = vector.load %arg19[%c1_358, %c0_359, %c0_360, %c0_361] : memref<2x2x32x16xf32, #tpu.memory_space<vmem>>, vector<1x1x32x16xf32>
    %504 = vector.shape_cast %503 : vector<1x1x32x16xf32> to vector<32x16xf32>
    %cst_362 = arith.constant dense<0.000000e+00> : vector<9x16xf32>
    %505 = tpu.matmul %486, %504, %cst_362 {dimension_numbers = #tpu.dot_dimension_numbers<[1], [0], [0], [1], [0, 0, 1, 1], [], []>} : vector<9x32xf32>, vector<32x16xf32>, vector<9x16xf32> -> vector<9x16xf32>
    %c1_363 = arith.constant 1 : index
    %c0_364 = arith.constant 0 : index
    %c0_365 = arith.constant 0 : index
    %c0_366 = arith.constant 0 : index
    %506 = vector.load %arg20[%c1_363, %c0_364, %c0_365, %c0_366] : memref<2x2x1x16xf32, #tpu.memory_space<vmem>>, vector<1x1x1x16xf32>
    %507 = vector.shape_cast %506 : vector<1x1x1x16xf32> to vector<1x16xf32>
    %508 = vector.broadcast %507 : vector<1x16xf32> to vector<9x16xf32>
    %509 = arith.addf %505, %508 : vector<9x16xf32>
    %cst_367 = arith.constant dense<0.000000e+00> : vector<9x9xf32>
    %510 = tpu.matmul %495, %502, %cst_367 {dimension_numbers = #tpu.dot_dimension_numbers<[1], [1], [0], [0], [0, 0, 1, 0], [], []>} : vector<9x16xf32>, vector<9x16xf32>, vector<9x9xf32> -> vector<9x9xf32>
    %cst_368 = arith.constant dense<0xFF800000> : vector<9xf32>
    %511 = vector.multi_reduction <maximumf>, %510, %cst_368 [1] : vector<9x9xf32> to vector<9xf32>
    %512 = vector.shape_cast %511 : vector<9xf32> to vector<9x1xf32>
    %513 = vector.broadcast %512 : vector<9x1xf32> to vector<9x9xf32>
    %514 = arith.subf %510, %513 : vector<9x9xf32>
    %515 = math.exp %514 : vector<9x9xf32>
    %cst_369 = arith.constant dense<0.000000e+00> : vector<9xf32>
    %516 = vector.multi_reduction <add>, %515, %cst_369 [1] : vector<9x9xf32> to vector<9xf32>
    %517 = vector.shape_cast %516 : vector<9xf32> to vector<9x1xf32>
    %518 = vector.broadcast %517 : vector<9x1xf32> to vector<9x9xf32>
    %519 = arith.divf %515, %518 : vector<9x9xf32>
    %cst_370 = arith.constant dense<0.000000e+00> : vector<9x16xf32>
    %520 = tpu.matmul %519, %509, %cst_370 {dimension_numbers = #tpu.dot_dimension_numbers<[1], [0], [0], [1], [0, 0, 1, 1], [], []>} : vector<9x9xf32>, vector<9x16xf32>, vector<9x16xf32> -> vector<9x16xf32>
    %c1_371 = arith.constant 1 : index
    %c0_372 = arith.constant 0 : index
    %c0_373 = arith.constant 0 : index
    %c0_374 = arith.constant 0 : index
    %521 = vector.load %arg21[%c1_371, %c0_372, %c0_373, %c0_374] : memref<2x2x16x32xf32, #tpu.memory_space<vmem>>, vector<1x1x16x32xf32>
    %522 = vector.shape_cast %521 : vector<1x1x16x32xf32> to vector<16x32xf32>
    %cst_375 = arith.constant dense<0.000000e+00> : vector<9x32xf32>
    %523 = tpu.matmul %520, %522, %cst_375 {dimension_numbers = #tpu.dot_dimension_numbers<[1], [0], [0], [1], [0, 0, 1, 1], [], []>} : vector<9x16xf32>, vector<16x32xf32>, vector<9x32xf32> -> vector<9x32xf32>
    %c1_376 = arith.constant 1 : index
    %c1_377 = arith.constant 1 : index
    %c0_378 = arith.constant 0 : index
    %c0_379 = arith.constant 0 : index
    %524 = vector.load %arg15[%c1_376, %c1_377, %c0_378, %c0_379] : memref<2x2x32x16xf32, #tpu.memory_space<vmem>>, vector<1x1x32x16xf32>
    %525 = vector.shape_cast %524 : vector<1x1x32x16xf32> to vector<32x16xf32>
    %cst_380 = arith.constant dense<0.000000e+00> : vector<9x16xf32>
    %526 = tpu.matmul %486, %525, %cst_380 {dimension_numbers = #tpu.dot_dimension_numbers<[1], [0], [0], [1], [0, 0, 1, 1], [], []>} : vector<9x32xf32>, vector<32x16xf32>, vector<9x16xf32> -> vector<9x16xf32>
    %c1_381 = arith.constant 1 : index
    %c1_382 = arith.constant 1 : index
    %c0_383 = arith.constant 0 : index
    %c0_384 = arith.constant 0 : index
    %527 = vector.load %arg16[%c1_381, %c1_382, %c0_383, %c0_384] : memref<2x2x1x16xf32, #tpu.memory_space<vmem>>, vector<1x1x1x16xf32>
    %528 = vector.shape_cast %527 : vector<1x1x1x16xf32> to vector<1x16xf32>
    %529 = vector.broadcast %528 : vector<1x16xf32> to vector<9x16xf32>
    %530 = arith.addf %526, %529 : vector<9x16xf32>
    %cst_385 = arith.constant 2.500000e-01 : f32
    %531 = vector.broadcast %cst_385 : f32 to vector<9x16xf32>
    %532 = arith.mulf %530, %531 : vector<9x16xf32>
    %c1_386 = arith.constant 1 : index
    %c1_387 = arith.constant 1 : index
    %c0_388 = arith.constant 0 : index
    %c0_389 = arith.constant 0 : index
    %533 = vector.load %arg17[%c1_386, %c1_387, %c0_388, %c0_389] : memref<2x2x32x16xf32, #tpu.memory_space<vmem>>, vector<1x1x32x16xf32>
    %534 = vector.shape_cast %533 : vector<1x1x32x16xf32> to vector<32x16xf32>
    %cst_390 = arith.constant dense<0.000000e+00> : vector<9x16xf32>
    %535 = tpu.matmul %486, %534, %cst_390 {dimension_numbers = #tpu.dot_dimension_numbers<[1], [0], [0], [1], [0, 0, 1, 1], [], []>} : vector<9x32xf32>, vector<32x16xf32>, vector<9x16xf32> -> vector<9x16xf32>
    %c1_391 = arith.constant 1 : index
    %c1_392 = arith.constant 1 : index
    %c0_393 = arith.constant 0 : index
    %c0_394 = arith.constant 0 : index
    %536 = vector.load %arg18[%c1_391, %c1_392, %c0_393, %c0_394] : memref<2x2x1x16xf32, #tpu.memory_space<vmem>>, vector<1x1x1x16xf32>
    %537 = vector.shape_cast %536 : vector<1x1x1x16xf32> to vector<1x16xf32>
    %538 = vector.broadcast %537 : vector<1x16xf32> to vector<9x16xf32>
    %539 = arith.addf %535, %538 : vector<9x16xf32>
    %c1_395 = arith.constant 1 : index
    %c1_396 = arith.constant 1 : index
    %c0_397 = arith.constant 0 : index
    %c0_398 = arith.constant 0 : index
    %540 = vector.load %arg19[%c1_395, %c1_396, %c0_397, %c0_398] : memref<2x2x32x16xf32, #tpu.memory_space<vmem>>, vector<1x1x32x16xf32>
    %541 = vector.shape_cast %540 : vector<1x1x32x16xf32> to vector<32x16xf32>
    %cst_399 = arith.constant dense<0.000000e+00> : vector<9x16xf32>
    %542 = tpu.matmul %486, %541, %cst_399 {dimension_numbers = #tpu.dot_dimension_numbers<[1], [0], [0], [1], [0, 0, 1, 1], [], []>} : vector<9x32xf32>, vector<32x16xf32>, vector<9x16xf32> -> vector<9x16xf32>
    %c1_400 = arith.constant 1 : index
    %c1_401 = arith.constant 1 : index
    %c0_402 = arith.constant 0 : index
    %c0_403 = arith.constant 0 : index
    %543 = vector.load %arg20[%c1_400, %c1_401, %c0_402, %c0_403] : memref<2x2x1x16xf32, #tpu.memory_space<vmem>>, vector<1x1x1x16xf32>
    %544 = vector.shape_cast %543 : vector<1x1x1x16xf32> to vector<1x16xf32>
    %545 = vector.broadcast %544 : vector<1x16xf32> to vector<9x16xf32>
    %546 = arith.addf %542, %545 : vector<9x16xf32>
    %cst_404 = arith.constant dense<0.000000e+00> : vector<9x9xf32>
    %547 = tpu.matmul %532, %539, %cst_404 {dimension_numbers = #tpu.dot_dimension_numbers<[1], [1], [0], [0], [0, 0, 1, 0], [], []>} : vector<9x16xf32>, vector<9x16xf32>, vector<9x9xf32> -> vector<9x9xf32>
    %cst_405 = arith.constant dense<0xFF800000> : vector<9xf32>
    %548 = vector.multi_reduction <maximumf>, %547, %cst_405 [1] : vector<9x9xf32> to vector<9xf32>
    %549 = vector.shape_cast %548 : vector<9xf32> to vector<9x1xf32>
    %550 = vector.broadcast %549 : vector<9x1xf32> to vector<9x9xf32>
    %551 = arith.subf %547, %550 : vector<9x9xf32>
    %552 = math.exp %551 : vector<9x9xf32>
    %cst_406 = arith.constant dense<0.000000e+00> : vector<9xf32>
    %553 = vector.multi_reduction <add>, %552, %cst_406 [1] : vector<9x9xf32> to vector<9xf32>
    %554 = vector.shape_cast %553 : vector<9xf32> to vector<9x1xf32>
    %555 = vector.broadcast %554 : vector<9x1xf32> to vector<9x9xf32>
    %556 = arith.divf %552, %555 : vector<9x9xf32>
    %cst_407 = arith.constant dense<0.000000e+00> : vector<9x16xf32>
    %557 = tpu.matmul %556, %546, %cst_407 {dimension_numbers = #tpu.dot_dimension_numbers<[1], [0], [0], [1], [0, 0, 1, 1], [], []>} : vector<9x9xf32>, vector<9x16xf32>, vector<9x16xf32> -> vector<9x16xf32>
    %c1_408 = arith.constant 1 : index
    %c1_409 = arith.constant 1 : index
    %c0_410 = arith.constant 0 : index
    %c0_411 = arith.constant 0 : index
    %558 = vector.load %arg21[%c1_408, %c1_409, %c0_410, %c0_411] : memref<2x2x16x32xf32, #tpu.memory_space<vmem>>, vector<1x1x16x32xf32>
    %559 = vector.shape_cast %558 : vector<1x1x16x32xf32> to vector<16x32xf32>
    %cst_412 = arith.constant dense<0.000000e+00> : vector<9x32xf32>
    %560 = tpu.matmul %557, %559, %cst_412 {dimension_numbers = #tpu.dot_dimension_numbers<[1], [0], [0], [1], [0, 0, 1, 1], [], []>} : vector<9x16xf32>, vector<16x32xf32>, vector<9x32xf32> -> vector<9x32xf32>
    %561 = arith.addf %523, %560 : vector<9x32xf32>
    %562 = arith.addf %330, %561 : vector<9x32xf32>
    %c1_413 = arith.constant 1 : index
    %c0_414 = arith.constant 0 : index
    %c0_415 = arith.constant 0 : index
    %563 = vector.load %arg22[%c1_413, %c0_414, %c0_415] : memref<2x1x32xf32, #tpu.memory_space<vmem>>, vector<1x1x32xf32>
    %564 = vector.shape_cast %563 : vector<1x1x32xf32> to vector<1x32xf32>
    %565 = vector.broadcast %564 : vector<1x32xf32> to vector<9x32xf32>
    %566 = arith.addf %562, %565 : vector<9x32xf32>
    %cst_416 = arith.constant dense<0.000000e+00> : vector<9xf32>
    %567 = vector.multi_reduction <add>, %566, %cst_416 [1] : vector<9x32xf32> to vector<9xf32>
    %568 = vector.shape_cast %567 : vector<9xf32> to vector<9x1xf32>
    %cst_417 = arith.constant 3.200000e+01 : f32
    %569 = vector.broadcast %cst_417 : f32 to vector<9x1xf32>
    %570 = arith.divf %568, %569 : vector<9x1xf32>
    %571 = vector.broadcast %570 : vector<9x1xf32> to vector<9x32xf32>
    %572 = arith.subf %566, %571 : vector<9x32xf32>
    %573 = arith.mulf %572, %572 : vector<9x32xf32>
    %cst_418 = arith.constant dense<0.000000e+00> : vector<9xf32>
    %574 = vector.multi_reduction <add>, %573, %cst_418 [1] : vector<9x32xf32> to vector<9xf32>
    %575 = vector.shape_cast %574 : vector<9xf32> to vector<9x1xf32>
    %cst_419 = arith.constant 3.200000e+01 : f32
    %576 = vector.broadcast %cst_419 : f32 to vector<9x1xf32>
    %577 = arith.divf %575, %576 : vector<9x1xf32>
    %cst_420 = arith.constant 9.99999974E-6 : f32
    %578 = vector.broadcast %cst_420 : f32 to vector<9x1xf32>
    %579 = arith.addf %577, %578 : vector<9x1xf32>
    %580 = math.rsqrt %579 : vector<9x1xf32>
    %581 = vector.broadcast %580 : vector<9x1xf32> to vector<9x32xf32>
    %582 = arith.mulf %572, %581 : vector<9x32xf32>
    %c1_421 = arith.constant 1 : index
    %c0_422 = arith.constant 0 : index
    %c0_423 = arith.constant 0 : index
    %583 = vector.load %arg23[%c1_421, %c0_422, %c0_423] : memref<2x32x128xf32, #tpu.memory_space<vmem>>, vector<1x32x128xf32>
    %584 = vector.shape_cast %583 : vector<1x32x128xf32> to vector<32x128xf32>
    %cst_424 = arith.constant dense<0.000000e+00> : vector<9x128xf32>
    %585 = tpu.matmul %582, %584, %cst_424 {dimension_numbers = #tpu.dot_dimension_numbers<[1], [0], [0], [1], [0, 0, 1, 1], [], []>} : vector<9x32xf32>, vector<32x128xf32>, vector<9x128xf32> -> vector<9x128xf32>
    %c1_425 = arith.constant 1 : index
    %c0_426 = arith.constant 0 : index
    %c0_427 = arith.constant 0 : index
    %586 = vector.load %arg24[%c1_425, %c0_426, %c0_427] : memref<2x1x128xf32, #tpu.memory_space<vmem>>, vector<1x1x128xf32>
    %587 = vector.shape_cast %586 : vector<1x1x128xf32> to vector<1x128xf32>
    %588 = vector.broadcast %587 : vector<1x128xf32> to vector<9x128xf32>
    %589 = arith.addf %585, %588 : vector<9x128xf32>
    %cst_428 = arith.constant 5.000000e-01 : f32
    %590 = vector.broadcast %cst_428 : f32 to vector<9x128xf32>
    %591 = arith.mulf %590, %589 : vector<9x128xf32>
    %cst_429 = arith.constant 4.471500e-02 : f32
    %592 = vector.broadcast %cst_429 : f32 to vector<9x128xf32>
    %593 = arith.mulf %592, %589 : vector<9x128xf32>
    %594 = arith.mulf %593, %589 : vector<9x128xf32>
    %595 = arith.mulf %594, %589 : vector<9x128xf32>
    %596 = arith.addf %589, %595 : vector<9x128xf32>
    %cst_430 = arith.constant 0.797884583 : f32
    %597 = vector.broadcast %cst_430 : f32 to vector<9x128xf32>
    %598 = arith.mulf %597, %596 : vector<9x128xf32>
    %599 = math.tanh %598 : vector<9x128xf32>
    %cst_431 = arith.constant 1.000000e+00 : f32
    %600 = vector.broadcast %cst_431 : f32 to vector<9x128xf32>
    %601 = arith.addf %600, %599 : vector<9x128xf32>
    %602 = arith.mulf %591, %601 : vector<9x128xf32>
    %c1_432 = arith.constant 1 : index
    %c0_433 = arith.constant 0 : index
    %c0_434 = arith.constant 0 : index
    %603 = vector.load %arg25[%c1_432, %c0_433, %c0_434] : memref<2x128x32xf32, #tpu.memory_space<vmem>>, vector<1x128x32xf32>
    %604 = vector.shape_cast %603 : vector<1x128x32xf32> to vector<128x32xf32>
    %cst_435 = arith.constant dense<0.000000e+00> : vector<9x32xf32>
    %605 = tpu.matmul %602, %604, %cst_435 {dimension_numbers = #tpu.dot_dimension_numbers<[1], [0], [0], [1], [0, 0, 1, 1], [], []>} : vector<9x128xf32>, vector<128x32xf32>, vector<9x32xf32> -> vector<9x32xf32>
    %606 = arith.addf %566, %605 : vector<9x32xf32>
    %c1_436 = arith.constant 1 : index
    %c0_437 = arith.constant 0 : index
    %c0_438 = arith.constant 0 : index
    %607 = vector.load %arg26[%c1_436, %c0_437, %c0_438] : memref<2x1x32xf32, #tpu.memory_space<vmem>>, vector<1x1x32xf32>
    %608 = vector.shape_cast %607 : vector<1x1x32xf32> to vector<1x32xf32>
    %609 = vector.broadcast %608 : vector<1x32xf32> to vector<9x32xf32>
    %610 = arith.addf %606, %609 : vector<9x32xf32>
    %c0_439 = arith.constant 0 : index
    %611 = memref.load %arg0[%c0_439] : memref<2xi32, #tpu.memory_space<smem>>
    %c0_440 = arith.constant 0 : index
    %c0_441 = arith.constant 0 : index
    %c0_442 = arith.constant 0 : index
    %612 = vector.load %arg28[%c0_440, %c0_441, %c0_442] : memref<2x9x32xf32, #tpu.memory_space<vmem>>, vector<1x9x32xf32>
    %613 = vector.shape_cast %612 : vector<1x9x32xf32> to vector<9x32xf32>
    %614 = vector.shape_cast %470 : vector<9x32xf32> to vector<1x9x32xf32>
    tpu.vector_store %arg28[%c0_440, %c0_441, %c0_442], %614 {strides = array<i32>} : memref<2x9x32xf32, #tpu.memory_space<vmem>>, vector<1x9x32xf32>,
    %c0_443 = arith.constant 0 : index
    %c1_444 = arith.constant 1 : index
    %c0_445 = arith.constant 0 : index
    %615 = vector.load %arg28[%c0_443, %c1_444, %c0_445] : memref<2x9x32xf32, #tpu.memory_space<vmem>>, vector<1x8x32xf32>
    %616 = vector.shape_cast %615 : vector<1x8x32xf32> to vector<8x32xf32>
    %cst_446 = arith.constant dense<0.000000e+00> : vector<8xf32>
    %617 = vector.multi_reduction <add>, %616, %cst_446 [1] : vector<8x32xf32> to vector<8xf32>
    %618 = vector.shape_cast %617 : vector<8xf32> to vector<8x1xf32>
    %cst_447 = arith.constant 3.200000e+01 : f32
    %619 = vector.broadcast %cst_447 : f32 to vector<8x1xf32>
    %620 = arith.divf %618, %619 : vector<8x1xf32>
    %621 = vector.broadcast %620 : vector<8x1xf32> to vector<8x32xf32>
    %622 = arith.subf %616, %621 : vector<8x32xf32>
    %623 = arith.mulf %622, %622 : vector<8x32xf32>
    %cst_448 = arith.constant dense<0.000000e+00> : vector<8xf32>
    %624 = vector.multi_reduction <add>, %623, %cst_448 [1] : vector<8x32xf32> to vector<8xf32>
    %625 = vector.shape_cast %624 : vector<8xf32> to vector<8x1xf32>
    %cst_449 = arith.constant 3.200000e+01 : f32
    %626 = vector.broadcast %cst_449 : f32 to vector<8x1xf32>
    %627 = arith.divf %625, %626 : vector<8x1xf32>
    %cst_450 = arith.constant 9.99999974E-6 : f32
    %628 = vector.broadcast %cst_450 : f32 to vector<8x1xf32>
    %629 = arith.addf %627, %628 : vector<8x1xf32>
    %630 = math.rsqrt %629 : vector<8x1xf32>
    %631 = vector.broadcast %630 : vector<8x1xf32> to vector<8x32xf32>
    %632 = arith.mulf %622, %631 : vector<8x32xf32>
    %633 = arith.index_cast %611 : i32 to index
    %c0_451 = arith.constant 0 : index
    %c0_452 = arith.constant 0 : index
    %634 = vector.load %arg11[%633, %c0_451, %c0_452] : memref<4x32x64xf32, #tpu.memory_space<vmem>>, vector<1x32x64xf32>
    %635 = vector.shape_cast %634 : vector<1x32x64xf32> to vector<32x64xf32>
    %cst_453 = arith.constant dense<0.000000e+00> : vector<8x64xf32>
    %636 = tpu.matmul %632, %635, %cst_453 {dimension_numbers = #tpu.dot_dimension_numbers<[1], [0], [0], [1], [0, 0, 1, 1], [], []>} : vector<8x32xf32>, vector<32x64xf32>, vector<8x64xf32> -> vector<8x64xf32>
    %637 = arith.index_cast %611 : i32 to index
    %c0_454 = arith.constant 0 : index
    %c0_455 = arith.constant 0 : index
    %638 = vector.load %arg12[%637, %c0_454, %c0_455] : memref<4x1x64xf32, #tpu.memory_space<vmem>>, vector<1x1x64xf32>
    %639 = vector.shape_cast %638 : vector<1x1x64xf32> to vector<1x64xf32>
    %640 = vector.broadcast %639 : vector<1x64xf32> to vector<8x64xf32>
    %641 = arith.addf %636, %640 : vector<8x64xf32>
    %cst_456 = arith.constant 0.000000e+00 : f32
    %642 = vector.broadcast %cst_456 : f32 to vector<8x64xf32>
    %643 = arith.maximumf %641, %642 : vector<8x64xf32>
    %644 = arith.index_cast %611 : i32 to index
    %c0_457 = arith.constant 0 : index
    %c0_458 = arith.constant 0 : index
    %645 = vector.load %arg13[%644, %c0_457, %c0_458] : memref<4x64x8xf32, #tpu.memory_space<vmem>>, vector<1x64x8xf32>
    %646 = vector.shape_cast %645 : vector<1x64x8xf32> to vector<64x8xf32>
    %cst_459 = arith.constant dense<0.000000e+00> : vector<8x8xf32>
    %647 = tpu.matmul %643, %646, %cst_459 {dimension_numbers = #tpu.dot_dimension_numbers<[1], [0], [0], [1], [0, 0, 1, 1], [], []>} : vector<8x64xf32>, vector<64x8xf32>, vector<8x8xf32> -> vector<8x8xf32>
    %648 = arith.index_cast %611 : i32 to index
    %c0_460 = arith.constant 0 : index
    %c0_461 = arith.constant 0 : index
    %649 = vector.load %arg14[%648, %c0_460, %c0_461] : memref<4x1x8xf32, #tpu.memory_space<vmem>>, vector<1x1x8xf32>
    %650 = vector.shape_cast %649 : vector<1x1x8xf32> to vector<1x8xf32>
    %651 = vector.broadcast %650 : vector<1x8xf32> to vector<8x8xf32>
    %652 = arith.addf %647, %651 : vector<8x8xf32>
    %c0_462 = arith.constant 0 : index
    %c0_463 = arith.constant 0 : index
    %c0_464 = arith.constant 0 : index
    %653 = vector.load %arg3[%c0_462, %c0_463, %c0_464] : memref<2x8x8xf32, #tpu.memory_space<vmem>>, vector<1x8x8xf32>
    %654 = vector.shape_cast %653 : vector<1x8x8xf32> to vector<8x8xf32>
    %655 = arith.subf %652, %654 : vector<8x8xf32>
    %c0_465 = arith.constant 0 : index
    %c0_466 = arith.constant 0 : index
    %c0_467 = arith.constant 0 : index
    %656 = vector.load %arg4[%c0_465, %c0_466, %c0_467] : memref<2x8x8xf32, #tpu.memory_space<vmem>>, vector<1x8x8xf32>
    %657 = vector.shape_cast %656 : vector<1x8x8xf32> to vector<8x8xf32>
    %658 = arith.mulf %655, %655 : vector<8x8xf32>
    %659 = arith.mulf %658, %657 : vector<8x8xf32>
    %660 = vector.shape_cast %659 : vector<8x8xf32> to vector<1x8x8xf32>
    %cst_468 = arith.constant dense<0.000000e+00> : vector<1xf32>
    %661 = vector.multi_reduction <add>, %660, %cst_468 [1, 2] : vector<1x8x8xf32> to vector<1xf32>
    %662 = vector.shape_cast %661 : vector<1xf32> to vector<1x1x1xf32>
    %663 = vector.extract %662[0, 0, 0] : f32 from vector<1x1x1xf32>
    %cst_469 = arith.constant 0.000000e+00 : f32
    %664 = arith.addf %cst_469, %663 : f32
    %665 = vector.shape_cast %657 : vector<8x8xf32> to vector<1x8x8xf32>
    %cst_470 = arith.constant dense<0.000000e+00> : vector<1xf32>
    %666 = vector.multi_reduction <add>, %665, %cst_470 [1, 2] : vector<1x8x8xf32> to vector<1xf32>
    %667 = vector.shape_cast %666 : vector<1xf32> to vector<1x1x1xf32>
    %668 = vector.extract %667[0, 0, 0] : f32 from vector<1x1x1xf32>
    %cst_471 = arith.constant 0.000000e+00 : f32
    %669 = arith.addf %cst_471, %668 : f32
    %c1_472 = arith.constant 1 : index
    %670 = memref.load %arg0[%c1_472] : memref<2xi32, #tpu.memory_space<smem>>
    %c1_473 = arith.constant 1 : index
    %c0_474 = arith.constant 0 : index
    %c0_475 = arith.constant 0 : index
    %671 = vector.load %arg28[%c1_473, %c0_474, %c0_475] : memref<2x9x32xf32, #tpu.memory_space<vmem>>, vector<1x9x32xf32>
    %672 = vector.shape_cast %671 : vector<1x9x32xf32> to vector<9x32xf32>
    %673 = vector.shape_cast %610 : vector<9x32xf32> to vector<1x9x32xf32>
    tpu.vector_store %arg28[%c1_473, %c0_474, %c0_475], %673 {strides = array<i32>} : memref<2x9x32xf32, #tpu.memory_space<vmem>>, vector<1x9x32xf32>,
    %c1_476 = arith.constant 1 : index
    %c1_477 = arith.constant 1 : index
    %c0_478 = arith.constant 0 : index
    %674 = vector.load %arg28[%c1_476, %c1_477, %c0_478] : memref<2x9x32xf32, #tpu.memory_space<vmem>>, vector<1x8x32xf32>
    %675 = vector.shape_cast %674 : vector<1x8x32xf32> to vector<8x32xf32>
    %cst_479 = arith.constant dense<0.000000e+00> : vector<8xf32>
    %676 = vector.multi_reduction <add>, %675, %cst_479 [1] : vector<8x32xf32> to vector<8xf32>
    %677 = vector.shape_cast %676 : vector<8xf32> to vector<8x1xf32>
    %cst_480 = arith.constant 3.200000e+01 : f32
    %678 = vector.broadcast %cst_480 : f32 to vector<8x1xf32>
    %679 = arith.divf %677, %678 : vector<8x1xf32>
    %680 = vector.broadcast %679 : vector<8x1xf32> to vector<8x32xf32>
    %681 = arith.subf %675, %680 : vector<8x32xf32>
    %682 = arith.mulf %681, %681 : vector<8x32xf32>
    %cst_481 = arith.constant dense<0.000000e+00> : vector<8xf32>
    %683 = vector.multi_reduction <add>, %682, %cst_481 [1] : vector<8x32xf32> to vector<8xf32>
    %684 = vector.shape_cast %683 : vector<8xf32> to vector<8x1xf32>
    %cst_482 = arith.constant 3.200000e+01 : f32
    %685 = vector.broadcast %cst_482 : f32 to vector<8x1xf32>
    %686 = arith.divf %684, %685 : vector<8x1xf32>
    %cst_483 = arith.constant 9.99999974E-6 : f32
    %687 = vector.broadcast %cst_483 : f32 to vector<8x1xf32>
    %688 = arith.addf %686, %687 : vector<8x1xf32>
    %689 = math.rsqrt %688 : vector<8x1xf32>
    %690 = vector.broadcast %689 : vector<8x1xf32> to vector<8x32xf32>
    %691 = arith.mulf %681, %690 : vector<8x32xf32>
    %692 = arith.index_cast %670 : i32 to index
    %c0_484 = arith.constant 0 : index
    %c0_485 = arith.constant 0 : index
    %693 = vector.load %arg11[%692, %c0_484, %c0_485] : memref<4x32x64xf32, #tpu.memory_space<vmem>>, vector<1x32x64xf32>
    %694 = vector.shape_cast %693 : vector<1x32x64xf32> to vector<32x64xf32>
    %cst_486 = arith.constant dense<0.000000e+00> : vector<8x64xf32>
    %695 = tpu.matmul %691, %694, %cst_486 {dimension_numbers = #tpu.dot_dimension_numbers<[1], [0], [0], [1], [0, 0, 1, 1], [], []>} : vector<8x32xf32>, vector<32x64xf32>, vector<8x64xf32> -> vector<8x64xf32>
    %696 = arith.index_cast %670 : i32 to index
    %c0_487 = arith.constant 0 : index
    %c0_488 = arith.constant 0 : index
    %697 = vector.load %arg12[%696, %c0_487, %c0_488] : memref<4x1x64xf32, #tpu.memory_space<vmem>>, vector<1x1x64xf32>
    %698 = vector.shape_cast %697 : vector<1x1x64xf32> to vector<1x64xf32>
    %699 = vector.broadcast %698 : vector<1x64xf32> to vector<8x64xf32>
    %700 = arith.addf %695, %699 : vector<8x64xf32>
    %cst_489 = arith.constant 0.000000e+00 : f32
    %701 = vector.broadcast %cst_489 : f32 to vector<8x64xf32>
    %702 = arith.maximumf %700, %701 : vector<8x64xf32>
    %703 = arith.index_cast %670 : i32 to index
    %c0_490 = arith.constant 0 : index
    %c0_491 = arith.constant 0 : index
    %704 = vector.load %arg13[%703, %c0_490, %c0_491] : memref<4x64x8xf32, #tpu.memory_space<vmem>>, vector<1x64x8xf32>
    %705 = vector.shape_cast %704 : vector<1x64x8xf32> to vector<64x8xf32>
    %cst_492 = arith.constant dense<0.000000e+00> : vector<8x8xf32>
    %706 = tpu.matmul %702, %705, %cst_492 {dimension_numbers = #tpu.dot_dimension_numbers<[1], [0], [0], [1], [0, 0, 1, 1], [], []>} : vector<8x64xf32>, vector<64x8xf32>, vector<8x8xf32> -> vector<8x8xf32>
    %707 = arith.index_cast %670 : i32 to index
    %c0_493 = arith.constant 0 : index
    %c0_494 = arith.constant 0 : index
    %708 = vector.load %arg14[%707, %c0_493, %c0_494] : memref<4x1x8xf32, #tpu.memory_space<vmem>>, vector<1x1x8xf32>
    %709 = vector.shape_cast %708 : vector<1x1x8xf32> to vector<1x8xf32>
    %710 = vector.broadcast %709 : vector<1x8xf32> to vector<8x8xf32>
    %711 = arith.addf %706, %710 : vector<8x8xf32>
    %c1_495 = arith.constant 1 : index
    %c0_496 = arith.constant 0 : index
    %c0_497 = arith.constant 0 : index
    %712 = vector.load %arg3[%c1_495, %c0_496, %c0_497] : memref<2x8x8xf32, #tpu.memory_space<vmem>>, vector<1x8x8xf32>
    %713 = vector.shape_cast %712 : vector<1x8x8xf32> to vector<8x8xf32>
    %714 = arith.subf %711, %713 : vector<8x8xf32>
    %c1_498 = arith.constant 1 : index
    %c0_499 = arith.constant 0 : index
    %c0_500 = arith.constant 0 : index
    %715 = vector.load %arg4[%c1_498, %c0_499, %c0_500] : memref<2x8x8xf32, #tpu.memory_space<vmem>>, vector<1x8x8xf32>
    %716 = vector.shape_cast %715 : vector<1x8x8xf32> to vector<8x8xf32>
    %717 = arith.mulf %714, %714 : vector<8x8xf32>
    %718 = arith.mulf %717, %716 : vector<8x8xf32>
    %719 = vector.shape_cast %718 : vector<8x8xf32> to vector<1x8x8xf32>
    %cst_501 = arith.constant dense<0.000000e+00> : vector<1xf32>
    %720 = vector.multi_reduction <add>, %719, %cst_501 [1, 2] : vector<1x8x8xf32> to vector<1xf32>
    %721 = vector.shape_cast %720 : vector<1xf32> to vector<1x1x1xf32>
    %722 = vector.extract %721[0, 0, 0] : f32 from vector<1x1x1xf32>
    %723 = arith.addf %664, %722 : f32
    %724 = vector.shape_cast %716 : vector<8x8xf32> to vector<1x8x8xf32>
    %cst_502 = arith.constant dense<0.000000e+00> : vector<1xf32>
    %725 = vector.multi_reduction <add>, %724, %cst_502 [1, 2] : vector<1x8x8xf32> to vector<1xf32>
    %726 = vector.shape_cast %725 : vector<1xf32> to vector<1x1x1xf32>
    %727 = vector.extract %726[0, 0, 0] : f32 from vector<1x1x1xf32>
    %728 = arith.addf %669, %727 : f32
    %729 = arith.divf %723, %728 : f32
    %c0_503 = arith.constant 0 : index
    %c0_504 = arith.constant 0 : index
    %730 = memref.load %arg27[%c0_503, %c0_504] : memref<1x1xf32, #tpu.memory_space<smem>>
    memref.store %729, %arg27[%c0_503, %c0_504] : memref<1x1xf32, #tpu.memory_space<smem>>
    return
  }
}

</mosaic_0001>

<llo_original>
// kernel: tpu_custom_call.1
$region0: #{tpu_custom_call.1}
  #allocation0 [shape = 'u32[]', space=smem, size = 0x4, offset = 0x4, fixed_abs, tag = 'smem constant byte address 0x4 - core index']
  #allocation1 [shape = 'u32[144,128]{1,0:T(1,128)}', space=vmem, size = 0x12000, scoped, tag = 'internal scratch']
  #allocation2 [shape = 'f32[2,9,32]{2,1,0:T(8,128)}', space=vmem, size = 0x4000, scoped, tag = 'scratch operand']
  %s0 = inlined_call_operand.vmem [shape: s32[2], index: 0, kind: input, shape index: {}]
  %s1 = inlined_call_operand.vmem [shape: f32[2,1,24], index: 1, kind: input, shape index: {}]
  %s2 = inlined_call_operand.vmem [shape: f32[32,32], index: 2, kind: input, shape index: {}]
  %s3 = inlined_call_operand.vmem [shape: f32[2,8,8], index: 3, kind: input, shape index: {}]
  %s4 = inlined_call_operand.vmem [shape: f32[2,8,8], index: 4, kind: input, shape index: {}]
  %s5 = inlined_call_operand.vmem [shape: f32[4,1,32], index: 5, kind: input, shape index: {}]
  %s6 = inlined_call_operand.vmem [shape: f32[8,32], index: 6, kind: input, shape index: {}]
  %s7 = inlined_call_operand.vmem [shape: f32[4,24,64], index: 7, kind: input, shape index: {}]
  %s8 = inlined_call_operand.vmem [shape: f32[4,1,64], index: 8, kind: input, shape index: {}]
  %s9 = inlined_call_operand.vmem [shape: f32[4,64,32], index: 9, kind: input, shape index: {}]
  %s10 = inlined_call_operand.vmem [shape: f32[4,1,32], index: 10, kind: input, shape index: {}]
  %s11 = inlined_call_operand.vmem [shape: f32[4,32,64], index: 11, kind: input, shape index: {}]
  %s12 = inlined_call_operand.vmem [shape: f32[4,1,64], index: 12, kind: input, shape index: {}]
  %s13 = inlined_call_operand.vmem [shape: f32[4,64,8], index: 13, kind: input, shape index: {}]
  %s14 = inlined_call_operand.vmem [shape: f32[4,1,8], index: 14, kind: input, shape index: {}]
  %s15 = inlined_call_operand.vmem [shape: f32[2,2,32,16], index: 15, kind: input, shape index: {}]
  %s16 = inlined_call_operand.vmem [shape: f32[2,2,1,16], index: 16, kind: input, shape index: {}]
  %s17 = inlined_call_operand.vmem [shape: f32[2,2,32,16], index: 17, kind: input, shape index: {}]
  %s18 = inlined_call_operand.vmem [shape: f32[2,2,1,16], index: 18, kind: input, shape index: {}]
  %s19 = inlined_call_operand.vmem [shape: f32[2,2,32,16], index: 19, kind: input, shape index: {}]
  %s20 = inlined_call_operand.vmem [shape: f32[2,2,1,16], index: 20, kind: input, shape index: {}]
  %s21 = inlined_call_operand.vmem [shape: f32[2,2,16,32], index: 21, kind: input, shape index: {}]
  %s22 = inlined_call_operand.vmem [shape: f32[2,1,32], index: 22, kind: input, shape index: {}]
  %s23 = inlined_call_operand.vmem [shape: f32[2,32,128], index: 23, kind: input, shape index: {}]
  %s24 = inlined_call_operand.vmem [shape: f32[2,1,128], index: 24, kind: input, shape index: {}]
  %s25 = inlined_call_operand.vmem [shape: f32[2,128,32], index: 25, kind: input, shape index: {}]
  %s26 = inlined_call_operand.vmem [shape: f32[2,1,32], index: 26, kind: input, shape index: {}]
  %s27 = inlined_call_operand.hbm [shape: f32[1,1], index: 27, kind: output, shape index: {}]
  %s28 = sld [smem:[#allocation0]]
  $region122: #{tpu_custom_call.1} parent=0
    _
  %s30 = ssub.s32 1, %s28
  %s31 = scalar_select 0, %s30, %s28
  $region1: #{tpu_custom_call.1} parent=0
    #allocation3 [shape = 'u8[512]{0}', space=smem, size = 0x200, scoped, tag = 'input window, operand 0, single buffered']
    #allocation4 [shape = 's32[1]{0}', space=sflag, size = 0x4, scoped, tag = 'scoped memory for tpu_custom_call.1']
    #allocation5 [shape = 's32[1]{0}', space=sflag, size = 0x4, scoped, tag = 'scoped memory for tpu_custom_call.1']
    #allocation6 [shape = 'u8[512]{0}', space=smem, size = 0x200, scoped, tag = 'output window, operand 0, single buffered']
    %32 = vsyncpa [#allocation5], 0
    %33 = vsyncpa [#allocation4], 0
    // Predicated region
    $region2: #{tpu_custom_call.1} parent=1 // pred_check
      _
    $region3: #{tpu_custom_call.1} parent=1 // pred_check_branch
      %35 = sbr.rel (0) target = $region5
    $region4: #{tpu_custom_call.1} parent=1 // pred_region
      %s37 = ssub.s32 16, 16
      %38 = vsyncadd [#allocation5], %s37
      %s40 = sshll.u32 %s0, 4
      %s41 = int_to_ptr.vmem [resolvable:$true] %s40
      %43 = dma.vmem_to_smem %s41, 16, [#allocation3], [#allocation5]
    $region5: #{tpu_custom_call.1} parent=1 // pred_fallthru
      _
    // Predicated region
    $region6: #{tpu_custom_call.1} parent=1 // pred_check
      _
    $region7: #{tpu_custom_call.1} parent=1 // pred_check_branch
      %45 = sbr.rel (0) target = $region9
    $region8: #{tpu_custom_call.1} parent=1 // pred_region
      _
    $region9: #{tpu_custom_call.1} parent=1 // pred_fallthru
      _
    // Predicated region
    $region10: #{tpu_custom_call.1} parent=1 // pred_check
      _
    $region11: #{tpu_custom_call.1} parent=1 // pred_check_branch
      %47 = sbr.rel (0) target = $region13
    $region12: #{tpu_custom_call.1} parent=1 // pred_region
      _
    $region13: #{tpu_custom_call.1} parent=1 // pred_fallthru
      _
    // Predicated region
    $region14: #{tpu_custom_call.1} parent=1 // pred_check
      _
    $region15: #{tpu_custom_call.1} parent=1 // pred_check_branch
      %49 = sbr.rel (0) target = $region17
    $region16: #{tpu_custom_call.1} parent=1 // pred_region
      _
    $region17: #{tpu_custom_call.1} parent=1 // pred_fallthru
      _
    // Predicated region
    $region18: #{tpu_custom_call.1} parent=1 // pred_check
      _
    $region19: #{tpu_custom_call.1} parent=1 // pred_check_branch
      %51 = sbr.rel (0) target = $region21
    $region20: #{tpu_custom_call.1} parent=1 // pred_region
      _
    $region21: #{tpu_custom_call.1} parent=1 // pred_fallthru
      _
    // Predicated region
    $region22: #{tpu_custom_call.1} parent=1 // pred_check
      _
    $region23: #{tpu_custom_call.1} parent=1 // pred_check_branch
      %53 = sbr.rel (0) target = $region25
    $region24: #{tpu_custom_call.1} parent=1 // pred_region
      _
    $region25: #{tpu_custom_call.1} parent=1 // pred_fallthru
      _
    // Predicated region
    $region26: #{tpu_custom_call.1} parent=1 // pred_check
      _
    $region27: #{tpu_custom_call.1} parent=1 // pred_check_branch
      %55 = sbr.rel (0) target = $region29
    $region28: #{tpu_custom_call.1} parent=1 // pred_region
      _
    $region29: #{tpu_custom_call.1} parent=1 // pred_fallthru
      _
    // Predicated region
    $region30: #{tpu_custom_call.1} parent=1 // pred_check
      _
    $region31: #{tpu_custom_call.1} parent=1 // pred_check_branch
      %57 = sbr.rel (0) target = $region33
    $region32: #{tpu_custom_call.1} parent=1 // pred_region
      _
    $region33: #{tpu_custom_call.1} parent=1 // pred_fallthru
      _
    // Predicated region
    $region34: #{tpu_custom_call.1} parent=1 // pred_check
      _
    $region35: #{tpu_custom_call.1} parent=1 // pred_check_branch
      %59 = sbr.rel (0) target = $region37
    $region36: #{tpu_custom_call.1} parent=1 // pred_region
      _
    $region37: #{tpu_custom_call.1} parent=1 // pred_fallthru
      _
    // Predicated region
    $region38: #{tpu_custom_call.1} parent=1 // pred_check
      _
    $region39: #{tpu_custom_call.1} parent=1 // pred_check_branch
      %61 = sbr.rel (0) target = $region41
    $region40: #{tpu_custom_call.1} parent=1 // pred_region
      _
    $region41: #{tpu_custom_call.1} parent=1 // pred_fallthru
      _
    // Predicated region
    $region42: #{tpu_custom_call.1} parent=1 // pred_check
      _
    $region43: #{tpu_custom_call.1} parent=1 // pred_check_branch
      %63 = sbr.rel (0) target = $region45
    $region44: #{tpu_custom_call.1} parent=1 // pred_region
      _
    $region45: #{tpu_custom_call.1} parent=1 // pred_fallthru
      _
    // Predicated region
    $region46: #{tpu_custom_call.1} parent=1 // pred_check
      _
    $region47: #{tpu_custom_call.1} parent=1 // pred_check_branch
      %65 = sbr.rel (0) target = $region49
    $region48: #{tpu_custom_call.1} parent=1 // pred_region
      _
    $region49: #{tpu_custom_call.1} parent=1 // pred_fallthru
      _
    // Predicated region
    $region50: #{tpu_custom_call.1} parent=1 // pred_check
      _
    $region51: #{tpu_custom_call.1} parent=1 // pred_check_branch
      %67 = sbr.rel (0) target = $region53
    $region52: #{tpu_custom_call.1} parent=1 // pred_region
      _
    $region53: #{tpu_custom_call.1} parent=1 // pred_fallthru
      _
    // Predicated region
    $region54: #{tpu_custom_call.1} parent=1 // pred_check
      _
    $region55: #{tpu_custom_call.1} parent=1 // pred_check_branch
      %69 = sbr.rel (0) target = $region57
    $region56: #{tpu_custom_call.1} parent=1 // pred_region
      _
    $region57: #{tpu_custom_call.1} parent=1 // pred_fallthru
      _
    // Predicated region
    $region58: #{tpu_custom_call.1} parent=1 // pred_check
      _
    $region59: #{tpu_custom_call.1} parent=1 // pred_check_branch
      %71 = sbr.rel (0) target = $region61
    $region60: #{tpu_custom_call.1} parent=1 // pred_region
      _
    $region61: #{tpu_custom_call.1} parent=1 // pred_fallthru
      _
    // Predicated region
    $region62: #{tpu_custom_call.1} parent=1 // pred_check
      _
    $region63: #{tpu_custom_call.1} parent=1 // pred_check_branch
      %73 = sbr.rel (0) target = $region65
    $region64: #{tpu_custom_call.1} parent=1 // pred_region
      _
    $region65: #{tpu_custom_call.1} parent=1 // pred_fallthru
      _
    // Predicated region
    $region66: #{tpu_custom_call.1} parent=1 // pred_check
      _
    $region67: #{tpu_custom_call.1} parent=1 // pred_check_branch
      %75 = sbr.rel (0) target = $region69
    $region68: #{tpu_custom_call.1} parent=1 // pred_region
      _
    $region69: #{tpu_custom_call.1} parent=1 // pred_fallthru
      _
    // Predicated region
    $region70: #{tpu_custom_call.1} parent=1 // pred_check
      _
    $region71: #{tpu_custom_call.1} parent=1 // pred_check_branch
      %77 = sbr.rel (0) target = $region73
    $region72: #{tpu_custom_call.1} parent=1 // pred_region
      _
    $region73: #{tpu_custom_call.1} parent=1 // pred_fallthru
      _
    // Predicated region
    $region74: #{tpu_custom_call.1} parent=1 // pred_check
      _
    $region75: #{tpu_custom_call.1} parent=1 // pred_check_branch
      %79 = sbr.rel (0) target = $region77
    $region76: #{tpu_custom_call.1} parent=1 // pred_region
      _
    $region77: #{tpu_custom_call.1} parent=1 // pred_fallthru
      _
    // Predicated region
    $region78: #{tpu_custom_call.1} parent=1 // pred_check
      _
    $region79: #{tpu_custom_call.1} parent=1 // pred_check_branch
      %81 = sbr.rel (0) target = $region81
    $region80: #{tpu_custom_call.1} parent=1 // pred_region
      _
    $region81: #{tpu_custom_call.1} parent=1 // pred_fallthru
      _
    // Predicated region
    $region82: #{tpu_custom_call.1} parent=1 // pred_check
      _
    $region83: #{tpu_custom_call.1} parent=1 // pred_check_branch
      %83 = sbr.rel (0) target = $region85
    $region84: #{tpu_custom_call.1} parent=1 // pred_region
      _
    $region85: #{tpu_custom_call.1} parent=1 // pred_fallthru
      _
    // Predicated region
    $region86: #{tpu_custom_call.1} parent=1 // pred_check
      _
    $region87: #{tpu_custom_call.1} parent=1 // pred_check_branch
      %85 = sbr.rel (0) target = $region89
    $region88: #{tpu_custom_call.1} parent=1 // pred_region
      _
    $region89: #{tpu_custom_call.1} parent=1 // pred_fallthru
      _
    // Predicated region
    $region90: #{tpu_custom_call.1} parent=1 // pred_check
      _
    $region91: #{tpu_custom_call.1} parent=1 // pred_check_branch
      %87 = sbr.rel (0) target = $region93
    $region92: #{tpu_custom_call.1} parent=1 // pred_region
      _
    $region93: #{tpu_custom_call.1} parent=1 // pred_fallthru
      _
    // Predicated region
    $region94: #{tpu_custom_call.1} parent=1 // pred_check
      _
    $region95: #{tpu_custom_call.1} parent=1 // pred_check_branch
      %89 = sbr.rel (0) target = $region97
    $region96: #{tpu_custom_call.1} parent=1 // pred_region
      _
    $region97: #{tpu_custom_call.1} parent=1 // pred_fallthru
      _
    // Predicated region
    $region98: #{tpu_custom_call.1} parent=1 // pred_check
      _
    $region99: #{tpu_custom_call.1} parent=1 // pred_check_branch
      %91 = sbr.rel (0) target = $region101
    $region100: #{tpu_custom_call.1} parent=1 // pred_region
      _
    $region101: #{tpu_custom_call.1} parent=1 // pred_fallthru
      _
    // Predicated region
    $region102: #{tpu_custom_call.1} parent=1 // pred_check
      _
    $region103: #{tpu_custom_call.1} parent=1 // pred_check_branch
      %93 = sbr.rel (0) target = $region105
    $region104: #{tpu_custom_call.1} parent=1 // pred_region
      _
    $region105: #{tpu_custom_call.1} parent=1 // pred_fallthru
      _
    // Predicated region
    $region106: #{tpu_custom_call.1} parent=1 // pred_check
      _
    $region107: #{tpu_custom_call.1} parent=1 // pred_check_branch
      %95 = sbr.rel (0) target = $region109
    $region108: #{tpu_custom_call.1} parent=1 // pred_region
      _
    $region109: #{tpu_custom_call.1} parent=1 // pred_fallthru
      _
    // Predicated region
    $region110: #{tpu_custom_call.1} parent=1 // pred_check
      _
    $region111: #{tpu_custom_call.1} parent=1 // pred_check_branch
      %97 = sbr.rel (0) target = $region113
    $region112: #{tpu_custom_call.1} parent=1 // pred_region
      %98 = dma.done [#allocation5], 16
    $region113: #{tpu_custom_call.1} parent=1 // pred_fallthru
      _
    %99 = sfence
    %v100 = vld [vmem:[%s2] sm:$0xff]
    %v101 = vld [vmem:[%s2 + $0x8] sm:$0xff]
    %v102 = vld [vmem:[%s2 + $0x10] sm:$0xff]
    %v103 = vld [vmem:[%s2 + $0x18] sm:$0xff]
    %s104 = sld [smem:[#allocation3]]
    %v105 = vld [vmem:[%s1] sm:$0x1]
    %s106 = smul.u32 %s104, 24
    %s107 = scalar_lea.vmem %s7, %s106
    %v108 = vld [vmem:[%s107] sm:$0xff]
    %v109 = vld [vmem:[%s107 + $0x8] sm:$0xff]
    %v110 = vld [vmem:[%s107 + $0x10] sm:$0xff]
    %s111 = scalar_lea.vmem %s8, %s104
    %v112 = vld [vmem:[%s111] sm:$0x1]
    %vm113 = vcmask 195584
    %v115 = vsel %vm113, %v105, 0
    %117 = vmatprep.subr.mxu0 0.0
    %118 = vmatpush1.msra.mxu0 0.0
    %119 = vmatprep.subr.mxu0 0.0
    %120 = vmatpush1.msra.mxu0 0.0
    %121 = vmatprep.subr.mxu0 0.0
    %122 = vmatpush1.msra.mxu0 0.0
    %123 = vmatprep.subr.mxu0 0.0
    %124 = vmatpush1.msra.mxu0 0.0
    %125 = vmatprep.subr.mxu0 0.0
    %126 = vmatpush1.msra.mxu0 0.0
    %127 = vmatprep.subr.mxu0 0.0
    %128 = vmatpush1.msra.mxu0 0.0
    %129 = vmatprep.subr.mxu0 0.0
    %130 = vmatpush1.msra.mxu0 0.0
    %131 = vmatprep.subr.mxu0 0.0
    %132 = vmatpush1.msra.mxu0 0.0
    %133 = vmatprep.subr.mxu0 0.0
    %134 = vmatpush1.msra.mxu0 0.0
    %135 = vmatprep.subr.mxu0 0.0
    %136 = vmatpush1.msra.mxu0 0.0
    %137 = vmatprep.subr.mxu0 0.0
    %138 = vmatpush1.msra.mxu0 0.0
    %139 = vmatprep.subr.mxu0 0.0
    %140 = vmatpush1.msra.mxu0 0.0
    %141 = vmatprep.subr.mxu0 0.0
    %142 = vmatpush1.msra.mxu0 0.0
    %143 = vmatprep.subr.mxu0 0.0
    %144 = vmatpush1.msra.mxu0 %v110
    %145 = vmatprep.subr.mxu0 0.0
    %146 = vmatpush1.msra.mxu0 %v109
    %147 = vmatprep.subr.mxu0 0.0
    %148 = vmatpush1.msra.mxu0 %v108
    %149 = vmatprep.subr.mxu0 0.0
    %150 = vmatpush2.msra.mxu0 0.0
    %151 = vmatprep.subr.mxu0 0.0
    %152 = vmatpush2.msra.mxu0 0.0
    %153 = vmatprep.subr.mxu0 0.0
    %154 = vmatpush2.msra.mxu0 0.0
    %155 = vmatprep.subr.mxu0 0.0
    %156 = vmatpush2.msra.mxu0 0.0
    %157 = vmatprep.subr.mxu0 0.0
    %158 = vmatpush2.msra.mxu0 0.0
    %159 = vmatprep.subr.mxu0 0.0
    %160 = vmatpush2.msra.mxu0 0.0
    %161 = vmatprep.subr.mxu0 0.0
    %162 = vmatpush2.msra.mxu0 0.0
    %163 = vmatprep.subr.mxu0 0.0
    %164 = vmatpush2.msra.mxu0 0.0
    %165 = vmatprep.subr.mxu0 0.0
    %166 = vmatpush2.msra.mxu0 0.0
    %167 = vmatprep.subr.mxu0 0.0
    %168 = vmatpush2.msra.mxu0 0.0
    %169 = vmatprep.subr.mxu0 0.0
    %170 = vmatpush2.msra.mxu0 0.0
    %171 = vmatprep.subr.mxu0 0.0
    %172 = vmatpush2.msra.mxu0 0.0
    %173 = vmatprep.subr.mxu0 0.0
    %174 = vmatpush2.msra.mxu0 0.0
    %175 = vmatprep.subr.mxu0 0.0
    %176 = vmatpush2.msra.mxu0 0.0
    %177 = vmatprep.subr.mxu0 0.0
    %178 = vmatpush2.msra.mxu0 0.0
    %179 = vmatprep.subr.mxu0 0.0
    %180 = vmatpush2.msra.mxu0 0.0
    %181 = vmatprep.mubr.f32.mxu0 0.0
    %182 = vmatmul.mubr.f32.gmra.mxu0 %v115
    %v183 = vpop.f32.mrf.mxu0
    %v184 = vadd.f32 %v112, %v183
    %v185 = vpop.f32.mrf.mxu0
    %186 = vdwg.mxu0
    %v187 = vmax.f32 %v184, 0.0
    %s188 = smul.u32 %s104, 64
    %s189 = scalar_lea.vmem %s9, %s188
    %v190 = vld [vmem:[%s189] sm:$0xff]
    %v191 = vld [vmem:[%s189 + $0x8] sm:$0xff]
    %v192 = vld [vmem:[%s189 + $0x10] sm:$0xff]
    %v193 = vld [vmem:[%s189 + $0x18] sm:$0xff]
    %v194 = vld [vmem:[%s189 + $0x20] sm:$0xff]
    %v195 = vld [vmem:[%s189 + $0x28] sm:$0xff]
    %v196 = vld [vmem:[%s189 + $0x30] sm:$0xff]
    %v197 = vld [vmem:[%s189 + $0x38] sm:$0xff]
    %s198 = scalar_lea.vmem %s10, %s104
    %v199 = vld [vmem:[%s198] sm:$0x1]
    %vm200 = vcmask 523264
    %v202 = vsel %vm200, %v187, 0
    %204 = vmatprep.subr.mxu0 0.0
    %205 = vmatpush1.msra.mxu0 0.0
    %206 = vmatprep.subr.mxu0 0.0
    %207 = vmatpush1.msra.mxu0 0.0
    %208 = vmatprep.subr.mxu0 0.0
    %209 = vmatpush1.msra.mxu0 0.0
    %210 = vmatprep.subr.mxu0 0.0
    %211 = vmatpush1.msra.mxu0 0.0
    %212 = vmatprep.subr.mxu0 0.0
    %213 = vmatpush1.msra.mxu0 0.0
    %214 = vmatprep.subr.mxu0 0.0
    %215 = vmatpush1.msra.mxu0 0.0
    %216 = vmatprep.subr.mxu0 0.0
    %217 = vmatpush1.msra.mxu0 0.0
    %218 = vmatprep.subr.mxu0 0.0
    %219 = vmatpush1.msra.mxu0 0.0
    %220 = vmatprep.subr.mxu0 0.0
    %221 = vmatpush1.msra.mxu0 %v197
    %222 = vmatprep.subr.mxu0 0.0
    %223 = vmatpush1.msra.mxu0 %v196
    %224 = vmatprep.subr.mxu0 0.0
    %225 = vmatpush1.msra.mxu0 %v195
    %226 = vmatprep.subr.mxu0 0.0
    %227 = vmatpush1.msra.mxu0 %v194
    %228 = vmatprep.subr.mxu0 0.0
    %229 = vmatpush1.msra.mxu0 %v193
    %230 = vmatprep.subr.mxu0 0.0
    %231 = vmatpush1.msra.mxu0 %v192
    %232 = vmatprep.subr.mxu0 0.0
    %233 = vmatpush1.msra.mxu0 %v191
    %234 = vmatprep.subr.mxu0 0.0
    %235 = vmatpush1.msra.mxu0 %v190
    %236 = vmatprep.subr.mxu0 0.0
    %237 = vmatpush2.msra.mxu0 0.0
    %238 = vmatprep.subr.mxu0 0.0
    %239 = vmatpush2.msra.mxu0 0.0
    %240 = vmatprep.subr.mxu0 0.0
    %241 = vmatpush2.msra.mxu0 0.0
    %242 = vmatprep.subr.mxu0 0.0
    %243 = vmatpush2.msra.mxu0 0.0
    %244 = vmatprep.subr.mxu0 0.0
    %245 = vmatpush2.msra.mxu0 0.0
    %246 = vmatprep.subr.mxu0 0.0
    %247 = vmatpush2.msra.mxu0 0.0
    %248 = vmatprep.subr.mxu0 0.0
    %249 = vmatpush2.msra.mxu0 0.0
    %250 = vmatprep.subr.mxu0 0.0
    %251 = vmatpush2.msra.mxu0 0.0
    %252 = vmatprep.subr.mxu0 0.0
    %253 = vmatpush2.msra.mxu0 0.0
    %254 = vmatprep.subr.mxu0 0.0
    %255 = vmatpush2.msra.mxu0 0.0
    %256 = vmatprep.subr.mxu0 0.0
    %257 = vmatpush2.msra.mxu0 0.0
    %258 = vmatprep.subr.mxu0 0.0
    %259 = vmatpush2.msra.mxu0 0.0
    %260 = vmatprep.subr.mxu0 0.0
    %261 = vmatpush2.msra.mxu0 0.0
    %262 = vmatprep.subr.mxu0 0.0
    %263 = vmatpush2.msra.mxu0 0.0
    %264 = vmatprep.subr.mxu0 0.0
    %265 = vmatpush2.msra.mxu0 0.0
    %266 = vmatprep.subr.mxu0 0.0
    %267 = vmatpush2.msra.mxu0 0.0
    %268 = vmatprep.mubr.f32.mxu0 0.0
    %269 = vmatmul.mubr.f32.gmra.mxu0 %v202
    %v270 = vpop.f32.mrf.mxu0
    %v271 = vadd.f32 %v199, %v270
    %v272 = vpop.f32.mrf.mxu0
    %273 = vdwg.mxu0
    %s274 = scalar_lea.vmem %s5, %s104
    %v275 = vld [vmem:[%s274] sm:$0x1]
    %v276 = vld [vmem:[%s6] sm:$0xff]
    %v278 = vlaneseq
    %v279 = vshrl.u32 %v278, 7
    %v280 = vsub.s32 0, %v279
    %v281 = vrot.slane %v275, %v280
    %v283 = vadd.f32 %v281, %v276
    %vm284 = vcmask 253952
    %285 = vst.msk [vmem:[#allocation2] sm:$0x1] %vm284, %v271
    %vm286 = vcmask 261120
    %287 = vst.msk [vmem:[#allocation2 + $0x1] sm:$0xff] %vm286, %v283
    %v288 = vld [vmem:[#allocation2] sm:$0xff]
    %v289 = vld [vmem:[#allocation2 + $0x8] sm:$0x1]
    %s290 = sld [smem:[#allocation3 + $0x1]]
    %s291 = scalar_lea.vmem %s1, 1
    %v292 = vld [vmem:[%s291] sm:$0x1]
    %s293 = smul.u32 %s290, 24
    %s294 = scalar_lea.vmem %s7, %s293
    %v295 = vld [vmem:[%s294] sm:$0xff]
    %v296 = vld [vmem:[%s294 + $0x8] sm:$0xff]
    %v297 = vld [vmem:[%s294 + $0x10] sm:$0xff]
    %s298 = scalar_lea.vmem %s8, %s290
    %v299 = vld [vmem:[%s298] sm:$0x1]
    %v301 = vsel %vm113, %v292, 0
    %303 = vmatprep.subr.mxu0 0.0
    %304 = vmatpush1.msra.mxu0 0.0
    %305 = vmatprep.subr.mxu0 0.0
    %306 = vmatpush1.msra.mxu0 0.0
    %307 = vmatprep.subr.mxu0 0.0
    %308 = vmatpush1.msra.mxu0 0.0
    %309 = vmatprep.subr.mxu0 0.0
    %310 = vmatpush1.msra.mxu0 0.0
    %311 = vmatprep.subr.mxu0 0.0
    %312 = vmatpush1.msra.mxu0 0.0
    %313 = vmatprep.subr.mxu0 0.0
    %314 = vmatpush1.msra.mxu0 0.0
    %315 = vmatprep.subr.mxu0 0.0
    %316 = vmatpush1.msra.mxu0 0.0
    %317 = vmatprep.subr.mxu0 0.0
    %318 = vmatpush1.msra.mxu0 0.0
    %319 = vmatprep.subr.mxu0 0.0
    %320 = vmatpush1.msra.mxu0 0.0
    %321 = vmatprep.subr.mxu0 0.0
    %322 = vmatpush1.msra.mxu0 0.0
    %323 = vmatprep.subr.mxu0 0.0
    %324 = vmatpush1.msra.mxu0 0.0
    %325 = vmatprep.subr.mxu0 0.0
    %326 = vmatpush1.msra.mxu0 0.0
    %327 = vmatprep.subr.mxu0 0.0
    %328 = vmatpush1.msra.mxu0 0.0
    %329 = vmatprep.subr.mxu0 0.0
    %330 = vmatpush1.msra.mxu0 %v297
    %331 = vmatprep.subr.mxu0 0.0
    %332 = vmatpush1.msra.mxu0 %v296
    %333 = vmatprep.subr.mxu0 0.0
    %334 = vmatpush1.msra.mxu0 %v295
    %335 = vmatprep.subr.mxu0 0.0
    %336 = vmatpush2.msra.mxu0 0.0
    %337 = vmatprep.subr.mxu0 0.0
    %338 = vmatpush2.msra.mxu0 0.0
    %339 = vmatprep.subr.mxu0 0.0
    %340 = vmatpush2.msra.mxu0 0.0
    %341 = vmatprep.subr.mxu0 0.0
    %342 = vmatpush2.msra.mxu0 0.0
    %343 = vmatprep.subr.mxu0 0.0
    %344 = vmatpush2.msra.mxu0 0.0
    %345 = vmatprep.subr.mxu0 0.0
    %346 = vmatpush2.msra.mxu0 0.0
    %347 = vmatprep.subr.mxu0 0.0
    %348 = vmatpush2.msra.mxu0 0.0
    %349 = vmatprep.subr.mxu0 0.0
    %350 = vmatpush2.msra.mxu0 0.0
    %351 = vmatprep.subr.mxu0 0.0
    %352 = vmatpush2.msra.mxu0 0.0
    %353 = vmatprep.subr.mxu0 0.0
    %354 = vmatpush2.msra.mxu0 0.0
    %355 = vmatprep.subr.mxu0 0.0
    %356 = vmatpush2.msra.mxu0 0.0
    %357 = vmatprep.subr.mxu0 0.0
    %358 = vmatpush2.msra.mxu0 0.0
    %359 = vmatprep.subr.mxu0 0.0
    %360 = vmatpush2.msra.mxu0 0.0
    %361 = vmatprep.subr.mxu0 0.0
    %362 = vmatpush2.msra.mxu0 0.0
    %363 = vmatprep.subr.mxu0 0.0
    %364 = vmatpush2.msra.mxu0 0.0
    %365 = vmatprep.subr.mxu0 0.0
    %366 = vmatpush2.msra.mxu0 0.0
    %367 = vmatprep.mubr.f32.mxu0 0.0
    %368 = vmatmul.mubr.f32.gmra.mxu0 %v301
    %v369 = vpop.f32.mrf.mxu0
    %v370 = vadd.f32 %v299, %v369
    %v371 = vpop.f32.mrf.mxu0
    %372 = vdwg.mxu0
    %v373 = vmax.f32 %v370, 0.0
    %s374 = smul.u32 %s290, 64
    %s375 = scalar_lea.vmem %s9, %s374
    %v376 = vld [vmem:[%s375] sm:$0xff]
    %v377 = vld [vmem:[%s375 + $0x8] sm:$0xff]
    %v378 = vld [vmem:[%s375 + $0x10] sm:$0xff]
    %v379 = vld [vmem:[%s375 + $0x18] sm:$0xff]
    %v380 = vld [vmem:[%s375 + $0x20] sm:$0xff]
    %v381 = vld [vmem:[%s375 + $0x28] sm:$0xff]
    %v382 = vld [vmem:[%s375 + $0x30] sm:$0xff]
    %v383 = vld [vmem:[%s375 + $0x38] sm:$0xff]
    %s384 = scalar_lea.vmem %s10, %s290
    %v385 = vld [vmem:[%s384] sm:$0x1]
    %v387 = vsel %vm200, %v373, 0
    %389 = vmatprep.subr.mxu0 0.0
    %390 = vmatpush1.msra.mxu0 0.0
    %391 = vmatprep.subr.mxu0 0.0
    %392 = vmatpush1.msra.mxu0 0.0
    %393 = vmatprep.subr.mxu0 0.0
    %394 = vmatpush1.msra.mxu0 0.0
    %395 = vmatprep.subr.mxu0 0.0
    %396 = vmatpush1.msra.mxu0 0.0
    %397 = vmatprep.subr.mxu0 0.0
    %398 = vmatpush1.msra.mxu0 0.0
    %399 = vmatprep.subr.mxu0 0.0
    %400 = vmatpush1.msra.mxu0 0.0
    %401 = vmatprep.subr.mxu0 0.0
    %402 = vmatpush1.msra.mxu0 0.0
    %403 = vmatprep.subr.mxu0 0.0
    %404 = vmatpush1.msra.mxu0 0.0
    %405 = vmatprep.subr.mxu0 0.0
    %406 = vmatpush1.msra.mxu0 %v383
    %407 = vmatprep.subr.mxu0 0.0
    %408 = vmatpush1.msra.mxu0 %v382
    %409 = vmatprep.subr.mxu0 0.0
    %410 = vmatpush1.msra.mxu0 %v381
    %411 = vmatprep.subr.mxu0 0.0
    %412 = vmatpush1.msra.mxu0 %v380
    %413 = vmatprep.subr.mxu0 0.0
    %414 = vmatpush1.msra.mxu0 %v379
    %415 = vmatprep.subr.mxu0 0.0
    %416 = vmatpush1.msra.mxu0 %v378
    %417 = vmatprep.subr.mxu0 0.0
    %418 = vmatpush1.msra.mxu0 %v377
    %419 = vmatprep.subr.mxu0 0.0
    %420 = vmatpush1.msra.mxu0 %v376
    %421 = vmatprep.subr.mxu0 0.0
    %422 = vmatpush2.msra.mxu0 0.0
    %423 = vmatprep.subr.mxu0 0.0
    %424 = vmatpush2.msra.mxu0 0.0
    %425 = vmatprep.subr.mxu0 0.0
    %426 = vmatpush2.msra.mxu0 0.0
    %427 = vmatprep.subr.mxu0 0.0
    %428 = vmatpush2.msra.mxu0 0.0
    %429 = vmatprep.subr.mxu0 0.0
    %430 = vmatpush2.msra.mxu0 0.0
    %431 = vmatprep.subr.mxu0 0.0
    %432 = vmatpush2.msra.mxu0 0.0
    %433 = vmatprep.subr.mxu0 0.0
    %434 = vmatpush2.msra.mxu0 0.0
    %435 = vmatprep.subr.mxu0 0.0
    %436 = vmatpush2.msra.mxu0 0.0
    %437 = vmatprep.subr.mxu0 0.0
    %438 = vmatpush2.msra.mxu0 0.0
    %439 = vmatprep.subr.mxu0 0.0
    %440 = vmatpush2.msra.mxu0 0.0
    %441 = vmatprep.subr.mxu0 0.0
    %442 = vmatpush2.msra.mxu0 0.0
    %443 = vmatprep.subr.mxu0 0.0
    %444 = vmatpush2.msra.mxu0 0.0
    %445 = vmatprep.subr.mxu0 0.0
    %446 = vmatpush2.msra.mxu0 0.0
    %447 = vmatprep.subr.mxu0 0.0
    %448 = vmatpush2.msra.mxu0 0.0
    %449 = vmatprep.subr.mxu0 0.0
    %450 = vmatpush2.msra.mxu0 0.0
    %451 = vmatprep.subr.mxu0 0.0
    %452 = vmatpush2.msra.mxu0 0.0
    %453 = vmatprep.mubr.f32.mxu0 0.0
    %454 = vmatmul.mubr.f32.gmra.mxu0 %v387
    %v455 = vpop.f32.mrf.mxu0
    %v456 = vadd.f32 %v385, %v455
    %v457 = vpop.f32.mrf.mxu0
    %458 = vdwg.mxu0
    %s459 = scalar_lea.vmem %s5, %s290
    %v460 = vld [vmem:[%s459] sm:$0x1]
    %v461 = vld [vmem:[%s6] sm:$0xff]
    %v463 = vlaneseq
    %v464 = vshrl.u32 %v463, 7
    %v465 = vsub.s32 0, %v464
    %v466 = vrot.slane %v460, %v465
    %v468 = vadd.f32 %v466, %v461
    %s469 = scalar_lea.vmem [#allocation2], 16
    %470 = vst.msk [vmem:[%s469] sm:$0x1] %vm284, %v456
    %471 = vst.msk [vmem:[%s469 + $0x1] sm:$0xff] %vm286, %v468
    %v472 = vld [vmem:[%s469] sm:$0xff]
    %v473 = vld [vmem:[%s469 + $0x8] sm:$0x1]
    %v474 = vld [vmem:[%s17] sm:$0xff]
    %v475 = vld [vmem:[%s17 + $0x8] sm:$0xff]
    %v476 = vld [vmem:[%s17 + $0x10] sm:$0xff]
    %v477 = vld [vmem:[%s17 + $0x18] sm:$0xff]
    %v478 = vld [vmem:[%s18] sm:$0x1]
    %v480 = vlaneseq
    %v481 = vshrl.u32 %v480, 7
    %v482 = vsub.s32 0, %v481
    %v483 = vrot.slane %v478, %v482
    %v486 = vsel %vm286, %v100, 0
    %v489 = vsel %vm286, %v101, 0
    %v492 = vsel %vm286, %v102, 0
    %v495 = vsel %vm286, %v103, 0
    %497 = vmatprep.subr.mxu0 0.0
    %498 = vmatpush1.msra.mxu0 0.0
    %499 = vmatprep.subr.mxu0 0.0
    %500 = vmatpush1.msra.mxu0 0.0
    %501 = vmatprep.subr.mxu0 0.0
    %502 = vmatpush1.msra.mxu0 0.0
    %503 = vmatprep.subr.mxu0 0.0
    %504 = vmatpush1.msra.mxu0 0.0
    %505 = vmatprep.subr.mxu0 0.0
    %506 = vmatpush1.msra.mxu0 0.0
    %507 = vmatprep.subr.mxu0 0.0
    %508 = vmatpush1.msra.mxu0 0.0
    %509 = vmatprep.subr.mxu0 0.0
    %510 = vmatpush1.msra.mxu0 0.0
    %511 = vmatprep.subr.mxu0 0.0
    %512 = vmatpush1.msra.mxu0 0.0
    %513 = vmatprep.subr.mxu0 0.0
    %514 = vmatpush1.msra.mxu0 0.0
    %515 = vmatprep.subr.mxu0 0.0
    %516 = vmatpush1.msra.mxu0 0.0
    %517 = vmatprep.subr.mxu0 0.0
    %518 = vmatpush1.msra.mxu0 0.0
    %519 = vmatprep.subr.mxu0 0.0
    %520 = vmatpush1.msra.mxu0 0.0
    %521 = vmatprep.subr.mxu0 0.0
    %522 = vmatpush1.msra.mxu0 %v477
    %523 = vmatprep.subr.mxu0 0.0
    %524 = vmatpush1.msra.mxu0 %v476
    %525 = vmatprep.subr.mxu0 0.0
    %526 = vmatpush1.msra.mxu0 %v475
    %527 = vmatprep.subr.mxu0 0.0
    %528 = vmatpush1.msra.mxu0 %v474
    %529 = vmatprep.subr.mxu0 0.0
    %530 = vmatpush2.msra.mxu0 0.0
    %531 = vmatprep.subr.mxu0 0.0
    %532 = vmatpush2.msra.mxu0 0.0
    %533 = vmatprep.subr.mxu0 0.0
    %534 = vmatpush2.msra.mxu0 0.0
    %535 = vmatprep.subr.mxu0 0.0
    %536 = vmatpush2.msra.mxu0 0.0
    %537 = vmatprep.subr.mxu0 0.0
    %538 = vmatpush2.msra.mxu0 0.0
    %539 = vmatprep.subr.mxu0 0.0
    %540 = vmatpush2.msra.mxu0 0.0
    %541 = vmatprep.subr.mxu0 0.0
    %542 = vmatpush2.msra.mxu0 0.0
    %543 = vmatprep.subr.mxu0 0.0
    %544 = vmatpush2.msra.mxu0 0.0
    %545 = vmatprep.subr.mxu0 0.0
    %546 = vmatpush2.msra.mxu0 0.0
    %547 = vmatprep.subr.mxu0 0.0
    %548 = vmatpush2.msra.mxu0 0.0
    %549 = vmatprep.subr.mxu0 0.0
    %550 = vmatpush2.msra.mxu0 0.0
    %551 = vmatprep.subr.mxu0 0.0
    %552 = vmatpush2.msra.mxu0 0.0
    %553 = vmatprep.subr.mxu0 0.0
    %554 = vmatpush2.msra.mxu0 0.0
    %555 = vmatprep.subr.mxu0 0.0
    %556 = vmatpush2.msra.mxu0 0.0
    %557 = vmatprep.subr.mxu0 0.0
    %558 = vmatpush2.msra.mxu0 0.0
    %559 = vmatprep.subr.mxu0 0.0
    %560 = vmatpush2.msra.mxu0 0.0
    %561 = vmatprep.mubr.f32.mxu0 0.0
    %562 = vmatmul.mubr.f32.gmra.mxu0 %v486
    %v563 = vpop.f32.mrf.mxu0
    %v564 = vadd.f32 %v483, %v563
    %v565 = vpop.f32.mrf.mxu0
    %566 = vmatprep.mubr.f32.mxu0 0.0
    %567 = vmatmul.mubr.f32.gmra.mxu0 %v489
    %v568 = vpop.f32.mrf.mxu0
    %v569 = vadd.f32 %v483, %v568
    %v570 = vpop.f32.mrf.mxu0
    %571 = vmatprep.mubr.f32.mxu0 0.0
    %572 = vmatmul.mubr.f32.gmra.mxu0 %v492
    %v573 = vpop.f32.mrf.mxu0
    %v574 = vadd.f32 %v483, %v573
    %v575 = vpop.f32.mrf.mxu0
    %576 = vmatprep.mubr.f32.mxu0 0.0
    %577 = vmatmul.mubr.f32.gmra.mxu0 %v495
    %v578 = vpop.f32.mrf.mxu0
    %v579 = vadd.f32 %v483, %v578
    %v580 = vpop.f32.mrf.mxu0
    %581 = vdwg.mxu0
    %v582 = vld [vmem:[%s19] sm:$0xff]
    %v583 = vld [vmem:[%s19 + $0x8] sm:$0xff]
    %v584 = vld [vmem:[%s19 + $0x10] sm:$0xff]
    %v585 = vld [vmem:[%s19 + $0x18] sm:$0xff]
    %v586 = vld [vmem:[%s20] sm:$0x1]
    %v588 = vlaneseq
    %v589 = vshrl.u32 %v588, 7
    %v590 = vsub.s32 0, %v589
    %v591 = vrot.slane %v586, %v590
    %593 = vmatprep.subr.mxu0 0.0
    %594 = vmatpush1.msra.mxu0 0.0
    %595 = vmatprep.subr.mxu0 0.0
    %596 = vmatpush1.msra.mxu0 0.0
    %597 = vmatprep.subr.mxu0 0.0
    %598 = vmatpush1.msra.mxu0 0.0
    %599 = vmatprep.subr.mxu0 0.0
    %600 = vmatpush1.msra.mxu0 0.0
    %601 = vmatprep.subr.mxu0 0.0
    %602 = vmatpush1.msra.mxu0 0.0
    %603 = vmatprep.subr.mxu0 0.0
    %604 = vmatpush1.msra.mxu0 0.0
    %605 = vmatprep.subr.mxu0 0.0
    %606 = vmatpush1.msra.mxu0 0.0
    %607 = vmatprep.subr.mxu0 0.0
    %608 = vmatpush1.msra.mxu0 0.0
    %609 = vmatprep.subr.mxu0 0.0
    %610 = vmatpush1.msra.mxu0 0.0
    %611 = vmatprep.subr.mxu0 0.0
    %612 = vmatpush1.msra.mxu0 0.0
    %613 = vmatprep.subr.mxu0 0.0
    %614 = vmatpush1.msra.mxu0 0.0
    %615 = vmatprep.subr.mxu0 0.0
    %616 = vmatpush1.msra.mxu0 0.0
    %617 = vmatprep.subr.mxu0 0.0
    %618 = vmatpush1.msra.mxu0 %v585
    %619 = vmatprep.subr.mxu0 0.0
    %620 = vmatpush1.msra.mxu0 %v584
    %621 = vmatprep.subr.mxu0 0.0
    %622 = vmatpush1.msra.mxu0 %v583
    %623 = vmatprep.subr.mxu0 0.0
    %624 = vmatpush1.msra.mxu0 %v582
    %625 = vmatprep.subr.mxu0 0.0
    %626 = vmatpush2.msra.mxu0 0.0
    %627 = vmatprep.subr.mxu0 0.0
    %628 = vmatpush2.msra.mxu0 0.0
    %629 = vmatprep.subr.mxu0 0.0
    %630 = vmatpush2.msra.mxu0 0.0
    %631 = vmatprep.subr.mxu0 0.0
    %632 = vmatpush2.msra.mxu0 0.0
    %633 = vmatprep.subr.mxu0 0.0
    %634 = vmatpush2.msra.mxu0 0.0
    %635 = vmatprep.subr.mxu0 0.0
    %636 = vmatpush2.msra.mxu0 0.0
    %637 = vmatprep.subr.mxu0 0.0
    %638 = vmatpush2.msra.mxu0 0.0
    %639 = vmatprep.subr.mxu0 0.0
    %640 = vmatpush2.msra.mxu0 0.0
    %641 = vmatprep.subr.mxu0 0.0
    %642 = vmatpush2.msra.mxu0 0.0
    %643 = vmatprep.subr.mxu0 0.0
    %644 = vmatpush2.msra.mxu0 0.0
    %645 = vmatprep.subr.mxu0 0.0
    %646 = vmatpush2.msra.mxu0 0.0
    %647 = vmatprep.subr.mxu0 0.0
    %648 = vmatpush2.msra.mxu0 0.0
    %649 = vmatprep.subr.mxu0 0.0
    %650 = vmatpush2.msra.mxu0 0.0
    %651 = vmatprep.subr.mxu0 0.0
    %652 = vmatpush2.msra.mxu0 0.0
    %653 = vmatprep.subr.mxu0 0.0
    %654 = vmatpush2.msra.mxu0 0.0
    %655 = vmatprep.subr.mxu0 0.0
    %656 = vmatpush2.msra.mxu0 0.0
    %657 = vmatprep.mubr.f32.mxu0 0.0
    %658 = vmatmul.mubr.f32.gmra.mxu0 %v486
    %v659 = vpop.f32.mrf.mxu0
    %v660 = vadd.f32 %v591, %v659
    %v661 = vpop.f32.mrf.mxu0
    %662 = vmatprep.mubr.f32.mxu0 0.0
    %663 = vmatmul.mubr.f32.gmra.mxu0 %v489
    %v664 = vpop.f32.mrf.mxu0
    %v665 = vadd.f32 %v591, %v664
    %v666 = vpop.f32.mrf.mxu0
    %667 = vmatprep.mubr.f32.mxu0 0.0
    %668 = vmatmul.mubr.f32.gmra.mxu0 %v492
    %v669 = vpop.f32.mrf.mxu0
    %v670 = vadd.f32 %v591, %v669
    %v671 = vpop.f32.mrf.mxu0
    %672 = vmatprep.mubr.f32.mxu0 0.0
    %673 = vmatmul.mubr.f32.gmra.mxu0 %v495
    %v674 = vpop.f32.mrf.mxu0
    %v675 = vadd.f32 %v591, %v674
    %v676 = vpop.f32.mrf.mxu0
    %677 = vdwg.mxu0
    %s678 = scalar_lea.vmem %s17, 32
    %v679 = vld [vmem:[%s678] sm:$0xff]
    %v680 = vld [vmem:[%s678 + $0x8] sm:$0xff]
    %v681 = vld [vmem:[%s678 + $0x10] sm:$0xff]
    %v682 = vld [vmem:[%s678 + $0x18] sm:$0xff]
    %s683 = scalar_lea.vmem %s18, 1
    %v684 = vld [vmem:[%s683] sm:$0x1]
    %v686 = vlaneseq
    %v687 = vshrl.u32 %v686, 7
    %v688 = vsub.s32 0, %v687
    %v689 = vrot.slane %v684, %v688
    %691 = vmatprep.subr.mxu0 0.0
    %692 = vmatpush1.msra.mxu0 0.0
    %693 = vmatprep.subr.mxu0 0.0
    %694 = vmatpush1.msra.mxu0 0.0
    %695 = vmatprep.subr.mxu0 0.0
    %696 = vmatpush1.msra.mxu0 0.0
    %697 = vmatprep.subr.mxu0 0.0
    %698 = vmatpush1.msra.mxu0 0.0
    %699 = vmatprep.subr.mxu0 0.0
    %700 = vmatpush1.msra.mxu0 0.0
    %701 = vmatprep.subr.mxu0 0.0
    %702 = vmatpush1.msra.mxu0 0.0
    %703 = vmatprep.subr.mxu0 0.0
    %704 = vmatpush1.msra.mxu0 0.0
    %705 = vmatprep.subr.mxu0 0.0
    %706 = vmatpush1.msra.mxu0 0.0
    %707 = vmatprep.subr.mxu0 0.0
    %708 = vmatpush1.msra.mxu0 0.0
    %709 = vmatprep.subr.mxu0 0.0
    %710 = vmatpush1.msra.mxu0 0.0
    %711 = vmatprep.subr.mxu0 0.0
    %712 = vmatpush1.msra.mxu0 0.0
    %713 = vmatprep.subr.mxu0 0.0
    %714 = vmatpush1.msra.mxu0 0.0
    %715 = vmatprep.subr.mxu0 0.0
    %716 = vmatpush1.msra.mxu0 %v682
    %717 = vmatprep.subr.mxu0 0.0
    %718 = vmatpush1.msra.mxu0 %v681
    %719 = vmatprep.subr.mxu0 0.0
    %720 = vmatpush1.msra.mxu0 %v680
    %721 = vmatprep.subr.mxu0 0.0
    %722 = vmatpush1.msra.mxu0 %v679
    %723 = vmatprep.subr.mxu0 0.0
    %724 = vmatpush2.msra.mxu0 0.0
    %725 = vmatprep.subr.mxu0 0.0
    %726 = vmatpush2.msra.mxu0 0.0
    %727 = vmatprep.subr.mxu0 0.0
    %728 = vmatpush2.msra.mxu0 0.0
    %729 = vmatprep.subr.mxu0 0.0
    %730 = vmatpush2.msra.mxu0 0.0
    %731 = vmatprep.subr.mxu0 0.0
    %732 = vmatpush2.msra.mxu0 0.0
    %733 = vmatprep.subr.mxu0 0.0
    %734 = vmatpush2.msra.mxu0 0.0
    %735 = vmatprep.subr.mxu0 0.0
    %736 = vmatpush2.msra.mxu0 0.0
    %737 = vmatprep.subr.mxu0 0.0
    %738 = vmatpush2.msra.mxu0 0.0
    %739 = vmatprep.subr.mxu0 0.0
    %740 = vmatpush2.msra.mxu0 0.0
    %741 = vmatprep.subr.mxu0 0.0
    %742 = vmatpush2.msra.mxu0 0.0
    %743 = vmatprep.subr.mxu0 0.0
    %744 = vmatpush2.msra.mxu0 0.0
    %745 = vmatprep.subr.mxu0 0.0
    %746 = vmatpush2.msra.mxu0 0.0
    %747 = vmatprep.subr.mxu0 0.0
    %748 = vmatpush2.msra.mxu0 0.0
    %749 = vmatprep.subr.mxu0 0.0
    %750 = vmatpush2.msra.mxu0 0.0
    %751 = vmatprep.subr.mxu0 0.0
    %752 = vmatpush2.msra.mxu0 0.0
    %753 = vmatprep.subr.mxu0 0.0
    %754 = vmatpush2.msra.mxu0 0.0
    %755 = vmatprep.mubr.f32.mxu0 0.0
    %756 = vmatmul.mubr.f32.gmra.mxu0 %v486
    %v757 = vpop.f32.mrf.mxu0
    %v758 = vadd.f32 %v689, %v757
    %v759 = vpop.f32.mrf.mxu0
    %760 = vmatprep.mubr.f32.mxu0 0.0
    %761 = vmatmul.mubr.f32.gmra.mxu0 %v489
    %v762 = vpop.f32.mrf.mxu0
    %v763 = vadd.f32 %v689, %v762
    %v764 = vpop.f32.mrf.mxu0
    %765 = vmatprep.mubr.f32.mxu0 0.0
    %766 = vmatmul.mubr.f32.gmra.mxu0 %v492
    %v767 = vpop.f32.mrf.mxu0
    %v768 = vadd.f32 %v689, %v767
    %v769 = vpop.f32.mrf.mxu0
    %770 = vmatprep.mubr.f32.mxu0 0.0
    %771 = vmatmul.mubr.f32.gmra.mxu0 %v495
    %v772 = vpop.f32.mrf.mxu0
    %v773 = vadd.f32 %v689, %v772
    %v774 = vpop.f32.mrf.mxu0
    %775 = vdwg.mxu0
    %s776 = scalar_lea.vmem %s19, 32
    %v777 = vld [vmem:[%s776] sm:$0xff]
    %v778 = vld [vmem:[%s776 + $0x8] sm:$0xff]
    %v779 = vld [vmem:[%s776 + $0x10] sm:$0xff]
    %v780 = vld [vmem:[%s776 + $0x18] sm:$0xff]
    %s781 = scalar_lea.vmem %s20, 1
    %v782 = vld [vmem:[%s781] sm:$0x1]
    %v784 = vlaneseq
    %v785 = vshrl.u32 %v784, 7
    %v786 = vsub.s32 0, %v785
    %v787 = vrot.slane %v782, %v786
    %789 = vmatprep.subr.mxu0 0.0
    %790 = vmatpush1.msra.mxu0 0.0
    %791 = vmatprep.subr.mxu0 0.0
    %792 = vmatpush1.msra.mxu0 0.0
    %793 = vmatprep.subr.mxu0 0.0
    %794 = vmatpush1.msra.mxu0 0.0
    %795 = vmatprep.subr.mxu0 0.0
    %796 = vmatpush1.msra.mxu0 0.0
    %797 = vmatprep.subr.mxu0 0.0
    %798 = vmatpush1.msra.mxu0 0.0
    %799 = vmatprep.subr.mxu0 0.0
    %800 = vmatpush1.msra.mxu0 0.0
    %801 = vmatprep.subr.mxu0 0.0
    %802 = vmatpush1.msra.mxu0 0.0
    %803 = vmatprep.subr.mxu0 0.0
    %804 = vmatpush1.msra.mxu0 0.0
    %805 = vmatprep.subr.mxu0 0.0
    %806 = vmatpush1.msra.mxu0 0.0
    %807 = vmatprep.subr.mxu0 0.0
    %808 = vmatpush1.msra.mxu0 0.0
    %809 = vmatprep.subr.mxu0 0.0
    %810 = vmatpush1.msra.mxu0 0.0
    %811 = vmatprep.subr.mxu0 0.0
    %812 = vmatpush1.msra.mxu0 0.0
    %813 = vmatprep.subr.mxu0 0.0
    %814 = vmatpush1.msra.mxu0 %v780
    %815 = vmatprep.subr.mxu0 0.0
    %816 = vmatpush1.msra.mxu0 %v779
    %817 = vmatprep.subr.mxu0 0.0
    %818 = vmatpush1.msra.mxu0 %v778
    %819 = vmatprep.subr.mxu0 0.0
    %820 = vmatpush1.msra.mxu0 %v777
    %821 = vmatprep.subr.mxu0 0.0
    %822 = vmatpush2.msra.mxu0 0.0
    %823 = vmatprep.subr.mxu0 0.0
    %824 = vmatpush2.msra.mxu0 0.0
    %825 = vmatprep.subr.mxu0 0.0
    %826 = vmatpush2.msra.mxu0 0.0
    %827 = vmatprep.subr.mxu0 0.0
    %828 = vmatpush2.msra.mxu0 0.0
    %829 = vmatprep.subr.mxu0 0.0
    %830 = vmatpush2.msra.mxu0 0.0
    %831 = vmatprep.subr.mxu0 0.0
    %832 = vmatpush2.msra.mxu0 0.0
    %833 = vmatprep.subr.mxu0 0.0
    %834 = vmatpush2.msra.mxu0 0.0
    %835 = vmatprep.subr.mxu0 0.0
    %836 = vmatpush2.msra.mxu0 0.0
    %837 = vmatprep.subr.mxu0 0.0
    %838 = vmatpush2.msra.mxu0 0.0
    %839 = vmatprep.subr.mxu0 0.0
    %840 = vmatpush2.msra.mxu0 0.0
    %841 = vmatprep.subr.mxu0 0.0
    %842 = vmatpush2.msra.mxu0 0.0
    %843 = vmatprep.subr.mxu0 0.0
    %844 = vmatpush2.msra.mxu0 0.0
    %845 = vmatprep.subr.mxu0 0.0
    %846 = vmatpush2.msra.mxu0 0.0
    %847 = vmatprep.subr.mxu0 0.0
    %848 = vmatpush2.msra.mxu0 0.0
    %849 = vmatprep.subr.mxu0 0.0
    %850 = vmatpush2.msra.mxu0 0.0
    %851 = vmatprep.subr.mxu0 0.0
    %852 = vmatpush2.msra.mxu0 0.0
    %853 = vmatprep.mubr.f32.mxu0 0.0
    %854 = vmatmul.mubr.f32.gmra.mxu0 %v486
    %v855 = vpop.f32.mrf.mxu0
    %v856 = vadd.f32 %v787, %v855
    %v857 = vpop.f32.mrf.mxu0
    %858 = vmatprep.mubr.f32.mxu0 0.0
    %859 = vmatmul.mubr.f32.gmra.mxu0 %v489
    %v860 = vpop.f32.mrf.mxu0
    %v861 = vadd.f32 %v787, %v860
    %v862 = vpop.f32.mrf.mxu0
    %863 = vmatprep.mubr.f32.mxu0 0.0
    %864 = vmatmul.mubr.f32.gmra.mxu0 %v492
    %v865 = vpop.f32.mrf.mxu0
    %v866 = vadd.f32 %v787, %v865
    %v867 = vpop.f32.mrf.mxu0
    %868 = vmatprep.mubr.f32.mxu0 0.0
    %869 = vmatmul.mubr.f32.gmra.mxu0 %v495
    %v870 = vpop.f32.mrf.mxu0
    %v871 = vadd.f32 %v787, %v870
    %v872 = vpop.f32.mrf.mxu0
    %873 = vdwg.mxu0
    %v874 = vsel %vm286, %v288, 0.0
    %875 = vadd.xlane.f32.xlu0 %v874
    %v876 = vpop.xlane.xlu0 %875
    %v877 = vsel %vm284, %v289, 0.0
    %878 = vadd.xlane.f32.xlu0 %v877
    %v879 = vpop.xlane.xlu0 %878
    %v880 = vrcp.pop 32.0
    %v881 = vmul.f32 %v876, %v880
    %v882 = vmul.f32 %v879, %v880
    %v883 = vsub.f32 %v288, %v881
    %v884 = vsub.f32 %v289, %v882
    %v885 = vmul.f32 %v883, %v883
    %v886 = vmul.f32 %v884, %v884
    %v887 = vsel %vm286, %v885, 0.0
    %888 = vadd.xlane.f32.xlu0 %v887
    %v889 = vpop.xlane.xlu0 %888
    %v890 = vsel %vm284, %v886, 0.0
    %891 = vadd.xlane.f32.xlu0 %v890
    %v892 = vpop.xlane.xlu0 %891
    %v893 = vmul.f32 %v889, %v880
    %v894 = vmul.f32 %v892, %v880
    %v895 = vadd.f32 %v893, 1e-05
    %v896 = vadd.f32 %v894, 1e-05
    %v897 = vrsqrt.pop %v895
    %v898 = vrsqrt.pop %v896
    %v899 = vmul.f32 %v883, %v897
    %v900 = vmul.f32 %v884, %v898
    %v901 = vld [vmem:[%s15] sm:$0xff]
    %v902 = vld [vmem:[%s15 + $0x8] sm:$0xff]
    %v903 = vld [vmem:[%s15 + $0x10] sm:$0xff]
    %v904 = vld [vmem:[%s15 + $0x18] sm:$0xff]
    %v905 = vld [vmem:[%s16] sm:$0x1]
    %v907 = vlaneseq
    %v908 = vshrl.u32 %v907, 7
    %v909 = vsub.s32 0, %v908
    %v910 = vrot.slane %v905, %v909
    %v913 = vsel %vm286, %v899, 0
    %v916 = vsel %vm286, %v900, 0
    %918 = vmatprep.subr.mxu0 0.0
    %919 = vmatpush1.msra.mxu0 0.0
    %920 = vmatprep.subr.mxu0 0.0
    %921 = vmatpush1.msra.mxu0 0.0
    %922 = vmatprep.subr.mxu0 0.0
    %923 = vmatpush1.msra.mxu0 0.0
    %924 = vmatprep.subr.mxu0 0.0
    %925 = vmatpush1.msra.mxu0 0.0
    %926 = vmatprep.subr.mxu0 0.0
    %927 = vmatpush1.msra.mxu0 0.0
    %928 = vmatprep.subr.mxu0 0.0
    %929 = vmatpush1.msra.mxu0 0.0
    %930 = vmatprep.subr.mxu0 0.0
    %931 = vmatpush1.msra.mxu0 0.0
    %932 = vmatprep.subr.mxu0 0.0
    %933 = vmatpush1.msra.mxu0 0.0
    %934 = vmatprep.subr.mxu0 0.0
    %935 = vmatpush1.msra.mxu0 0.0
    %936 = vmatprep.subr.mxu0 0.0
    %937 = vmatpush1.msra.mxu0 0.0
    %938 = vmatprep.subr.mxu0 0.0
    %939 = vmatpush1.msra.mxu0 0.0
    %940 = vmatprep.subr.mxu0 0.0
    %941 = vmatpush1.msra.mxu0 0.0
    %942 = vmatprep.subr.mxu0 0.0
    %943 = vmatpush1.msra.mxu0 %v904
    %944 = vmatprep.subr.mxu0 0.0
    %945 = vmatpush1.msra.mxu0 %v903
    %946 = vmatprep.subr.mxu0 0.0
    %947 = vmatpush1.msra.mxu0 %v902
    %948 = vmatprep.subr.mxu0 0.0
    %949 = vmatpush1.msra.mxu0 %v901
    %950 = vmatprep.subr.mxu0 0.0
    %951 = vmatpush2.msra.mxu0 0.0
    %952 = vmatprep.subr.mxu0 0.0
    %953 = vmatpush2.msra.mxu0 0.0
    %954 = vmatprep.subr.mxu0 0.0
    %955 = vmatpush2.msra.mxu0 0.0
    %956 = vmatprep.subr.mxu0 0.0
    %957 = vmatpush2.msra.mxu0 0.0
    %958 = vmatprep.subr.mxu0 0.0
    %959 = vmatpush2.msra.mxu0 0.0
    %960 = vmatprep.subr.mxu0 0.0
    %961 = vmatpush2.msra.mxu0 0.0
    %962 = vmatprep.subr.mxu0 0.0
    %963 = vmatpush2.msra.mxu0 0.0
    %964 = vmatprep.subr.mxu0 0.0
    %965 = vmatpush2.msra.mxu0 0.0
    %966 = vmatprep.subr.mxu0 0.0
    %967 = vmatpush2.msra.mxu0 0.0
    %968 = vmatprep.subr.mxu0 0.0
    %969 = vmatpush2.msra.mxu0 0.0
    %970 = vmatprep.subr.mxu0 0.0
    %971 = vmatpush2.msra.mxu0 0.0
    %972 = vmatprep.subr.mxu0 0.0
    %973 = vmatpush2.msra.mxu0 0.0
    %974 = vmatprep.subr.mxu0 0.0
    %975 = vmatpush2.msra.mxu0 0.0
    %976 = vmatprep.subr.mxu0 0.0
    %977 = vmatpush2.msra.mxu0 0.0
    %978 = vmatprep.subr.mxu0 0.0
    %979 = vmatpush2.msra.mxu0 0.0
    %980 = vmatprep.subr.mxu0 0.0
    %981 = vmatpush2.msra.mxu0 0.0
    %982 = vmatprep.mubr.f32.mxu0 0.0
    %983 = vmatmul.mubr.f32.gmra.mxu0 %v913
    %v984 = vpop.f32.mrf.mxu0
    %v985 = vadd.f32 %v910, %v984
    %v986 = vpop.f32.mrf.mxu0
    %987 = vmatprep.mubr.f32.mxu0 0.0
    %988 = vmatmul.mubr.f32.gmra.mxu0 %v916
    %v989 = vpop.f32.mrf.mxu0
    %v990 = vadd.f32 %v910, %v989
    %v991 = vpop.f32.mrf.mxu0
    %992 = vdwg.mxu0
    %v993 = vmul.f32 %v985, 0.25
    %v994 = vmul.f32 %v990, 0.25
    %vm995 = vcmask 130048
    %v997 = vsel %vm995, %v993, 0
    %v1000 = vsel %vm995, %v994, 0
    %v1003 = vsel %vm995, %v564, 0
    %v1006 = vsel %vm995, %v569, 0
    %1008 = vmatprep.subr.mxu0 0.0
    %1009 = vmatpush1.xpose.msra.mxu0 0.0
    %1010 = vmatprep.subr.mxu0 0.0
    %1011 = vmatpush1.xpose.msra.mxu0 0.0
    %1012 = vmatprep.subr.mxu0 0.0
    %1013 = vmatpush1.xpose.msra.mxu0 0.0
    %1014 = vmatprep.subr.mxu0 0.0
    %1015 = vmatpush1.xpose.msra.mxu0 0.0
    %1016 = vmatprep.subr.mxu0 0.0
    %1017 = vmatpush1.xpose.msra.mxu0 0.0
    %1018 = vmatprep.subr.mxu0 0.0
    %1019 = vmatpush1.xpose.msra.mxu0 0.0
    %1020 = vmatprep.subr.mxu0 0.0
    %1021 = vmatpush1.xpose.msra.mxu0 0.0
    %1022 = vmatprep.subr.mxu0 0.0
    %1023 = vmatpush1.xpose.msra.mxu0 0.0
    %1024 = vmatprep.subr.mxu0 0.0
    %1025 = vmatpush1.xpose.msra.mxu0 0.0
    %1026 = vmatprep.subr.mxu0 0.0
    %1027 = vmatpush1.xpose.msra.mxu0 0.0
    %1028 = vmatprep.subr.mxu0 0.0
    %1029 = vmatpush1.xpose.msra.mxu0 0.0
    %1030 = vmatprep.subr.mxu0 0.0
    %1031 = vmatpush1.xpose.msra.mxu0 0.0
    %1032 = vmatprep.subr.mxu0 0.0
    %1033 = vmatpush1.xpose.msra.mxu0 0.0
    %1034 = vmatprep.subr.mxu0 0.0
    %1035 = vmatpush1.xpose.msra.mxu0 0.0
    %1036 = vmatprep.subr.mxu0 0.0
    %1037 = vmatpush1.xpose.msra.mxu0 %v1006
    %1038 = vmatprep.subr.mxu0 0.0
    %1039 = vmatpush1.xpose.msra.mxu0 %v1003
    %1040 = vmatprep.subr.mxu0 0.0
    %1041 = vmatpush2.xpose.msra.mxu0 0.0
    %1042 = vmatprep.subr.mxu0 0.0
    %1043 = vmatpush2.xpose.msra.mxu0 0.0
    %1044 = vmatprep.subr.mxu0 0.0
    %1045 = vmatpush2.xpose.msra.mxu0 0.0
    %1046 = vmatprep.subr.mxu0 0.0
    %1047 = vmatpush2.xpose.msra.mxu0 0.0
    %1048 = vmatprep.subr.mxu0 0.0
    %1049 = vmatpush2.xpose.msra.mxu0 0.0
    %1050 = vmatprep.subr.mxu0 0.0
    %1051 = vmatpush2.xpose.msra.mxu0 0.0
    %1052 = vmatprep.subr.mxu0 0.0
    %1053 = vmatpush2.xpose.msra.mxu0 0.0
    %1054 = vmatprep.subr.mxu0 0.0
    %1055 = vmatpush2.xpose.msra.mxu0 0.0
    %1056 = vmatprep.subr.mxu0 0.0
    %1057 = vmatpush2.xpose.msra.mxu0 0.0
    %1058 = vmatprep.subr.mxu0 0.0
    %1059 = vmatpush2.xpose.msra.mxu0 0.0
    %1060 = vmatprep.subr.mxu0 0.0
    %1061 = vmatpush2.xpose.msra.mxu0 0.0
    %1062 = vmatprep.subr.mxu0 0.0
    %1063 = vmatpush2.xpose.msra.mxu0 0.0
    %1064 = vmatprep.subr.mxu0 0.0
    %1065 = vmatpush2.xpose.msra.mxu0 0.0
    %1066 = vmatprep.subr.mxu0 0.0
    %1067 = vmatpush2.xpose.msra.mxu0 0.0
    %1068 = vmatprep.subr.mxu0 0.0
    %1069 = vmatpush2.xpose.msra.mxu0 0.0
    %1070 = vmatprep.subr.mxu0 0.0
    %1071 = vmatpush2.xpose.msra.mxu0 0.0
    %1072 = vmatprep.mubr.f32.mxu0 0.0
    %1073 = vmatmul.mubr.f32.gmra.mxu0 %v997
    %v1074 = vpop.f32.mrf.mxu0
    %v1075 = vadd.f32 0.0, %v1074
    %v1076 = vpop.f32.mrf.mxu0
    %1077 = vmatprep.mubr.f32.mxu0 0.0
    %1078 = vmatmul.mubr.f32.gmra.mxu0 %v1000
    %v1079 = vpop.f32.mrf.mxu0
    %v1080 = vadd.f32 0.0, %v1079
    %v1081 = vpop.f32.mrf.mxu0
    %1082 = vdwg.mxu0
    %v1083 = vsel %vm995, %v1075, -inf
    %1084 = vmax.xlane.f32.xlu0 %v1083
    %v1085 = vpop.xlane.xlu0 %1084
    %vm1086 = vcmask 122880
    %v1087 = vsel %vm1086, %v1080, -inf
    %1088 = vmax.xlane.f32.xlu0 %v1087
    %v1089 = vpop.xlane.xlu0 %1088
    %v1090 = vsub.f32 %v1075, %v1085
    %v1091 = vsub.f32 %v1080, %v1089
    %v1092 = vmul.f32 %v1090, 1.442695
    %v1093 = vpow.pop %v1092
    %v1094 = vmul.f32 %v1091, 1.442695
    %v1095 = vpow.pop %v1094
    %v1096 = vsel %vm995, %v1093, 0.0
    %1097 = vadd.xlane.f32.xlu0 %v1096
    %v1098 = vpop.xlane.xlu0 %1097
    %v1099 = vsel %vm1086, %v1095, 0.0
    %1100 = vadd.xlane.f32.xlu0 %v1099
    %v1101 = vpop.xlane.xlu0 %1100
    %v1102 = vrcp.pop %v1098
    %v1103 = vmul.f32 %v1093, %v1102
    %v1104 = vrcp.pop %v1101
    %v1105 = vmul.f32 %v1095, %v1104
    %v1107 = vsel %vm995, %v1103, 0
    %v1110 = vsel %vm995, %v1105, 0
    %1112 = vmatprep.subr.mxu0 0.0
    %1113 = vmatpush1.msra.mxu0 0.0
    %1114 = vmatprep.subr.mxu0 0.0
    %1115 = vmatpush1.msra.mxu0 0.0
    %1116 = vmatprep.subr.mxu0 0.0
    %1117 = vmatpush1.msra.mxu0 0.0
    %1118 = vmatprep.subr.mxu0 0.0
    %1119 = vmatpush1.msra.mxu0 0.0
    %1120 = vmatprep.subr.mxu0 0.0
    %1121 = vmatpush1.msra.mxu0 0.0
    %1122 = vmatprep.subr.mxu0 0.0
    %1123 = vmatpush1.msra.mxu0 0.0
    %1124 = vmatprep.subr.mxu0 0.0
    %1125 = vmatpush1.msra.mxu0 0.0
    %1126 = vmatprep.subr.mxu0 0.0
    %1127 = vmatpush1.msra.mxu0 0.0
    %1128 = vmatprep.subr.mxu0 0.0
    %1129 = vmatpush1.msra.mxu0 0.0
    %1130 = vmatprep.subr.mxu0 0.0
    %1131 = vmatpush1.msra.mxu0 0.0
    %1132 = vmatprep.subr.mxu0 0.0
    %1133 = vmatpush1.msra.mxu0 0.0
    %1134 = vmatprep.subr.mxu0 0.0
    %1135 = vmatpush1.msra.mxu0 0.0
    %1136 = vmatprep.subr.mxu0 0.0
    %1137 = vmatpush1.msra.mxu0 0.0
    %1138 = vmatprep.subr.mxu0 0.0
    %1139 = vmatpush1.msra.mxu0 0.0
    %1140 = vmatprep.subr.mxu0 0.0
    %1141 = vmatpush1.msra.mxu0 %v665
    %1142 = vmatprep.subr.mxu0 0.0
    %1143 = vmatpush1.msra.mxu0 %v660
    %1144 = vmatprep.subr.mxu0 0.0
    %1145 = vmatpush2.msra.mxu0 0.0
    %1146 = vmatprep.subr.mxu0 0.0
    %1147 = vmatpush2.msra.mxu0 0.0
    %1148 = vmatprep.subr.mxu0 0.0
    %1149 = vmatpush2.msra.mxu0 0.0
    %1150 = vmatprep.subr.mxu0 0.0
    %1151 = vmatpush2.msra.mxu0 0.0
    %1152 = vmatprep.subr.mxu0 0.0
    %1153 = vmatpush2.msra.mxu0 0.0
    %1154 = vmatprep.subr.mxu0 0.0
    %1155 = vmatpush2.msra.mxu0 0.0
    %1156 = vmatprep.subr.mxu0 0.0
    %1157 = vmatpush2.msra.mxu0 0.0
    %1158 = vmatprep.subr.mxu0 0.0
    %1159 = vmatpush2.msra.mxu0 0.0
    %1160 = vmatprep.subr.mxu0 0.0
    %1161 = vmatpush2.msra.mxu0 0.0
    %1162 = vmatprep.subr.mxu0 0.0
    %1163 = vmatpush2.msra.mxu0 0.0
    %1164 = vmatprep.subr.mxu0 0.0
    %1165 = vmatpush2.msra.mxu0 0.0
    %1166 = vmatprep.subr.mxu0 0.0
    %1167 = vmatpush2.msra.mxu0 0.0
    %1168 = vmatprep.subr.mxu0 0.0
    %1169 = vmatpush2.msra.mxu0 0.0
    %1170 = vmatprep.subr.mxu0 0.0
    %1171 = vmatpush2.msra.mxu0 0.0
    %1172 = vmatprep.subr.mxu0 0.0
    %1173 = vmatpush2.msra.mxu0 0.0
    %1174 = vmatprep.subr.mxu0 0.0
    %1175 = vmatpush2.msra.mxu0 0.0
    %1176 = vmatprep.mubr.f32.mxu0 0.0
    %1177 = vmatmul.mubr.f32.gmra.mxu0 %v1107
    %v1178 = vpop.f32.mrf.mxu0
    %v1179 = vadd.f32 0.0, %v1178
    %v1180 = vpop.f32.mrf.mxu0
    %1181 = vmatprep.mubr.f32.mxu0 0.0
    %1182 = vmatmul.mubr.f32.gmra.mxu0 %v1110
    %v1183 = vpop.f32.mrf.mxu0
    %v1184 = vadd.f32 0.0, %v1183
    %v1185 = vpop.f32.mrf.mxu0
    %1186 = vdwg.mxu0
    %v1187 = vld [vmem:[%s21] sm:$0xff]
    %v1188 = vld [vmem:[%s21 + $0x8] sm:$0xff]
    %s1189 = scalar_lea.vmem %s15, 32
    %v1190 = vld [vmem:[%s1189] sm:$0xff]
    %v1191 = vld [vmem:[%s1189 + $0x8] sm:$0xff]
    %v1192 = vld [vmem:[%s1189 + $0x10] sm:$0xff]
    %v1193 = vld [vmem:[%s1189 + $0x18] sm:$0xff]
    %s1194 = scalar_lea.vmem %s16, 1
    %v1195 = vld [vmem:[%s1194] sm:$0x1]
    %v1197 = vlaneseq
    %v1198 = vshrl.u32 %v1197, 7
    %v1199 = vsub.s32 0, %v1198
    %v1200 = vrot.slane %v1195, %v1199
    %1202 = vmatprep.subr.mxu0 0.0
    %1203 = vmatpush1.msra.mxu0 0.0
    %1204 = vmatprep.subr.mxu0 0.0
    %1205 = vmatpush1.msra.mxu0 0.0
    %1206 = vmatprep.subr.mxu0 0.0
    %1207 = vmatpush1.msra.mxu0 0.0
    %1208 = vmatprep.subr.mxu0 0.0
    %1209 = vmatpush1.msra.mxu0 0.0
    %1210 = vmatprep.subr.mxu0 0.0
    %1211 = vmatpush1.msra.mxu0 0.0
    %1212 = vmatprep.subr.mxu0 0.0
    %1213 = vmatpush1.msra.mxu0 0.0
    %1214 = vmatprep.subr.mxu0 0.0
    %1215 = vmatpush1.msra.mxu0 0.0
    %1216 = vmatprep.subr.mxu0 0.0
    %1217 = vmatpush1.msra.mxu0 0.0
    %1218 = vmatprep.subr.mxu0 0.0
    %1219 = vmatpush1.msra.mxu0 0.0
    %1220 = vmatprep.subr.mxu0 0.0
    %1221 = vmatpush1.msra.mxu0 0.0
    %1222 = vmatprep.subr.mxu0 0.0
    %1223 = vmatpush1.msra.mxu0 0.0
    %1224 = vmatprep.subr.mxu0 0.0
    %1225 = vmatpush1.msra.mxu0 0.0
    %1226 = vmatprep.subr.mxu0 0.0
    %1227 = vmatpush1.msra.mxu0 %v1193
    %1228 = vmatprep.subr.mxu0 0.0
    %1229 = vmatpush1.msra.mxu0 %v1192
    %1230 = vmatprep.subr.mxu0 0.0
    %1231 = vmatpush1.msra.mxu0 %v1191
    %1232 = vmatprep.subr.mxu0 0.0
    %1233 = vmatpush1.msra.mxu0 %v1190
    %1234 = vmatprep.subr.mxu0 0.0
    %1235 = vmatpush2.msra.mxu0 0.0
    %1236 = vmatprep.subr.mxu0 0.0
    %1237 = vmatpush2.msra.mxu0 0.0
    %1238 = vmatprep.subr.mxu0 0.0
    %1239 = vmatpush2.msra.mxu0 0.0
    %1240 = vmatprep.subr.mxu0 0.0
    %1241 = vmatpush2.msra.mxu0 0.0
    %1242 = vmatprep.subr.mxu0 0.0
    %1243 = vmatpush2.msra.mxu0 0.0
    %1244 = vmatprep.subr.mxu0 0.0
    %1245 = vmatpush2.msra.mxu0 0.0
    %1246 = vmatprep.subr.mxu0 0.0
    %1247 = vmatpush2.msra.mxu0 0.0
    %1248 = vmatprep.subr.mxu0 0.0
    %1249 = vmatpush2.msra.mxu0 0.0
    %1250 = vmatprep.subr.mxu0 0.0
    %1251 = vmatpush2.msra.mxu0 0.0
    %1252 = vmatprep.subr.mxu0 0.0
    %1253 = vmatpush2.msra.mxu0 0.0
    %1254 = vmatprep.subr.mxu0 0.0
    %1255 = vmatpush2.msra.mxu0 0.0
    %1256 = vmatprep.subr.mxu0 0.0
    %1257 = vmatpush2.msra.mxu0 0.0
    %1258 = vmatprep.subr.mxu0 0.0
    %1259 = vmatpush2.msra.mxu0 0.0
    %1260 = vmatprep.subr.mxu0 0.0
    %1261 = vmatpush2.msra.mxu0 0.0
    %1262 = vmatprep.subr.mxu0 0.0
    %1263 = vmatpush2.msra.mxu0 0.0
    %1264 = vmatprep.subr.mxu0 0.0
    %1265 = vmatpush2.msra.mxu0 0.0
    %1266 = vmatprep.mubr.f32.mxu0 0.0
    %1267 = vmatmul.mubr.f32.gmra.mxu0 %v913
    %v1268 = vpop.f32.mrf.mxu0
    %v1269 = vadd.f32 %v1200, %v1268
    %v1270 = vpop.f32.mrf.mxu0
    %1271 = vmatprep.mubr.f32.mxu0 0.0
    %1272 = vmatmul.mubr.f32.gmra.mxu0 %v916
    %v1273 = vpop.f32.mrf.mxu0
    %v1274 = vadd.f32 %v1200, %v1273
    %v1275 = vpop.f32.mrf.mxu0
    %1276 = vdwg.mxu0
    %v1277 = vmul.f32 %v1269, 0.25
    %v1278 = vmul.f32 %v1274, 0.25
    %v1280 = vsel %vm995, %v1277, 0
    %v1283 = vsel %vm995, %v1278, 0
    %v1286 = vsel %vm995, %v758, 0
    %v1289 = vsel %vm995, %v763, 0
    %1291 = vmatprep.subr.mxu0 0.0
    %1292 = vmatpush1.xpose.msra.mxu0 0.0
    %1293 = vmatprep.subr.mxu0 0.0
    %1294 = vmatpush1.xpose.msra.mxu0 0.0
    %1295 = vmatprep.subr.mxu0 0.0
    %1296 = vmatpush1.xpose.msra.mxu0 0.0
    %1297 = vmatprep.subr.mxu0 0.0
    %1298 = vmatpush1.xpose.msra.mxu0 0.0
    %1299 = vmatprep.subr.mxu0 0.0
    %1300 = vmatpush1.xpose.msra.mxu0 0.0
    %1301 = vmatprep.subr.mxu0 0.0
    %1302 = vmatpush1.xpose.msra.mxu0 0.0
    %1303 = vmatprep.subr.mxu0 0.0
    %1304 = vmatpush1.xpose.msra.mxu0 0.0
    %1305 = vmatprep.subr.mxu0 0.0
    %1306 = vmatpush1.xpose.msra.mxu0 0.0
    %1307 = vmatprep.subr.mxu0 0.0
    %1308 = vmatpush1.xpose.msra.mxu0 0.0
    %1309 = vmatprep.subr.mxu0 0.0
    %1310 = vmatpush1.xpose.msra.mxu0 0.0
    %1311 = vmatprep.subr.mxu0 0.0
    %1312 = vmatpush1.xpose.msra.mxu0 0.0
    %1313 = vmatprep.subr.mxu0 0.0
    %1314 = vmatpush1.xpose.msra.mxu0 0.0
    %1315 = vmatprep.subr.mxu0 0.0
    %1316 = vmatpush1.xpose.msra.mxu0 0.0
    %1317 = vmatprep.subr.mxu0 0.0
    %1318 = vmatpush1.xpose.msra.mxu0 0.0
    %1319 = vmatprep.subr.mxu0 0.0
    %1320 = vmatpush1.xpose.msra.mxu0 %v1289
    %1321 = vmatprep.subr.mxu0 0.0
    %1322 = vmatpush1.xpose.msra.mxu0 %v1286
    %1323 = vmatprep.subr.mxu0 0.0
    %1324 = vmatpush2.xpose.msra.mxu0 0.0
    %1325 = vmatprep.subr.mxu0 0.0
    %1326 = vmatpush2.xpose.msra.mxu0 0.0
    %1327 = vmatprep.subr.mxu0 0.0
    %1328 = vmatpush2.xpose.msra.mxu0 0.0
    %1329 = vmatprep.subr.mxu0 0.0
    %1330 = vmatpush2.xpose.msra.mxu0 0.0
    %1331 = vmatprep.subr.mxu0 0.0
    %1332 = vmatpush2.xpose.msra.mxu0 0.0
    %1333 = vmatprep.subr.mxu0 0.0
    %1334 = vmatpush2.xpose.msra.mxu0 0.0
    %1335 = vmatprep.subr.mxu0 0.0
    %1336 = vmatpush2.xpose.msra.mxu0 0.0
    %1337 = vmatprep.subr.mxu0 0.0
    %1338 = vmatpush2.xpose.msra.mxu0 0.0
    %1339 = vmatprep.subr.mxu0 0.0
    %1340 = vmatpush2.xpose.msra.mxu0 0.0
    %1341 = vmatprep.subr.mxu0 0.0
    %1342 = vmatpush2.xpose.msra.mxu0 0.0
    %1343 = vmatprep.subr.mxu0 0.0
    %1344 = vmatpush2.xpose.msra.mxu0 0.0
    %1345 = vmatprep.subr.mxu0 0.0
    %1346 = vmatpush2.xpose.msra.mxu0 0.0
    %1347 = vmatprep.subr.mxu0 0.0
    %1348 = vmatpush2.xpose.msra.mxu0 0.0
    %1349 = vmatprep.subr.mxu0 0.0
    %1350 = vmatpush2.xpose.msra.mxu0 0.0
    %1351 = vmatprep.subr.mxu0 0.0
    %1352 = vmatpush2.xpose.msra.mxu0 0.0
    %1353 = vmatprep.subr.mxu0 0.0
    %1354 = vmatpush2.xpose.msra.mxu0 0.0
    %1355 = vmatprep.mubr.f32.mxu0 0.0
    %1356 = vmatmul.mubr.f32.gmra.mxu0 %v1280
    %v1357 = vpop.f32.mrf.mxu0
    %v1358 = vadd.f32 0.0, %v1357
    %v1359 = vpop.f32.mrf.mxu0
    %1360 = vmatprep.mubr.f32.mxu0 0.0
    %1361 = vmatmul.mubr.f32.gmra.mxu0 %v1283
    %v1362 = vpop.f32.mrf.mxu0
    %v1363 = vadd.f32 0.0, %v1362
    %v1364 = vpop.f32.mrf.mxu0
    %1365 = vdwg.mxu0
    %v1366 = vsel %vm995, %v1358, -inf
    %1367 = vmax.xlane.f32.xlu0 %v1366
    %v1368 = vpop.xlane.xlu0 %1367
    %v1369 = vsel %vm1086, %v1363, -inf
    %1370 = vmax.xlane.f32.xlu0 %v1369
    %v1371 = vpop.xlane.xlu0 %1370
    %v1372 = vsub.f32 %v1358, %v1368
    %v1373 = vsub.f32 %v1363, %v1371
    %v1374 = vmul.f32 %v1372, 1.442695
    %v1375 = vpow.pop %v1374
    %v1376 = vmul.f32 %v1373, 1.442695
    %v1377 = vpow.pop %v1376
    %v1378 = vsel %vm995, %v1375, 0.0
    %1379 = vadd.xlane.f32.xlu0 %v1378
    %v1380 = vpop.xlane.xlu0 %1379
    %v1381 = vsel %vm1086, %v1377, 0.0
    %1382 = vadd.xlane.f32.xlu0 %v1381
    %v1383 = vpop.xlane.xlu0 %1382
    %v1384 = vrcp.pop %v1380
    %v1385 = vmul.f32 %v1375, %v1384
    %v1386 = vrcp.pop %v1383
    %v1387 = vmul.f32 %v1377, %v1386
    %v1389 = vsel %vm995, %v1385, 0
    %v1392 = vsel %vm995, %v1387, 0
    %1394 = vmatprep.subr.mxu0 0.0
    %1395 = vmatpush1.msra.mxu0 0.0
    %1396 = vmatprep.subr.mxu0 0.0
    %1397 = vmatpush1.msra.mxu0 0.0
    %1398 = vmatprep.subr.mxu0 0.0
    %1399 = vmatpush1.msra.mxu0 0.0
    %1400 = vmatprep.subr.mxu0 0.0
    %1401 = vmatpush1.msra.mxu0 0.0
    %1402 = vmatprep.subr.mxu0 0.0
    %1403 = vmatpush1.msra.mxu0 0.0
    %1404 = vmatprep.subr.mxu0 0.0
    %1405 = vmatpush1.msra.mxu0 0.0
    %1406 = vmatprep.subr.mxu0 0.0
    %1407 = vmatpush1.msra.mxu0 0.0
    %1408 = vmatprep.subr.mxu0 0.0
    %1409 = vmatpush1.msra.mxu0 0.0
    %1410 = vmatprep.subr.mxu0 0.0
    %1411 = vmatpush1.msra.mxu0 0.0
    %1412 = vmatprep.subr.mxu0 0.0
    %1413 = vmatpush1.msra.mxu0 0.0
    %1414 = vmatprep.subr.mxu0 0.0
    %1415 = vmatpush1.msra.mxu0 0.0
    %1416 = vmatprep.subr.mxu0 0.0
    %1417 = vmatpush1.msra.mxu0 0.0
    %1418 = vmatprep.subr.mxu0 0.0
    %1419 = vmatpush1.msra.mxu0 0.0
    %1420 = vmatprep.subr.mxu0 0.0
    %1421 = vmatpush1.msra.mxu0 0.0
    %1422 = vmatprep.subr.mxu0 0.0
    %1423 = vmatpush1.msra.mxu0 %v861
    %1424 = vmatprep.subr.mxu0 0.0
    %1425 = vmatpush1.msra.mxu0 %v856
    %1426 = vmatprep.subr.mxu0 0.0
    %1427 = vmatpush2.msra.mxu0 0.0
    %1428 = vmatprep.subr.mxu0 0.0
    %1429 = vmatpush2.msra.mxu0 0.0
    %1430 = vmatprep.subr.mxu0 0.0
    %1431 = vmatpush2.msra.mxu0 0.0
    %1432 = vmatprep.subr.mxu0 0.0
    %1433 = vmatpush2.msra.mxu0 0.0
    %1434 = vmatprep.subr.mxu0 0.0
    %1435 = vmatpush2.msra.mxu0 0.0
    %1436 = vmatprep.subr.mxu0 0.0
    %1437 = vmatpush2.msra.mxu0 0.0
    %1438 = vmatprep.subr.mxu0 0.0
    %1439 = vmatpush2.msra.mxu0 0.0
    %1440 = vmatprep.subr.mxu0 0.0
    %1441 = vmatpush2.msra.mxu0 0.0
    %1442 = vmatprep.subr.mxu0 0.0
    %1443 = vmatpush2.msra.mxu0 0.0
    %1444 = vmatprep.subr.mxu0 0.0
    %1445 = vmatpush2.msra.mxu0 0.0
    %1446 = vmatprep.subr.mxu0 0.0
    %1447 = vmatpush2.msra.mxu0 0.0
    %1448 = vmatprep.subr.mxu0 0.0
    %1449 = vmatpush2.msra.mxu0 0.0
    %1450 = vmatprep.subr.mxu0 0.0
    %1451 = vmatpush2.msra.mxu0 0.0
    %1452 = vmatprep.subr.mxu0 0.0
    %1453 = vmatpush2.msra.mxu0 0.0
    %1454 = vmatprep.subr.mxu0 0.0
    %1455 = vmatpush2.msra.mxu0 0.0
    %1456 = vmatprep.subr.mxu0 0.0
    %1457 = vmatpush2.msra.mxu0 0.0
    %1458 = vmatprep.mubr.f32.mxu0 0.0
    %1459 = vmatmul.mubr.f32.gmra.mxu0 %v1389
    %v1460 = vpop.f32.mrf.mxu0
    %v1461 = vadd.f32 0.0, %v1460
    %v1462 = vpop.f32.mrf.mxu0
    %1463 = vmatprep.mubr.f32.mxu0 0.0
    %1464 = vmatmul.mubr.f32.gmra.mxu0 %v1392
    %v1465 = vpop.f32.mrf.mxu0
    %v1466 = vadd.f32 0.0, %v1465
    %v1467 = vpop.f32.mrf.mxu0
    %1468 = vdwg.mxu0
    %s1469 = scalar_lea.vmem %s21, 16
    %v1470 = vld [vmem:[%s1469] sm:$0xff]
    %v1471 = vld [vmem:[%s1469 + $0x8] sm:$0xff]
    %v1473 = vsel %vm995, %v1461, 0
    %v1476 = vsel %vm995, %v1466, 0
    %1478 = vmatprep.subr.mxu0 0.0
    %1479 = vmatpush1.msra.mxu0 0.0
    %1480 = vmatprep.subr.mxu0 0.0
    %1481 = vmatpush1.msra.mxu0 0.0
    %1482 = vmatprep.subr.mxu0 0.0
    %1483 = vmatpush1.msra.mxu0 0.0
    %1484 = vmatprep.subr.mxu0 0.0
    %1485 = vmatpush1.msra.mxu0 0.0
    %1486 = vmatprep.subr.mxu0 0.0
    %1487 = vmatpush1.msra.mxu0 0.0
    %1488 = vmatprep.subr.mxu0 0.0
    %1489 = vmatpush1.msra.mxu0 0.0
    %1490 = vmatprep.subr.mxu0 0.0
    %1491 = vmatpush1.msra.mxu0 0.0
    %1492 = vmatprep.subr.mxu0 0.0
    %1493 = vmatpush1.msra.mxu0 0.0
    %1494 = vmatprep.subr.mxu0 0.0
    %1495 = vmatpush1.msra.mxu0 0.0
    %1496 = vmatprep.subr.mxu0 0.0
    %1497 = vmatpush1.msra.mxu0 0.0
    %1498 = vmatprep.subr.mxu0 0.0
    %1499 = vmatpush1.msra.mxu0 0.0
    %1500 = vmatprep.subr.mxu0 0.0
    %1501 = vmatpush1.msra.mxu0 0.0
    %1502 = vmatprep.subr.mxu0 0.0
    %1503 = vmatpush1.msra.mxu0 0.0
    %1504 = vmatprep.subr.mxu0 0.0
    %1505 = vmatpush1.msra.mxu0 0.0
    %1506 = vmatprep.subr.mxu0 0.0
    %1507 = vmatpush1.msra.mxu0 %v1471
    %1508 = vmatprep.subr.mxu0 0.0
    %1509 = vmatpush1.msra.mxu0 %v1470
    %1510 = vmatprep.subr.mxu0 0.0
    %1511 = vmatpush2.msra.mxu0 0.0
    %1512 = vmatprep.subr.mxu0 0.0
    %1513 = vmatpush2.msra.mxu0 0.0
    %1514 = vmatprep.subr.mxu0 0.0
    %1515 = vmatpush2.msra.mxu0 0.0
    %1516 = vmatprep.subr.mxu0 0.0
    %1517 = vmatpush2.msra.mxu0 0.0
    %1518 = vmatprep.subr.mxu0 0.0
    %1519 = vmatpush2.msra.mxu0 0.0
    %1520 = vmatprep.subr.mxu0 0.0
    %1521 = vmatpush2.msra.mxu0 0.0
    %1522 = vmatprep.subr.mxu0 0.0
    %1523 = vmatpush2.msra.mxu0 0.0
    %1524 = vmatprep.subr.mxu0 0.0
    %1525 = vmatpush2.msra.mxu0 0.0
    %1526 = vmatprep.subr.mxu0 0.0
    %1527 = vmatpush2.msra.mxu0 0.0
    %1528 = vmatprep.subr.mxu0 0.0
    %1529 = vmatpush2.msra.mxu0 0.0
    %1530 = vmatprep.subr.mxu0 0.0
    %1531 = vmatpush2.msra.mxu0 0.0
    %1532 = vmatprep.subr.mxu0 0.0
    %1533 = vmatpush2.msra.mxu0 0.0
    %1534 = vmatprep.subr.mxu0 0.0
    %1535 = vmatpush2.msra.mxu0 0.0
    %1536 = vmatprep.subr.mxu0 0.0
    %1537 = vmatpush2.msra.mxu0 0.0
    %1538 = vmatprep.subr.mxu0 0.0
    %1539 = vmatpush2.msra.mxu0 0.0
    %1540 = vmatprep.subr.mxu0 0.0
    %1541 = vmatpush2.msra.mxu0 0.0
    %1542 = vmatprep.mubr.f32.mxu0 0.0
    %1543 = vmatmul.mubr.f32.gmra.mxu0 %v1473
    %v1544 = vpop.f32.mrf.mxu0
    %v1545 = vadd.f32 0.0, %v1544
    %v1546 = vpop.f32.mrf.mxu0
    %1547 = vmatprep.mubr.f32.mxu0 0.0
    %1548 = vmatmul.mubr.f32.gmra.mxu0 %v1476
    %v1549 = vpop.f32.mrf.mxu0
    %v1550 = vadd.f32 0.0, %v1549
    %v1551 = vpop.f32.mrf.mxu0
    %1552 = vdwg.mxu0
    %v1554 = vsel %vm995, %v1179, 0
    %v1557 = vsel %vm995, %v1184, 0
    %1559 = vmatprep.subr.mxu0 0.0
    %1560 = vmatpush1.msra.mxu0 0.0
    %1561 = vmatprep.subr.mxu0 0.0
    %1562 = vmatpush1.msra.mxu0 0.0
    %1563 = vmatprep.subr.mxu0 0.0
    %1564 = vmatpush1.msra.mxu0 0.0
    %1565 = vmatprep.subr.mxu0 0.0
    %1566 = vmatpush1.msra.mxu0 0.0
    %1567 = vmatprep.subr.mxu0 0.0
    %1568 = vmatpush1.msra.mxu0 0.0
    %1569 = vmatprep.subr.mxu0 0.0
    %1570 = vmatpush1.msra.mxu0 0.0
    %1571 = vmatprep.subr.mxu0 0.0
    %1572 = vmatpush1.msra.mxu0 0.0
    %1573 = vmatprep.subr.mxu0 0.0
    %1574 = vmatpush1.msra.mxu0 0.0
    %1575 = vmatprep.subr.mxu0 0.0
    %1576 = vmatpush1.msra.mxu0 0.0
    %1577 = vmatprep.subr.mxu0 0.0
    %1578 = vmatpush1.msra.mxu0 0.0
    %1579 = vmatprep.subr.mxu0 0.0
    %1580 = vmatpush1.msra.mxu0 0.0
    %1581 = vmatprep.subr.mxu0 0.0
    %1582 = vmatpush1.msra.mxu0 0.0
    %1583 = vmatprep.subr.mxu0 0.0
    %1584 = vmatpush1.msra.mxu0 0.0
    %1585 = vmatprep.subr.mxu0 0.0
    %1586 = vmatpush1.msra.mxu0 0.0
    %1587 = vmatprep.subr.mxu0 0.0
    %1588 = vmatpush1.msra.mxu0 %v1188
    %1589 = vmatprep.subr.mxu0 0.0
    %1590 = vmatpush1.msra.mxu0 %v1187
    %1591 = vmatprep.subr.mxu0 0.0
    %1592 = vmatpush2.msra.mxu0 0.0
    %1593 = vmatprep.subr.mxu0 0.0
    %1594 = vmatpush2.msra.mxu0 0.0
    %1595 = vmatprep.subr.mxu0 0.0
    %1596 = vmatpush2.msra.mxu0 0.0
    %1597 = vmatprep.subr.mxu0 0.0
    %1598 = vmatpush2.msra.mxu0 0.0
    %1599 = vmatprep.subr.mxu0 0.0
    %1600 = vmatpush2.msra.mxu0 0.0
    %1601 = vmatprep.subr.mxu0 0.0
    %1602 = vmatpush2.msra.mxu0 0.0
    %1603 = vmatprep.subr.mxu0 0.0
    %1604 = vmatpush2.msra.mxu0 0.0
    %1605 = vmatprep.subr.mxu0 0.0
    %1606 = vmatpush2.msra.mxu0 0.0
    %1607 = vmatprep.subr.mxu0 0.0
    %1608 = vmatpush2.msra.mxu0 0.0
    %1609 = vmatprep.subr.mxu0 0.0
    %1610 = vmatpush2.msra.mxu0 0.0
    %1611 = vmatprep.subr.mxu0 0.0
    %1612 = vmatpush2.msra.mxu0 0.0
    %1613 = vmatprep.subr.mxu0 0.0
    %1614 = vmatpush2.msra.mxu0 0.0
    %1615 = vmatprep.subr.mxu0 0.0
    %1616 = vmatpush2.msra.mxu0 0.0
    %1617 = vmatprep.subr.mxu0 0.0
    %1618 = vmatpush2.msra.mxu0 0.0
    %1619 = vmatprep.subr.mxu0 0.0
    %1620 = vmatpush2.msra.mxu0 0.0
    %1621 = vmatprep.subr.mxu0 0.0
    %1622 = vmatpush2.msra.mxu0 0.0
    %1623 = vmatprep.mubr.f32.mxu0 0.0
    %1624 = vmatmul.mubr.f32.gmra.mxu0 %v1554
    %v1625 = vpop.f32.mrf.mxu0
    %v1626 = vadd.f32 %v1545, %v1625
    %v1627 = vpop.f32.mrf.mxu0
    %1628 = vmatprep.mubr.f32.mxu0 0.0
    %1629 = vmatmul.mubr.f32.gmra.mxu0 %v1557
    %v1630 = vpop.f32.mrf.mxu0
    %v1631 = vadd.f32 %v1550, %v1630
    %v1632 = vpop.f32.mrf.mxu0
    %1633 = vdwg.mxu0
    %v1634 = vadd.f32 %v288, %v1626
    %v1635 = vadd.f32 %v289, %v1631
    %v1636 = vld [vmem:[%s22] sm:$0x1]
    %v1638 = vlaneseq
    %v1639 = vshrl.u32 %v1638, 7
    %v1640 = vsub.s32 0, %v1639
    %v1641 = vrot.slane %v1636, %v1640
    %v1643 = vadd.f32 %v1634, %v1641
    %v1644 = vadd.f32 %v1635, %v1641
    %v1645 = vsel %vm286, %v1643, 0.0
    %1646 = vadd.xlane.f32.xlu0 %v1645
    %v1647 = vpop.xlane.xlu0 %1646
    %v1648 = vsel %vm284, %v1644, 0.0
    %1649 = vadd.xlane.f32.xlu0 %v1648
    %v1650 = vpop.xlane.xlu0 %1649
    %v1651 = vmul.f32 %v1647, %v880
    %v1652 = vmul.f32 %v1650, %v880
    %v1653 = vsub.f32 %v1643, %v1651
    %v1654 = vsub.f32 %v1644, %v1652
    %v1655 = vmul.f32 %v1653, %v1653
    %v1656 = vmul.f32 %v1654, %v1654
    %v1657 = vsel %vm286, %v1655, 0.0
    %1658 = vadd.xlane.f32.xlu0 %v1657
    %v1659 = vpop.xlane.xlu0 %1658
    %v1660 = vsel %vm284, %v1656, 0.0
    %1661 = vadd.xlane.f32.xlu0 %v1660
    %v1662 = vpop.xlane.xlu0 %1661
    %v1663 = vmul.f32 %v1659, %v880
    %v1664 = vmul.f32 %v1662, %v880
    %v1665 = vadd.f32 %v1663, 1e-05
    %v1666 = vadd.f32 %v1664, 1e-05
    %v1667 = vrsqrt.pop %v1665
    %v1668 = vrsqrt.pop %v1666
    %v1669 = vmul.f32 %v1653, %v1667
    %v1670 = vmul.f32 %v1654, %v1668
    %v1671 = vld [vmem:[%s23] sm:$0xff]
    %v1672 = vld [vmem:[%s23 + $0x8] sm:$0xff]
    %v1673 = vld [vmem:[%s23 + $0x10] sm:$0xff]
    %v1674 = vld [vmem:[%s23 + $0x18] sm:$0xff]
    %v1675 = vld [vmem:[%s24] sm:$0x1]
    %v1677 = vlaneseq
    %v1678 = vshrl.u32 %v1677, 7
    %v1679 = vsub.s32 0, %v1678
    %v1680 = vrot.slane %v1675, %v1679
    %v1683 = vsel %vm286, %v1669, 0
    %v1686 = vsel %vm286, %v1670, 0
    %1688 = vmatprep.subr.mxu0 0.0
    %1689 = vmatpush1.msra.mxu0 0.0
    %1690 = vmatprep.subr.mxu0 0.0
    %1691 = vmatpush1.msra.mxu0 0.0
    %1692 = vmatprep.subr.mxu0 0.0
    %1693 = vmatpush1.msra.mxu0 0.0
    %1694 = vmatprep.subr.mxu0 0.0
    %1695 = vmatpush1.msra.mxu0 0.0
    %1696 = vmatprep.subr.mxu0 0.0
    %1697 = vmatpush1.msra.mxu0 0.0
    %1698 = vmatprep.subr.mxu0 0.0
    %1699 = vmatpush1.msra.mxu0 0.0
    %1700 = vmatprep.subr.mxu0 0.0
    %1701 = vmatpush1.msra.mxu0 0.0
    %1702 = vmatprep.subr.mxu0 0.0
    %1703 = vmatpush1.msra.mxu0 0.0
    %1704 = vmatprep.subr.mxu0 0.0
    %1705 = vmatpush1.msra.mxu0 0.0
    %1706 = vmatprep.subr.mxu0 0.0
    %1707 = vmatpush1.msra.mxu0 0.0
    %1708 = vmatprep.subr.mxu0 0.0
    %1709 = vmatpush1.msra.mxu0 0.0
    %1710 = vmatprep.subr.mxu0 0.0
    %1711 = vmatpush1.msra.mxu0 0.0
    %1712 = vmatprep.subr.mxu0 0.0
    %1713 = vmatpush1.msra.mxu0 %v1674
    %1714 = vmatprep.subr.mxu0 0.0
    %1715 = vmatpush1.msra.mxu0 %v1673
    %1716 = vmatprep.subr.mxu0 0.0
    %1717 = vmatpush1.msra.mxu0 %v1672
    %1718 = vmatprep.subr.mxu0 0.0
    %1719 = vmatpush1.msra.mxu0 %v1671
    %1720 = vmatprep.subr.mxu0 0.0
    %1721 = vmatpush2.msra.mxu0 0.0
    %1722 = vmatprep.subr.mxu0 0.0
    %1723 = vmatpush2.msra.mxu0 0.0
    %1724 = vmatprep.subr.mxu0 0.0
    %1725 = vmatpush2.msra.mxu0 0.0
    %1726 = vmatprep.subr.mxu0 0.0
    %1727 = vmatpush2.msra.mxu0 0.0
    %1728 = vmatprep.subr.mxu0 0.0
    %1729 = vmatpush2.msra.mxu0 0.0
    %1730 = vmatprep.subr.mxu0 0.0
    %1731 = vmatpush2.msra.mxu0 0.0
    %1732 = vmatprep.subr.mxu0 0.0
    %1733 = vmatpush2.msra.mxu0 0.0
    %1734 = vmatprep.subr.mxu0 0.0
    %1735 = vmatpush2.msra.mxu0 0.0
    %1736 = vmatprep.subr.mxu0 0.0
    %1737 = vmatpush2.msra.mxu0 0.0
    %1738 = vmatprep.subr.mxu0 0.0
    %1739 = vmatpush2.msra.mxu0 0.0
    %1740 = vmatprep.subr.mxu0 0.0
    %1741 = vmatpush2.msra.mxu0 0.0
    %1742 = vmatprep.subr.mxu0 0.0
    %1743 = vmatpush2.msra.mxu0 0.0
    %1744 = vmatprep.subr.mxu0 0.0
    %1745 = vmatpush2.msra.mxu0 0.0
    %1746 = vmatprep.subr.mxu0 0.0
    %1747 = vmatpush2.msra.mxu0 0.0
    %1748 = vmatprep.subr.mxu0 0.0
    %1749 = vmatpush2.msra.mxu0 0.0
    %1750 = vmatprep.subr.mxu0 0.0
    %1751 = vmatpush2.msra.mxu0 0.0
    %1752 = vmatprep.mubr.f32.mxu0 0.0
    %1753 = vmatmul.mubr.f32.gmra.mxu0 %v1683
    %v1754 = vpop.f32.mrf.mxu0
    %v1755 = vadd.f32 %v1680, %v1754
    %v1756 = vpop.f32.mrf.mxu0
    %1757 = vmatprep.mubr.f32.mxu0 0.0
    %1758 = vmatmul.mubr.f32.gmra.mxu0 %v1686
    %v1759 = vpop.f32.mrf.mxu0
    %v1760 = vadd.f32 %v1680, %v1759
    %v1761 = vpop.f32.mrf.mxu0
    %1762 = vdwg.mxu0
    %v1763 = vmul.f32 %v1755, 0.5
    %v1764 = vmul.f32 %v1760, 0.5
    %v1765 = vmul.f32 %v1755, 0.044715
    %v1766 = vmul.f32 %v1760, 0.044715
    %v1767 = vmul.f32 %v1765, %v1755
    %v1768 = vmul.f32 %v1766, %v1760
    %v1769 = vmul.f32 %v1767, %v1755
    %v1770 = vmul.f32 %v1768, %v1760
    %v1771 = vadd.f32 %v1755, %v1769
    %v1772 = vadd.f32 %v1760, %v1770
    %v1773 = vmul.f32 %v1771, 0.7978846
    %v1774 = vmul.f32 %v1772, 0.7978846
    %v1775 = vtanh.pop %v1773
    %v1776 = vtanh.pop %v1774
    %v1777 = vadd.f32 %v1775, 1.0
    %v1778 = vadd.f32 %v1776, 1.0
    %v1779 = vmul.f32 %v1763, %v1777
    %v1780 = vmul.f32 %v1764, %v1778
    %v1781 = vld [vmem:[%s25] sm:$0xff]
    %v1782 = vld [vmem:[%s25 + $0x8] sm:$0xff]
    %v1783 = vld [vmem:[%s25 + $0x10] sm:$0xff]
    %v1784 = vld [vmem:[%s25 + $0x18] sm:$0xff]
    %v1785 = vld [vmem:[%s25 + $0x20] sm:$0xff]
    %v1786 = vld [vmem:[%s25 + $0x28] sm:$0xff]
    %v1787 = vld [vmem:[%s25 + $0x30] sm:$0xff]
    %v1788 = vld [vmem:[%s25 + $0x38] sm:$0xff]
    %v1789 = vld [vmem:[%s25 + $0x40] sm:$0xff]
    %v1790 = vld [vmem:[%s25 + $0x48] sm:$0xff]
    %v1791 = vld [vmem:[%s25 + $0x50] sm:$0xff]
    %v1792 = vld [vmem:[%s25 + $0x58] sm:$0xff]
    %v1793 = vld [vmem:[%s25 + $0x60] sm:$0xff]
    %v1794 = vld [vmem:[%s25 + $0x68] sm:$0xff]
    %v1795 = vld [vmem:[%s25 + $0x70] sm:$0xff]
    %v1796 = vld [vmem:[%s25 + $0x78] sm:$0xff]
    %1797 = vmatprep.subr.mxu0 0.0
    %1798 = vmatpush1.msra.mxu0 %v1796
    %1799 = vmatprep.subr.mxu0 0.0
    %1800 = vmatpush1.msra.mxu0 %v1795
    %1801 = vmatprep.subr.mxu0 0.0
    %1802 = vmatpush1.msra.mxu0 %v1794
    %1803 = vmatprep.subr.mxu0 0.0
    %1804 = vmatpush1.msra.mxu0 %v1793
    %1805 = vmatprep.subr.mxu0 0.0
    %1806 = vmatpush1.msra.mxu0 %v1792
    %1807 = vmatprep.subr.mxu0 0.0
    %1808 = vmatpush1.msra.mxu0 %v1791
    %1809 = vmatprep.subr.mxu0 0.0
    %1810 = vmatpush1.msra.mxu0 %v1790
    %1811 = vmatprep.subr.mxu0 0.0
    %1812 = vmatpush1.msra.mxu0 %v1789
    %1813 = vmatprep.subr.mxu0 0.0
    %1814 = vmatpush1.msra.mxu0 %v1788
    %1815 = vmatprep.subr.mxu0 0.0
    %1816 = vmatpush1.msra.mxu0 %v1787
    %1817 = vmatprep.subr.mxu0 0.0
    %1818 = vmatpush1.msra.mxu0 %v1786
    %1819 = vmatprep.subr.mxu0 0.0
    %1820 = vmatpush1.msra.mxu0 %v1785
    %1821 = vmatprep.subr.mxu0 0.0
    %1822 = vmatpush1.msra.mxu0 %v1784
    %1823 = vmatprep.subr.mxu0 0.0
    %1824 = vmatpush1.msra.mxu0 %v1783
    %1825 = vmatprep.subr.mxu0 0.0
    %1826 = vmatpush1.msra.mxu0 %v1782
    %1827 = vmatprep.subr.mxu0 0.0
    %1828 = vmatpush1.msra.mxu0 %v1781
    %1829 = vmatprep.subr.mxu0 0.0
    %1830 = vmatpush2.msra.mxu0 0.0
    %1831 = vmatprep.subr.mxu0 0.0
    %1832 = vmatpush2.msra.mxu0 0.0
    %1833 = vmatprep.subr.mxu0 0.0
    %1834 = vmatpush2.msra.mxu0 0.0
    %1835 = vmatprep.subr.mxu0 0.0
    %1836 = vmatpush2.msra.mxu0 0.0
    %1837 = vmatprep.subr.mxu0 0.0
    %1838 = vmatpush2.msra.mxu0 0.0
    %1839 = vmatprep.subr.mxu0 0.0
    %1840 = vmatpush2.msra.mxu0 0.0
    %1841 = vmatprep.subr.mxu0 0.0
    %1842 = vmatpush2.msra.mxu0 0.0
    %1843 = vmatprep.subr.mxu0 0.0
    %1844 = vmatpush2.msra.mxu0 0.0
    %1845 = vmatprep.subr.mxu0 0.0
    %1846 = vmatpush2.msra.mxu0 0.0
    %1847 = vmatprep.subr.mxu0 0.0
    %1848 = vmatpush2.msra.mxu0 0.0
    %1849 = vmatprep.subr.mxu0 0.0
    %1850 = vmatpush2.msra.mxu0 0.0
    %1851 = vmatprep.subr.mxu0 0.0
    %1852 = vmatpush2.msra.mxu0 0.0
    %1853 = vmatprep.subr.mxu0 0.0
    %1854 = vmatpush2.msra.mxu0 0.0
    %1855 = vmatprep.subr.mxu0 0.0
    %1856 = vmatpush2.msra.mxu0 0.0
    %1857 = vmatprep.subr.mxu0 0.0
    %1858 = vmatpush2.msra.mxu0 0.0
    %1859 = vmatprep.subr.mxu0 0.0
    %1860 = vmatpush2.msra.mxu0 0.0
    %1861 = vmatprep.mubr.f32.mxu0 0.0
    %1862 = vmatmul.mubr.f32.gmra.mxu0 %v1779
    %v1863 = vpop.f32.mrf.mxu0
    %v1864 = vadd.f32 0.0, %v1863
    %v1865 = vpop.f32.mrf.mxu0
    %1866 = vmatprep.mubr.f32.mxu0 0.0
    %1867 = vmatmul.mubr.f32.gmra.mxu0 %v1780
    %v1868 = vpop.f32.mrf.mxu0
    %v1869 = vadd.f32 0.0, %v1868
    %v1870 = vpop.f32.mrf.mxu0
    %1871 = vdwg.mxu0
    %v1872 = vadd.f32 %v1643, %v1864
    %v1873 = vadd.f32 %v1644, %v1869
    %v1874 = vld [vmem:[%s26] sm:$0x1]
    %v1876 = vlaneseq
    %v1877 = vshrl.u32 %v1876, 7
    %v1878 = vsub.s32 0, %v1877
    %v1879 = vrot.slane %v1874, %v1878
    %v1881 = vadd.f32 %v1872, %v1879
    %v1882 = vadd.f32 %v1873, %v1879
    %v1883 = vsel %vm286, %v472, 0.0
    %1884 = vadd.xlane.f32.xlu0 %v1883
    %v1885 = vpop.xlane.xlu0 %1884
    %v1886 = vsel %vm284, %v473, 0.0
    %1887 = vadd.xlane.f32.xlu0 %v1886
    %v1888 = vpop.xlane.xlu0 %1887
    %v1889 = vmul.f32 %v1885, %v880
    %v1890 = vmul.f32 %v1888, %v880
    %v1891 = vsub.f32 %v472, %v1889
    %v1892 = vsub.f32 %v473, %v1890
    %v1893 = vmul.f32 %v1891, %v1891
    %v1894 = vmul.f32 %v1892, %v1892
    %v1895 = vsel %vm286, %v1893, 0.0
    %1896 = vadd.xlane.f32.xlu0 %v1895
    %v1897 = vpop.xlane.xlu0 %1896
    %v1898 = vsel %vm284, %v1894, 0.0
    %1899 = vadd.xlane.f32.xlu0 %v1898
    %v1900 = vpop.xlane.xlu0 %1899
    %v1901 = vmul.f32 %v1897, %v880
    %v1902 = vmul.f32 %v1900, %v880
    %v1903 = vadd.f32 %v1901, 1e-05
    %v1904 = vadd.f32 %v1902, 1e-05
    %v1905 = vrsqrt.pop %v1903
    %v1906 = vrsqrt.pop %v1904
    %v1907 = vmul.f32 %v1891, %v1905
    %v1908 = vmul.f32 %v1892, %v1906
    %v1910 = vsel %vm286, %v1907, 0
    %v1913 = vsel %vm286, %v1908, 0
    %1915 = vmatprep.subr.mxu0 0.0
    %1916 = vmatpush1.msra.mxu0 0.0
    %1917 = vmatprep.subr.mxu0 0.0
    %1918 = vmatpush1.msra.mxu0 0.0
    %1919 = vmatprep.subr.mxu0 0.0
    %1920 = vmatpush1.msra.mxu0 0.0
    %1921 = vmatprep.subr.mxu0 0.0
    %1922 = vmatpush1.msra.mxu0 0.0
    %1923 = vmatprep.subr.mxu0 0.0
    %1924 = vmatpush1.msra.mxu0 0.0
    %1925 = vmatprep.subr.mxu0 0.0
    %1926 = vmatpush1.msra.mxu0 0.0
    %1927 = vmatprep.subr.mxu0 0.0
    %1928 = vmatpush1.msra.mxu0 0.0
    %1929 = vmatprep.subr.mxu0 0.0
    %1930 = vmatpush1.msra.mxu0 0.0
    %1931 = vmatprep.subr.mxu0 0.0
    %1932 = vmatpush1.msra.mxu0 0.0
    %1933 = vmatprep.subr.mxu0 0.0
    %1934 = vmatpush1.msra.mxu0 0.0
    %1935 = vmatprep.subr.mxu0 0.0
    %1936 = vmatpush1.msra.mxu0 0.0
    %1937 = vmatprep.subr.mxu0 0.0
    %1938 = vmatpush1.msra.mxu0 0.0
    %1939 = vmatprep.subr.mxu0 0.0
    %1940 = vmatpush1.msra.mxu0 %v904
    %1941 = vmatprep.subr.mxu0 0.0
    %1942 = vmatpush1.msra.mxu0 %v903
    %1943 = vmatprep.subr.mxu0 0.0
    %1944 = vmatpush1.msra.mxu0 %v902
    %1945 = vmatprep.subr.mxu0 0.0
    %1946 = vmatpush1.msra.mxu0 %v901
    %1947 = vmatprep.subr.mxu0 0.0
    %1948 = vmatpush2.msra.mxu0 0.0
    %1949 = vmatprep.subr.mxu0 0.0
    %1950 = vmatpush2.msra.mxu0 0.0
    %1951 = vmatprep.subr.mxu0 0.0
    %1952 = vmatpush2.msra.mxu0 0.0
    %1953 = vmatprep.subr.mxu0 0.0
    %1954 = vmatpush2.msra.mxu0 0.0
    %1955 = vmatprep.subr.mxu0 0.0
    %1956 = vmatpush2.msra.mxu0 0.0
    %1957 = vmatprep.subr.mxu0 0.0
    %1958 = vmatpush2.msra.mxu0 0.0
    %1959 = vmatprep.subr.mxu0 0.0
    %1960 = vmatpush2.msra.mxu0 0.0
    %1961 = vmatprep.subr.mxu0 0.0
    %1962 = vmatpush2.msra.mxu0 0.0
    %1963 = vmatprep.subr.mxu0 0.0
    %1964 = vmatpush2.msra.mxu0 0.0
    %1965 = vmatprep.subr.mxu0 0.0
    %1966 = vmatpush2.msra.mxu0 0.0
    %1967 = vmatprep.subr.mxu0 0.0
    %1968 = vmatpush2.msra.mxu0 0.0
    %1969 = vmatprep.subr.mxu0 0.0
    %1970 = vmatpush2.msra.mxu0 0.0
    %1971 = vmatprep.subr.mxu0 0.0
    %1972 = vmatpush2.msra.mxu0 0.0
    %1973 = vmatprep.subr.mxu0 0.0
    %1974 = vmatpush2.msra.mxu0 0.0
    %1975 = vmatprep.subr.mxu0 0.0
    %1976 = vmatpush2.msra.mxu0 0.0
    %1977 = vmatprep.subr.mxu0 0.0
    %1978 = vmatpush2.msra.mxu0 0.0
    %1979 = vmatprep.mubr.f32.mxu0 0.0
    %1980 = vmatmul.mubr.f32.gmra.mxu0 %v1910
    %v1981 = vpop.f32.mrf.mxu0
    %v1982 = vadd.f32 %v910, %v1981
    %v1983 = vpop.f32.mrf.mxu0
    %1984 = vmatprep.mubr.f32.mxu0 0.0
    %1985 = vmatmul.mubr.f32.gmra.mxu0 %v1913
    %v1986 = vpop.f32.mrf.mxu0
    %v1987 = vadd.f32 %v910, %v1986
    %v1988 = vpop.f32.mrf.mxu0
    %1989 = vdwg.mxu0
    %v1990 = vmul.f32 %v1982, 0.25
    %v1991 = vmul.f32 %v1987, 0.25
    %v1993 = vsel %vm995, %v1990, 0
    %v1996 = vsel %vm995, %v1991, 0
    %v1999 = vsel %vm995, %v574, 0
    %v2002 = vsel %vm995, %v579, 0
    %2004 = vmatprep.subr.mxu0 0.0
    %2005 = vmatpush1.xpose.msra.mxu0 0.0
    %2006 = vmatprep.subr.mxu0 0.0
    %2007 = vmatpush1.xpose.msra.mxu0 0.0
    %2008 = vmatprep.subr.mxu0 0.0
    %2009 = vmatpush1.xpose.msra.mxu0 0.0
    %2010 = vmatprep.subr.mxu0 0.0
    %2011 = vmatpush1.xpose.msra.mxu0 0.0
    %2012 = vmatprep.subr.mxu0 0.0
    %2013 = vmatpush1.xpose.msra.mxu0 0.0
    %2014 = vmatprep.subr.mxu0 0.0
    %2015 = vmatpush1.xpose.msra.mxu0 0.0
    %2016 = vmatprep.subr.mxu0 0.0
    %2017 = vmatpush1.xpose.msra.mxu0 0.0
    %2018 = vmatprep.subr.mxu0 0.0
    %2019 = vmatpush1.xpose.msra.mxu0 0.0
    %2020 = vmatprep.subr.mxu0 0.0
    %2021 = vmatpush1.xpose.msra.mxu0 0.0
    %2022 = vmatprep.subr.mxu0 0.0
    %2023 = vmatpush1.xpose.msra.mxu0 0.0
    %2024 = vmatprep.subr.mxu0 0.0
    %2025 = vmatpush1.xpose.msra.mxu0 0.0
    %2026 = vmatprep.subr.mxu0 0.0
    %2027 = vmatpush1.xpose.msra.mxu0 0.0
    %2028 = vmatprep.subr.mxu0 0.0
    %2029 = vmatpush1.xpose.msra.mxu0 0.0
    %2030 = vmatprep.subr.mxu0 0.0
    %2031 = vmatpush1.xpose.msra.mxu0 0.0
    %2032 = vmatprep.subr.mxu0 0.0
    %2033 = vmatpush1.xpose.msra.mxu0 %v2002
    %2034 = vmatprep.subr.mxu0 0.0
    %2035 = vmatpush1.xpose.msra.mxu0 %v1999
    %2036 = vmatprep.subr.mxu0 0.0
    %2037 = vmatpush2.xpose.msra.mxu0 0.0
    %2038 = vmatprep.subr.mxu0 0.0
    %2039 = vmatpush2.xpose.msra.mxu0 0.0
    %2040 = vmatprep.subr.mxu0 0.0
    %2041 = vmatpush2.xpose.msra.mxu0 0.0
    %2042 = vmatprep.subr.mxu0 0.0
    %2043 = vmatpush2.xpose.msra.mxu0 0.0
    %2044 = vmatprep.subr.mxu0 0.0
    %2045 = vmatpush2.xpose.msra.mxu0 0.0
    %2046 = vmatprep.subr.mxu0 0.0
    %2047 = vmatpush2.xpose.msra.mxu0 0.0
    %2048 = vmatprep.subr.mxu0 0.0
    %2049 = vmatpush2.xpose.msra.mxu0 0.0
    %2050 = vmatprep.subr.mxu0 0.0
    %2051 = vmatpush2.xpose.msra.mxu0 0.0
    %2052 = vmatprep.subr.mxu0 0.0
    %2053 = vmatpush2.xpose.msra.mxu0 0.0
    %2054 = vmatprep.subr.mxu0 0.0
    %2055 = vmatpush2.xpose.msra.mxu0 0.0
    %2056 = vmatprep.subr.mxu0 0.0
    %2057 = vmatpush2.xpose.msra.mxu0 0.0
    %2058 = vmatprep.subr.mxu0 0.0
    %2059 = vmatpush2.xpose.msra.mxu0 0.0
    %2060 = vmatprep.subr.mxu0 0.0
    %2061 = vmatpush2.xpose.msra.mxu0 0.0
    %2062 = vmatprep.subr.mxu0 0.0
    %2063 = vmatpush2.xpose.msra.mxu0 0.0
    %2064 = vmatprep.subr.mxu0 0.0
    %2065 = vmatpush2.xpose.msra.mxu0 0.0
    %2066 = vmatprep.subr.mxu0 0.0
    %2067 = vmatpush2.xpose.msra.mxu0 0.0
    %2068 = vmatprep.mubr.f32.mxu0 0.0
    %2069 = vmatmul.mubr.f32.gmra.mxu0 %v1993
    %v2070 = vpop.f32.mrf.mxu0
    %v2071 = vadd.f32 0.0, %v2070
    %v2072 = vpop.f32.mrf.mxu0
    %2073 = vmatprep.mubr.f32.mxu0 0.0
    %2074 = vmatmul.mubr.f32.gmra.mxu0 %v1996
    %v2075 = vpop.f32.mrf.mxu0
    %v2076 = vadd.f32 0.0, %v2075
    %v2077 = vpop.f32.mrf.mxu0
    %2078 = vdwg.mxu0
    %v2079 = vsel %vm995, %v2071, -inf
    %2080 = vmax.xlane.f32.xlu0 %v2079
    %v2081 = vpop.xlane.xlu0 %2080
    %v2082 = vsel %vm1086, %v2076, -inf
    %2083 = vmax.xlane.f32.xlu0 %v2082
    %v2084 = vpop.xlane.xlu0 %2083
    %v2085 = vsub.f32 %v2071, %v2081
    %v2086 = vsub.f32 %v2076, %v2084
    %v2087 = vmul.f32 %v2085, 1.442695
    %v2088 = vpow.pop %v2087
    %v2089 = vmul.f32 %v2086, 1.442695
    %v2090 = vpow.pop %v2089
    %v2091 = vsel %vm995, %v2088, 0.0
    %2092 = vadd.xlane.f32.xlu0 %v2091
    %v2093 = vpop.xlane.xlu0 %2092
    %v2094 = vsel %vm1086, %v2090, 0.0
    %2095 = vadd.xlane.f32.xlu0 %v2094
    %v2096 = vpop.xlane.xlu0 %2095
    %v2097 = vrcp.pop %v2093
    %v2098 = vmul.f32 %v2088, %v2097
    %v2099 = vrcp.pop %v2096
    %v2100 = vmul.f32 %v2090, %v2099
    %v2102 = vsel %vm995, %v2098, 0
    %v2105 = vsel %vm995, %v2100, 0
    %2107 = vmatprep.subr.mxu0 0.0
    %2108 = vmatpush1.msra.mxu0 0.0
    %2109 = vmatprep.subr.mxu0 0.0
    %2110 = vmatpush1.msra.mxu0 0.0
    %2111 = vmatprep.subr.mxu0 0.0
    %2112 = vmatpush1.msra.mxu0 0.0
    %2113 = vmatprep.subr.mxu0 0.0
    %2114 = vmatpush1.msra.mxu0 0.0
    %2115 = vmatprep.subr.mxu0 0.0
    %2116 = vmatpush1.msra.mxu0 0.0
    %2117 = vmatprep.subr.mxu0 0.0
    %2118 = vmatpush1.msra.mxu0 0.0
    %2119 = vmatprep.subr.mxu0 0.0
    %2120 = vmatpush1.msra.mxu0 0.0
    %2121 = vmatprep.subr.mxu0 0.0
    %2122 = vmatpush1.msra.mxu0 0.0
    %2123 = vmatprep.subr.mxu0 0.0
    %2124 = vmatpush1.msra.mxu0 0.0
    %2125 = vmatprep.subr.mxu0 0.0
    %2126 = vmatpush1.msra.mxu0 0.0
    %2127 = vmatprep.subr.mxu0 0.0
    %2128 = vmatpush1.msra.mxu0 0.0
    %2129 = vmatprep.subr.mxu0 0.0
    %2130 = vmatpush1.msra.mxu0 0.0
    %2131 = vmatprep.subr.mxu0 0.0
    %2132 = vmatpush1.msra.mxu0 0.0
    %2133 = vmatprep.subr.mxu0 0.0
    %2134 = vmatpush1.msra.mxu0 0.0
    %2135 = vmatprep.subr.mxu0 0.0
    %2136 = vmatpush1.msra.mxu0 %v675
    %2137 = vmatprep.subr.mxu0 0.0
    %2138 = vmatpush1.msra.mxu0 %v670
    %2139 = vmatprep.subr.mxu0 0.0
    %2140 = vmatpush2.msra.mxu0 0.0
    %2141 = vmatprep.subr.mxu0 0.0
    %2142 = vmatpush2.msra.mxu0 0.0
    %2143 = vmatprep.subr.mxu0 0.0
    %2144 = vmatpush2.msra.mxu0 0.0
    %2145 = vmatprep.subr.mxu0 0.0
    %2146 = vmatpush2.msra.mxu0 0.0
    %2147 = vmatprep.subr.mxu0 0.0
    %2148 = vmatpush2.msra.mxu0 0.0
    %2149 = vmatprep.subr.mxu0 0.0
    %2150 = vmatpush2.msra.mxu0 0.0
    %2151 = vmatprep.subr.mxu0 0.0
    %2152 = vmatpush2.msra.mxu0 0.0
    %2153 = vmatprep.subr.mxu0 0.0
    %2154 = vmatpush2.msra.mxu0 0.0
    %2155 = vmatprep.subr.mxu0 0.0
    %2156 = vmatpush2.msra.mxu0 0.0
    %2157 = vmatprep.subr.mxu0 0.0
    %2158 = vmatpush2.msra.mxu0 0.0
    %2159 = vmatprep.subr.mxu0 0.0
    %2160 = vmatpush2.msra.mxu0 0.0
    %2161 = vmatprep.subr.mxu0 0.0
    %2162 = vmatpush2.msra.mxu0 0.0
    %2163 = vmatprep.subr.mxu0 0.0
    %2164 = vmatpush2.msra.mxu0 0.0
    %2165 = vmatprep.subr.mxu0 0.0
    %2166 = vmatpush2.msra.mxu0 0.0
    %2167 = vmatprep.subr.mxu0 0.0
    %2168 = vmatpush2.msra.mxu0 0.0
    %2169 = vmatprep.subr.mxu0 0.0
    %2170 = vmatpush2.msra.mxu0 0.0
    %2171 = vmatprep.mubr.f32.mxu0 0.0
    %2172 = vmatmul.mubr.f32.gmra.mxu0 %v2102
    %v2173 = vpop.f32.mrf.mxu0
    %v2174 = vadd.f32 0.0, %v2173
    %v2175 = vpop.f32.mrf.mxu0
    %2176 = vmatprep.mubr.f32.mxu0 0.0
    %2177 = vmatmul.mubr.f32.gmra.mxu0 %v2105
    %v2178 = vpop.f32.mrf.mxu0
    %v2179 = vadd.f32 0.0, %v2178
    %v2180 = vpop.f32.mrf.mxu0
    %2181 = vdwg.mxu0
    %2182 = vmatprep.subr.mxu0 0.0
    %2183 = vmatpush1.msra.mxu0 0.0
    %2184 = vmatprep.subr.mxu0 0.0
    %2185 = vmatpush1.msra.mxu0 0.0
    %2186 = vmatprep.subr.mxu0 0.0
    %2187 = vmatpush1.msra.mxu0 0.0
    %2188 = vmatprep.subr.mxu0 0.0
    %2189 = vmatpush1.msra.mxu0 0.0
    %2190 = vmatprep.subr.mxu0 0.0
    %2191 = vmatpush1.msra.mxu0 0.0
    %2192 = vmatprep.subr.mxu0 0.0
    %2193 = vmatpush1.msra.mxu0 0.0
    %2194 = vmatprep.subr.mxu0 0.0
    %2195 = vmatpush1.msra.mxu0 0.0
    %2196 = vmatprep.subr.mxu0 0.0
    %2197 = vmatpush1.msra.mxu0 0.0
    %2198 = vmatprep.subr.mxu0 0.0
    %2199 = vmatpush1.msra.mxu0 0.0
    %2200 = vmatprep.subr.mxu0 0.0
    %2201 = vmatpush1.msra.mxu0 0.0
    %2202 = vmatprep.subr.mxu0 0.0
    %2203 = vmatpush1.msra.mxu0 0.0
    %2204 = vmatprep.subr.mxu0 0.0
    %2205 = vmatpush1.msra.mxu0 0.0
    %2206 = vmatprep.subr.mxu0 0.0
    %2207 = vmatpush1.msra.mxu0 %v1193
    %2208 = vmatprep.subr.mxu0 0.0
    %2209 = vmatpush1.msra.mxu0 %v1192
    %2210 = vmatprep.subr.mxu0 0.0
    %2211 = vmatpush1.msra.mxu0 %v1191
    %2212 = vmatprep.subr.mxu0 0.0
    %2213 = vmatpush1.msra.mxu0 %v1190
    %2214 = vmatprep.subr.mxu0 0.0
    %2215 = vmatpush2.msra.mxu0 0.0
    %2216 = vmatprep.subr.mxu0 0.0
    %2217 = vmatpush2.msra.mxu0 0.0
    %2218 = vmatprep.subr.mxu0 0.0
    %2219 = vmatpush2.msra.mxu0 0.0
    %2220 = vmatprep.subr.mxu0 0.0
    %2221 = vmatpush2.msra.mxu0 0.0
    %2222 = vmatprep.subr.mxu0 0.0
    %2223 = vmatpush2.msra.mxu0 0.0
    %2224 = vmatprep.subr.mxu0 0.0
    %2225 = vmatpush2.msra.mxu0 0.0
    %2226 = vmatprep.subr.mxu0 0.0
    %2227 = vmatpush2.msra.mxu0 0.0
    %2228 = vmatprep.subr.mxu0 0.0
    %2229 = vmatpush2.msra.mxu0 0.0
    %2230 = vmatprep.subr.mxu0 0.0
    %2231 = vmatpush2.msra.mxu0 0.0
    %2232 = vmatprep.subr.mxu0 0.0
    %2233 = vmatpush2.msra.mxu0 0.0
    %2234 = vmatprep.subr.mxu0 0.0
    %2235 = vmatpush2.msra.mxu0 0.0
    %2236 = vmatprep.subr.mxu0 0.0
    %2237 = vmatpush2.msra.mxu0 0.0
    %2238 = vmatprep.subr.mxu0 0.0
    %2239 = vmatpush2.msra.mxu0 0.0
    %2240 = vmatprep.subr.mxu0 0.0
    %2241 = vmatpush2.msra.mxu0 0.0
    %2242 = vmatprep.subr.mxu0 0.0
    %2243 = vmatpush2.msra.mxu0 0.0
    %2244 = vmatprep.subr.mxu0 0.0
    %2245 = vmatpush2.msra.mxu0 0.0
    %2246 = vmatprep.mubr.f32.mxu0 0.0
    %2247 = vmatmul.mubr.f32.gmra.mxu0 %v1910
    %v2248 = vpop.f32.mrf.mxu0
    %v2249 = vadd.f32 %v1200, %v2248
    %v2250 = vpop.f32.mrf.mxu0
    %2251 = vmatprep.mubr.f32.mxu0 0.0
    %2252 = vmatmul.mubr.f32.gmra.mxu0 %v1913
    %v2253 = vpop.f32.mrf.mxu0
    %v2254 = vadd.f32 %v1200, %v2253
    %v2255 = vpop.f32.mrf.mxu0
    %2256 = vdwg.mxu0
    %v2257 = vmul.f32 %v2249, 0.25
    %v2258 = vmul.f32 %v2254, 0.25
    %v2260 = vsel %vm995, %v2257, 0
    %v2263 = vsel %vm995, %v2258, 0
    %v2266 = vsel %vm995, %v768, 0
    %v2269 = vsel %vm995, %v773, 0
    %2271 = vmatprep.subr.mxu0 0.0
    %2272 = vmatpush1.xpose.msra.mxu0 0.0
    %2273 = vmatprep.subr.mxu0 0.0
    %2274 = vmatpush1.xpose.msra.mxu0 0.0
    %2275 = vmatprep.subr.mxu0 0.0
    %2276 = vmatpush1.xpose.msra.mxu0 0.0
    %2277 = vmatprep.subr.mxu0 0.0
    %2278 = vmatpush1.xpose.msra.mxu0 0.0
    %2279 = vmatprep.subr.mxu0 0.0
    %2280 = vmatpush1.xpose.msra.mxu0 0.0
    %2281 = vmatprep.subr.mxu0 0.0
    %2282 = vmatpush1.xpose.msra.mxu0 0.0
    %2283 = vmatprep.subr.mxu0 0.0
    %2284 = vmatpush1.xpose.msra.mxu0 0.0
    %2285 = vmatprep.subr.mxu0 0.0
    %2286 = vmatpush1.xpose.msra.mxu0 0.0
    %2287 = vmatprep.subr.mxu0 0.0
    %2288 = vmatpush1.xpose.msra.mxu0 0.0
    %2289 = vmatprep.subr.mxu0 0.0
    %2290 = vmatpush1.xpose.msra.mxu0 0.0
    %2291 = vmatprep.subr.mxu0 0.0
    %2292 = vmatpush1.xpose.msra.mxu0 0.0
    %2293 = vmatprep.subr.mxu0 0.0
    %2294 = vmatpush1.xpose.msra.mxu0 0.0
    %2295 = vmatprep.subr.mxu0 0.0
    %2296 = vmatpush1.xpose.msra.mxu0 0.0
    %2297 = vmatprep.subr.mxu0 0.0
    %2298 = vmatpush1.xpose.msra.mxu0 0.0
    %2299 = vmatprep.subr.mxu0 0.0
    %2300 = vmatpush1.xpose.msra.mxu0 %v2269
    %2301 = vmatprep.subr.mxu0 0.0
    %2302 = vmatpush1.xpose.msra.mxu0 %v2266
    %2303 = vmatprep.subr.mxu0 0.0
    %2304 = vmatpush2.xpose.msra.mxu0 0.0
    %2305 = vmatprep.subr.mxu0 0.0
    %2306 = vmatpush2.xpose.msra.mxu0 0.0
    %2307 = vmatprep.subr.mxu0 0.0
    %2308 = vmatpush2.xpose.msra.mxu0 0.0
    %2309 = vmatprep.subr.mxu0 0.0
    %2310 = vmatpush2.xpose.msra.mxu0 0.0
    %2311 = vmatprep.subr.mxu0 0.0
    %2312 = vmatpush2.xpose.msra.mxu0 0.0
    %2313 = vmatprep.subr.mxu0 0.0
    %2314 = vmatpush2.xpose.msra.mxu0 0.0
    %2315 = vmatprep.subr.mxu0 0.0
    %2316 = vmatpush2.xpose.msra.mxu0 0.0
    %2317 = vmatprep.subr.mxu0 0.0
    %2318 = vmatpush2.xpose.msra.mxu0 0.0
    %2319 = vmatprep.subr.mxu0 0.0
    %2320 = vmatpush2.xpose.msra.mxu0 0.0
    %2321 = vmatprep.subr.mxu0 0.0
    %2322 = vmatpush2.xpose.msra.mxu0 0.0
    %2323 = vmatprep.subr.mxu0 0.0
    %2324 = vmatpush2.xpose.msra.mxu0 0.0
    %2325 = vmatprep.subr.mxu0 0.0
    %2326 = vmatpush2.xpose.msra.mxu0 0.0
    %2327 = vmatprep.subr.mxu0 0.0
    %2328 = vmatpush2.xpose.msra.mxu0 0.0
    %2329 = vmatprep.subr.mxu0 0.0
    %2330 = vmatpush2.xpose.msra.mxu0 0.0
    %2331 = vmatprep.subr.mxu0 0.0
    %2332 = vmatpush2.xpose.msra.mxu0 0.0
    %2333 = vmatprep.subr.mxu0 0.0
    %2334 = vmatpush2.xpose.msra.mxu0 0.0
    %2335 = vmatprep.mubr.f32.mxu0 0.0
    %2336 = vmatmul.mubr.f32.gmra.mxu0 %v2260
    %v2337 = vpop.f32.mrf.mxu0
    %v2338 = vadd.f32 0.0, %v2337
    %v2339 = vpop.f32.mrf.mxu0
    %2340 = vmatprep.mubr.f32.mxu0 0.0
    %2341 = vmatmul.mubr.f32.gmra.mxu0 %v2263
    %v2342 = vpop.f32.mrf.mxu0
    %v2343 = vadd.f32 0.0, %v2342
    %v2344 = vpop.f32.mrf.mxu0
    %2345 = vdwg.mxu0
    %v2346 = vsel %vm995, %v2338, -inf
    %2347 = vmax.xlane.f32.xlu0 %v2346
    %v2348 = vpop.xlane.xlu0 %2347
    %v2349 = vsel %vm1086, %v2343, -inf
    %2350 = vmax.xlane.f32.xlu0 %v2349
    %v2351 = vpop.xlane.xlu0 %2350
    %v2352 = vsub.f32 %v2338, %v2348
    %v2353 = vsub.f32 %v2343, %v2351
    %v2354 = vmul.f32 %v2352, 1.442695
    %v2355 = vpow.pop %v2354
    %v2356 = vmul.f32 %v2353, 1.442695
    %v2357 = vpow.pop %v2356
    %v2358 = vsel %vm995, %v2355, 0.0
    %2359 = vadd.xlane.f32.xlu0 %v2358
    %v2360 = vpop.xlane.xlu0 %2359
    %v2361 = vsel %vm1086, %v2357, 0.0
    %2362 = vadd.xlane.f32.xlu0 %v2361
    %v2363 = vpop.xlane.xlu0 %2362
    %v2364 = vrcp.pop %v2360
    %v2365 = vmul.f32 %v2355, %v2364
    %v2366 = vrcp.pop %v2363
    %v2367 = vmul.f32 %v2357, %v2366
    %v2369 = vsel %vm995, %v2365, 0
    %v2372 = vsel %vm995, %v2367, 0
    %2374 = vmatprep.subr.mxu0 0.0
    %2375 = vmatpush1.msra.mxu0 0.0
    %2376 = vmatprep.subr.mxu0 0.0
    %2377 = vmatpush1.msra.mxu0 0.0
    %2378 = vmatprep.subr.mxu0 0.0
    %2379 = vmatpush1.msra.mxu0 0.0
    %2380 = vmatprep.subr.mxu0 0.0
    %2381 = vmatpush1.msra.mxu0 0.0
    %2382 = vmatprep.subr.mxu0 0.0
    %2383 = vmatpush1.msra.mxu0 0.0
    %2384 = vmatprep.subr.mxu0 0.0
    %2385 = vmatpush1.msra.mxu0 0.0
    %2386 = vmatprep.subr.mxu0 0.0
    %2387 = vmatpush1.msra.mxu0 0.0
    %2388 = vmatprep.subr.mxu0 0.0
    %2389 = vmatpush1.msra.mxu0 0.0
    %2390 = vmatprep.subr.mxu0 0.0
    %2391 = vmatpush1.msra.mxu0 0.0
    %2392 = vmatprep.subr.mxu0 0.0
    %2393 = vmatpush1.msra.mxu0 0.0
    %2394 = vmatprep.subr.mxu0 0.0
    %2395 = vmatpush1.msra.mxu0 0.0
    %2396 = vmatprep.subr.mxu0 0.0
    %2397 = vmatpush1.msra.mxu0 0.0
    %2398 = vmatprep.subr.mxu0 0.0
    %2399 = vmatpush1.msra.mxu0 0.0
    %2400 = vmatprep.subr.mxu0 0.0
    %2401 = vmatpush1.msra.mxu0 0.0
    %2402 = vmatprep.subr.mxu0 0.0
    %2403 = vmatpush1.msra.mxu0 %v871
    %2404 = vmatprep.subr.mxu0 0.0
    %2405 = vmatpush1.msra.mxu0 %v866
    %2406 = vmatprep.subr.mxu0 0.0
    %2407 = vmatpush2.msra.mxu0 0.0
    %2408 = vmatprep.subr.mxu0 0.0
    %2409 = vmatpush2.msra.mxu0 0.0
    %2410 = vmatprep.subr.mxu0 0.0
    %2411 = vmatpush2.msra.mxu0 0.0
    %2412 = vmatprep.subr.mxu0 0.0
    %2413 = vmatpush2.msra.mxu0 0.0
    %2414 = vmatprep.subr.mxu0 0.0
    %2415 = vmatpush2.msra.mxu0 0.0
    %2416 = vmatprep.subr.mxu0 0.0
    %2417 = vmatpush2.msra.mxu0 0.0
    %2418 = vmatprep.subr.mxu0 0.0
    %2419 = vmatpush2.msra.mxu0 0.0
    %2420 = vmatprep.subr.mxu0 0.0
    %2421 = vmatpush2.msra.mxu0 0.0
    %2422 = vmatprep.subr.mxu0 0.0
    %2423 = vmatpush2.msra.mxu0 0.0
    %2424 = vmatprep.subr.mxu0 0.0
    %2425 = vmatpush2.msra.mxu0 0.0
    %2426 = vmatprep.subr.mxu0 0.0
    %2427 = vmatpush2.msra.mxu0 0.0
    %2428 = vmatprep.subr.mxu0 0.0
    %2429 = vmatpush2.msra.mxu0 0.0
    %2430 = vmatprep.subr.mxu0 0.0
    %2431 = vmatpush2.msra.mxu0 0.0
    %2432 = vmatprep.subr.mxu0 0.0
    %2433 = vmatpush2.msra.mxu0 0.0
    %2434 = vmatprep.subr.mxu0 0.0
    %2435 = vmatpush2.msra.mxu0 0.0
    %2436 = vmatprep.subr.mxu0 0.0
    %2437 = vmatpush2.msra.mxu0 0.0
    %2438 = vmatprep.mubr.f32.mxu0 0.0
    %2439 = vmatmul.mubr.f32.gmra.mxu0 %v2369
    %v2440 = vpop.f32.mrf.mxu0
    %v2441 = vadd.f32 0.0, %v2440
    %v2442 = vpop.f32.mrf.mxu0
    %2443 = vmatprep.mubr.f32.mxu0 0.0
    %2444 = vmatmul.mubr.f32.gmra.mxu0 %v2372
    %v2445 = vpop.f32.mrf.mxu0
    %v2446 = vadd.f32 0.0, %v2445
    %v2447 = vpop.f32.mrf.mxu0
    %2448 = vdwg.mxu0
    %v2450 = vsel %vm995, %v2441, 0
    %v2453 = vsel %vm995, %v2446, 0
    %2455 = vmatprep.subr.mxu0 0.0
    %2456 = vmatpush1.msra.mxu0 0.0
    %2457 = vmatprep.subr.mxu0 0.0
    %2458 = vmatpush1.msra.mxu0 0.0
    %2459 = vmatprep.subr.mxu0 0.0
    %2460 = vmatpush1.msra.mxu0 0.0
    %2461 = vmatprep.subr.mxu0 0.0
    %2462 = vmatpush1.msra.mxu0 0.0
    %2463 = vmatprep.subr.mxu0 0.0
    %2464 = vmatpush1.msra.mxu0 0.0
    %2465 = vmatprep.subr.mxu0 0.0
    %2466 = vmatpush1.msra.mxu0 0.0
    %2467 = vmatprep.subr.mxu0 0.0
    %2468 = vmatpush1.msra.mxu0 0.0
    %2469 = vmatprep.subr.mxu0 0.0
    %2470 = vmatpush1.msra.mxu0 0.0
    %2471 = vmatprep.subr.mxu0 0.0
    %2472 = vmatpush1.msra.mxu0 0.0
    %2473 = vmatprep.subr.mxu0 0.0
    %2474 = vmatpush1.msra.mxu0 0.0
    %2475 = vmatprep.subr.mxu0 0.0
    %2476 = vmatpush1.msra.mxu0 0.0
    %2477 = vmatprep.subr.mxu0 0.0
    %2478 = vmatpush1.msra.mxu0 0.0
    %2479 = vmatprep.subr.mxu0 0.0
    %2480 = vmatpush1.msra.mxu0 0.0
    %2481 = vmatprep.subr.mxu0 0.0
    %2482 = vmatpush1.msra.mxu0 0.0
    %2483 = vmatprep.subr.mxu0 0.0
    %2484 = vmatpush1.msra.mxu0 %v1471
    %2485 = vmatprep.subr.mxu0 0.0
    %2486 = vmatpush1.msra.mxu0 %v1470
    %2487 = vmatprep.subr.mxu0 0.0
    %2488 = vmatpush2.msra.mxu0 0.0
    %2489 = vmatprep.subr.mxu0 0.0
    %2490 = vmatpush2.msra.mxu0 0.0
    %2491 = vmatprep.subr.mxu0 0.0
    %2492 = vmatpush2.msra.mxu0 0.0
    %2493 = vmatprep.subr.mxu0 0.0
    %2494 = vmatpush2.msra.mxu0 0.0
    %2495 = vmatprep.subr.mxu0 0.0
    %2496 = vmatpush2.msra.mxu0 0.0
    %2497 = vmatprep.subr.mxu0 0.0
    %2498 = vmatpush2.msra.mxu0 0.0
    %2499 = vmatprep.subr.mxu0 0.0
    %2500 = vmatpush2.msra.mxu0 0.0
    %2501 = vmatprep.subr.mxu0 0.0
    %2502 = vmatpush2.msra.mxu0 0.0
    %2503 = vmatprep.subr.mxu0 0.0
    %2504 = vmatpush2.msra.mxu0 0.0
    %2505 = vmatprep.subr.mxu0 0.0
    %2506 = vmatpush2.msra.mxu0 0.0
    %2507 = vmatprep.subr.mxu0 0.0
    %2508 = vmatpush2.msra.mxu0 0.0
    %2509 = vmatprep.subr.mxu0 0.0
    %2510 = vmatpush2.msra.mxu0 0.0
    %2511 = vmatprep.subr.mxu0 0.0
    %2512 = vmatpush2.msra.mxu0 0.0
    %2513 = vmatprep.subr.mxu0 0.0
    %2514 = vmatpush2.msra.mxu0 0.0
    %2515 = vmatprep.subr.mxu0 0.0
    %2516 = vmatpush2.msra.mxu0 0.0
    %2517 = vmatprep.subr.mxu0 0.0
    %2518 = vmatpush2.msra.mxu0 0.0
    %2519 = vmatprep.mubr.f32.mxu0 0.0
    %2520 = vmatmul.mubr.f32.gmra.mxu0 %v2450
    %v2521 = vpop.f32.mrf.mxu0
    %v2522 = vadd.f32 0.0, %v2521
    %v2523 = vpop.f32.mrf.mxu0
    %2524 = vmatprep.mubr.f32.mxu0 0.0
    %2525 = vmatmul.mubr.f32.gmra.mxu0 %v2453
    %v2526 = vpop.f32.mrf.mxu0
    %v2527 = vadd.f32 0.0, %v2526
    %v2528 = vpop.f32.mrf.mxu0
    %2529 = vdwg.mxu0
    %v2531 = vsel %vm995, %v2174, 0
    %v2534 = vsel %vm995, %v2179, 0
    %2536 = vmatprep.subr.mxu0 0.0
    %2537 = vmatpush1.msra.mxu0 0.0
    %2538 = vmatprep.subr.mxu0 0.0
    %2539 = vmatpush1.msra.mxu0 0.0
    %2540 = vmatprep.subr.mxu0 0.0
    %2541 = vmatpush1.msra.mxu0 0.0
    %2542 = vmatprep.subr.mxu0 0.0
    %2543 = vmatpush1.msra.mxu0 0.0
    %2544 = vmatprep.subr.mxu0 0.0
    %2545 = vmatpush1.msra.mxu0 0.0
    %2546 = vmatprep.subr.mxu0 0.0
    %2547 = vmatpush1.msra.mxu0 0.0
    %2548 = vmatprep.subr.mxu0 0.0
    %2549 = vmatpush1.msra.mxu0 0.0
    %2550 = vmatprep.subr.mxu0 0.0
    %2551 = vmatpush1.msra.mxu0 0.0
    %2552 = vmatprep.subr.mxu0 0.0
    %2553 = vmatpush1.msra.mxu0 0.0
    %2554 = vmatprep.subr.mxu0 0.0
    %2555 = vmatpush1.msra.mxu0 0.0
    %2556 = vmatprep.subr.mxu0 0.0
    %2557 = vmatpush1.msra.mxu0 0.0
    %2558 = vmatprep.subr.mxu0 0.0
    %2559 = vmatpush1.msra.mxu0 0.0
    %2560 = vmatprep.subr.mxu0 0.0
    %2561 = vmatpush1.msra.mxu0 0.0
    %2562 = vmatprep.subr.mxu0 0.0
    %2563 = vmatpush1.msra.mxu0 0.0
    %2564 = vmatprep.subr.mxu0 0.0
    %2565 = vmatpush1.msra.mxu0 %v1188
    %2566 = vmatprep.subr.mxu0 0.0
    %2567 = vmatpush1.msra.mxu0 %v1187
    %2568 = vmatprep.subr.mxu0 0.0
    %2569 = vmatpush2.msra.mxu0 0.0
    %2570 = vmatprep.subr.mxu0 0.0
    %2571 = vmatpush2.msra.mxu0 0.0
    %2572 = vmatprep.subr.mxu0 0.0
    %2573 = vmatpush2.msra.mxu0 0.0
    %2574 = vmatprep.subr.mxu0 0.0
    %2575 = vmatpush2.msra.mxu0 0.0
    %2576 = vmatprep.subr.mxu0 0.0
    %2577 = vmatpush2.msra.mxu0 0.0
    %2578 = vmatprep.subr.mxu0 0.0
    %2579 = vmatpush2.msra.mxu0 0.0
    %2580 = vmatprep.subr.mxu0 0.0
    %2581 = vmatpush2.msra.mxu0 0.0
    %2582 = vmatprep.subr.mxu0 0.0
    %2583 = vmatpush2.msra.mxu0 0.0
    %2584 = vmatprep.subr.mxu0 0.0
    %2585 = vmatpush2.msra.mxu0 0.0
    %2586 = vmatprep.subr.mxu0 0.0
    %2587 = vmatpush2.msra.mxu0 0.0
    %2588 = vmatprep.subr.mxu0 0.0
    %2589 = vmatpush2.msra.mxu0 0.0
    %2590 = vmatprep.subr.mxu0 0.0
    %2591 = vmatpush2.msra.mxu0 0.0
    %2592 = vmatprep.subr.mxu0 0.0
    %2593 = vmatpush2.msra.mxu0 0.0
    %2594 = vmatprep.subr.mxu0 0.0
    %2595 = vmatpush2.msra.mxu0 0.0
    %2596 = vmatprep.subr.mxu0 0.0
    %2597 = vmatpush2.msra.mxu0 0.0
    %2598 = vmatprep.subr.mxu0 0.0
    %2599 = vmatpush2.msra.mxu0 0.0
    %2600 = vmatprep.mubr.f32.mxu0 0.0
    %2601 = vmatmul.mubr.f32.gmra.mxu0 %v2531
    %v2602 = vpop.f32.mrf.mxu0
    %v2603 = vadd.f32 %v2522, %v2602
    %v2604 = vpop.f32.mrf.mxu0
    %2605 = vmatprep.mubr.f32.mxu0 0.0
    %2606 = vmatmul.mubr.f32.gmra.mxu0 %v2534
    %v2607 = vpop.f32.mrf.mxu0
    %v2608 = vadd.f32 %v2527, %v2607
    %v2609 = vpop.f32.mrf.mxu0
    %2610 = vdwg.mxu0
    %v2611 = vadd.f32 %v472, %v2603
    %v2612 = vadd.f32 %v473, %v2608
    %v2613 = vadd.f32 %v2611, %v1641
    %v2614 = vadd.f32 %v2612, %v1641
    %v2615 = vsel %vm286, %v2613, 0.0
    %2616 = vadd.xlane.f32.xlu0 %v2615
    %v2617 = vpop.xlane.xlu0 %2616
    %v2618 = vsel %vm284, %v2614, 0.0
    %2619 = vadd.xlane.f32.xlu0 %v2618
    %v2620 = vpop.xlane.xlu0 %2619
    %v2621 = vmul.f32 %v2617, %v880
    %v2622 = vmul.f32 %v2620, %v880
    %v2623 = vsub.f32 %v2613, %v2621
    %v2624 = vsub.f32 %v2614, %v2622
    %v2625 = vmul.f32 %v2623, %v2623
    %v2626 = vmul.f32 %v2624, %v2624
    %v2627 = vsel %vm286, %v2625, 0.0
    %2628 = vadd.xlane.f32.xlu0 %v2627
    %v2629 = vpop.xlane.xlu0 %2628
    %v2630 = vsel %vm284, %v2626, 0.0
    %2631 = vadd.xlane.f32.xlu0 %v2630
    %v2632 = vpop.xlane.xlu0 %2631
    %v2633 = vmul.f32 %v2629, %v880
    %v2634 = vmul.f32 %v2632, %v880
    %v2635 = vadd.f32 %v2633, 1e-05
    %v2636 = vadd.f32 %v2634, 1e-05
    %v2637 = vrsqrt.pop %v2635
    %v2638 = vrsqrt.pop %v2636
    %v2639 = vmul.f32 %v2623, %v2637
    %v2640 = vmul.f32 %v2624, %v2638
    %v2642 = vsel %vm286, %v2639, 0
    %v2645 = vsel %vm286, %v2640, 0
    %2647 = vmatprep.subr.mxu0 0.0
    %2648 = vmatpush1.msra.mxu0 0.0
    %2649 = vmatprep.subr.mxu0 0.0
    %2650 = vmatpush1.msra.mxu0 0.0
    %2651 = vmatprep.subr.mxu0 0.0
    %2652 = vmatpush1.msra.mxu0 0.0
    %2653 = vmatprep.subr.mxu0 0.0
    %2654 = vmatpush1.msra.mxu0 0.0
    %2655 = vmatprep.subr.mxu0 0.0
    %2656 = vmatpush1.msra.mxu0 0.0
    %2657 = vmatprep.subr.mxu0 0.0
    %2658 = vmatpush1.msra.mxu0 0.0
    %2659 = vmatprep.subr.mxu0 0.0
    %2660 = vmatpush1.msra.mxu0 0.0
    %2661 = vmatprep.subr.mxu0 0.0
    %2662 = vmatpush1.msra.mxu0 0.0
    %2663 = vmatprep.subr.mxu0 0.0
    %2664 = vmatpush1.msra.mxu0 0.0
    %2665 = vmatprep.subr.mxu0 0.0
    %2666 = vmatpush1.msra.mxu0 0.0
    %2667 = vmatprep.subr.mxu0 0.0
    %2668 = vmatpush1.msra.mxu0 0.0
    %2669 = vmatprep.subr.mxu0 0.0
    %2670 = vmatpush1.msra.mxu0 0.0
    %2671 = vmatprep.subr.mxu0 0.0
    %2672 = vmatpush1.msra.mxu0 %v1674
    %2673 = vmatprep.subr.mxu0 0.0
    %2674 = vmatpush1.msra.mxu0 %v1673
    %2675 = vmatprep.subr.mxu0 0.0
    %2676 = vmatpush1.msra.mxu0 %v1672
    %2677 = vmatprep.subr.mxu0 0.0
    %2678 = vmatpush1.msra.mxu0 %v1671
    %2679 = vmatprep.subr.mxu0 0.0
    %2680 = vmatpush2.msra.mxu0 0.0
    %2681 = vmatprep.subr.mxu0 0.0
    %2682 = vmatpush2.msra.mxu0 0.0
    %2683 = vmatprep.subr.mxu0 0.0
    %2684 = vmatpush2.msra.mxu0 0.0
    %2685 = vmatprep.subr.mxu0 0.0
    %2686 = vmatpush2.msra.mxu0 0.0
    %2687 = vmatprep.subr.mxu0 0.0
    %2688 = vmatpush2.msra.mxu0 0.0
    %2689 = vmatprep.subr.mxu0 0.0
    %2690 = vmatpush2.msra.mxu0 0.0
    %2691 = vmatprep.subr.mxu0 0.0
    %2692 = vmatpush2.msra.mxu0 0.0
    %2693 = vmatprep.subr.mxu0 0.0
    %2694 = vmatpush2.msra.mxu0 0.0
    %2695 = vmatprep.subr.mxu0 0.0
    %2696 = vmatpush2.msra.mxu0 0.0
    %2697 = vmatprep.subr.mxu0 0.0
    %2698 = vmatpush2.msra.mxu0 0.0
    %2699 = vmatprep.subr.mxu0 0.0
    %2700 = vmatpush2.msra.mxu0 0.0
    %2701 = vmatprep.subr.mxu0 0.0
    %2702 = vmatpush2.msra.mxu0 0.0
    %2703 = vmatprep.subr.mxu0 0.0
    %2704 = vmatpush2.msra.mxu0 0.0
    %2705 = vmatprep.subr.mxu0 0.0
    %2706 = vmatpush2.msra.mxu0 0.0
    %2707 = vmatprep.subr.mxu0 0.0
    %2708 = vmatpush2.msra.mxu0 0.0
    %2709 = vmatprep.subr.mxu0 0.0
    %2710 = vmatpush2.msra.mxu0 0.0
    %2711 = vmatprep.mubr.f32.mxu0 0.0
    %2712 = vmatmul.mubr.f32.gmra.mxu0 %v2642
    %v2713 = vpop.f32.mrf.mxu0
    %v2714 = vadd.f32 %v1680, %v2713
    %v2715 = vpop.f32.mrf.mxu0
    %2716 = vmatprep.mubr.f32.mxu0 0.0
    %2717 = vmatmul.mubr.f32.gmra.mxu0 %v2645
    %v2718 = vpop.f32.mrf.mxu0
    %v2719 = vadd.f32 %v1680, %v2718
    %v2720 = vpop.f32.mrf.mxu0
    %2721 = vdwg.mxu0
    %v2722 = vmul.f32 %v2714, 0.5
    %v2723 = vmul.f32 %v2719, 0.5
    %v2724 = vmul.f32 %v2714, 0.044715
    %v2725 = vmul.f32 %v2719, 0.044715
    %v2726 = vmul.f32 %v2724, %v2714
    %v2727 = vmul.f32 %v2725, %v2719
    %v2728 = vmul.f32 %v2726, %v2714
    %v2729 = vmul.f32 %v2727, %v2719
    %v2730 = vadd.f32 %v2714, %v2728
    %v2731 = vadd.f32 %v2719, %v2729
    %v2732 = vmul.f32 %v2730, 0.7978846
    %v2733 = vmul.f32 %v2731, 0.7978846
    %v2734 = vtanh.pop %v2732
    %v2735 = vtanh.pop %v2733
    %v2736 = vadd.f32 %v2734, 1.0
    %v2737 = vadd.f32 %v2735, 1.0
    %v2738 = vmul.f32 %v2722, %v2736
    %v2739 = vmul.f32 %v2723, %v2737
    %2740 = vmatprep.subr.mxu0 0.0
    %2741 = vmatpush1.msra.mxu0 %v1796
    %2742 = vmatprep.subr.mxu0 0.0
    %2743 = vmatpush1.msra.mxu0 %v1795
    %2744 = vmatprep.subr.mxu0 0.0
    %2745 = vmatpush1.msra.mxu0 %v1794
    %2746 = vmatprep.subr.mxu0 0.0
    %2747 = vmatpush1.msra.mxu0 %v1793
    %2748 = vmatprep.subr.mxu0 0.0
    %2749 = vmatpush1.msra.mxu0 %v1792
    %2750 = vmatprep.subr.mxu0 0.0
    %2751 = vmatpush1.msra.mxu0 %v1791
    %2752 = vmatprep.subr.mxu0 0.0
    %2753 = vmatpush1.msra.mxu0 %v1790
    %2754 = vmatprep.subr.mxu0 0.0
    %2755 = vmatpush1.msra.mxu0 %v1789
    %2756 = vmatprep.subr.mxu0 0.0
    %2757 = vmatpush1.msra.mxu0 %v1788
    %2758 = vmatprep.subr.mxu0 0.0
    %2759 = vmatpush1.msra.mxu0 %v1787
    %2760 = vmatprep.subr.mxu0 0.0
    %2761 = vmatpush1.msra.mxu0 %v1786
    %2762 = vmatprep.subr.mxu0 0.0
    %2763 = vmatpush1.msra.mxu0 %v1785
    %2764 = vmatprep.subr.mxu0 0.0
    %2765 = vmatpush1.msra.mxu0 %v1784
    %2766 = vmatprep.subr.mxu0 0.0
    %2767 = vmatpush1.msra.mxu0 %v1783
    %2768 = vmatprep.subr.mxu0 0.0
    %2769 = vmatpush1.msra.mxu0 %v1782
    %2770 = vmatprep.subr.mxu0 0.0
    %2771 = vmatpush1.msra.mxu0 %v1781
    %2772 = vmatprep.subr.mxu0 0.0
    %2773 = vmatpush2.msra.mxu0 0.0
    %2774 = vmatprep.subr.mxu0 0.0
    %2775 = vmatpush2.msra.mxu0 0.0
    %2776 = vmatprep.subr.mxu0 0.0
    %2777 = vmatpush2.msra.mxu0 0.0
    %2778 = vmatprep.subr.mxu0 0.0
    %2779 = vmatpush2.msra.mxu0 0.0
    %2780 = vmatprep.subr.mxu0 0.0
    %2781 = vmatpush2.msra.mxu0 0.0
    %2782 = vmatprep.subr.mxu0 0.0
    %2783 = vmatpush2.msra.mxu0 0.0
    %2784 = vmatprep.subr.mxu0 0.0
    %2785 = vmatpush2.msra.mxu0 0.0
    %2786 = vmatprep.subr.mxu0 0.0
    %2787 = vmatpush2.msra.mxu0 0.0
    %2788 = vmatprep.subr.mxu0 0.0
    %2789 = vmatpush2.msra.mxu0 0.0
    %2790 = vmatprep.subr.mxu0 0.0
    %2791 = vmatpush2.msra.mxu0 0.0
    %2792 = vmatprep.subr.mxu0 0.0
    %2793 = vmatpush2.msra.mxu0 0.0
    %2794 = vmatprep.subr.mxu0 0.0
    %2795 = vmatpush2.msra.mxu0 0.0
    %2796 = vmatprep.subr.mxu0 0.0
    %2797 = vmatpush2.msra.mxu0 0.0
    %2798 = vmatprep.subr.mxu0 0.0
    %2799 = vmatpush2.msra.mxu0 0.0
    %2800 = vmatprep.subr.mxu0 0.0
    %2801 = vmatpush2.msra.mxu0 0.0
    %2802 = vmatprep.subr.mxu0 0.0
    %2803 = vmatpush2.msra.mxu0 0.0
    %2804 = vmatprep.mubr.f32.mxu0 0.0
    %2805 = vmatmul.mubr.f32.gmra.mxu0 %v2738
    %v2806 = vpop.f32.mrf.mxu0
    %v2807 = vadd.f32 0.0, %v2806
    %v2808 = vpop.f32.mrf.mxu0
    %2809 = vmatprep.mubr.f32.mxu0 0.0
    %2810 = vmatmul.mubr.f32.gmra.mxu0 %v2739
    %v2811 = vpop.f32.mrf.mxu0
    %v2812 = vadd.f32 0.0, %v2811
    %v2813 = vpop.f32.mrf.mxu0
    %2814 = vdwg.mxu0
    %v2815 = vadd.f32 %v2613, %v2807
    %v2816 = vadd.f32 %v2614, %v2812
    %v2817 = vadd.f32 %v2815, %v1879
    %v2818 = vadd.f32 %v2816, %v1879
    %v2819 = vsel %vm286, %v1881, 0.0
    %2820 = vadd.xlane.f32.xlu0 %v2819
    %v2821 = vpop.xlane.xlu0 %2820
    %v2822 = vsel %vm284, %v1882, 0.0
    %2823 = vadd.xlane.f32.xlu0 %v2822
    %v2824 = vpop.xlane.xlu0 %2823
    %v2825 = vmul.f32 %v2821, %v880
    %v2826 = vmul.f32 %v2824, %v880
    %v2827 = vsub.f32 %v1881, %v2825
    %v2828 = vsub.f32 %v1882, %v2826
    %v2829 = vmul.f32 %v2827, %v2827
    %v2830 = vmul.f32 %v2828, %v2828
    %v2831 = vsel %vm286, %v2829, 0.0
    %2832 = vadd.xlane.f32.xlu0 %v2831
    %v2833 = vpop.xlane.xlu0 %2832
    %v2834 = vsel %vm284, %v2830, 0.0
    %2835 = vadd.xlane.f32.xlu0 %v2834
    %v2836 = vpop.xlane.xlu0 %2835
    %v2837 = vmul.f32 %v2833, %v880
    %v2838 = vmul.f32 %v2836, %v880
    %v2839 = vadd.f32 %v2837, 1e-05
    %v2840 = vadd.f32 %v2838, 1e-05
    %v2841 = vrsqrt.pop %v2839
    %v2842 = vrsqrt.pop %v2840
    %v2843 = vmul.f32 %v2827, %v2841
    %v2844 = vmul.f32 %v2828, %v2842
    %s2845 = scalar_lea.vmem %s15, 64
    %v2846 = vld [vmem:[%s2845] sm:$0xff]
    %v2847 = vld [vmem:[%s2845 + $0x8] sm:$0xff]
    %v2848 = vld [vmem:[%s2845 + $0x10] sm:$0xff]
    %v2849 = vld [vmem:[%s2845 + $0x18] sm:$0xff]
    %s2850 = scalar_lea.vmem %s16, 2
    %v2851 = vld [vmem:[%s2850] sm:$0x1]
    %v2853 = vlaneseq
    %v2854 = vshrl.u32 %v2853, 7
    %v2855 = vsub.s32 0, %v2854
    %v2856 = vrot.slane %v2851, %v2855
    %v2859 = vsel %vm286, %v2843, 0
    %v2862 = vsel %vm286, %v2844, 0
    %2864 = vmatprep.subr.mxu0 0.0
    %2865 = vmatpush1.msra.mxu0 0.0
    %2866 = vmatprep.subr.mxu0 0.0
    %2867 = vmatpush1.msra.mxu0 0.0
    %2868 = vmatprep.subr.mxu0 0.0
    %2869 = vmatpush1.msra.mxu0 0.0
    %2870 = vmatprep.subr.mxu0 0.0
    %2871 = vmatpush1.msra.mxu0 0.0
    %2872 = vmatprep.subr.mxu0 0.0
    %2873 = vmatpush1.msra.mxu0 0.0
    %2874 = vmatprep.subr.mxu0 0.0
    %2875 = vmatpush1.msra.mxu0 0.0
    %2876 = vmatprep.subr.mxu0 0.0
    %2877 = vmatpush1.msra.mxu0 0.0
    %2878 = vmatprep.subr.mxu0 0.0
    %2879 = vmatpush1.msra.mxu0 0.0
    %2880 = vmatprep.subr.mxu0 0.0
    %2881 = vmatpush1.msra.mxu0 0.0
    %2882 = vmatprep.subr.mxu0 0.0
    %2883 = vmatpush1.msra.mxu0 0.0
    %2884 = vmatprep.subr.mxu0 0.0
    %2885 = vmatpush1.msra.mxu0 0.0
    %2886 = vmatprep.subr.mxu0 0.0
    %2887 = vmatpush1.msra.mxu0 0.0
    %2888 = vmatprep.subr.mxu0 0.0
    %2889 = vmatpush1.msra.mxu0 %v2849
    %2890 = vmatprep.subr.mxu0 0.0
    %2891 = vmatpush1.msra.mxu0 %v2848
    %2892 = vmatprep.subr.mxu0 0.0
    %2893 = vmatpush1.msra.mxu0 %v2847
    %2894 = vmatprep.subr.mxu0 0.0
    %2895 = vmatpush1.msra.mxu0 %v2846
    %2896 = vmatprep.subr.mxu0 0.0
    %2897 = vmatpush2.msra.mxu0 0.0
    %2898 = vmatprep.subr.mxu0 0.0
    %2899 = vmatpush2.msra.mxu0 0.0
    %2900 = vmatprep.subr.mxu0 0.0
    %2901 = vmatpush2.msra.mxu0 0.0
    %2902 = vmatprep.subr.mxu0 0.0
    %2903 = vmatpush2.msra.mxu0 0.0
    %2904 = vmatprep.subr.mxu0 0.0
    %2905 = vmatpush2.msra.mxu0 0.0
    %2906 = vmatprep.subr.mxu0 0.0
    %2907 = vmatpush2.msra.mxu0 0.0
    %2908 = vmatprep.subr.mxu0 0.0
    %2909 = vmatpush2.msra.mxu0 0.0
    %2910 = vmatprep.subr.mxu0 0.0
    %2911 = vmatpush2.msra.mxu0 0.0
    %2912 = vmatprep.subr.mxu0 0.0
    %2913 = vmatpush2.msra.mxu0 0.0
    %2914 = vmatprep.subr.mxu0 0.0
    %2915 = vmatpush2.msra.mxu0 0.0
    %2916 = vmatprep.subr.mxu0 0.0
    %2917 = vmatpush2.msra.mxu0 0.0
    %2918 = vmatprep.subr.mxu0 0.0
    %2919 = vmatpush2.msra.mxu0 0.0
    %2920 = vmatprep.subr.mxu0 0.0
    %2921 = vmatpush2.msra.mxu0 0.0
    %2922 = vmatprep.subr.mxu0 0.0
    %2923 = vmatpush2.msra.mxu0 0.0
    %2924 = vmatprep.subr.mxu0 0.0
    %2925 = vmatpush2.msra.mxu0 0.0
    %2926 = vmatprep.subr.mxu0 0.0
    %2927 = vmatpush2.msra.mxu0 0.0
    %2928 = vmatprep.mubr.f32.mxu0 0.0
    %2929 = vmatmul.mubr.f32.gmra.mxu0 %v2859
    %v2930 = vpop.f32.mrf.mxu0
    %v2931 = vadd.f32 %v2856, %v2930
    %v2932 = vpop.f32.mrf.mxu0
    %2933 = vmatprep.mubr.f32.mxu0 0.0
    %2934 = vmatmul.mubr.f32.gmra.mxu0 %v2862
    %v2935 = vpop.f32.mrf.mxu0
    %v2936 = vadd.f32 %v2856, %v2935
    %v2937 = vpop.f32.mrf.mxu0
    %2938 = vdwg.mxu0
    %v2939 = vmul.f32 %v2931, 0.25
    %v2940 = vmul.f32 %v2936, 0.25
    %s2941 = scalar_lea.vmem %s17, 64
    %v2942 = vld [vmem:[%s2941] sm:$0xff]
    %v2943 = vld [vmem:[%s2941 + $0x8] sm:$0xff]
    %v2944 = vld [vmem:[%s2941 + $0x10] sm:$0xff]
    %v2945 = vld [vmem:[%s2941 + $0x18] sm:$0xff]
    %s2946 = scalar_lea.vmem %s18, 2
    %v2947 = vld [vmem:[%s2946] sm:$0x1]
    %v2949 = vlaneseq
    %v2950 = vshrl.u32 %v2949, 7
    %v2951 = vsub.s32 0, %v2950
    %v2952 = vrot.slane %v2947, %v2951
    %2954 = vmatprep.subr.mxu0 0.0
    %2955 = vmatpush1.msra.mxu0 0.0
    %2956 = vmatprep.subr.mxu0 0.0
    %2957 = vmatpush1.msra.mxu0 0.0
    %2958 = vmatprep.subr.mxu0 0.0
    %2959 = vmatpush1.msra.mxu0 0.0
    %2960 = vmatprep.subr.mxu0 0.0
    %2961 = vmatpush1.msra.mxu0 0.0
    %2962 = vmatprep.subr.mxu0 0.0
    %2963 = vmatpush1.msra.mxu0 0.0
    %2964 = vmatprep.subr.mxu0 0.0
    %2965 = vmatpush1.msra.mxu0 0.0
    %2966 = vmatprep.subr.mxu0 0.0
    %2967 = vmatpush1.msra.mxu0 0.0
    %2968 = vmatprep.subr.mxu0 0.0
    %2969 = vmatpush1.msra.mxu0 0.0
    %2970 = vmatprep.subr.mxu0 0.0
    %2971 = vmatpush1.msra.mxu0 0.0
    %2972 = vmatprep.subr.mxu0 0.0
    %2973 = vmatpush1.msra.mxu0 0.0
    %2974 = vmatprep.subr.mxu0 0.0
    %2975 = vmatpush1.msra.mxu0 0.0
    %2976 = vmatprep.subr.mxu0 0.0
    %2977 = vmatpush1.msra.mxu0 0.0
    %2978 = vmatprep.subr.mxu0 0.0
    %2979 = vmatpush1.msra.mxu0 %v2945
    %2980 = vmatprep.subr.mxu0 0.0
    %2981 = vmatpush1.msra.mxu0 %v2944
    %2982 = vmatprep.subr.mxu0 0.0
    %2983 = vmatpush1.msra.mxu0 %v2943
    %2984 = vmatprep.subr.mxu0 0.0
    %2985 = vmatpush1.msra.mxu0 %v2942
    %2986 = vmatprep.subr.mxu0 0.0
    %2987 = vmatpush2.msra.mxu0 0.0
    %2988 = vmatprep.subr.mxu0 0.0
    %2989 = vmatpush2.msra.mxu0 0.0
    %2990 = vmatprep.subr.mxu0 0.0
    %2991 = vmatpush2.msra.mxu0 0.0
    %2992 = vmatprep.subr.mxu0 0.0
    %2993 = vmatpush2.msra.mxu0 0.0
    %2994 = vmatprep.subr.mxu0 0.0
    %2995 = vmatpush2.msra.mxu0 0.0
    %2996 = vmatprep.subr.mxu0 0.0
    %2997 = vmatpush2.msra.mxu0 0.0
    %2998 = vmatprep.subr.mxu0 0.0
    %2999 = vmatpush2.msra.mxu0 0.0
    %3000 = vmatprep.subr.mxu0 0.0
    %3001 = vmatpush2.msra.mxu0 0.0
    %3002 = vmatprep.subr.mxu0 0.0
    %3003 = vmatpush2.msra.mxu0 0.0
    %3004 = vmatprep.subr.mxu0 0.0
    %3005 = vmatpush2.msra.mxu0 0.0
    %3006 = vmatprep.subr.mxu0 0.0
    %3007 = vmatpush2.msra.mxu0 0.0
    %3008 = vmatprep.subr.mxu0 0.0
    %3009 = vmatpush2.msra.mxu0 0.0
    %3010 = vmatprep.subr.mxu0 0.0
    %3011 = vmatpush2.msra.mxu0 0.0
    %3012 = vmatprep.subr.mxu0 0.0
    %3013 = vmatpush2.msra.mxu0 0.0
    %3014 = vmatprep.subr.mxu0 0.0
    %3015 = vmatpush2.msra.mxu0 0.0
    %3016 = vmatprep.subr.mxu0 0.0
    %3017 = vmatpush2.msra.mxu0 0.0
    %3018 = vmatprep.mubr.f32.mxu0 0.0
    %3019 = vmatmul.mubr.f32.gmra.mxu0 %v2859
    %v3020 = vpop.f32.mrf.mxu0
    %v3021 = vadd.f32 %v2952, %v3020
    %v3022 = vpop.f32.mrf.mxu0
    %3023 = vmatprep.mubr.f32.mxu0 0.0
    %3024 = vmatmul.mubr.f32.gmra.mxu0 %v2862
    %v3025 = vpop.f32.mrf.mxu0
    %v3026 = vadd.f32 %v2952, %v3025
    %v3027 = vpop.f32.mrf.mxu0
    %3028 = vdwg.mxu0
    %s3029 = scalar_lea.vmem %s19, 64
    %v3030 = vld [vmem:[%s3029] sm:$0xff]
    %v3031 = vld [vmem:[%s3029 + $0x8] sm:$0xff]
    %v3032 = vld [vmem:[%s3029 + $0x10] sm:$0xff]
    %v3033 = vld [vmem:[%s3029 + $0x18] sm:$0xff]
    %s3034 = scalar_lea.vmem %s20, 2
    %v3035 = vld [vmem:[%s3034] sm:$0x1]
    %v3037 = vlaneseq
    %v3038 = vshrl.u32 %v3037, 7
    %v3039 = vsub.s32 0, %v3038
    %v3040 = vrot.slane %v3035, %v3039
    %3042 = vmatprep.subr.mxu0 0.0
    %3043 = vmatpush1.msra.mxu0 0.0
    %3044 = vmatprep.subr.mxu0 0.0
    %3045 = vmatpush1.msra.mxu0 0.0
    %3046 = vmatprep.subr.mxu0 0.0
    %3047 = vmatpush1.msra.mxu0 0.0
    %3048 = vmatprep.subr.mxu0 0.0
    %3049 = vmatpush1.msra.mxu0 0.0
    %3050 = vmatprep.subr.mxu0 0.0
    %3051 = vmatpush1.msra.mxu0 0.0
    %3052 = vmatprep.subr.mxu0 0.0
    %3053 = vmatpush1.msra.mxu0 0.0
    %3054 = vmatprep.subr.mxu0 0.0
    %3055 = vmatpush1.msra.mxu0 0.0
    %3056 = vmatprep.subr.mxu0 0.0
    %3057 = vmatpush1.msra.mxu0 0.0
    %3058 = vmatprep.subr.mxu0 0.0
    %3059 = vmatpush1.msra.mxu0 0.0
    %3060 = vmatprep.subr.mxu0 0.0
    %3061 = vmatpush1.msra.mxu0 0.0
    %3062 = vmatprep.subr.mxu0 0.0
    %3063 = vmatpush1.msra.mxu0 0.0
    %3064 = vmatprep.subr.mxu0 0.0
    %3065 = vmatpush1.msra.mxu0 0.0
    %3066 = vmatprep.subr.mxu0 0.0
    %3067 = vmatpush1.msra.mxu0 %v3033
    %3068 = vmatprep.subr.mxu0 0.0
    %3069 = vmatpush1.msra.mxu0 %v3032
    %3070 = vmatprep.subr.mxu0 0.0
    %3071 = vmatpush1.msra.mxu0 %v3031
    %3072 = vmatprep.subr.mxu0 0.0
    %3073 = vmatpush1.msra.mxu0 %v3030
    %3074 = vmatprep.subr.mxu0 0.0
    %3075 = vmatpush2.msra.mxu0 0.0
    %3076 = vmatprep.subr.mxu0 0.0
    %3077 = vmatpush2.msra.mxu0 0.0
    %3078 = vmatprep.subr.mxu0 0.0
    %3079 = vmatpush2.msra.mxu0 0.0
    %3080 = vmatprep.subr.mxu0 0.0
    %3081 = vmatpush2.msra.mxu0 0.0
    %3082 = vmatprep.subr.mxu0 0.0
    %3083 = vmatpush2.msra.mxu0 0.0
    %3084 = vmatprep.subr.mxu0 0.0
    %3085 = vmatpush2.msra.mxu0 0.0
    %3086 = vmatprep.subr.mxu0 0.0
    %3087 = vmatpush2.msra.mxu0 0.0
    %3088 = vmatprep.subr.mxu0 0.0
    %3089 = vmatpush2.msra.mxu0 0.0
    %3090 = vmatprep.subr.mxu0 0.0
    %3091 = vmatpush2.msra.mxu0 0.0
    %3092 = vmatprep.subr.mxu0 0.0
    %3093 = vmatpush2.msra.mxu0 0.0
    %3094 = vmatprep.subr.mxu0 0.0
    %3095 = vmatpush2.msra.mxu0 0.0
    %3096 = vmatprep.subr.mxu0 0.0
    %3097 = vmatpush2.msra.mxu0 0.0
    %3098 = vmatprep.subr.mxu0 0.0
    %3099 = vmatpush2.msra.mxu0 0.0
    %3100 = vmatprep.subr.mxu0 0.0
    %3101 = vmatpush2.msra.mxu0 0.0
    %3102 = vmatprep.subr.mxu0 0.0
    %3103 = vmatpush2.msra.mxu0 0.0
    %3104 = vmatprep.subr.mxu0 0.0
    %3105 = vmatpush2.msra.mxu0 0.0
    %3106 = vmatprep.mubr.f32.mxu0 0.0
    %3107 = vmatmul.mubr.f32.gmra.mxu0 %v2859
    %v3108 = vpop.f32.mrf.mxu0
    %v3109 = vadd.f32 %v3040, %v3108
    %v3110 = vpop.f32.mrf.mxu0
    %3111 = vmatprep.mubr.f32.mxu0 0.0
    %3112 = vmatmul.mubr.f32.gmra.mxu0 %v2862
    %v3113 = vpop.f32.mrf.mxu0
    %v3114 = vadd.f32 %v3040, %v3113
    %v3115 = vpop.f32.mrf.mxu0
    %3116 = vdwg.mxu0
    %v3118 = vsel %vm995, %v2939, 0
    %v3121 = vsel %vm995, %v2940, 0
    %v3124 = vsel %vm995, %v3021, 0
    %v3127 = vsel %vm995, %v3026, 0
    %3129 = vmatprep.subr.mxu0 0.0
    %3130 = vmatpush1.xpose.msra.mxu0 0.0
    %3131 = vmatprep.subr.mxu0 0.0
    %3132 = vmatpush1.xpose.msra.mxu0 0.0
    %3133 = vmatprep.subr.mxu0 0.0
    %3134 = vmatpush1.xpose.msra.mxu0 0.0
    %3135 = vmatprep.subr.mxu0 0.0
    %3136 = vmatpush1.xpose.msra.mxu0 0.0
    %3137 = vmatprep.subr.mxu0 0.0
    %3138 = vmatpush1.xpose.msra.mxu0 0.0
    %3139 = vmatprep.subr.mxu0 0.0
    %3140 = vmatpush1.xpose.msra.mxu0 0.0
    %3141 = vmatprep.subr.mxu0 0.0
    %3142 = vmatpush1.xpose.msra.mxu0 0.0
    %3143 = vmatprep.subr.mxu0 0.0
    %3144 = vmatpush1.xpose.msra.mxu0 0.0
    %3145 = vmatprep.subr.mxu0 0.0
    %3146 = vmatpush1.xpose.msra.mxu0 0.0
    %3147 = vmatprep.subr.mxu0 0.0
    %3148 = vmatpush1.xpose.msra.mxu0 0.0
    %3149 = vmatprep.subr.mxu0 0.0
    %3150 = vmatpush1.xpose.msra.mxu0 0.0
    %3151 = vmatprep.subr.mxu0 0.0
    %3152 = vmatpush1.xpose.msra.mxu0 0.0
    %3153 = vmatprep.subr.mxu0 0.0
    %3154 = vmatpush1.xpose.msra.mxu0 0.0
    %3155 = vmatprep.subr.mxu0 0.0
    %3156 = vmatpush1.xpose.msra.mxu0 0.0
    %3157 = vmatprep.subr.mxu0 0.0
    %3158 = vmatpush1.xpose.msra.mxu0 %v3127
    %3159 = vmatprep.subr.mxu0 0.0
    %3160 = vmatpush1.xpose.msra.mxu0 %v3124
    %3161 = vmatprep.subr.mxu0 0.0
    %3162 = vmatpush2.xpose.msra.mxu0 0.0
    %3163 = vmatprep.subr.mxu0 0.0
    %3164 = vmatpush2.xpose.msra.mxu0 0.0
    %3165 = vmatprep.subr.mxu0 0.0
    %3166 = vmatpush2.xpose.msra.mxu0 0.0
    %3167 = vmatprep.subr.mxu0 0.0
    %3168 = vmatpush2.xpose.msra.mxu0 0.0
    %3169 = vmatprep.subr.mxu0 0.0
    %3170 = vmatpush2.xpose.msra.mxu0 0.0
    %3171 = vmatprep.subr.mxu0 0.0
    %3172 = vmatpush2.xpose.msra.mxu0 0.0
    %3173 = vmatprep.subr.mxu0 0.0
    %3174 = vmatpush2.xpose.msra.mxu0 0.0
    %3175 = vmatprep.subr.mxu0 0.0
    %3176 = vmatpush2.xpose.msra.mxu0 0.0
    %3177 = vmatprep.subr.mxu0 0.0
    %3178 = vmatpush2.xpose.msra.mxu0 0.0
    %3179 = vmatprep.subr.mxu0 0.0
    %3180 = vmatpush2.xpose.msra.mxu0 0.0
    %3181 = vmatprep.subr.mxu0 0.0
    %3182 = vmatpush2.xpose.msra.mxu0 0.0
    %3183 = vmatprep.subr.mxu0 0.0
    %3184 = vmatpush2.xpose.msra.mxu0 0.0
    %3185 = vmatprep.subr.mxu0 0.0
    %3186 = vmatpush2.xpose.msra.mxu0 0.0
    %3187 = vmatprep.subr.mxu0 0.0
    %3188 = vmatpush2.xpose.msra.mxu0 0.0
    %3189 = vmatprep.subr.mxu0 0.0
    %3190 = vmatpush2.xpose.msra.mxu0 0.0
    %3191 = vmatprep.subr.mxu0 0.0
    %3192 = vmatpush2.xpose.msra.mxu0 0.0
    %3193 = vmatprep.mubr.f32.mxu0 0.0
    %3194 = vmatmul.mubr.f32.gmra.mxu0 %v3118
    %v3195 = vpop.f32.mrf.mxu0
    %v3196 = vadd.f32 0.0, %v3195
    %v3197 = vpop.f32.mrf.mxu0
    %3198 = vmatprep.mubr.f32.mxu0 0.0
    %3199 = vmatmul.mubr.f32.gmra.mxu0 %v3121
    %v3200 = vpop.f32.mrf.mxu0
    %v3201 = vadd.f32 0.0, %v3200
    %v3202 = vpop.f32.mrf.mxu0
    %3203 = vdwg.mxu0
    %vm3204 = vcmask 72704
    %v3205 = vsel %vm3204, %v3196, -inf
    %3206 = vmax.xlane.f32.xlu0 %v3205
    %v3207 = vpop.xlane.xlu0 %3206
    %vm3208 = vcmask 65536
    %v3209 = vsel %vm3208, %v3201, -inf
    %3210 = vmax.xlane.f32.xlu0 %v3209
    %v3211 = vpop.xlane.xlu0 %3210
    %v3212 = vsub.f32 %v3196, %v3207
    %v3213 = vsub.f32 %v3201, %v3211
    %v3214 = vmul.f32 %v3212, 1.442695
    %v3215 = vpow.pop %v3214
    %v3216 = vmul.f32 %v3213, 1.442695
    %v3217 = vpow.pop %v3216
    %v3218 = vsel %vm3204, %v3215, 0.0
    %3219 = vadd.xlane.f32.xlu0 %v3218
    %v3220 = vpop.xlane.xlu0 %3219
    %v3221 = vsel %vm3208, %v3217, 0.0
    %3222 = vadd.xlane.f32.xlu0 %v3221
    %v3223 = vpop.xlane.xlu0 %3222
    %v3224 = vrcp.pop %v3220
    %v3225 = vmul.f32 %v3215, %v3224
    %v3226 = vrcp.pop %v3223
    %v3227 = vmul.f32 %v3217, %v3226
    %v3229 = vsel %vm3204, %v3225, 0
    %v3232 = vsel %vm3204, %v3227, 0
    %vm3234 = vcmask 1040384
    %v3236 = vsel %vm3234, %v3114, 0
    %3238 = vmatprep.subr.mxu0 0.0
    %3239 = vmatpush1.msra.mxu0 0.0
    %3240 = vmatprep.subr.mxu0 0.0
    %3241 = vmatpush1.msra.mxu0 0.0
    %3242 = vmatprep.subr.mxu0 0.0
    %3243 = vmatpush1.msra.mxu0 0.0
    %3244 = vmatprep.subr.mxu0 0.0
    %3245 = vmatpush1.msra.mxu0 0.0
    %3246 = vmatprep.subr.mxu0 0.0
    %3247 = vmatpush1.msra.mxu0 0.0
    %3248 = vmatprep.subr.mxu0 0.0
    %3249 = vmatpush1.msra.mxu0 0.0
    %3250 = vmatprep.subr.mxu0 0.0
    %3251 = vmatpush1.msra.mxu0 0.0
    %3252 = vmatprep.subr.mxu0 0.0
    %3253 = vmatpush1.msra.mxu0 0.0
    %3254 = vmatprep.subr.mxu0 0.0
    %3255 = vmatpush1.msra.mxu0 0.0
    %3256 = vmatprep.subr.mxu0 0.0
    %3257 = vmatpush1.msra.mxu0 0.0
    %3258 = vmatprep.subr.mxu0 0.0
    %3259 = vmatpush1.msra.mxu0 0.0
    %3260 = vmatprep.subr.mxu0 0.0
    %3261 = vmatpush1.msra.mxu0 0.0
    %3262 = vmatprep.subr.mxu0 0.0
    %3263 = vmatpush1.msra.mxu0 0.0
    %3264 = vmatprep.subr.mxu0 0.0
    %3265 = vmatpush1.msra.mxu0 0.0
    %3266 = vmatprep.subr.mxu0 0.0
    %3267 = vmatpush1.msra.mxu0 %v3236
    %3268 = vmatprep.subr.mxu0 0.0
    %3269 = vmatpush1.msra.mxu0 %v3109
    %3270 = vmatprep.subr.mxu0 0.0
    %3271 = vmatpush2.msra.mxu0 0.0
    %3272 = vmatprep.subr.mxu0 0.0
    %3273 = vmatpush2.msra.mxu0 0.0
    %3274 = vmatprep.subr.mxu0 0.0
    %3275 = vmatpush2.msra.mxu0 0.0
    %3276 = vmatprep.subr.mxu0 0.0
    %3277 = vmatpush2.msra.mxu0 0.0
    %3278 = vmatprep.subr.mxu0 0.0
    %3279 = vmatpush2.msra.mxu0 0.0
    %3280 = vmatprep.subr.mxu0 0.0
    %3281 = vmatpush2.msra.mxu0 0.0
    %3282 = vmatprep.subr.mxu0 0.0
    %3283 = vmatpush2.msra.mxu0 0.0
    %3284 = vmatprep.subr.mxu0 0.0
    %3285 = vmatpush2.msra.mxu0 0.0
    %3286 = vmatprep.subr.mxu0 0.0
    %3287 = vmatpush2.msra.mxu0 0.0
    %3288 = vmatprep.subr.mxu0 0.0
    %3289 = vmatpush2.msra.mxu0 0.0
    %3290 = vmatprep.subr.mxu0 0.0
    %3291 = vmatpush2.msra.mxu0 0.0
    %3292 = vmatprep.subr.mxu0 0.0
    %3293 = vmatpush2.msra.mxu0 0.0
    %3294 = vmatprep.subr.mxu0 0.0
    %3295 = vmatpush2.msra.mxu0 0.0
    %3296 = vmatprep.subr.mxu0 0.0
    %3297 = vmatpush2.msra.mxu0 0.0
    %3298 = vmatprep.subr.mxu0 0.0
    %3299 = vmatpush2.msra.mxu0 0.0
    %3300 = vmatprep.subr.mxu0 0.0
    %3301 = vmatpush2.msra.mxu0 0.0
    %3302 = vmatprep.mubr.f32.mxu0 0.0
    %3303 = vmatmul.mubr.f32.gmra.mxu0 %v3229
    %v3304 = vpop.f32.mrf.mxu0
    %v3305 = vadd.f32 0.0, %v3304
    %v3306 = vpop.f32.mrf.mxu0
    %3307 = vmatprep.mubr.f32.mxu0 0.0
    %3308 = vmatmul.mubr.f32.gmra.mxu0 %v3232
    %v3309 = vpop.f32.mrf.mxu0
    %v3310 = vadd.f32 0.0, %v3309
    %v3311 = vpop.f32.mrf.mxu0
    %3312 = vdwg.mxu0
    %s3313 = scalar_lea.vmem %s21, 32
    %v3314 = vld [vmem:[%s3313] sm:$0xff]
    %v3315 = vld [vmem:[%s3313 + $0x8] sm:$0xff]
    %s3316 = scalar_lea.vmem %s15, 96
    %v3317 = vld [vmem:[%s3316] sm:$0xff]
    %v3318 = vld [vmem:[%s3316 + $0x8] sm:$0xff]
    %v3319 = vld [vmem:[%s3316 + $0x10] sm:$0xff]
    %v3320 = vld [vmem:[%s3316 + $0x18] sm:$0xff]
    %s3321 = scalar_lea.vmem %s16, 3
    %v3322 = vld [vmem:[%s3321] sm:$0x1]
    %v3324 = vlaneseq
    %v3325 = vshrl.u32 %v3324, 7
    %v3326 = vsub.s32 0, %v3325
    %v3327 = vrot.slane %v3322, %v3326
    %3329 = vmatprep.subr.mxu0 0.0
    %3330 = vmatpush1.msra.mxu0 0.0
    %3331 = vmatprep.subr.mxu0 0.0
    %3332 = vmatpush1.msra.mxu0 0.0
    %3333 = vmatprep.subr.mxu0 0.0
    %3334 = vmatpush1.msra.mxu0 0.0
    %3335 = vmatprep.subr.mxu0 0.0
    %3336 = vmatpush1.msra.mxu0 0.0
    %3337 = vmatprep.subr.mxu0 0.0
    %3338 = vmatpush1.msra.mxu0 0.0
    %3339 = vmatprep.subr.mxu0 0.0
    %3340 = vmatpush1.msra.mxu0 0.0
    %3341 = vmatprep.subr.mxu0 0.0
    %3342 = vmatpush1.msra.mxu0 0.0
    %3343 = vmatprep.subr.mxu0 0.0
    %3344 = vmatpush1.msra.mxu0 0.0
    %3345 = vmatprep.subr.mxu0 0.0
    %3346 = vmatpush1.msra.mxu0 0.0
    %3347 = vmatprep.subr.mxu0 0.0
    %3348 = vmatpush1.msra.mxu0 0.0
    %3349 = vmatprep.subr.mxu0 0.0
    %3350 = vmatpush1.msra.mxu0 0.0
    %3351 = vmatprep.subr.mxu0 0.0
    %3352 = vmatpush1.msra.mxu0 0.0
    %3353 = vmatprep.subr.mxu0 0.0
    %3354 = vmatpush1.msra.mxu0 %v3320
    %3355 = vmatprep.subr.mxu0 0.0
    %3356 = vmatpush1.msra.mxu0 %v3319
    %3357 = vmatprep.subr.mxu0 0.0
    %3358 = vmatpush1.msra.mxu0 %v3318
    %3359 = vmatprep.subr.mxu0 0.0
    %3360 = vmatpush1.msra.mxu0 %v3317
    %3361 = vmatprep.subr.mxu0 0.0
    %3362 = vmatpush2.msra.mxu0 0.0
    %3363 = vmatprep.subr.mxu0 0.0
    %3364 = vmatpush2.msra.mxu0 0.0
    %3365 = vmatprep.subr.mxu0 0.0
    %3366 = vmatpush2.msra.mxu0 0.0
    %3367 = vmatprep.subr.mxu0 0.0
    %3368 = vmatpush2.msra.mxu0 0.0
    %3369 = vmatprep.subr.mxu0 0.0
    %3370 = vmatpush2.msra.mxu0 0.0
    %3371 = vmatprep.subr.mxu0 0.0
    %3372 = vmatpush2.msra.mxu0 0.0
    %3373 = vmatprep.subr.mxu0 0.0
    %3374 = vmatpush2.msra.mxu0 0.0
    %3375 = vmatprep.subr.mxu0 0.0
    %3376 = vmatpush2.msra.mxu0 0.0
    %3377 = vmatprep.subr.mxu0 0.0
    %3378 = vmatpush2.msra.mxu0 0.0
    %3379 = vmatprep.subr.mxu0 0.0
    %3380 = vmatpush2.msra.mxu0 0.0
    %3381 = vmatprep.subr.mxu0 0.0
    %3382 = vmatpush2.msra.mxu0 0.0
    %3383 = vmatprep.subr.mxu0 0.0
    %3384 = vmatpush2.msra.mxu0 0.0
    %3385 = vmatprep.subr.mxu0 0.0
    %3386 = vmatpush2.msra.mxu0 0.0
    %3387 = vmatprep.subr.mxu0 0.0
    %3388 = vmatpush2.msra.mxu0 0.0
    %3389 = vmatprep.subr.mxu0 0.0
    %3390 = vmatpush2.msra.mxu0 0.0
    %3391 = vmatprep.subr.mxu0 0.0
    %3392 = vmatpush2.msra.mxu0 0.0
    %3393 = vmatprep.mubr.f32.mxu0 0.0
    %3394 = vmatmul.mubr.f32.gmra.mxu0 %v2859
    %v3395 = vpop.f32.mrf.mxu0
    %v3396 = vadd.f32 %v3327, %v3395
    %v3397 = vpop.f32.mrf.mxu0
    %3398 = vmatprep.mubr.f32.mxu0 0.0
    %3399 = vmatmul.mubr.f32.gmra.mxu0 %v2862
    %v3400 = vpop.f32.mrf.mxu0
    %v3401 = vadd.f32 %v3327, %v3400
    %v3402 = vpop.f32.mrf.mxu0
    %3403 = vdwg.mxu0
    %v3404 = vmul.f32 %v3396, 0.25
    %v3405 = vmul.f32 %v3401, 0.25
    %s3406 = scalar_lea.vmem %s17, 96
    %v3407 = vld [vmem:[%s3406] sm:$0xff]
    %v3408 = vld [vmem:[%s3406 + $0x8] sm:$0xff]
    %v3409 = vld [vmem:[%s3406 + $0x10] sm:$0xff]
    %v3410 = vld [vmem:[%s3406 + $0x18] sm:$0xff]
    %s3411 = scalar_lea.vmem %s18, 3
    %v3412 = vld [vmem:[%s3411] sm:$0x1]
    %v3414 = vlaneseq
    %v3415 = vshrl.u32 %v3414, 7
    %v3416 = vsub.s32 0, %v3415
    %v3417 = vrot.slane %v3412, %v3416
    %3419 = vmatprep.subr.mxu0 0.0
    %3420 = vmatpush1.msra.mxu0 0.0
    %3421 = vmatprep.subr.mxu0 0.0
    %3422 = vmatpush1.msra.mxu0 0.0
    %3423 = vmatprep.subr.mxu0 0.0
    %3424 = vmatpush1.msra.mxu0 0.0
    %3425 = vmatprep.subr.mxu0 0.0
    %3426 = vmatpush1.msra.mxu0 0.0
    %3427 = vmatprep.subr.mxu0 0.0
    %3428 = vmatpush1.msra.mxu0 0.0
    %3429 = vmatprep.subr.mxu0 0.0
    %3430 = vmatpush1.msra.mxu0 0.0
    %3431 = vmatprep.subr.mxu0 0.0
    %3432 = vmatpush1.msra.mxu0 0.0
    %3433 = vmatprep.subr.mxu0 0.0
    %3434 = vmatpush1.msra.mxu0 0.0
    %3435 = vmatprep.subr.mxu0 0.0
    %3436 = vmatpush1.msra.mxu0 0.0
    %3437 = vmatprep.subr.mxu0 0.0
    %3438 = vmatpush1.msra.mxu0 0.0
    %3439 = vmatprep.subr.mxu0 0.0
    %3440 = vmatpush1.msra.mxu0 0.0
    %3441 = vmatprep.subr.mxu0 0.0
    %3442 = vmatpush1.msra.mxu0 0.0
    %3443 = vmatprep.subr.mxu0 0.0
    %3444 = vmatpush1.msra.mxu0 %v3410
    %3445 = vmatprep.subr.mxu0 0.0
    %3446 = vmatpush1.msra.mxu0 %v3409
    %3447 = vmatprep.subr.mxu0 0.0
    %3448 = vmatpush1.msra.mxu0 %v3408
    %3449 = vmatprep.subr.mxu0 0.0
    %3450 = vmatpush1.msra.mxu0 %v3407
    %3451 = vmatprep.subr.mxu0 0.0
    %3452 = vmatpush2.msra.mxu0 0.0
    %3453 = vmatprep.subr.mxu0 0.0
    %3454 = vmatpush2.msra.mxu0 0.0
    %3455 = vmatprep.subr.mxu0 0.0
    %3456 = vmatpush2.msra.mxu0 0.0
    %3457 = vmatprep.subr.mxu0 0.0
    %3458 = vmatpush2.msra.mxu0 0.0
    %3459 = vmatprep.subr.mxu0 0.0
    %3460 = vmatpush2.msra.mxu0 0.0
    %3461 = vmatprep.subr.mxu0 0.0
    %3462 = vmatpush2.msra.mxu0 0.0
    %3463 = vmatprep.subr.mxu0 0.0
    %3464 = vmatpush2.msra.mxu0 0.0
    %3465 = vmatprep.subr.mxu0 0.0
    %3466 = vmatpush2.msra.mxu0 0.0
    %3467 = vmatprep.subr.mxu0 0.0
    %3468 = vmatpush2.msra.mxu0 0.0
    %3469 = vmatprep.subr.mxu0 0.0
    %3470 = vmatpush2.msra.mxu0 0.0
    %3471 = vmatprep.subr.mxu0 0.0
    %3472 = vmatpush2.msra.mxu0 0.0
    %3473 = vmatprep.subr.mxu0 0.0
    %3474 = vmatpush2.msra.mxu0 0.0
    %3475 = vmatprep.subr.mxu0 0.0
    %3476 = vmatpush2.msra.mxu0 0.0
    %3477 = vmatprep.subr.mxu0 0.0
    %3478 = vmatpush2.msra.mxu0 0.0
    %3479 = vmatprep.subr.mxu0 0.0
    %3480 = vmatpush2.msra.mxu0 0.0
    %3481 = vmatprep.subr.mxu0 0.0
    %3482 = vmatpush2.msra.mxu0 0.0
    %3483 = vmatprep.mubr.f32.mxu0 0.0
    %3484 = vmatmul.mubr.f32.gmra.mxu0 %v2859
    %v3485 = vpop.f32.mrf.mxu0
    %v3486 = vadd.f32 %v3417, %v3485
    %v3487 = vpop.f32.mrf.mxu0
    %3488 = vmatprep.mubr.f32.mxu0 0.0
    %3489 = vmatmul.mubr.f32.gmra.mxu0 %v2862
    %v3490 = vpop.f32.mrf.mxu0
    %v3491 = vadd.f32 %v3417, %v3490
    %v3492 = vpop.f32.mrf.mxu0
    %3493 = vdwg.mxu0
    %s3494 = scalar_lea.vmem %s19, 96
    %v3495 = vld [vmem:[%s3494] sm:$0xff]
    %v3496 = vld [vmem:[%s3494 + $0x8] sm:$0xff]
    %v3497 = vld [vmem:[%s3494 + $0x10] sm:$0xff]
    %v3498 = vld [vmem:[%s3494 + $0x18] sm:$0xff]
    %s3499 = scalar_lea.vmem %s20, 3
    %v3500 = vld [vmem:[%s3499] sm:$0x1]
    %v3502 = vlaneseq
    %v3503 = vshrl.u32 %v3502, 7
    %v3504 = vsub.s32 0, %v3503
    %v3505 = vrot.slane %v3500, %v3504
    %3507 = vmatprep.subr.mxu0 0.0
    %3508 = vmatpush1.msra.mxu0 0.0
    %3509 = vmatprep.subr.mxu0 0.0
    %3510 = vmatpush1.msra.mxu0 0.0
    %3511 = vmatprep.subr.mxu0 0.0
    %3512 = vmatpush1.msra.mxu0 0.0
    %3513 = vmatprep.subr.mxu0 0.0
    %3514 = vmatpush1.msra.mxu0 0.0
    %3515 = vmatprep.subr.mxu0 0.0
    %3516 = vmatpush1.msra.mxu0 0.0
    %3517 = vmatprep.subr.mxu0 0.0
    %3518 = vmatpush1.msra.mxu0 0.0
    %3519 = vmatprep.subr.mxu0 0.0
    %3520 = vmatpush1.msra.mxu0 0.0
    %3521 = vmatprep.subr.mxu0 0.0
    %3522 = vmatpush1.msra.mxu0 0.0
    %3523 = vmatprep.subr.mxu0 0.0
    %3524 = vmatpush1.msra.mxu0 0.0
    %3525 = vmatprep.subr.mxu0 0.0
    %3526 = vmatpush1.msra.mxu0 0.0
    %3527 = vmatprep.subr.mxu0 0.0
    %3528 = vmatpush1.msra.mxu0 0.0
    %3529 = vmatprep.subr.mxu0 0.0
    %3530 = vmatpush1.msra.mxu0 0.0
    %3531 = vmatprep.subr.mxu0 0.0
    %3532 = vmatpush1.msra.mxu0 %v3498
    %3533 = vmatprep.subr.mxu0 0.0
    %3534 = vmatpush1.msra.mxu0 %v3497
    %3535 = vmatprep.subr.mxu0 0.0
    %3536 = vmatpush1.msra.mxu0 %v3496
    %3537 = vmatprep.subr.mxu0 0.0
    %3538 = vmatpush1.msra.mxu0 %v3495
    %3539 = vmatprep.subr.mxu0 0.0
    %3540 = vmatpush2.msra.mxu0 0.0
    %3541 = vmatprep.subr.mxu0 0.0
    %3542 = vmatpush2.msra.mxu0 0.0
    %3543 = vmatprep.subr.mxu0 0.0
    %3544 = vmatpush2.msra.mxu0 0.0
    %3545 = vmatprep.subr.mxu0 0.0
    %3546 = vmatpush2.msra.mxu0 0.0
    %3547 = vmatprep.subr.mxu0 0.0
    %3548 = vmatpush2.msra.mxu0 0.0
    %3549 = vmatprep.subr.mxu0 0.0
    %3550 = vmatpush2.msra.mxu0 0.0
    %3551 = vmatprep.subr.mxu0 0.0
    %3552 = vmatpush2.msra.mxu0 0.0
    %3553 = vmatprep.subr.mxu0 0.0
    %3554 = vmatpush2.msra.mxu0 0.0
    %3555 = vmatprep.subr.mxu0 0.0
    %3556 = vmatpush2.msra.mxu0 0.0
    %3557 = vmatprep.subr.mxu0 0.0
    %3558 = vmatpush2.msra.mxu0 0.0
    %3559 = vmatprep.subr.mxu0 0.0
    %3560 = vmatpush2.msra.mxu0 0.0
    %3561 = vmatprep.subr.mxu0 0.0
    %3562 = vmatpush2.msra.mxu0 0.0
    %3563 = vmatprep.subr.mxu0 0.0
    %3564 = vmatpush2.msra.mxu0 0.0
    %3565 = vmatprep.subr.mxu0 0.0
    %3566 = vmatpush2.msra.mxu0 0.0
    %3567 = vmatprep.subr.mxu0 0.0
    %3568 = vmatpush2.msra.mxu0 0.0
    %3569 = vmatprep.subr.mxu0 0.0
    %3570 = vmatpush2.msra.mxu0 0.0
    %3571 = vmatprep.mubr.f32.mxu0 0.0
    %3572 = vmatmul.mubr.f32.gmra.mxu0 %v2859
    %v3573 = vpop.f32.mrf.mxu0
    %v3574 = vadd.f32 %v3505, %v3573
    %v3575 = vpop.f32.mrf.mxu0
    %3576 = vmatprep.mubr.f32.mxu0 0.0
    %3577 = vmatmul.mubr.f32.gmra.mxu0 %v2862
    %v3578 = vpop.f32.mrf.mxu0
    %v3579 = vadd.f32 %v3505, %v3578
    %v3580 = vpop.f32.mrf.mxu0
    %3581 = vdwg.mxu0
    %v3583 = vsel %vm995, %v3404, 0
    %v3586 = vsel %vm995, %v3405, 0
    %v3589 = vsel %vm995, %v3486, 0
    %v3592 = vsel %vm995, %v3491, 0
    %3594 = vmatprep.subr.mxu0 0.0
    %3595 = vmatpush1.xpose.msra.mxu0 0.0
    %3596 = vmatprep.subr.mxu0 0.0
    %3597 = vmatpush1.xpose.msra.mxu0 0.0
    %3598 = vmatprep.subr.mxu0 0.0
    %3599 = vmatpush1.xpose.msra.mxu0 0.0
    %3600 = vmatprep.subr.mxu0 0.0
    %3601 = vmatpush1.xpose.msra.mxu0 0.0
    %3602 = vmatprep.subr.mxu0 0.0
    %3603 = vmatpush1.xpose.msra.mxu0 0.0
    %3604 = vmatprep.subr.mxu0 0.0
    %3605 = vmatpush1.xpose.msra.mxu0 0.0
    %3606 = vmatprep.subr.mxu0 0.0
    %3607 = vmatpush1.xpose.msra.mxu0 0.0
    %3608 = vmatprep.subr.mxu0 0.0
    %3609 = vmatpush1.xpose.msra.mxu0 0.0
    %3610 = vmatprep.subr.mxu0 0.0
    %3611 = vmatpush1.xpose.msra.mxu0 0.0
    %3612 = vmatprep.subr.mxu0 0.0
    %3613 = vmatpush1.xpose.msra.mxu0 0.0
    %3614 = vmatprep.subr.mxu0 0.0
    %3615 = vmatpush1.xpose.msra.mxu0 0.0
    %3616 = vmatprep.subr.mxu0 0.0
    %3617 = vmatpush1.xpose.msra.mxu0 0.0
    %3618 = vmatprep.subr.mxu0 0.0
    %3619 = vmatpush1.xpose.msra.mxu0 0.0
    %3620 = vmatprep.subr.mxu0 0.0
    %3621 = vmatpush1.xpose.msra.mxu0 0.0
    %3622 = vmatprep.subr.mxu0 0.0
    %3623 = vmatpush1.xpose.msra.mxu0 %v3592
    %3624 = vmatprep.subr.mxu0 0.0
    %3625 = vmatpush1.xpose.msra.mxu0 %v3589
    %3626 = vmatprep.subr.mxu0 0.0
    %3627 = vmatpush2.xpose.msra.mxu0 0.0
    %3628 = vmatprep.subr.mxu0 0.0
    %3629 = vmatpush2.xpose.msra.mxu0 0.0
    %3630 = vmatprep.subr.mxu0 0.0
    %3631 = vmatpush2.xpose.msra.mxu0 0.0
    %3632 = vmatprep.subr.mxu0 0.0
    %3633 = vmatpush2.xpose.msra.mxu0 0.0
    %3634 = vmatprep.subr.mxu0 0.0
    %3635 = vmatpush2.xpose.msra.mxu0 0.0
    %3636 = vmatprep.subr.mxu0 0.0
    %3637 = vmatpush2.xpose.msra.mxu0 0.0
    %3638 = vmatprep.subr.mxu0 0.0
    %3639 = vmatpush2.xpose.msra.mxu0 0.0
    %3640 = vmatprep.subr.mxu0 0.0
    %3641 = vmatpush2.xpose.msra.mxu0 0.0
    %3642 = vmatprep.subr.mxu0 0.0
    %3643 = vmatpush2.xpose.msra.mxu0 0.0
    %3644 = vmatprep.subr.mxu0 0.0
    %3645 = vmatpush2.xpose.msra.mxu0 0.0
    %3646 = vmatprep.subr.mxu0 0.0
    %3647 = vmatpush2.xpose.msra.mxu0 0.0
    %3648 = vmatprep.subr.mxu0 0.0
    %3649 = vmatpush2.xpose.msra.mxu0 0.0
    %3650 = vmatprep.subr.mxu0 0.0
    %3651 = vmatpush2.xpose.msra.mxu0 0.0
    %3652 = vmatprep.subr.mxu0 0.0
    %3653 = vmatpush2.xpose.msra.mxu0 0.0
    %3654 = vmatprep.subr.mxu0 0.0
    %3655 = vmatpush2.xpose.msra.mxu0 0.0
    %3656 = vmatprep.subr.mxu0 0.0
    %3657 = vmatpush2.xpose.msra.mxu0 0.0
    %3658 = vmatprep.mubr.f32.mxu0 0.0
    %3659 = vmatmul.mubr.f32.gmra.mxu0 %v3583
    %v3660 = vpop.f32.mrf.mxu0
    %v3661 = vadd.f32 0.0, %v3660
    %v3662 = vpop.f32.mrf.mxu0
    %3663 = vmatprep.mubr.f32.mxu0 0.0
    %3664 = vmatmul.mubr.f32.gmra.mxu0 %v3586
    %v3665 = vpop.f32.mrf.mxu0
    %v3666 = vadd.f32 0.0, %v3665
    %v3667 = vpop.f32.mrf.mxu0
    %3668 = vdwg.mxu0
    %v3669 = vsel %vm3204, %v3661, -inf
    %3670 = vmax.xlane.f32.xlu0 %v3669
    %v3671 = vpop.xlane.xlu0 %3670
    %v3672 = vsel %vm3208, %v3666, -inf
    %3673 = vmax.xlane.f32.xlu0 %v3672
    %v3674 = vpop.xlane.xlu0 %3673
    %v3675 = vsub.f32 %v3661, %v3671
    %v3676 = vsub.f32 %v3666, %v3674
    %v3677 = vmul.f32 %v3675, 1.442695
    %v3678 = vpow.pop %v3677
    %v3679 = vmul.f32 %v3676, 1.442695
    %v3680 = vpow.pop %v3679
    %v3681 = vsel %vm3204, %v3678, 0.0
    %3682 = vadd.xlane.f32.xlu0 %v3681
    %v3683 = vpop.xlane.xlu0 %3682
    %v3684 = vsel %vm3208, %v3680, 0.0
    %3685 = vadd.xlane.f32.xlu0 %v3684
    %v3686 = vpop.xlane.xlu0 %3685
    %v3687 = vrcp.pop %v3683
    %v3688 = vmul.f32 %v3678, %v3687
    %v3689 = vrcp.pop %v3686
    %v3690 = vmul.f32 %v3680, %v3689
    %v3692 = vsel %vm3204, %v3688, 0
    %v3695 = vsel %vm3204, %v3690, 0
    %v3698 = vsel %vm3234, %v3579, 0
    %3700 = vmatprep.subr.mxu0 0.0
    %3701 = vmatpush1.msra.mxu0 0.0
    %3702 = vmatprep.subr.mxu0 0.0
    %3703 = vmatpush1.msra.mxu0 0.0
    %3704 = vmatprep.subr.mxu0 0.0
    %3705 = vmatpush1.msra.mxu0 0.0
    %3706 = vmatprep.subr.mxu0 0.0
    %3707 = vmatpush1.msra.mxu0 0.0
    %3708 = vmatprep.subr.mxu0 0.0
    %3709 = vmatpush1.msra.mxu0 0.0
    %3710 = vmatprep.subr.mxu0 0.0
    %3711 = vmatpush1.msra.mxu0 0.0
    %3712 = vmatprep.subr.mxu0 0.0
    %3713 = vmatpush1.msra.mxu0 0.0
    %3714 = vmatprep.subr.mxu0 0.0
    %3715 = vmatpush1.msra.mxu0 0.0
    %3716 = vmatprep.subr.mxu0 0.0
    %3717 = vmatpush1.msra.mxu0 0.0
    %3718 = vmatprep.subr.mxu0 0.0
    %3719 = vmatpush1.msra.mxu0 0.0
    %3720 = vmatprep.subr.mxu0 0.0
    %3721 = vmatpush1.msra.mxu0 0.0
    %3722 = vmatprep.subr.mxu0 0.0
    %3723 = vmatpush1.msra.mxu0 0.0
    %3724 = vmatprep.subr.mxu0 0.0
    %3725 = vmatpush1.msra.mxu0 0.0
    %3726 = vmatprep.subr.mxu0 0.0
    %3727 = vmatpush1.msra.mxu0 0.0
    %3728 = vmatprep.subr.mxu0 0.0
    %3729 = vmatpush1.msra.mxu0 %v3698
    %3730 = vmatprep.subr.mxu0 0.0
    %3731 = vmatpush1.msra.mxu0 %v3574
    %3732 = vmatprep.subr.mxu0 0.0
    %3733 = vmatpush2.msra.mxu0 0.0
    %3734 = vmatprep.subr.mxu0 0.0
    %3735 = vmatpush2.msra.mxu0 0.0
    %3736 = vmatprep.subr.mxu0 0.0
    %3737 = vmatpush2.msra.mxu0 0.0
    %3738 = vmatprep.subr.mxu0 0.0
    %3739 = vmatpush2.msra.mxu0 0.0
    %3740 = vmatprep.subr.mxu0 0.0
    %3741 = vmatpush2.msra.mxu0 0.0
    %3742 = vmatprep.subr.mxu0 0.0
    %3743 = vmatpush2.msra.mxu0 0.0
    %3744 = vmatprep.subr.mxu0 0.0
    %3745 = vmatpush2.msra.mxu0 0.0
    %3746 = vmatprep.subr.mxu0 0.0
    %3747 = vmatpush2.msra.mxu0 0.0
    %3748 = vmatprep.subr.mxu0 0.0
    %3749 = vmatpush2.msra.mxu0 0.0
    %3750 = vmatprep.subr.mxu0 0.0
    %3751 = vmatpush2.msra.mxu0 0.0
    %3752 = vmatprep.subr.mxu0 0.0
    %3753 = vmatpush2.msra.mxu0 0.0
    %3754 = vmatprep.subr.mxu0 0.0
    %3755 = vmatpush2.msra.mxu0 0.0
    %3756 = vmatprep.subr.mxu0 0.0
    %3757 = vmatpush2.msra.mxu0 0.0
    %3758 = vmatprep.subr.mxu0 0.0
    %3759 = vmatpush2.msra.mxu0 0.0
    %3760 = vmatprep.subr.mxu0 0.0
    %3761 = vmatpush2.msra.mxu0 0.0
    %3762 = vmatprep.subr.mxu0 0.0
    %3763 = vmatpush2.msra.mxu0 0.0
    %3764 = vmatprep.mubr.f32.mxu0 0.0
    %3765 = vmatmul.mubr.f32.gmra.mxu0 %v3692
    %v3766 = vpop.f32.mrf.mxu0
    %v3767 = vadd.f32 0.0, %v3766
    %v3768 = vpop.f32.mrf.mxu0
    %3769 = vmatprep.mubr.f32.mxu0 0.0
    %3770 = vmatmul.mubr.f32.gmra.mxu0 %v3695
    %v3771 = vpop.f32.mrf.mxu0
    %v3772 = vadd.f32 0.0, %v3771
    %v3773 = vpop.f32.mrf.mxu0
    %3774 = vdwg.mxu0
    %s3775 = scalar_lea.vmem %s21, 48
    %v3776 = vld [vmem:[%s3775] sm:$0xff]
    %v3777 = vld [vmem:[%s3775 + $0x8] sm:$0xff]
    %v3779 = vsel %vm995, %v3767, 0
    %v3782 = vsel %vm995, %v3772, 0
    %3784 = vmatprep.subr.mxu0 0.0
    %3785 = vmatpush1.msra.mxu0 0.0
    %3786 = vmatprep.subr.mxu0 0.0
    %3787 = vmatpush1.msra.mxu0 0.0
    %3788 = vmatprep.subr.mxu0 0.0
    %3789 = vmatpush1.msra.mxu0 0.0
    %3790 = vmatprep.subr.mxu0 0.0
    %3791 = vmatpush1.msra.mxu0 0.0
    %3792 = vmatprep.subr.mxu0 0.0
    %3793 = vmatpush1.msra.mxu0 0.0
    %3794 = vmatprep.subr.mxu0 0.0
    %3795 = vmatpush1.msra.mxu0 0.0
    %3796 = vmatprep.subr.mxu0 0.0
    %3797 = vmatpush1.msra.mxu0 0.0
    %3798 = vmatprep.subr.mxu0 0.0
    %3799 = vmatpush1.msra.mxu0 0.0
    %3800 = vmatprep.subr.mxu0 0.0
    %3801 = vmatpush1.msra.mxu0 0.0
    %3802 = vmatprep.subr.mxu0 0.0
    %3803 = vmatpush1.msra.mxu0 0.0
    %3804 = vmatprep.subr.mxu0 0.0
    %3805 = vmatpush1.msra.mxu0 0.0
    %3806 = vmatprep.subr.mxu0 0.0
    %3807 = vmatpush1.msra.mxu0 0.0
    %3808 = vmatprep.subr.mxu0 0.0
    %3809 = vmatpush1.msra.mxu0 0.0
    %3810 = vmatprep.subr.mxu0 0.0
    %3811 = vmatpush1.msra.mxu0 0.0
    %3812 = vmatprep.subr.mxu0 0.0
    %3813 = vmatpush1.msra.mxu0 %v3777
    %3814 = vmatprep.subr.mxu0 0.0
    %3815 = vmatpush1.msra.mxu0 %v3776
    %3816 = vmatprep.subr.mxu0 0.0
    %3817 = vmatpush2.msra.mxu0 0.0
    %3818 = vmatprep.subr.mxu0 0.0
    %3819 = vmatpush2.msra.mxu0 0.0
    %3820 = vmatprep.subr.mxu0 0.0
    %3821 = vmatpush2.msra.mxu0 0.0
    %3822 = vmatprep.subr.mxu0 0.0
    %3823 = vmatpush2.msra.mxu0 0.0
    %3824 = vmatprep.subr.mxu0 0.0
    %3825 = vmatpush2.msra.mxu0 0.0
    %3826 = vmatprep.subr.mxu0 0.0
    %3827 = vmatpush2.msra.mxu0 0.0
    %3828 = vmatprep.subr.mxu0 0.0
    %3829 = vmatpush2.msra.mxu0 0.0
    %3830 = vmatprep.subr.mxu0 0.0
    %3831 = vmatpush2.msra.mxu0 0.0
    %3832 = vmatprep.subr.mxu0 0.0
    %3833 = vmatpush2.msra.mxu0 0.0
    %3834 = vmatprep.subr.mxu0 0.0
    %3835 = vmatpush2.msra.mxu0 0.0
    %3836 = vmatprep.subr.mxu0 0.0
    %3837 = vmatpush2.msra.mxu0 0.0
    %3838 = vmatprep.subr.mxu0 0.0
    %3839 = vmatpush2.msra.mxu0 0.0
    %3840 = vmatprep.subr.mxu0 0.0
    %3841 = vmatpush2.msra.mxu0 0.0
    %3842 = vmatprep.subr.mxu0 0.0
    %3843 = vmatpush2.msra.mxu0 0.0
    %3844 = vmatprep.subr.mxu0 0.0
    %3845 = vmatpush2.msra.mxu0 0.0
    %3846 = vmatprep.subr.mxu0 0.0
    %3847 = vmatpush2.msra.mxu0 0.0
    %3848 = vmatprep.mubr.f32.mxu0 0.0
    %3849 = vmatmul.mubr.f32.gmra.mxu0 %v3779
    %v3850 = vpop.f32.mrf.mxu0
    %v3851 = vadd.f32 0.0, %v3850
    %v3852 = vpop.f32.mrf.mxu0
    %3853 = vmatprep.mubr.f32.mxu0 0.0
    %3854 = vmatmul.mubr.f32.gmra.mxu0 %v3782
    %v3855 = vpop.f32.mrf.mxu0
    %v3856 = vadd.f32 0.0, %v3855
    %v3857 = vpop.f32.mrf.mxu0
    %3858 = vdwg.mxu0
    %v3860 = vsel %vm995, %v3305, 0
    %v3863 = vsel %vm995, %v3310, 0
    %3865 = vmatprep.subr.mxu0 0.0
    %3866 = vmatpush1.msra.mxu0 0.0
    %3867 = vmatprep.subr.mxu0 0.0
    %3868 = vmatpush1.msra.mxu0 0.0
    %3869 = vmatprep.subr.mxu0 0.0
    %3870 = vmatpush1.msra.mxu0 0.0
    %3871 = vmatprep.subr.mxu0 0.0
    %3872 = vmatpush1.msra.mxu0 0.0
    %3873 = vmatprep.subr.mxu0 0.0
    %3874 = vmatpush1.msra.mxu0 0.0
    %3875 = vmatprep.subr.mxu0 0.0
    %3876 = vmatpush1.msra.mxu0 0.0
    %3877 = vmatprep.subr.mxu0 0.0
    %3878 = vmatpush1.msra.mxu0 0.0
    %3879 = vmatprep.subr.mxu0 0.0
    %3880 = vmatpush1.msra.mxu0 0.0
    %3881 = vmatprep.subr.mxu0 0.0
    %3882 = vmatpush1.msra.mxu0 0.0
    %3883 = vmatprep.subr.mxu0 0.0
    %3884 = vmatpush1.msra.mxu0 0.0
    %3885 = vmatprep.subr.mxu0 0.0
    %3886 = vmatpush1.msra.mxu0 0.0
    %3887 = vmatprep.subr.mxu0 0.0
    %3888 = vmatpush1.msra.mxu0 0.0
    %3889 = vmatprep.subr.mxu0 0.0
    %3890 = vmatpush1.msra.mxu0 0.0
    %3891 = vmatprep.subr.mxu0 0.0
    %3892 = vmatpush1.msra.mxu0 0.0
    %3893 = vmatprep.subr.mxu0 0.0
    %3894 = vmatpush1.msra.mxu0 %v3315
    %3895 = vmatprep.subr.mxu0 0.0
    %3896 = vmatpush1.msra.mxu0 %v3314
    %3897 = vmatprep.subr.mxu0 0.0
    %3898 = vmatpush2.msra.mxu0 0.0
    %3899 = vmatprep.subr.mxu0 0.0
    %3900 = vmatpush2.msra.mxu0 0.0
    %3901 = vmatprep.subr.mxu0 0.0
    %3902 = vmatpush2.msra.mxu0 0.0
    %3903 = vmatprep.subr.mxu0 0.0
    %3904 = vmatpush2.msra.mxu0 0.0
    %3905 = vmatprep.subr.mxu0 0.0
    %3906 = vmatpush2.msra.mxu0 0.0
    %3907 = vmatprep.subr.mxu0 0.0
    %3908 = vmatpush2.msra.mxu0 0.0
    %3909 = vmatprep.subr.mxu0 0.0
    %3910 = vmatpush2.msra.mxu0 0.0
    %3911 = vmatprep.subr.mxu0 0.0
    %3912 = vmatpush2.msra.mxu0 0.0
    %3913 = vmatprep.subr.mxu0 0.0
    %3914 = vmatpush2.msra.mxu0 0.0
    %3915 = vmatprep.subr.mxu0 0.0
    %3916 = vmatpush2.msra.mxu0 0.0
    %3917 = vmatprep.subr.mxu0 0.0
    %3918 = vmatpush2.msra.mxu0 0.0
    %3919 = vmatprep.subr.mxu0 0.0
    %3920 = vmatpush2.msra.mxu0 0.0
    %3921 = vmatprep.subr.mxu0 0.0
    %3922 = vmatpush2.msra.mxu0 0.0
    %3923 = vmatprep.subr.mxu0 0.0
    %3924 = vmatpush2.msra.mxu0 0.0
    %3925 = vmatprep.subr.mxu0 0.0
    %3926 = vmatpush2.msra.mxu0 0.0
    %3927 = vmatprep.subr.mxu0 0.0
    %3928 = vmatpush2.msra.mxu0 0.0
    %3929 = vmatprep.mubr.f32.mxu0 0.0
    %3930 = vmatmul.mubr.f32.gmra.mxu0 %v3860
    %v3931 = vpop.f32.mrf.mxu0
    %v3932 = vadd.f32 %v3851, %v3931
    %v3933 = vpop.f32.mrf.mxu0
    %3934 = vmatprep.mubr.f32.mxu0 0.0
    %3935 = vmatmul.mubr.f32.gmra.mxu0 %v3863
    %v3936 = vpop.f32.mrf.mxu0
    %v3937 = vadd.f32 %v3856, %v3936
    %v3938 = vpop.f32.mrf.mxu0
    %3939 = vdwg.mxu0
    %v3940 = vadd.f32 %v1881, %v3932
    %v3941 = vadd.f32 %v1882, %v3937
    %s3942 = scalar_lea.vmem %s22, 1
    %v3943 = vld [vmem:[%s3942] sm:$0x1]
    %v3945 = vlaneseq
    %v3946 = vshrl.u32 %v3945, 7
    %v3947 = vsub.s32 0, %v3946
    %v3948 = vrot.slane %v3943, %v3947
    %v3950 = vadd.f32 %v3940, %v3948
    %v3951 = vadd.f32 %v3941, %v3948
    %v3952 = vsel %vm286, %v3950, 0.0
    %3953 = vadd.xlane.f32.xlu0 %v3952
    %v3954 = vpop.xlane.xlu0 %3953
    %v3955 = vsel %vm284, %v3951, 0.0
    %3956 = vadd.xlane.f32.xlu0 %v3955
    %v3957 = vpop.xlane.xlu0 %3956
    %v3958 = vmul.f32 %v3954, %v880
    %v3959 = vmul.f32 %v3957, %v880
    %v3960 = vsub.f32 %v3950, %v3958
    %v3961 = vsub.f32 %v3951, %v3959
    %v3962 = vmul.f32 %v3960, %v3960
    %v3963 = vmul.f32 %v3961, %v3961
    %v3964 = vsel %vm286, %v3962, 0.0
    %3965 = vadd.xlane.f32.xlu0 %v3964
    %v3966 = vpop.xlane.xlu0 %3965
    %v3967 = vsel %vm284, %v3963, 0.0
    %3968 = vadd.xlane.f32.xlu0 %v3967
    %v3969 = vpop.xlane.xlu0 %3968
    %v3970 = vmul.f32 %v3966, %v880
    %v3971 = vmul.f32 %v3969, %v880
    %v3972 = vadd.f32 %v3970, 1e-05
    %v3973 = vadd.f32 %v3971, 1e-05
    %v3974 = vrsqrt.pop %v3972
    %v3975 = vrsqrt.pop %v3973
    %v3976 = vmul.f32 %v3960, %v3974
    %v3977 = vmul.f32 %v3961, %v3975
    %s3978 = scalar_lea.vmem %s23, 32
    %v3979 = vld [vmem:[%s3978] sm:$0xff]
    %v3980 = vld [vmem:[%s3978 + $0x8] sm:$0xff]
    %v3981 = vld [vmem:[%s3978 + $0x10] sm:$0xff]
    %v3982 = vld [vmem:[%s3978 + $0x18] sm:$0xff]
    %s3983 = scalar_lea.vmem %s24, 1
    %v3984 = vld [vmem:[%s3983] sm:$0x1]
    %v3986 = vlaneseq
    %v3987 = vshrl.u32 %v3986, 7
    %v3988 = vsub.s32 0, %v3987
    %v3989 = vrot.slane %v3984, %v3988
    %v3992 = vsel %vm286, %v3976, 0
    %v3995 = vsel %vm286, %v3977, 0
    %3997 = vmatprep.subr.mxu0 0.0
    %3998 = vmatpush1.msra.mxu0 0.0
    %3999 = vmatprep.subr.mxu0 0.0
    %4000 = vmatpush1.msra.mxu0 0.0
    %4001 = vmatprep.subr.mxu0 0.0
    %4002 = vmatpush1.msra.mxu0 0.0
    %4003 = vmatprep.subr.mxu0 0.0
    %4004 = vmatpush1.msra.mxu0 0.0
    %4005 = vmatprep.subr.mxu0 0.0
    %4006 = vmatpush1.msra.mxu0 0.0
    %4007 = vmatprep.subr.mxu0 0.0
    %4008 = vmatpush1.msra.mxu0 0.0
    %4009 = vmatprep.subr.mxu0 0.0
    %4010 = vmatpush1.msra.mxu0 0.0
    %4011 = vmatprep.subr.mxu0 0.0
    %4012 = vmatpush1.msra.mxu0 0.0
    %4013 = vmatprep.subr.mxu0 0.0
    %4014 = vmatpush1.msra.mxu0 0.0
    %4015 = vmatprep.subr.mxu0 0.0
    %4016 = vmatpush1.msra.mxu0 0.0
    %4017 = vmatprep.subr.mxu0 0.0
    %4018 = vmatpush1.msra.mxu0 0.0
    %4019 = vmatprep.subr.mxu0 0.0
    %4020 = vmatpush1.msra.mxu0 0.0
    %4021 = vmatprep.subr.mxu0 0.0
    %4022 = vmatpush1.msra.mxu0 %v3982
    %4023 = vmatprep.subr.mxu0 0.0
    %4024 = vmatpush1.msra.mxu0 %v3981
    %4025 = vmatprep.subr.mxu0 0.0
    %4026 = vmatpush1.msra.mxu0 %v3980
    %4027 = vmatprep.subr.mxu0 0.0
    %4028 = vmatpush1.msra.mxu0 %v3979
    %4029 = vmatprep.subr.mxu0 0.0
    %4030 = vmatpush2.msra.mxu0 0.0
    %4031 = vmatprep.subr.mxu0 0.0
    %4032 = vmatpush2.msra.mxu0 0.0
    %4033 = vmatprep.subr.mxu0 0.0
    %4034 = vmatpush2.msra.mxu0 0.0
    %4035 = vmatprep.subr.mxu0 0.0
    %4036 = vmatpush2.msra.mxu0 0.0
    %4037 = vmatprep.subr.mxu0 0.0
    %4038 = vmatpush2.msra.mxu0 0.0
    %4039 = vmatprep.subr.mxu0 0.0
    %4040 = vmatpush2.msra.mxu0 0.0
    %4041 = vmatprep.subr.mxu0 0.0
    %4042 = vmatpush2.msra.mxu0 0.0
    %4043 = vmatprep.subr.mxu0 0.0
    %4044 = vmatpush2.msra.mxu0 0.0
    %4045 = vmatprep.subr.mxu0 0.0
    %4046 = vmatpush2.msra.mxu0 0.0
    %4047 = vmatprep.subr.mxu0 0.0
    %4048 = vmatpush2.msra.mxu0 0.0
    %4049 = vmatprep.subr.mxu0 0.0
    %4050 = vmatpush2.msra.mxu0 0.0
    %4051 = vmatprep.subr.mxu0 0.0
    %4052 = vmatpush2.msra.mxu0 0.0
    %4053 = vmatprep.subr.mxu0 0.0
    %4054 = vmatpush2.msra.mxu0 0.0
    %4055 = vmatprep.subr.mxu0 0.0
    %4056 = vmatpush2.msra.mxu0 0.0
    %4057 = vmatprep.subr.mxu0 0.0
    %4058 = vmatpush2.msra.mxu0 0.0
    %4059 = vmatprep.subr.mxu0 0.0
    %4060 = vmatpush2.msra.mxu0 0.0
    %4061 = vmatprep.mubr.f32.mxu0 0.0
    %4062 = vmatmul.mubr.f32.gmra.mxu0 %v3992
    %v4063 = vpop.f32.mrf.mxu0
    %v4064 = vadd.f32 %v3989, %v4063
    %v4065 = vpop.f32.mrf.mxu0
    %4066 = vmatprep.mubr.f32.mxu0 0.0
    %4067 = vmatmul.mubr.f32.gmra.mxu0 %v3995
    %v4068 = vpop.f32.mrf.mxu0
    %v4069 = vadd.f32 %v3989, %v4068
    %v4070 = vpop.f32.mrf.mxu0
    %4071 = vdwg.mxu0
    %v4072 = vmul.f32 %v4064, 0.5
    %v4073 = vmul.f32 %v4069, 0.5
    %v4074 = vmul.f32 %v4064, 0.044715
    %v4075 = vmul.f32 %v4069, 0.044715
    %v4076 = vmul.f32 %v4074, %v4064
    %v4077 = vmul.f32 %v4075, %v4069
    %v4078 = vmul.f32 %v4076, %v4064
    %v4079 = vmul.f32 %v4077, %v4069
    %v4080 = vadd.f32 %v4064, %v4078
    %v4081 = vadd.f32 %v4069, %v4079
    %v4082 = vmul.f32 %v4080, 0.7978846
    %v4083 = vmul.f32 %v4081, 0.7978846
    %v4084 = vtanh.pop %v4082
    %v4085 = vtanh.pop %v4083
    %v4086 = vadd.f32 %v4084, 1.0
    %v4087 = vadd.f32 %v4085, 1.0
    %v4088 = vmul.f32 %v4072, %v4086
    %v4089 = vmul.f32 %v4073, %v4087
    %s4090 = scalar_lea.vmem %s25, 128
    %v4091 = vld [vmem:[%s4090] sm:$0xff]
    %v4092 = vld [vmem:[%s4090 + $0x8] sm:$0xff]
    %v4093 = vld [vmem:[%s4090 + $0x10] sm:$0xff]
    %v4094 = vld [vmem:[%s4090 + $0x18] sm:$0xff]
    %v4095 = vld [vmem:[%s4090 + $0x20] sm:$0xff]
    %v4096 = vld [vmem:[%s4090 + $0x28] sm:$0xff]
    %v4097 = vld [vmem:[%s4090 + $0x30] sm:$0xff]
    %v4098 = vld [vmem:[%s4090 + $0x38] sm:$0xff]
    %v4099 = vld [vmem:[%s4090 + $0x40] sm:$0xff]
    %v4100 = vld [vmem:[%s4090 + $0x48] sm:$0xff]
    %v4101 = vld [vmem:[%s4090 + $0x50] sm:$0xff]
    %v4102 = vld [vmem:[%s4090 + $0x58] sm:$0xff]
    %v4103 = vld [vmem:[%s4090 + $0x60] sm:$0xff]
    %v4104 = vld [vmem:[%s4090 + $0x68] sm:$0xff]
    %v4105 = vld [vmem:[%s4090 + $0x70] sm:$0xff]
    %v4106 = vld [vmem:[%s4090 + $0x78] sm:$0xff]
    %4107 = vmatprep.subr.mxu0 0.0
    %4108 = vmatpush1.msra.mxu0 %v4106
    %4109 = vmatprep.subr.mxu0 0.0
    %4110 = vmatpush1.msra.mxu0 %v4105
    %4111 = vmatprep.subr.mxu0 0.0
    %4112 = vmatpush1.msra.mxu0 %v4104
    %4113 = vmatprep.subr.mxu0 0.0
    %4114 = vmatpush1.msra.mxu0 %v4103
    %4115 = vmatprep.subr.mxu0 0.0
    %4116 = vmatpush1.msra.mxu0 %v4102
    %4117 = vmatprep.subr.mxu0 0.0
    %4118 = vmatpush1.msra.mxu0 %v4101
    %4119 = vmatprep.subr.mxu0 0.0
    %4120 = vmatpush1.msra.mxu0 %v4100
    %4121 = vmatprep.subr.mxu0 0.0
    %4122 = vmatpush1.msra.mxu0 %v4099
    %4123 = vmatprep.subr.mxu0 0.0
    %4124 = vmatpush1.msra.mxu0 %v4098
    %4125 = vmatprep.subr.mxu0 0.0
    %4126 = vmatpush1.msra.mxu0 %v4097
    %4127 = vmatprep.subr.mxu0 0.0
    %4128 = vmatpush1.msra.mxu0 %v4096
    %4129 = vmatprep.subr.mxu0 0.0
    %4130 = vmatpush1.msra.mxu0 %v4095
    %4131 = vmatprep.subr.mxu0 0.0
    %4132 = vmatpush1.msra.mxu0 %v4094
    %4133 = vmatprep.subr.mxu0 0.0
    %4134 = vmatpush1.msra.mxu0 %v4093
    %4135 = vmatprep.subr.mxu0 0.0
    %4136 = vmatpush1.msra.mxu0 %v4092
    %4137 = vmatprep.subr.mxu0 0.0
    %4138 = vmatpush1.msra.mxu0 %v4091
    %4139 = vmatprep.subr.mxu0 0.0
    %4140 = vmatpush2.msra.mxu0 0.0
    %4141 = vmatprep.subr.mxu0 0.0
    %4142 = vmatpush2.msra.mxu0 0.0
    %4143 = vmatprep.subr.mxu0 0.0
    %4144 = vmatpush2.msra.mxu0 0.0
    %4145 = vmatprep.subr.mxu0 0.0
    %4146 = vmatpush2.msra.mxu0 0.0
    %4147 = vmatprep.subr.mxu0 0.0
    %4148 = vmatpush2.msra.mxu0 0.0
    %4149 = vmatprep.subr.mxu0 0.0
    %4150 = vmatpush2.msra.mxu0 0.0
    %4151 = vmatprep.subr.mxu0 0.0
    %4152 = vmatpush2.msra.mxu0 0.0
    %4153 = vmatprep.subr.mxu0 0.0
    %4154 = vmatpush2.msra.mxu0 0.0
    %4155 = vmatprep.subr.mxu0 0.0
    %4156 = vmatpush2.msra.mxu0 0.0
    %4157 = vmatprep.subr.mxu0 0.0
    %4158 = vmatpush2.msra.mxu0 0.0
    %4159 = vmatprep.subr.mxu0 0.0
    %4160 = vmatpush2.msra.mxu0 0.0
    %4161 = vmatprep.subr.mxu0 0.0
    %4162 = vmatpush2.msra.mxu0 0.0
    %4163 = vmatprep.subr.mxu0 0.0
    %4164 = vmatpush2.msra.mxu0 0.0
    %4165 = vmatprep.subr.mxu0 0.0
    %4166 = vmatpush2.msra.mxu0 0.0
    %4167 = vmatprep.subr.mxu0 0.0
    %4168 = vmatpush2.msra.mxu0 0.0
    %4169 = vmatprep.subr.mxu0 0.0
    %4170 = vmatpush2.msra.mxu0 0.0
    %4171 = vmatprep.mubr.f32.mxu0 0.0
    %4172 = vmatmul.mubr.f32.gmra.mxu0 %v4088
    %v4173 = vpop.f32.mrf.mxu0
    %v4174 = vadd.f32 0.0, %v4173
    %v4175 = vpop.f32.mrf.mxu0
    %4176 = vmatprep.mubr.f32.mxu0 0.0
    %4177 = vmatmul.mubr.f32.gmra.mxu0 %v4089
    %v4178 = vpop.f32.mrf.mxu0
    %v4179 = vadd.f32 0.0, %v4178
    %v4180 = vpop.f32.mrf.mxu0
    %4181 = vdwg.mxu0
    %v4182 = vadd.f32 %v3950, %v4174
    %v4183 = vadd.f32 %v3951, %v4179
    %s4184 = scalar_lea.vmem %s26, 1
    %v4185 = vld [vmem:[%s4184] sm:$0x1]
    %v4187 = vlaneseq
    %v4188 = vshrl.u32 %v4187, 7
    %v4189 = vsub.s32 0, %v4188
    %v4190 = vrot.slane %v4185, %v4189
    %v4192 = vadd.f32 %v4182, %v4190
    %v4193 = vadd.f32 %v4183, %v4190
    %v4194 = vsel %vm286, %v2817, 0.0
    %4195 = vadd.xlane.f32.xlu0 %v4194
    %v4196 = vpop.xlane.xlu0 %4195
    %v4197 = vsel %vm284, %v2818, 0.0
    %4198 = vadd.xlane.f32.xlu0 %v4197
    %v4199 = vpop.xlane.xlu0 %4198
    %v4200 = vmul.f32 %v4196, %v880
    %v4201 = vmul.f32 %v4199, %v880
    %v4202 = vsub.f32 %v2817, %v4200
    %v4203 = vsub.f32 %v2818, %v4201
    %v4204 = vmul.f32 %v4202, %v4202
    %v4205 = vmul.f32 %v4203, %v4203
    %v4206 = vsel %vm286, %v4204, 0.0
    %4207 = vadd.xlane.f32.xlu0 %v4206
    %v4208 = vpop.xlane.xlu0 %4207
    %v4209 = vsel %vm284, %v4205, 0.0
    %4210 = vadd.xlane.f32.xlu0 %v4209
    %v4211 = vpop.xlane.xlu0 %4210
    %v4212 = vmul.f32 %v4208, %v880
    %v4213 = vmul.f32 %v4211, %v880
    %v4214 = vadd.f32 %v4212, 1e-05
    %v4215 = vadd.f32 %v4213, 1e-05
    %v4216 = vrsqrt.pop %v4214
    %v4217 = vrsqrt.pop %v4215
    %v4218 = vmul.f32 %v4202, %v4216
    %v4219 = vmul.f32 %v4203, %v4217
    %v4221 = vsel %vm286, %v4218, 0
    %v4224 = vsel %vm286, %v4219, 0
    %4226 = vmatprep.subr.mxu0 0.0
    %4227 = vmatpush1.msra.mxu0 0.0
    %4228 = vmatprep.subr.mxu0 0.0
    %4229 = vmatpush1.msra.mxu0 0.0
    %4230 = vmatprep.subr.mxu0 0.0
    %4231 = vmatpush1.msra.mxu0 0.0
    %4232 = vmatprep.subr.mxu0 0.0
    %4233 = vmatpush1.msra.mxu0 0.0
    %4234 = vmatprep.subr.mxu0 0.0
    %4235 = vmatpush1.msra.mxu0 0.0
    %4236 = vmatprep.subr.mxu0 0.0
    %4237 = vmatpush1.msra.mxu0 0.0
    %4238 = vmatprep.subr.mxu0 0.0
    %4239 = vmatpush1.msra.mxu0 0.0
    %4240 = vmatprep.subr.mxu0 0.0
    %4241 = vmatpush1.msra.mxu0 0.0
    %4242 = vmatprep.subr.mxu0 0.0
    %4243 = vmatpush1.msra.mxu0 0.0
    %4244 = vmatprep.subr.mxu0 0.0
    %4245 = vmatpush1.msra.mxu0 0.0
    %4246 = vmatprep.subr.mxu0 0.0
    %4247 = vmatpush1.msra.mxu0 0.0
    %4248 = vmatprep.subr.mxu0 0.0
    %4249 = vmatpush1.msra.mxu0 0.0
    %4250 = vmatprep.subr.mxu0 0.0
    %4251 = vmatpush1.msra.mxu0 %v2849
    %4252 = vmatprep.subr.mxu0 0.0
    %4253 = vmatpush1.msra.mxu0 %v2848
    %4254 = vmatprep.subr.mxu0 0.0
    %4255 = vmatpush1.msra.mxu0 %v2847
    %4256 = vmatprep.subr.mxu0 0.0
    %4257 = vmatpush1.msra.mxu0 %v2846
    %4258 = vmatprep.subr.mxu0 0.0
    %4259 = vmatpush2.msra.mxu0 0.0
    %4260 = vmatprep.subr.mxu0 0.0
    %4261 = vmatpush2.msra.mxu0 0.0
    %4262 = vmatprep.subr.mxu0 0.0
    %4263 = vmatpush2.msra.mxu0 0.0
    %4264 = vmatprep.subr.mxu0 0.0
    %4265 = vmatpush2.msra.mxu0 0.0
    %4266 = vmatprep.subr.mxu0 0.0
    %4267 = vmatpush2.msra.mxu0 0.0
    %4268 = vmatprep.subr.mxu0 0.0
    %4269 = vmatpush2.msra.mxu0 0.0
    %4270 = vmatprep.subr.mxu0 0.0
    %4271 = vmatpush2.msra.mxu0 0.0
    %4272 = vmatprep.subr.mxu0 0.0
    %4273 = vmatpush2.msra.mxu0 0.0
    %4274 = vmatprep.subr.mxu0 0.0
    %4275 = vmatpush2.msra.mxu0 0.0
    %4276 = vmatprep.subr.mxu0 0.0
    %4277 = vmatpush2.msra.mxu0 0.0
    %4278 = vmatprep.subr.mxu0 0.0
    %4279 = vmatpush2.msra.mxu0 0.0
    %4280 = vmatprep.subr.mxu0 0.0
    %4281 = vmatpush2.msra.mxu0 0.0
    %4282 = vmatprep.subr.mxu0 0.0
    %4283 = vmatpush2.msra.mxu0 0.0
    %4284 = vmatprep.subr.mxu0 0.0
    %4285 = vmatpush2.msra.mxu0 0.0
    %4286 = vmatprep.subr.mxu0 0.0
    %4287 = vmatpush2.msra.mxu0 0.0
    %4288 = vmatprep.subr.mxu0 0.0
    %4289 = vmatpush2.msra.mxu0 0.0
    %4290 = vmatprep.mubr.f32.mxu0 0.0
    %4291 = vmatmul.mubr.f32.gmra.mxu0 %v4221
    %v4292 = vpop.f32.mrf.mxu0
    %v4293 = vadd.f32 %v2856, %v4292
    %v4294 = vpop.f32.mrf.mxu0
    %4295 = vmatprep.mubr.f32.mxu0 0.0
    %4296 = vmatmul.mubr.f32.gmra.mxu0 %v4224
    %v4297 = vpop.f32.mrf.mxu0
    %v4298 = vadd.f32 %v2856, %v4297
    %v4299 = vpop.f32.mrf.mxu0
    %4300 = vdwg.mxu0
    %v4301 = vmul.f32 %v4293, 0.25
    %v4302 = vmul.f32 %v4298, 0.25
    %4303 = vmatprep.subr.mxu0 0.0
    %4304 = vmatpush1.msra.mxu0 0.0
    %4305 = vmatprep.subr.mxu0 0.0
    %4306 = vmatpush1.msra.mxu0 0.0
    %4307 = vmatprep.subr.mxu0 0.0
    %4308 = vmatpush1.msra.mxu0 0.0
    %4309 = vmatprep.subr.mxu0 0.0
    %4310 = vmatpush1.msra.mxu0 0.0
    %4311 = vmatprep.subr.mxu0 0.0
    %4312 = vmatpush1.msra.mxu0 0.0
    %4313 = vmatprep.subr.mxu0 0.0
    %4314 = vmatpush1.msra.mxu0 0.0
    %4315 = vmatprep.subr.mxu0 0.0
    %4316 = vmatpush1.msra.mxu0 0.0
    %4317 = vmatprep.subr.mxu0 0.0
    %4318 = vmatpush1.msra.mxu0 0.0
    %4319 = vmatprep.subr.mxu0 0.0
    %4320 = vmatpush1.msra.mxu0 0.0
    %4321 = vmatprep.subr.mxu0 0.0
    %4322 = vmatpush1.msra.mxu0 0.0
    %4323 = vmatprep.subr.mxu0 0.0
    %4324 = vmatpush1.msra.mxu0 0.0
    %4325 = vmatprep.subr.mxu0 0.0
    %4326 = vmatpush1.msra.mxu0 0.0
    %4327 = vmatprep.subr.mxu0 0.0
    %4328 = vmatpush1.msra.mxu0 %v2945
    %4329 = vmatprep.subr.mxu0 0.0
    %4330 = vmatpush1.msra.mxu0 %v2944
    %4331 = vmatprep.subr.mxu0 0.0
    %4332 = vmatpush1.msra.mxu0 %v2943
    %4333 = vmatprep.subr.mxu0 0.0
    %4334 = vmatpush1.msra.mxu0 %v2942
    %4335 = vmatprep.subr.mxu0 0.0
    %4336 = vmatpush2.msra.mxu0 0.0
    %4337 = vmatprep.subr.mxu0 0.0
    %4338 = vmatpush2.msra.mxu0 0.0
    %4339 = vmatprep.subr.mxu0 0.0
    %4340 = vmatpush2.msra.mxu0 0.0
    %4341 = vmatprep.subr.mxu0 0.0
    %4342 = vmatpush2.msra.mxu0 0.0
    %4343 = vmatprep.subr.mxu0 0.0
    %4344 = vmatpush2.msra.mxu0 0.0
    %4345 = vmatprep.subr.mxu0 0.0
    %4346 = vmatpush2.msra.mxu0 0.0
    %4347 = vmatprep.subr.mxu0 0.0
    %4348 = vmatpush2.msra.mxu0 0.0
    %4349 = vmatprep.subr.mxu0 0.0
    %4350 = vmatpush2.msra.mxu0 0.0
    %4351 = vmatprep.subr.mxu0 0.0
    %4352 = vmatpush2.msra.mxu0 0.0
    %4353 = vmatprep.subr.mxu0 0.0
    %4354 = vmatpush2.msra.mxu0 0.0
    %4355 = vmatprep.subr.mxu0 0.0
    %4356 = vmatpush2.msra.mxu0 0.0
    %4357 = vmatprep.subr.mxu0 0.0
    %4358 = vmatpush2.msra.mxu0 0.0
    %4359 = vmatprep.subr.mxu0 0.0
    %4360 = vmatpush2.msra.mxu0 0.0
    %4361 = vmatprep.subr.mxu0 0.0
    %4362 = vmatpush2.msra.mxu0 0.0
    %4363 = vmatprep.subr.mxu0 0.0
    %4364 = vmatpush2.msra.mxu0 0.0
    %4365 = vmatprep.subr.mxu0 0.0
    %4366 = vmatpush2.msra.mxu0 0.0
    %4367 = vmatprep.mubr.f32.mxu0 0.0
    %4368 = vmatmul.mubr.f32.gmra.mxu0 %v4221
    %v4369 = vpop.f32.mrf.mxu0
    %v4370 = vadd.f32 %v2952, %v4369
    %v4371 = vpop.f32.mrf.mxu0
    %4372 = vmatprep.mubr.f32.mxu0 0.0
    %4373 = vmatmul.mubr.f32.gmra.mxu0 %v4224
    %v4374 = vpop.f32.mrf.mxu0
    %v4375 = vadd.f32 %v2952, %v4374
    %v4376 = vpop.f32.mrf.mxu0
    %4377 = vdwg.mxu0
    %4378 = vmatprep.subr.mxu0 0.0
    %4379 = vmatpush1.msra.mxu0 0.0
    %4380 = vmatprep.subr.mxu0 0.0
    %4381 = vmatpush1.msra.mxu0 0.0
    %4382 = vmatprep.subr.mxu0 0.0
    %4383 = vmatpush1.msra.mxu0 0.0
    %4384 = vmatprep.subr.mxu0 0.0
    %4385 = vmatpush1.msra.mxu0 0.0
    %4386 = vmatprep.subr.mxu0 0.0
    %4387 = vmatpush1.msra.mxu0 0.0
    %4388 = vmatprep.subr.mxu0 0.0
    %4389 = vmatpush1.msra.mxu0 0.0
    %4390 = vmatprep.subr.mxu0 0.0
    %4391 = vmatpush1.msra.mxu0 0.0
    %4392 = vmatprep.subr.mxu0 0.0
    %4393 = vmatpush1.msra.mxu0 0.0
    %4394 = vmatprep.subr.mxu0 0.0
    %4395 = vmatpush1.msra.mxu0 0.0
    %4396 = vmatprep.subr.mxu0 0.0
    %4397 = vmatpush1.msra.mxu0 0.0
    %4398 = vmatprep.subr.mxu0 0.0
    %4399 = vmatpush1.msra.mxu0 0.0
    %4400 = vmatprep.subr.mxu0 0.0
    %4401 = vmatpush1.msra.mxu0 0.0
    %4402 = vmatprep.subr.mxu0 0.0
    %4403 = vmatpush1.msra.mxu0 %v3033
    %4404 = vmatprep.subr.mxu0 0.0
    %4405 = vmatpush1.msra.mxu0 %v3032
    %4406 = vmatprep.subr.mxu0 0.0
    %4407 = vmatpush1.msra.mxu0 %v3031
    %4408 = vmatprep.subr.mxu0 0.0
    %4409 = vmatpush1.msra.mxu0 %v3030
    %4410 = vmatprep.subr.mxu0 0.0
    %4411 = vmatpush2.msra.mxu0 0.0
    %4412 = vmatprep.subr.mxu0 0.0
    %4413 = vmatpush2.msra.mxu0 0.0
    %4414 = vmatprep.subr.mxu0 0.0
    %4415 = vmatpush2.msra.mxu0 0.0
    %4416 = vmatprep.subr.mxu0 0.0
    %4417 = vmatpush2.msra.mxu0 0.0
    %4418 = vmatprep.subr.mxu0 0.0
    %4419 = vmatpush2.msra.mxu0 0.0
    %4420 = vmatprep.subr.mxu0 0.0
    %4421 = vmatpush2.msra.mxu0 0.0
    %4422 = vmatprep.subr.mxu0 0.0
    %4423 = vmatpush2.msra.mxu0 0.0
    %4424 = vmatprep.subr.mxu0 0.0
    %4425 = vmatpush2.msra.mxu0 0.0
    %4426 = vmatprep.subr.mxu0 0.0
    %4427 = vmatpush2.msra.mxu0 0.0
    %4428 = vmatprep.subr.mxu0 0.0
    %4429 = vmatpush2.msra.mxu0 0.0
    %4430 = vmatprep.subr.mxu0 0.0
    %4431 = vmatpush2.msra.mxu0 0.0
    %4432 = vmatprep.subr.mxu0 0.0
    %4433 = vmatpush2.msra.mxu0 0.0
    %4434 = vmatprep.subr.mxu0 0.0
    %4435 = vmatpush2.msra.mxu0 0.0
    %4436 = vmatprep.subr.mxu0 0.0
    %4437 = vmatpush2.msra.mxu0 0.0
    %4438 = vmatprep.subr.mxu0 0.0
    %4439 = vmatpush2.msra.mxu0 0.0
    %4440 = vmatprep.subr.mxu0 0.0
    %4441 = vmatpush2.msra.mxu0 0.0
    %4442 = vmatprep.mubr.f32.mxu0 0.0
    %4443 = vmatmul.mubr.f32.gmra.mxu0 %v4221
    %v4444 = vpop.f32.mrf.mxu0
    %v4445 = vadd.f32 %v3040, %v4444
    %v4446 = vpop.f32.mrf.mxu0
    %4447 = vmatprep.mubr.f32.mxu0 0.0
    %4448 = vmatmul.mubr.f32.gmra.mxu0 %v4224
    %v4449 = vpop.f32.mrf.mxu0
    %v4450 = vadd.f32 %v3040, %v4449
    %v4451 = vpop.f32.mrf.mxu0
    %4452 = vdwg.mxu0
    %v4454 = vsel %vm995, %v4301, 0
    %v4457 = vsel %vm995, %v4302, 0
    %v4460 = vsel %vm995, %v4370, 0
    %v4463 = vsel %vm995, %v4375, 0
    %4465 = vmatprep.subr.mxu0 0.0
    %4466 = vmatpush1.xpose.msra.mxu0 0.0
    %4467 = vmatprep.subr.mxu0 0.0
    %4468 = vmatpush1.xpose.msra.mxu0 0.0
    %4469 = vmatprep.subr.mxu0 0.0
    %4470 = vmatpush1.xpose.msra.mxu0 0.0
    %4471 = vmatprep.subr.mxu0 0.0
    %4472 = vmatpush1.xpose.msra.mxu0 0.0
    %4473 = vmatprep.subr.mxu0 0.0
    %4474 = vmatpush1.xpose.msra.mxu0 0.0
    %4475 = vmatprep.subr.mxu0 0.0
    %4476 = vmatpush1.xpose.msra.mxu0 0.0
    %4477 = vmatprep.subr.mxu0 0.0
    %4478 = vmatpush1.xpose.msra.mxu0 0.0
    %4479 = vmatprep.subr.mxu0 0.0
    %4480 = vmatpush1.xpose.msra.mxu0 0.0
    %4481 = vmatprep.subr.mxu0 0.0
    %4482 = vmatpush1.xpose.msra.mxu0 0.0
    %4483 = vmatprep.subr.mxu0 0.0
    %4484 = vmatpush1.xpose.msra.mxu0 0.0
    %4485 = vmatprep.subr.mxu0 0.0
    %4486 = vmatpush1.xpose.msra.mxu0 0.0
    %4487 = vmatprep.subr.mxu0 0.0
    %4488 = vmatpush1.xpose.msra.mxu0 0.0
    %4489 = vmatprep.subr.mxu0 0.0
    %4490 = vmatpush1.xpose.msra.mxu0 0.0
    %4491 = vmatprep.subr.mxu0 0.0
    %4492 = vmatpush1.xpose.msra.mxu0 0.0
    %4493 = vmatprep.subr.mxu0 0.0
    %4494 = vmatpush1.xpose.msra.mxu0 %v4463
    %4495 = vmatprep.subr.mxu0 0.0
    %4496 = vmatpush1.xpose.msra.mxu0 %v4460
    %4497 = vmatprep.subr.mxu0 0.0
    %4498 = vmatpush2.xpose.msra.mxu0 0.0
    %4499 = vmatprep.subr.mxu0 0.0
    %4500 = vmatpush2.xpose.msra.mxu0 0.0
    %4501 = vmatprep.subr.mxu0 0.0
    %4502 = vmatpush2.xpose.msra.mxu0 0.0
    %4503 = vmatprep.subr.mxu0 0.0
    %4504 = vmatpush2.xpose.msra.mxu0 0.0
    %4505 = vmatprep.subr.mxu0 0.0
    %4506 = vmatpush2.xpose.msra.mxu0 0.0
    %4507 = vmatprep.subr.mxu0 0.0
    %4508 = vmatpush2.xpose.msra.mxu0 0.0
    %4509 = vmatprep.subr.mxu0 0.0
    %4510 = vmatpush2.xpose.msra.mxu0 0.0
    %4511 = vmatprep.subr.mxu0 0.0
    %4512 = vmatpush2.xpose.msra.mxu0 0.0
    %4513 = vmatprep.subr.mxu0 0.0
    %4514 = vmatpush2.xpose.msra.mxu0 0.0
    %4515 = vmatprep.subr.mxu0 0.0
    %4516 = vmatpush2.xpose.msra.mxu0 0.0
    %4517 = vmatprep.subr.mxu0 0.0
    %4518 = vmatpush2.xpose.msra.mxu0 0.0
    %4519 = vmatprep.subr.mxu0 0.0
    %4520 = vmatpush2.xpose.msra.mxu0 0.0
    %4521 = vmatprep.subr.mxu0 0.0
    %4522 = vmatpush2.xpose.msra.mxu0 0.0
    %4523 = vmatprep.subr.mxu0 0.0
    %4524 = vmatpush2.xpose.msra.mxu0 0.0
    %4525 = vmatprep.subr.mxu0 0.0
    %4526 = vmatpush2.xpose.msra.mxu0 0.0
    %4527 = vmatprep.subr.mxu0 0.0
    %4528 = vmatpush2.xpose.msra.mxu0 0.0
    %4529 = vmatprep.mubr.f32.mxu0 0.0
    %4530 = vmatmul.mubr.f32.gmra.mxu0 %v4454
    %v4531 = vpop.f32.mrf.mxu0
    %v4532 = vadd.f32 0.0, %v4531
    %v4533 = vpop.f32.mrf.mxu0
    %4534 = vmatprep.mubr.f32.mxu0 0.0
    %4535 = vmatmul.mubr.f32.gmra.mxu0 %v4457
    %v4536 = vpop.f32.mrf.mxu0
    %v4537 = vadd.f32 0.0, %v4536
    %v4538 = vpop.f32.mrf.mxu0
    %4539 = vdwg.mxu0
    %v4540 = vsel %vm3204, %v4532, -inf
    %4541 = vmax.xlane.f32.xlu0 %v4540
    %v4542 = vpop.xlane.xlu0 %4541
    %v4543 = vsel %vm3208, %v4537, -inf
    %4544 = vmax.xlane.f32.xlu0 %v4543
    %v4545 = vpop.xlane.xlu0 %4544
    %v4546 = vsub.f32 %v4532, %v4542
    %v4547 = vsub.f32 %v4537, %v4545
    %v4548 = vmul.f32 %v4546, 1.442695
    %v4549 = vpow.pop %v4548
    %v4550 = vmul.f32 %v4547, 1.442695
    %v4551 = vpow.pop %v4550
    %v4552 = vsel %vm3204, %v4549, 0.0
    %4553 = vadd.xlane.f32.xlu0 %v4552
    %v4554 = vpop.xlane.xlu0 %4553
    %v4555 = vsel %vm3208, %v4551, 0.0
    %4556 = vadd.xlane.f32.xlu0 %v4555
    %v4557 = vpop.xlane.xlu0 %4556
    %v4558 = vrcp.pop %v4554
    %v4559 = vmul.f32 %v4549, %v4558
    %v4560 = vrcp.pop %v4557
    %v4561 = vmul.f32 %v4551, %v4560
    %v4563 = vsel %vm3204, %v4559, 0
    %v4566 = vsel %vm3204, %v4561, 0
    %v4569 = vsel %vm3234, %v4450, 0
    %4571 = vmatprep.subr.mxu0 0.0
    %4572 = vmatpush1.msra.mxu0 0.0
    %4573 = vmatprep.subr.mxu0 0.0
    %4574 = vmatpush1.msra.mxu0 0.0
    %4575 = vmatprep.subr.mxu0 0.0
    %4576 = vmatpush1.msra.mxu0 0.0
    %4577 = vmatprep.subr.mxu0 0.0
    %4578 = vmatpush1.msra.mxu0 0.0
    %4579 = vmatprep.subr.mxu0 0.0
    %4580 = vmatpush1.msra.mxu0 0.0
    %4581 = vmatprep.subr.mxu0 0.0
    %4582 = vmatpush1.msra.mxu0 0.0
    %4583 = vmatprep.subr.mxu0 0.0
    %4584 = vmatpush1.msra.mxu0 0.0
    %4585 = vmatprep.subr.mxu0 0.0
    %4586 = vmatpush1.msra.mxu0 0.0
    %4587 = vmatprep.subr.mxu0 0.0
    %4588 = vmatpush1.msra.mxu0 0.0
    %4589 = vmatprep.subr.mxu0 0.0
    %4590 = vmatpush1.msra.mxu0 0.0
    %4591 = vmatprep.subr.mxu0 0.0
    %4592 = vmatpush1.msra.mxu0 0.0
    %4593 = vmatprep.subr.mxu0 0.0
    %4594 = vmatpush1.msra.mxu0 0.0
    %4595 = vmatprep.subr.mxu0 0.0
    %4596 = vmatpush1.msra.mxu0 0.0
    %4597 = vmatprep.subr.mxu0 0.0
    %4598 = vmatpush1.msra.mxu0 0.0
    %4599 = vmatprep.subr.mxu0 0.0
    %4600 = vmatpush1.msra.mxu0 %v4569
    %4601 = vmatprep.subr.mxu0 0.0
    %4602 = vmatpush1.msra.mxu0 %v4445
    %4603 = vmatprep.subr.mxu0 0.0
    %4604 = vmatpush2.msra.mxu0 0.0
    %4605 = vmatprep.subr.mxu0 0.0
    %4606 = vmatpush2.msra.mxu0 0.0
    %4607 = vmatprep.subr.mxu0 0.0
    %4608 = vmatpush2.msra.mxu0 0.0
    %4609 = vmatprep.subr.mxu0 0.0
    %4610 = vmatpush2.msra.mxu0 0.0
    %4611 = vmatprep.subr.mxu0 0.0
    %4612 = vmatpush2.msra.mxu0 0.0
    %4613 = vmatprep.subr.mxu0 0.0
    %4614 = vmatpush2.msra.mxu0 0.0
    %4615 = vmatprep.subr.mxu0 0.0
    %4616 = vmatpush2.msra.mxu0 0.0
    %4617 = vmatprep.subr.mxu0 0.0
    %4618 = vmatpush2.msra.mxu0 0.0
    %4619 = vmatprep.subr.mxu0 0.0
    %4620 = vmatpush2.msra.mxu0 0.0
    %4621 = vmatprep.subr.mxu0 0.0
    %4622 = vmatpush2.msra.mxu0 0.0
    %4623 = vmatprep.subr.mxu0 0.0
    %4624 = vmatpush2.msra.mxu0 0.0
    %4625 = vmatprep.subr.mxu0 0.0
    %4626 = vmatpush2.msra.mxu0 0.0
    %4627 = vmatprep.subr.mxu0 0.0
    %4628 = vmatpush2.msra.mxu0 0.0
    %4629 = vmatprep.subr.mxu0 0.0
    %4630 = vmatpush2.msra.mxu0 0.0
    %4631 = vmatprep.subr.mxu0 0.0
    %4632 = vmatpush2.msra.mxu0 0.0
    %4633 = vmatprep.subr.mxu0 0.0
    %4634 = vmatpush2.msra.mxu0 0.0
    %4635 = vmatprep.mubr.f32.mxu0 0.0
    %4636 = vmatmul.mubr.f32.gmra.mxu0 %v4563
    %v4637 = vpop.f32.mrf.mxu0
    %v4638 = vadd.f32 0.0, %v4637
    %v4639 = vpop.f32.mrf.mxu0
    %4640 = vmatprep.mubr.f32.mxu0 0.0
    %4641 = vmatmul.mubr.f32.gmra.mxu0 %v4566
    %v4642 = vpop.f32.mrf.mxu0
    %v4643 = vadd.f32 0.0, %v4642
    %v4644 = vpop.f32.mrf.mxu0
    %4645 = vdwg.mxu0
    %4646 = vmatprep.subr.mxu0 0.0
    %4647 = vmatpush1.msra.mxu0 0.0
    %4648 = vmatprep.subr.mxu0 0.0
    %4649 = vmatpush1.msra.mxu0 0.0
    %4650 = vmatprep.subr.mxu0 0.0
    %4651 = vmatpush1.msra.mxu0 0.0
    %4652 = vmatprep.subr.mxu0 0.0
    %4653 = vmatpush1.msra.mxu0 0.0
    %4654 = vmatprep.subr.mxu0 0.0
    %4655 = vmatpush1.msra.mxu0 0.0
    %4656 = vmatprep.subr.mxu0 0.0
    %4657 = vmatpush1.msra.mxu0 0.0
    %4658 = vmatprep.subr.mxu0 0.0
    %4659 = vmatpush1.msra.mxu0 0.0
    %4660 = vmatprep.subr.mxu0 0.0
    %4661 = vmatpush1.msra.mxu0 0.0
    %4662 = vmatprep.subr.mxu0 0.0
    %4663 = vmatpush1.msra.mxu0 0.0
    %4664 = vmatprep.subr.mxu0 0.0
    %4665 = vmatpush1.msra.mxu0 0.0
    %4666 = vmatprep.subr.mxu0 0.0
    %4667 = vmatpush1.msra.mxu0 0.0
    %4668 = vmatprep.subr.mxu0 0.0
    %4669 = vmatpush1.msra.mxu0 0.0
    %4670 = vmatprep.subr.mxu0 0.0
    %4671 = vmatpush1.msra.mxu0 %v3320
    %4672 = vmatprep.subr.mxu0 0.0
    %4673 = vmatpush1.msra.mxu0 %v3319
    %4674 = vmatprep.subr.mxu0 0.0
    %4675 = vmatpush1.msra.mxu0 %v3318
    %4676 = vmatprep.subr.mxu0 0.0
    %4677 = vmatpush1.msra.mxu0 %v3317
    %4678 = vmatprep.subr.mxu0 0.0
    %4679 = vmatpush2.msra.mxu0 0.0
    %4680 = vmatprep.subr.mxu0 0.0
    %4681 = vmatpush2.msra.mxu0 0.0
    %4682 = vmatprep.subr.mxu0 0.0
    %4683 = vmatpush2.msra.mxu0 0.0
    %4684 = vmatprep.subr.mxu0 0.0
    %4685 = vmatpush2.msra.mxu0 0.0
    %4686 = vmatprep.subr.mxu0 0.0
    %4687 = vmatpush2.msra.mxu0 0.0
    %4688 = vmatprep.subr.mxu0 0.0
    %4689 = vmatpush2.msra.mxu0 0.0
    %4690 = vmatprep.subr.mxu0 0.0
    %4691 = vmatpush2.msra.mxu0 0.0
    %4692 = vmatprep.subr.mxu0 0.0
    %4693 = vmatpush2.msra.mxu0 0.0
    %4694 = vmatprep.subr.mxu0 0.0
    %4695 = vmatpush2.msra.mxu0 0.0
    %4696 = vmatprep.subr.mxu0 0.0
    %4697 = vmatpush2.msra.mxu0 0.0
    %4698 = vmatprep.subr.mxu0 0.0
    %4699 = vmatpush2.msra.mxu0 0.0
    %4700 = vmatprep.subr.mxu0 0.0
    %4701 = vmatpush2.msra.mxu0 0.0
    %4702 = vmatprep.subr.mxu0 0.0
    %4703 = vmatpush2.msra.mxu0 0.0
    %4704 = vmatprep.subr.mxu0 0.0
    %4705 = vmatpush2.msra.mxu0 0.0
    %4706 = vmatprep.subr.mxu0 0.0
    %4707 = vmatpush2.msra.mxu0 0.0
    %4708 = vmatprep.subr.mxu0 0.0
    %4709 = vmatpush2.msra.mxu0 0.0
    %4710 = vmatprep.mubr.f32.mxu0 0.0
    %4711 = vmatmul.mubr.f32.gmra.mxu0 %v4221
    %v4712 = vpop.f32.mrf.mxu0
    %v4713 = vadd.f32 %v3327, %v4712
    %v4714 = vpop.f32.mrf.mxu0
    %4715 = vmatprep.mubr.f32.mxu0 0.0
    %4716 = vmatmul.mubr.f32.gmra.mxu0 %v4224
    %v4717 = vpop.f32.mrf.mxu0
    %v4718 = vadd.f32 %v3327, %v4717
    %v4719 = vpop.f32.mrf.mxu0
    %4720 = vdwg.mxu0
    %v4721 = vmul.f32 %v4713, 0.25
    %v4722 = vmul.f32 %v4718, 0.25
    %4723 = vmatprep.subr.mxu0 0.0
    %4724 = vmatpush1.msra.mxu0 0.0
    %4725 = vmatprep.subr.mxu0 0.0
    %4726 = vmatpush1.msra.mxu0 0.0
    %4727 = vmatprep.subr.mxu0 0.0
    %4728 = vmatpush1.msra.mxu0 0.0
    %4729 = vmatprep.subr.mxu0 0.0
    %4730 = vmatpush1.msra.mxu0 0.0
    %4731 = vmatprep.subr.mxu0 0.0
    %4732 = vmatpush1.msra.mxu0 0.0
    %4733 = vmatprep.subr.mxu0 0.0
    %4734 = vmatpush1.msra.mxu0 0.0
    %4735 = vmatprep.subr.mxu0 0.0
    %4736 = vmatpush1.msra.mxu0 0.0
    %4737 = vmatprep.subr.mxu0 0.0
    %4738 = vmatpush1.msra.mxu0 0.0
    %4739 = vmatprep.subr.mxu0 0.0
    %4740 = vmatpush1.msra.mxu0 0.0
    %4741 = vmatprep.subr.mxu0 0.0
    %4742 = vmatpush1.msra.mxu0 0.0
    %4743 = vmatprep.subr.mxu0 0.0
    %4744 = vmatpush1.msra.mxu0 0.0
    %4745 = vmatprep.subr.mxu0 0.0
    %4746 = vmatpush1.msra.mxu0 0.0
    %4747 = vmatprep.subr.mxu0 0.0
    %4748 = vmatpush1.msra.mxu0 %v3410
    %4749 = vmatprep.subr.mxu0 0.0
    %4750 = vmatpush1.msra.mxu0 %v3409
    %4751 = vmatprep.subr.mxu0 0.0
    %4752 = vmatpush1.msra.mxu0 %v3408
    %4753 = vmatprep.subr.mxu0 0.0
    %4754 = vmatpush1.msra.mxu0 %v3407
    %4755 = vmatprep.subr.mxu0 0.0
    %4756 = vmatpush2.msra.mxu0 0.0
    %4757 = vmatprep.subr.mxu0 0.0
    %4758 = vmatpush2.msra.mxu0 0.0
    %4759 = vmatprep.subr.mxu0 0.0
    %4760 = vmatpush2.msra.mxu0 0.0
    %4761 = vmatprep.subr.mxu0 0.0
    %4762 = vmatpush2.msra.mxu0 0.0
    %4763 = vmatprep.subr.mxu0 0.0
    %4764 = vmatpush2.msra.mxu0 0.0
    %4765 = vmatprep.subr.mxu0 0.0
    %4766 = vmatpush2.msra.mxu0 0.0
    %4767 = vmatprep.subr.mxu0 0.0
    %4768 = vmatpush2.msra.mxu0 0.0
    %4769 = vmatprep.subr.mxu0 0.0
    %4770 = vmatpush2.msra.mxu0 0.0
    %4771 = vmatprep.subr.mxu0 0.0
    %4772 = vmatpush2.msra.mxu0 0.0
    %4773 = vmatprep.subr.mxu0 0.0
    %4774 = vmatpush2.msra.mxu0 0.0
    %4775 = vmatprep.subr.mxu0 0.0
    %4776 = vmatpush2.msra.mxu0 0.0
    %4777 = vmatprep.subr.mxu0 0.0
    %4778 = vmatpush2.msra.mxu0 0.0
    %4779 = vmatprep.subr.mxu0 0.0
    %4780 = vmatpush2.msra.mxu0 0.0
    %4781 = vmatprep.subr.mxu0 0.0
    %4782 = vmatpush2.msra.mxu0 0.0
    %4783 = vmatprep.subr.mxu0 0.0
    %4784 = vmatpush2.msra.mxu0 0.0
    %4785 = vmatprep.subr.mxu0 0.0
    %4786 = vmatpush2.msra.mxu0 0.0
    %4787 = vmatprep.mubr.f32.mxu0 0.0
    %4788 = vmatmul.mubr.f32.gmra.mxu0 %v4221
    %v4789 = vpop.f32.mrf.mxu0
    %v4790 = vadd.f32 %v3417, %v4789
    %v4791 = vpop.f32.mrf.mxu0
    %4792 = vmatprep.mubr.f32.mxu0 0.0
    %4793 = vmatmul.mubr.f32.gmra.mxu0 %v4224
    %v4794 = vpop.f32.mrf.mxu0
    %v4795 = vadd.f32 %v3417, %v4794
    %v4796 = vpop.f32.mrf.mxu0
    %4797 = vdwg.mxu0
    %4798 = vmatprep.subr.mxu0 0.0
    %4799 = vmatpush1.msra.mxu0 0.0
    %4800 = vmatprep.subr.mxu0 0.0
    %4801 = vmatpush1.msra.mxu0 0.0
    %4802 = vmatprep.subr.mxu0 0.0
    %4803 = vmatpush1.msra.mxu0 0.0
    %4804 = vmatprep.subr.mxu0 0.0
    %4805 = vmatpush1.msra.mxu0 0.0
    %4806 = vmatprep.subr.mxu0 0.0
    %4807 = vmatpush1.msra.mxu0 0.0
    %4808 = vmatprep.subr.mxu0 0.0
    %4809 = vmatpush1.msra.mxu0 0.0
    %4810 = vmatprep.subr.mxu0 0.0
    %4811 = vmatpush1.msra.mxu0 0.0
    %4812 = vmatprep.subr.mxu0 0.0
    %4813 = vmatpush1.msra.mxu0 0.0
    %4814 = vmatprep.subr.mxu0 0.0
    %4815 = vmatpush1.msra.mxu0 0.0
    %4816 = vmatprep.subr.mxu0 0.0
    %4817 = vmatpush1.msra.mxu0 0.0
    %4818 = vmatprep.subr.mxu0 0.0
    %4819 = vmatpush1.msra.mxu0 0.0
    %4820 = vmatprep.subr.mxu0 0.0
    %4821 = vmatpush1.msra.mxu0 0.0
    %4822 = vmatprep.subr.mxu0 0.0
    %4823 = vmatpush1.msra.mxu0 %v3498
    %4824 = vmatprep.subr.mxu0 0.0
    %4825 = vmatpush1.msra.mxu0 %v3497
    %4826 = vmatprep.subr.mxu0 0.0
    %4827 = vmatpush1.msra.mxu0 %v3496
    %4828 = vmatprep.subr.mxu0 0.0
    %4829 = vmatpush1.msra.mxu0 %v3495
    %4830 = vmatprep.subr.mxu0 0.0
    %4831 = vmatpush2.msra.mxu0 0.0
    %4832 = vmatprep.subr.mxu0 0.0
    %4833 = vmatpush2.msra.mxu0 0.0
    %4834 = vmatprep.subr.mxu0 0.0
    %4835 = vmatpush2.msra.mxu0 0.0
    %4836 = vmatprep.subr.mxu0 0.0
    %4837 = vmatpush2.msra.mxu0 0.0
    %4838 = vmatprep.subr.mxu0 0.0
    %4839 = vmatpush2.msra.mxu0 0.0
    %4840 = vmatprep.subr.mxu0 0.0
    %4841 = vmatpush2.msra.mxu0 0.0
    %4842 = vmatprep.subr.mxu0 0.0
    %4843 = vmatpush2.msra.mxu0 0.0
    %4844 = vmatprep.subr.mxu0 0.0
    %4845 = vmatpush2.msra.mxu0 0.0
    %4846 = vmatprep.subr.mxu0 0.0
    %4847 = vmatpush2.msra.mxu0 0.0
    %4848 = vmatprep.subr.mxu0 0.0
    %4849 = vmatpush2.msra.mxu0 0.0
    %4850 = vmatprep.subr.mxu0 0.0
    %4851 = vmatpush2.msra.mxu0 0.0
    %4852 = vmatprep.subr.mxu0 0.0
    %4853 = vmatpush2.msra.mxu0 0.0
    %4854 = vmatprep.subr.mxu0 0.0
    %4855 = vmatpush2.msra.mxu0 0.0
    %4856 = vmatprep.subr.mxu0 0.0
    %4857 = vmatpush2.msra.mxu0 0.0
    %4858 = vmatprep.subr.mxu0 0.0
    %4859 = vmatpush2.msra.mxu0 0.0
    %4860 = vmatprep.subr.mxu0 0.0
    %4861 = vmatpush2.msra.mxu0 0.0
    %4862 = vmatprep.mubr.f32.mxu0 0.0
    %4863 = vmatmul.mubr.f32.gmra.mxu0 %v4221
    %v4864 = vpop.f32.mrf.mxu0
    %v4865 = vadd.f32 %v3505, %v4864
    %v4866 = vpop.f32.mrf.mxu0
    %4867 = vmatprep.mubr.f32.mxu0 0.0
    %4868 = vmatmul.mubr.f32.gmra.mxu0 %v4224
    %v4869 = vpop.f32.mrf.mxu0
    %v4870 = vadd.f32 %v3505, %v4869
    %v4871 = vpop.f32.mrf.mxu0
    %4872 = vdwg.mxu0
    %v4874 = vsel %vm995, %v4721, 0
    %v4877 = vsel %vm995, %v4722, 0
    %v4880 = vsel %vm995, %v4790, 0
    %v4883 = vsel %vm995, %v4795, 0
    %4885 = vmatprep.subr.mxu0 0.0
    %4886 = vmatpush1.xpose.msra.mxu0 0.0
    %4887 = vmatprep.subr.mxu0 0.0
    %4888 = vmatpush1.xpose.msra.mxu0 0.0
    %4889 = vmatprep.subr.mxu0 0.0
    %4890 = vmatpush1.xpose.msra.mxu0 0.0
    %4891 = vmatprep.subr.mxu0 0.0
    %4892 = vmatpush1.xpose.msra.mxu0 0.0
    %4893 = vmatprep.subr.mxu0 0.0
    %4894 = vmatpush1.xpose.msra.mxu0 0.0
    %4895 = vmatprep.subr.mxu0 0.0
    %4896 = vmatpush1.xpose.msra.mxu0 0.0
    %4897 = vmatprep.subr.mxu0 0.0
    %4898 = vmatpush1.xpose.msra.mxu0 0.0
    %4899 = vmatprep.subr.mxu0 0.0
    %4900 = vmatpush1.xpose.msra.mxu0 0.0
    %4901 = vmatprep.subr.mxu0 0.0
    %4902 = vmatpush1.xpose.msra.mxu0 0.0
    %4903 = vmatprep.subr.mxu0 0.0
    %4904 = vmatpush1.xpose.msra.mxu0 0.0
    %4905 = vmatprep.subr.mxu0 0.0
    %4906 = vmatpush1.xpose.msra.mxu0 0.0
    %4907 = vmatprep.subr.mxu0 0.0
    %4908 = vmatpush1.xpose.msra.mxu0 0.0
    %4909 = vmatprep.subr.mxu0 0.0
    %4910 = vmatpush1.xpose.msra.mxu0 0.0
    %4911 = vmatprep.subr.mxu0 0.0
    %4912 = vmatpush1.xpose.msra.mxu0 0.0
    %4913 = vmatprep.subr.mxu0 0.0
    %4914 = vmatpush1.xpose.msra.mxu0 %v4883
    %4915 = vmatprep.subr.mxu0 0.0
    %4916 = vmatpush1.xpose.msra.mxu0 %v4880
    %4917 = vmatprep.subr.mxu0 0.0
    %4918 = vmatpush2.xpose.msra.mxu0 0.0
    %4919 = vmatprep.subr.mxu0 0.0
    %4920 = vmatpush2.xpose.msra.mxu0 0.0
    %4921 = vmatprep.subr.mxu0 0.0
    %4922 = vmatpush2.xpose.msra.mxu0 0.0
    %4923 = vmatprep.subr.mxu0 0.0
    %4924 = vmatpush2.xpose.msra.mxu0 0.0
    %4925 = vmatprep.subr.mxu0 0.0
    %4926 = vmatpush2.xpose.msra.mxu0 0.0
    %4927 = vmatprep.subr.mxu0 0.0
    %4928 = vmatpush2.xpose.msra.mxu0 0.0
    %4929 = vmatprep.subr.mxu0 0.0
    %4930 = vmatpush2.xpose.msra.mxu0 0.0
    %4931 = vmatprep.subr.mxu0 0.0
    %4932 = vmatpush2.xpose.msra.mxu0 0.0
    %4933 = vmatprep.subr.mxu0 0.0
    %4934 = vmatpush2.xpose.msra.mxu0 0.0
    %4935 = vmatprep.subr.mxu0 0.0
    %4936 = vmatpush2.xpose.msra.mxu0 0.0
    %4937 = vmatprep.subr.mxu0 0.0
    %4938 = vmatpush2.xpose.msra.mxu0 0.0
    %4939 = vmatprep.subr.mxu0 0.0
    %4940 = vmatpush2.xpose.msra.mxu0 0.0
    %4941 = vmatprep.subr.mxu0 0.0
    %4942 = vmatpush2.xpose.msra.mxu0 0.0
    %4943 = vmatprep.subr.mxu0 0.0
    %4944 = vmatpush2.xpose.msra.mxu0 0.0
    %4945 = vmatprep.subr.mxu0 0.0
    %4946 = vmatpush2.xpose.msra.mxu0 0.0
    %4947 = vmatprep.subr.mxu0 0.0
    %4948 = vmatpush2.xpose.msra.mxu0 0.0
    %4949 = vmatprep.mubr.f32.mxu0 0.0
    %4950 = vmatmul.mubr.f32.gmra.mxu0 %v4874
    %v4951 = vpop.f32.mrf.mxu0
    %v4952 = vadd.f32 0.0, %v4951
    %v4953 = vpop.f32.mrf.mxu0
    %4954 = vmatprep.mubr.f32.mxu0 0.0
    %4955 = vmatmul.mubr.f32.gmra.mxu0 %v4877
    %v4956 = vpop.f32.mrf.mxu0
    %v4957 = vadd.f32 0.0, %v4956
    %v4958 = vpop.f32.mrf.mxu0
    %4959 = vdwg.mxu0
    %v4960 = vsel %vm3204, %v4952, -inf
    %4961 = vmax.xlane.f32.xlu0 %v4960
    %v4962 = vpop.xlane.xlu0 %4961
    %v4963 = vsel %vm3208, %v4957, -inf
    %4964 = vmax.xlane.f32.xlu0 %v4963
    %v4965 = vpop.xlane.xlu0 %4964
    %v4966 = vsub.f32 %v4952, %v4962
    %v4967 = vsub.f32 %v4957, %v4965
    %v4968 = vmul.f32 %v4966, 1.442695
    %v4969 = vpow.pop %v4968
    %v4970 = vmul.f32 %v4967, 1.442695
    %v4971 = vpow.pop %v4970
    %v4972 = vsel %vm3204, %v4969, 0.0
    %4973 = vadd.xlane.f32.xlu0 %v4972
    %v4974 = vpop.xlane.xlu0 %4973
    %v4975 = vsel %vm3208, %v4971, 0.0
    %4976 = vadd.xlane.f32.xlu0 %v4975
    %v4977 = vpop.xlane.xlu0 %4976
    %v4978 = vrcp.pop %v4974
    %v4979 = vmul.f32 %v4969, %v4978
    %v4980 = vrcp.pop %v4977
    %v4981 = vmul.f32 %v4971, %v4980
    %v4983 = vsel %vm3204, %v4979, 0
    %v4986 = vsel %vm3204, %v4981, 0
    %v4989 = vsel %vm3234, %v4870, 0
    %4991 = vmatprep.subr.mxu0 0.0
    %4992 = vmatpush1.msra.mxu0 0.0
    %4993 = vmatprep.subr.mxu0 0.0
    %4994 = vmatpush1.msra.mxu0 0.0
    %4995 = vmatprep.subr.mxu0 0.0
    %4996 = vmatpush1.msra.mxu0 0.0
    %4997 = vmatprep.subr.mxu0 0.0
    %4998 = vmatpush1.msra.mxu0 0.0
    %4999 = vmatprep.subr.mxu0 0.0
    %5000 = vmatpush1.msra.mxu0 0.0
    %5001 = vmatprep.subr.mxu0 0.0
    %5002 = vmatpush1.msra.mxu0 0.0
    %5003 = vmatprep.subr.mxu0 0.0
    %5004 = vmatpush1.msra.mxu0 0.0
    %5005 = vmatprep.subr.mxu0 0.0
    %5006 = vmatpush1.msra.mxu0 0.0
    %5007 = vmatprep.subr.mxu0 0.0
    %5008 = vmatpush1.msra.mxu0 0.0
    %5009 = vmatprep.subr.mxu0 0.0
    %5010 = vmatpush1.msra.mxu0 0.0
    %5011 = vmatprep.subr.mxu0 0.0
    %5012 = vmatpush1.msra.mxu0 0.0
    %5013 = vmatprep.subr.mxu0 0.0
    %5014 = vmatpush1.msra.mxu0 0.0
    %5015 = vmatprep.subr.mxu0 0.0
    %5016 = vmatpush1.msra.mxu0 0.0
    %5017 = vmatprep.subr.mxu0 0.0
    %5018 = vmatpush1.msra.mxu0 0.0
    %5019 = vmatprep.subr.mxu0 0.0
    %5020 = vmatpush1.msra.mxu0 %v4989
    %5021 = vmatprep.subr.mxu0 0.0
    %5022 = vmatpush1.msra.mxu0 %v4865
    %5023 = vmatprep.subr.mxu0 0.0
    %5024 = vmatpush2.msra.mxu0 0.0
    %5025 = vmatprep.subr.mxu0 0.0
    %5026 = vmatpush2.msra.mxu0 0.0
    %5027 = vmatprep.subr.mxu0 0.0
    %5028 = vmatpush2.msra.mxu0 0.0
    %5029 = vmatprep.subr.mxu0 0.0
    %5030 = vmatpush2.msra.mxu0 0.0
    %5031 = vmatprep.subr.mxu0 0.0
    %5032 = vmatpush2.msra.mxu0 0.0
    %5033 = vmatprep.subr.mxu0 0.0
    %5034 = vmatpush2.msra.mxu0 0.0
    %5035 = vmatprep.subr.mxu0 0.0
    %5036 = vmatpush2.msra.mxu0 0.0
    %5037 = vmatprep.subr.mxu0 0.0
    %5038 = vmatpush2.msra.mxu0 0.0
    %5039 = vmatprep.subr.mxu0 0.0
    %5040 = vmatpush2.msra.mxu0 0.0
    %5041 = vmatprep.subr.mxu0 0.0
    %5042 = vmatpush2.msra.mxu0 0.0
    %5043 = vmatprep.subr.mxu0 0.0
    %5044 = vmatpush2.msra.mxu0 0.0
    %5045 = vmatprep.subr.mxu0 0.0
    %5046 = vmatpush2.msra.mxu0 0.0
    %5047 = vmatprep.subr.mxu0 0.0
    %5048 = vmatpush2.msra.mxu0 0.0
    %5049 = vmatprep.subr.mxu0 0.0
    %5050 = vmatpush2.msra.mxu0 0.0
    %5051 = vmatprep.subr.mxu0 0.0
    %5052 = vmatpush2.msra.mxu0 0.0
    %5053 = vmatprep.subr.mxu0 0.0
    %5054 = vmatpush2.msra.mxu0 0.0
    %5055 = vmatprep.mubr.f32.mxu0 0.0
    %5056 = vmatmul.mubr.f32.gmra.mxu0 %v4983
    %v5057 = vpop.f32.mrf.mxu0
    %v5058 = vadd.f32 0.0, %v5057
    %v5059 = vpop.f32.mrf.mxu0
    %5060 = vmatprep.mubr.f32.mxu0 0.0
    %5061 = vmatmul.mubr.f32.gmra.mxu0 %v4986
    %v5062 = vpop.f32.mrf.mxu0
    %v5063 = vadd.f32 0.0, %v5062
    %v5064 = vpop.f32.mrf.mxu0
    %5065 = vdwg.mxu0
    %v5067 = vsel %vm995, %v5058, 0
    %v5070 = vsel %vm995, %v5063, 0
    %5072 = vmatprep.subr.mxu0 0.0
    %5073 = vmatpush1.msra.mxu0 0.0
    %5074 = vmatprep.subr.mxu0 0.0
    %5075 = vmatpush1.msra.mxu0 0.0
    %5076 = vmatprep.subr.mxu0 0.0
    %5077 = vmatpush1.msra.mxu0 0.0
    %5078 = vmatprep.subr.mxu0 0.0
    %5079 = vmatpush1.msra.mxu0 0.0
    %5080 = vmatprep.subr.mxu0 0.0
    %5081 = vmatpush1.msra.mxu0 0.0
    %5082 = vmatprep.subr.mxu0 0.0
    %5083 = vmatpush1.msra.mxu0 0.0
    %5084 = vmatprep.subr.mxu0 0.0
    %5085 = vmatpush1.msra.mxu0 0.0
    %5086 = vmatprep.subr.mxu0 0.0
    %5087 = vmatpush1.msra.mxu0 0.0
    %5088 = vmatprep.subr.mxu0 0.0
    %5089 = vmatpush1.msra.mxu0 0.0
    %5090 = vmatprep.subr.mxu0 0.0
    %5091 = vmatpush1.msra.mxu0 0.0
    %5092 = vmatprep.subr.mxu0 0.0
    %5093 = vmatpush1.msra.mxu0 0.0
    %5094 = vmatprep.subr.mxu0 0.0
    %5095 = vmatpush1.msra.mxu0 0.0
    %5096 = vmatprep.subr.mxu0 0.0
    %5097 = vmatpush1.msra.mxu0 0.0
    %5098 = vmatprep.subr.mxu0 0.0
    %5099 = vmatpush1.msra.mxu0 0.0
    %5100 = vmatprep.subr.mxu0 0.0
    %5101 = vmatpush1.msra.mxu0 %v3777
    %5102 = vmatprep.subr.mxu0 0.0
    %5103 = vmatpush1.msra.mxu0 %v3776
    %5104 = vmatprep.subr.mxu0 0.0
    %5105 = vmatpush2.msra.mxu0 0.0
    %5106 = vmatprep.subr.mxu0 0.0
    %5107 = vmatpush2.msra.mxu0 0.0
    %5108 = vmatprep.subr.mxu0 0.0
    %5109 = vmatpush2.msra.mxu0 0.0
    %5110 = vmatprep.subr.mxu0 0.0
    %5111 = vmatpush2.msra.mxu0 0.0
    %5112 = vmatprep.subr.mxu0 0.0
    %5113 = vmatpush2.msra.mxu0 0.0
    %5114 = vmatprep.subr.mxu0 0.0
    %5115 = vmatpush2.msra.mxu0 0.0
    %5116 = vmatprep.subr.mxu0 0.0
    %5117 = vmatpush2.msra.mxu0 0.0
    %5118 = vmatprep.subr.mxu0 0.0
    %5119 = vmatpush2.msra.mxu0 0.0
    %5120 = vmatprep.subr.mxu0 0.0
    %5121 = vmatpush2.msra.mxu0 0.0
    %5122 = vmatprep.subr.mxu0 0.0
    %5123 = vmatpush2.msra.mxu0 0.0
    %5124 = vmatprep.subr.mxu0 0.0
    %5125 = vmatpush2.msra.mxu0 0.0
    %5126 = vmatprep.subr.mxu0 0.0
    %5127 = vmatpush2.msra.mxu0 0.0
    %5128 = vmatprep.subr.mxu0 0.0
    %5129 = vmatpush2.msra.mxu0 0.0
    %5130 = vmatprep.subr.mxu0 0.0
    %5131 = vmatpush2.msra.mxu0 0.0
    %5132 = vmatprep.subr.mxu0 0.0
    %5133 = vmatpush2.msra.mxu0 0.0
    %5134 = vmatprep.subr.mxu0 0.0
    %5135 = vmatpush2.msra.mxu0 0.0
    %5136 = vmatprep.mubr.f32.mxu0 0.0
    %5137 = vmatmul.mubr.f32.gmra.mxu0 %v5067
    %v5138 = vpop.f32.mrf.mxu0
    %v5139 = vadd.f32 0.0, %v5138
    %v5140 = vpop.f32.mrf.mxu0
    %5141 = vmatprep.mubr.f32.mxu0 0.0
    %5142 = vmatmul.mubr.f32.gmra.mxu0 %v5070
    %v5143 = vpop.f32.mrf.mxu0
    %v5144 = vadd.f32 0.0, %v5143
    %v5145 = vpop.f32.mrf.mxu0
    %5146 = vdwg.mxu0
    %v5148 = vsel %vm995, %v4638, 0
    %v5151 = vsel %vm995, %v4643, 0
    %5153 = vmatprep.subr.mxu0 0.0
    %5154 = vmatpush1.msra.mxu0 0.0
    %5155 = vmatprep.subr.mxu0 0.0
    %5156 = vmatpush1.msra.mxu0 0.0
    %5157 = vmatprep.subr.mxu0 0.0
    %5158 = vmatpush1.msra.mxu0 0.0
    %5159 = vmatprep.subr.mxu0 0.0
    %5160 = vmatpush1.msra.mxu0 0.0
    %5161 = vmatprep.subr.mxu0 0.0
    %5162 = vmatpush1.msra.mxu0 0.0
    %5163 = vmatprep.subr.mxu0 0.0
    %5164 = vmatpush1.msra.mxu0 0.0
    %5165 = vmatprep.subr.mxu0 0.0
    %5166 = vmatpush1.msra.mxu0 0.0
    %5167 = vmatprep.subr.mxu0 0.0
    %5168 = vmatpush1.msra.mxu0 0.0
    %5169 = vmatprep.subr.mxu0 0.0
    %5170 = vmatpush1.msra.mxu0 0.0
    %5171 = vmatprep.subr.mxu0 0.0
    %5172 = vmatpush1.msra.mxu0 0.0
    %5173 = vmatprep.subr.mxu0 0.0
    %5174 = vmatpush1.msra.mxu0 0.0
    %5175 = vmatprep.subr.mxu0 0.0
    %5176 = vmatpush1.msra.mxu0 0.0
    %5177 = vmatprep.subr.mxu0 0.0
    %5178 = vmatpush1.msra.mxu0 0.0
    %5179 = vmatprep.subr.mxu0 0.0
    %5180 = vmatpush1.msra.mxu0 0.0
    %5181 = vmatprep.subr.mxu0 0.0
    %5182 = vmatpush1.msra.mxu0 %v3315
    %5183 = vmatprep.subr.mxu0 0.0
    %5184 = vmatpush1.msra.mxu0 %v3314
    %5185 = vmatprep.subr.mxu0 0.0
    %5186 = vmatpush2.msra.mxu0 0.0
    %5187 = vmatprep.subr.mxu0 0.0
    %5188 = vmatpush2.msra.mxu0 0.0
    %5189 = vmatprep.subr.mxu0 0.0
    %5190 = vmatpush2.msra.mxu0 0.0
    %5191 = vmatprep.subr.mxu0 0.0
    %5192 = vmatpush2.msra.mxu0 0.0
    %5193 = vmatprep.subr.mxu0 0.0
    %5194 = vmatpush2.msra.mxu0 0.0
    %5195 = vmatprep.subr.mxu0 0.0
    %5196 = vmatpush2.msra.mxu0 0.0
    %5197 = vmatprep.subr.mxu0 0.0
    %5198 = vmatpush2.msra.mxu0 0.0
    %5199 = vmatprep.subr.mxu0 0.0
    %5200 = vmatpush2.msra.mxu0 0.0
    %5201 = vmatprep.subr.mxu0 0.0
    %5202 = vmatpush2.msra.mxu0 0.0
    %5203 = vmatprep.subr.mxu0 0.0
    %5204 = vmatpush2.msra.mxu0 0.0
    %5205 = vmatprep.subr.mxu0 0.0
    %5206 = vmatpush2.msra.mxu0 0.0
    %5207 = vmatprep.subr.mxu0 0.0
    %5208 = vmatpush2.msra.mxu0 0.0
    %5209 = vmatprep.subr.mxu0 0.0
    %5210 = vmatpush2.msra.mxu0 0.0
    %5211 = vmatprep.subr.mxu0 0.0
    %5212 = vmatpush2.msra.mxu0 0.0
    %5213 = vmatprep.subr.mxu0 0.0
    %5214 = vmatpush2.msra.mxu0 0.0
    %5215 = vmatprep.subr.mxu0 0.0
    %5216 = vmatpush2.msra.mxu0 0.0
    %5217 = vmatprep.mubr.f32.mxu0 0.0
    %5218 = vmatmul.mubr.f32.gmra.mxu0 %v5148
    %v5219 = vpop.f32.mrf.mxu0
    %v5220 = vadd.f32 %v5139, %v5219
    %v5221 = vpop.f32.mrf.mxu0
    %5222 = vmatprep.mubr.f32.mxu0 0.0
    %5223 = vmatmul.mubr.f32.gmra.mxu0 %v5151
    %v5224 = vpop.f32.mrf.mxu0
    %v5225 = vadd.f32 %v5144, %v5224
    %v5226 = vpop.f32.mrf.mxu0
    %5227 = vdwg.mxu0
    %v5228 = vadd.f32 %v2817, %v5220
    %v5229 = vadd.f32 %v2818, %v5225
    %v5230 = vadd.f32 %v5228, %v3948
    %v5231 = vadd.f32 %v5229, %v3948
    %v5232 = vsel %vm286, %v5230, 0.0
    %5233 = vadd.xlane.f32.xlu0 %v5232
    %v5234 = vpop.xlane.xlu0 %5233
    %v5235 = vsel %vm284, %v5231, 0.0
    %5236 = vadd.xlane.f32.xlu0 %v5235
    %v5237 = vpop.xlane.xlu0 %5236
    %v5238 = vmul.f32 %v5234, %v880
    %v5239 = vmul.f32 %v5237, %v880
    %v5240 = vsub.f32 %v5230, %v5238
    %v5241 = vsub.f32 %v5231, %v5239
    %v5242 = vmul.f32 %v5240, %v5240
    %v5243 = vmul.f32 %v5241, %v5241
    %v5244 = vsel %vm286, %v5242, 0.0
    %5245 = vadd.xlane.f32.xlu0 %v5244
    %v5246 = vpop.xlane.xlu0 %5245
    %v5247 = vsel %vm284, %v5243, 0.0
    %5248 = vadd.xlane.f32.xlu0 %v5247
    %v5249 = vpop.xlane.xlu0 %5248
    %v5250 = vmul.f32 %v5246, %v880
    %v5251 = vmul.f32 %v5249, %v880
    %v5252 = vadd.f32 %v5250, 1e-05
    %v5253 = vadd.f32 %v5251, 1e-05
    %v5254 = vrsqrt.pop %v5252
    %v5255 = vrsqrt.pop %v5253
    %v5256 = vmul.f32 %v5240, %v5254
    %v5257 = vmul.f32 %v5241, %v5255
    %v5259 = vsel %vm286, %v5256, 0
    %v5262 = vsel %vm286, %v5257, 0
    %5264 = vmatprep.subr.mxu0 0.0
    %5265 = vmatpush1.msra.mxu0 0.0
    %5266 = vmatprep.subr.mxu0 0.0
    %5267 = vmatpush1.msra.mxu0 0.0
    %5268 = vmatprep.subr.mxu0 0.0
    %5269 = vmatpush1.msra.mxu0 0.0
    %5270 = vmatprep.subr.mxu0 0.0
    %5271 = vmatpush1.msra.mxu0 0.0
    %5272 = vmatprep.subr.mxu0 0.0
    %5273 = vmatpush1.msra.mxu0 0.0
    %5274 = vmatprep.subr.mxu0 0.0
    %5275 = vmatpush1.msra.mxu0 0.0
    %5276 = vmatprep.subr.mxu0 0.0
    %5277 = vmatpush1.msra.mxu0 0.0
    %5278 = vmatprep.subr.mxu0 0.0
    %5279 = vmatpush1.msra.mxu0 0.0
    %5280 = vmatprep.subr.mxu0 0.0
    %5281 = vmatpush1.msra.mxu0 0.0
    %5282 = vmatprep.subr.mxu0 0.0
    %5283 = vmatpush1.msra.mxu0 0.0
    %5284 = vmatprep.subr.mxu0 0.0
    %5285 = vmatpush1.msra.mxu0 0.0
    %5286 = vmatprep.subr.mxu0 0.0
    %5287 = vmatpush1.msra.mxu0 0.0
    %5288 = vmatprep.subr.mxu0 0.0
    %5289 = vmatpush1.msra.mxu0 %v3982
    %5290 = vmatprep.subr.mxu0 0.0
    %5291 = vmatpush1.msra.mxu0 %v3981
    %5292 = vmatprep.subr.mxu0 0.0
    %5293 = vmatpush1.msra.mxu0 %v3980
    %5294 = vmatprep.subr.mxu0 0.0
    %5295 = vmatpush1.msra.mxu0 %v3979
    %5296 = vmatprep.subr.mxu0 0.0
    %5297 = vmatpush2.msra.mxu0 0.0
    %5298 = vmatprep.subr.mxu0 0.0
    %5299 = vmatpush2.msra.mxu0 0.0
    %5300 = vmatprep.subr.mxu0 0.0
    %5301 = vmatpush2.msra.mxu0 0.0
    %5302 = vmatprep.subr.mxu0 0.0
    %5303 = vmatpush2.msra.mxu0 0.0
    %5304 = vmatprep.subr.mxu0 0.0
    %5305 = vmatpush2.msra.mxu0 0.0
    %5306 = vmatprep.subr.mxu0 0.0
    %5307 = vmatpush2.msra.mxu0 0.0
    %5308 = vmatprep.subr.mxu0 0.0
    %5309 = vmatpush2.msra.mxu0 0.0
    %5310 = vmatprep.subr.mxu0 0.0
    %5311 = vmatpush2.msra.mxu0 0.0
    %5312 = vmatprep.subr.mxu0 0.0
    %5313 = vmatpush2.msra.mxu0 0.0
    %5314 = vmatprep.subr.mxu0 0.0
    %5315 = vmatpush2.msra.mxu0 0.0
    %5316 = vmatprep.subr.mxu0 0.0
    %5317 = vmatpush2.msra.mxu0 0.0
    %5318 = vmatprep.subr.mxu0 0.0
    %5319 = vmatpush2.msra.mxu0 0.0
    %5320 = vmatprep.subr.mxu0 0.0
    %5321 = vmatpush2.msra.mxu0 0.0
    %5322 = vmatprep.subr.mxu0 0.0
    %5323 = vmatpush2.msra.mxu0 0.0
    %5324 = vmatprep.subr.mxu0 0.0
    %5325 = vmatpush2.msra.mxu0 0.0
    %5326 = vmatprep.subr.mxu0 0.0
    %5327 = vmatpush2.msra.mxu0 0.0
    %5328 = vmatprep.mubr.f32.mxu0 0.0
    %5329 = vmatmul.mubr.f32.gmra.mxu0 %v5259
    %v5330 = vpop.f32.mrf.mxu0
    %v5331 = vadd.f32 %v3989, %v5330
    %v5332 = vpop.f32.mrf.mxu0
    %5333 = vmatprep.mubr.f32.mxu0 0.0
    %5334 = vmatmul.mubr.f32.gmra.mxu0 %v5262
    %v5335 = vpop.f32.mrf.mxu0
    %v5336 = vadd.f32 %v3989, %v5335
    %v5337 = vpop.f32.mrf.mxu0
    %5338 = vdwg.mxu0
    %v5339 = vmul.f32 %v5331, 0.5
    %v5340 = vmul.f32 %v5336, 0.5
    %v5341 = vmul.f32 %v5331, 0.044715
    %v5342 = vmul.f32 %v5336, 0.044715
    %v5343 = vmul.f32 %v5341, %v5331
    %v5344 = vmul.f32 %v5342, %v5336
    %v5345 = vmul.f32 %v5343, %v5331
    %v5346 = vmul.f32 %v5344, %v5336
    %v5347 = vadd.f32 %v5331, %v5345
    %v5348 = vadd.f32 %v5336, %v5346
    %v5349 = vmul.f32 %v5347, 0.7978846
    %v5350 = vmul.f32 %v5348, 0.7978846
    %v5351 = vtanh.pop %v5349
    %v5352 = vtanh.pop %v5350
    %v5353 = vadd.f32 %v5351, 1.0
    %v5354 = vadd.f32 %v5352, 1.0
    %v5355 = vmul.f32 %v5339, %v5353
    %v5356 = vmul.f32 %v5340, %v5354
    %5357 = vmatprep.subr.mxu0 0.0
    %5358 = vmatpush1.msra.mxu0 %v4106
    %5359 = vmatprep.subr.mxu0 0.0
    %5360 = vmatpush1.msra.mxu0 %v4105
    %5361 = vmatprep.subr.mxu0 0.0
    %5362 = vmatpush1.msra.mxu0 %v4104
    %5363 = vmatprep.subr.mxu0 0.0
    %5364 = vmatpush1.msra.mxu0 %v4103
    %5365 = vmatprep.subr.mxu0 0.0
    %5366 = vmatpush1.msra.mxu0 %v4102
    %5367 = vmatprep.subr.mxu0 0.0
    %5368 = vmatpush1.msra.mxu0 %v4101
    %5369 = vmatprep.subr.mxu0 0.0
    %5370 = vmatpush1.msra.mxu0 %v4100
    %5371 = vmatprep.subr.mxu0 0.0
    %5372 = vmatpush1.msra.mxu0 %v4099
    %5373 = vmatprep.subr.mxu0 0.0
    %5374 = vmatpush1.msra.mxu0 %v4098
    %5375 = vmatprep.subr.mxu0 0.0
    %5376 = vmatpush1.msra.mxu0 %v4097
    %5377 = vmatprep.subr.mxu0 0.0
    %5378 = vmatpush1.msra.mxu0 %v4096
    %5379 = vmatprep.subr.mxu0 0.0
    %5380 = vmatpush1.msra.mxu0 %v4095
    %5381 = vmatprep.subr.mxu0 0.0
    %5382 = vmatpush1.msra.mxu0 %v4094
    %5383 = vmatprep.subr.mxu0 0.0
    %5384 = vmatpush1.msra.mxu0 %v4093
    %5385 = vmatprep.subr.mxu0 0.0
    %5386 = vmatpush1.msra.mxu0 %v4092
    %5387 = vmatprep.subr.mxu0 0.0
    %5388 = vmatpush1.msra.mxu0 %v4091
    %5389 = vmatprep.subr.mxu0 0.0
    %5390 = vmatpush2.msra.mxu0 0.0
    %5391 = vmatprep.subr.mxu0 0.0
    %5392 = vmatpush2.msra.mxu0 0.0
    %5393 = vmatprep.subr.mxu0 0.0
    %5394 = vmatpush2.msra.mxu0 0.0
    %5395 = vmatprep.subr.mxu0 0.0
    %5396 = vmatpush2.msra.mxu0 0.0
    %5397 = vmatprep.subr.mxu0 0.0
    %5398 = vmatpush2.msra.mxu0 0.0
    %5399 = vmatprep.subr.mxu0 0.0
    %5400 = vmatpush2.msra.mxu0 0.0
    %5401 = vmatprep.subr.mxu0 0.0
    %5402 = vmatpush2.msra.mxu0 0.0
    %5403 = vmatprep.subr.mxu0 0.0
    %5404 = vmatpush2.msra.mxu0 0.0
    %5405 = vmatprep.subr.mxu0 0.0
    %5406 = vmatpush2.msra.mxu0 0.0
    %5407 = vmatprep.subr.mxu0 0.0
    %5408 = vmatpush2.msra.mxu0 0.0
    %5409 = vmatprep.subr.mxu0 0.0
    %5410 = vmatpush2.msra.mxu0 0.0
    %5411 = vmatprep.subr.mxu0 0.0
    %5412 = vmatpush2.msra.mxu0 0.0
    %5413 = vmatprep.subr.mxu0 0.0
    %5414 = vmatpush2.msra.mxu0 0.0
    %5415 = vmatprep.subr.mxu0 0.0
    %5416 = vmatpush2.msra.mxu0 0.0
    %5417 = vmatprep.subr.mxu0 0.0
    %5418 = vmatpush2.msra.mxu0 0.0
    %5419 = vmatprep.subr.mxu0 0.0
    %5420 = vmatpush2.msra.mxu0 0.0
    %5421 = vmatprep.mubr.f32.mxu0 0.0
    %5422 = vmatmul.mubr.f32.gmra.mxu0 %v5355
    %v5423 = vpop.f32.mrf.mxu0
    %v5424 = vadd.f32 0.0, %v5423
    %v5425 = vpop.f32.mrf.mxu0
    %5426 = vmatprep.mubr.f32.mxu0 0.0
    %5427 = vmatmul.mubr.f32.gmra.mxu0 %v5356
    %v5428 = vpop.f32.mrf.mxu0
    %v5429 = vadd.f32 0.0, %v5428
    %v5430 = vpop.f32.mrf.mxu0
    %5431 = vdwg.mxu0
    %v5432 = vadd.f32 %v5230, %v5424
    %v5433 = vadd.f32 %v5231, %v5429
    %v5434 = vadd.f32 %v5432, %v4190
    %v5435 = vadd.f32 %v5433, %v4190
    %s5436 = sld [smem:[#allocation3]]
    %5437 = vst.msk [vmem:[#allocation2] sm:$0xff] %vm286, %v4192
    %5438 = vst.msk [vmem:[#allocation2 + $0x8] sm:$0x1] %vm284, %v4193
    %v5439 = vld [vmem:[#allocation2 + $0x1] sm:$0xff]
    %v5440 = vsel %vm286, %v5439, 0.0
    %5441 = vadd.xlane.f32.xlu0 %v5440
    %v5442 = vpop.xlane.xlu0 %5441
    %v5443 = vmul.f32 %v5442, %v880
    %v5444 = vsub.f32 %v5439, %v5443
    %v5445 = vmul.f32 %v5444, %v5444
    %v5446 = vsel %vm286, %v5445, 0.0
    %5447 = vadd.xlane.f32.xlu0 %v5446
    %v5448 = vpop.xlane.xlu0 %5447
    %v5449 = vmul.f32 %v5448, %v880
    %v5450 = vadd.f32 %v5449, 1e-05
    %v5451 = vrsqrt.pop %v5450
    %v5452 = vmul.f32 %v5444, %v5451
    %s5453 = smul.u32 %s5436, 32
    %s5454 = scalar_lea.vmem %s11, %s5453
    %v5455 = vld [vmem:[%s5454] sm:$0xff]
    %v5456 = vld [vmem:[%s5454 + $0x8] sm:$0xff]
    %v5457 = vld [vmem:[%s5454 + $0x10] sm:$0xff]
    %v5458 = vld [vmem:[%s5454 + $0x18] sm:$0xff]
    %s5459 = scalar_lea.vmem %s12, %s5436
    %v5460 = vld [vmem:[%s5459] sm:$0x1]
    %v5462 = vlaneseq
    %v5463 = vshrl.u32 %v5462, 7
    %v5464 = vsub.s32 0, %v5463
    %v5465 = vrot.slane %v5460, %v5464
    %v5468 = vsel %vm286, %v5452, 0
    %5470 = vmatprep.subr.mxu0 0.0
    %5471 = vmatpush1.msra.mxu0 0.0
    %5472 = vmatprep.subr.mxu0 0.0
    %5473 = vmatpush1.msra.mxu0 0.0
    %5474 = vmatprep.subr.mxu0 0.0
    %5475 = vmatpush1.msra.mxu0 0.0
    %5476 = vmatprep.subr.mxu0 0.0
    %5477 = vmatpush1.msra.mxu0 0.0
    %5478 = vmatprep.subr.mxu0 0.0
    %5479 = vmatpush1.msra.mxu0 0.0
    %5480 = vmatprep.subr.mxu0 0.0
    %5481 = vmatpush1.msra.mxu0 0.0
    %5482 = vmatprep.subr.mxu0 0.0
    %5483 = vmatpush1.msra.mxu0 0.0
    %5484 = vmatprep.subr.mxu0 0.0
    %5485 = vmatpush1.msra.mxu0 0.0
    %5486 = vmatprep.subr.mxu0 0.0
    %5487 = vmatpush1.msra.mxu0 0.0
    %5488 = vmatprep.subr.mxu0 0.0
    %5489 = vmatpush1.msra.mxu0 0.0
    %5490 = vmatprep.subr.mxu0 0.0
    %5491 = vmatpush1.msra.mxu0 0.0
    %5492 = vmatprep.subr.mxu0 0.0
    %5493 = vmatpush1.msra.mxu0 0.0
    %5494 = vmatprep.subr.mxu0 0.0
    %5495 = vmatpush1.msra.mxu0 %v5458
    %5496 = vmatprep.subr.mxu0 0.0
    %5497 = vmatpush1.msra.mxu0 %v5457
    %5498 = vmatprep.subr.mxu0 0.0
    %5499 = vmatpush1.msra.mxu0 %v5456
    %5500 = vmatprep.subr.mxu0 0.0
    %5501 = vmatpush1.msra.mxu0 %v5455
    %5502 = vmatprep.subr.mxu0 0.0
    %5503 = vmatpush2.msra.mxu0 0.0
    %5504 = vmatprep.subr.mxu0 0.0
    %5505 = vmatpush2.msra.mxu0 0.0
    %5506 = vmatprep.subr.mxu0 0.0
    %5507 = vmatpush2.msra.mxu0 0.0
    %5508 = vmatprep.subr.mxu0 0.0
    %5509 = vmatpush2.msra.mxu0 0.0
    %5510 = vmatprep.subr.mxu0 0.0
    %5511 = vmatpush2.msra.mxu0 0.0
    %5512 = vmatprep.subr.mxu0 0.0
    %5513 = vmatpush2.msra.mxu0 0.0
    %5514 = vmatprep.subr.mxu0 0.0
    %5515 = vmatpush2.msra.mxu0 0.0
    %5516 = vmatprep.subr.mxu0 0.0
    %5517 = vmatpush2.msra.mxu0 0.0
    %5518 = vmatprep.subr.mxu0 0.0
    %5519 = vmatpush2.msra.mxu0 0.0
    %5520 = vmatprep.subr.mxu0 0.0
    %5521 = vmatpush2.msra.mxu0 0.0
    %5522 = vmatprep.subr.mxu0 0.0
    %5523 = vmatpush2.msra.mxu0 0.0
    %5524 = vmatprep.subr.mxu0 0.0
    %5525 = vmatpush2.msra.mxu0 0.0
    %5526 = vmatprep.subr.mxu0 0.0
    %5527 = vmatpush2.msra.mxu0 0.0
    %5528 = vmatprep.subr.mxu0 0.0
    %5529 = vmatpush2.msra.mxu0 0.0
    %5530 = vmatprep.subr.mxu0 0.0
    %5531 = vmatpush2.msra.mxu0 0.0
    %5532 = vmatprep.subr.mxu0 0.0
    %5533 = vmatpush2.msra.mxu0 0.0
    %5534 = vmatprep.mubr.f32.mxu0 0.0
    %5535 = vmatmul.mubr.f32.gmra.mxu0 %v5468
    %v5536 = vpop.f32.mrf.mxu0
    %v5537 = vadd.f32 %v5465, %v5536
    %v5538 = vpop.f32.mrf.mxu0
    %5539 = vdwg.mxu0
    %v5540 = vmax.f32 %v5537, 0.0
    %s5541 = smul.u32 %s5436, 64
    %s5542 = scalar_lea.vmem %s13, %s5541
    %v5543 = vld [vmem:[%s5542] sm:$0xff]
    %v5544 = vld [vmem:[%s5542 + $0x8] sm:$0xff]
    %v5545 = vld [vmem:[%s5542 + $0x10] sm:$0xff]
    %v5546 = vld [vmem:[%s5542 + $0x18] sm:$0xff]
    %v5547 = vld [vmem:[%s5542 + $0x20] sm:$0xff]
    %v5548 = vld [vmem:[%s5542 + $0x28] sm:$0xff]
    %v5549 = vld [vmem:[%s5542 + $0x30] sm:$0xff]
    %v5550 = vld [vmem:[%s5542 + $0x38] sm:$0xff]
    %s5551 = scalar_lea.vmem %s14, %s5436
    %v5552 = vld [vmem:[%s5551] sm:$0x1]
    %v5554 = vlaneseq
    %v5555 = vshrl.u32 %v5554, 7
    %v5556 = vsub.s32 0, %v5555
    %v5557 = vrot.slane %v5552, %v5556
    %v5560 = vsel %vm200, %v5540, 0
    %5562 = vmatprep.subr.mxu0 0.0
    %5563 = vmatpush1.msra.mxu0 0.0
    %5564 = vmatprep.subr.mxu0 0.0
    %5565 = vmatpush1.msra.mxu0 0.0
    %5566 = vmatprep.subr.mxu0 0.0
    %5567 = vmatpush1.msra.mxu0 0.0
    %5568 = vmatprep.subr.mxu0 0.0
    %5569 = vmatpush1.msra.mxu0 0.0
    %5570 = vmatprep.subr.mxu0 0.0
    %5571 = vmatpush1.msra.mxu0 0.0
    %5572 = vmatprep.subr.mxu0 0.0
    %5573 = vmatpush1.msra.mxu0 0.0
    %5574 = vmatprep.subr.mxu0 0.0
    %5575 = vmatpush1.msra.mxu0 0.0
    %5576 = vmatprep.subr.mxu0 0.0
    %5577 = vmatpush1.msra.mxu0 0.0
    %5578 = vmatprep.subr.mxu0 0.0
    %5579 = vmatpush1.msra.mxu0 %v5550
    %5580 = vmatprep.subr.mxu0 0.0
    %5581 = vmatpush1.msra.mxu0 %v5549
    %5582 = vmatprep.subr.mxu0 0.0
    %5583 = vmatpush1.msra.mxu0 %v5548
    %5584 = vmatprep.subr.mxu0 0.0
    %5585 = vmatpush1.msra.mxu0 %v5547
    %5586 = vmatprep.subr.mxu0 0.0
    %5587 = vmatpush1.msra.mxu0 %v5546
    %5588 = vmatprep.subr.mxu0 0.0
    %5589 = vmatpush1.msra.mxu0 %v5545
    %5590 = vmatprep.subr.mxu0 0.0
    %5591 = vmatpush1.msra.mxu0 %v5544
    %5592 = vmatprep.subr.mxu0 0.0
    %5593 = vmatpush1.msra.mxu0 %v5543
    %5594 = vmatprep.subr.mxu0 0.0
    %5595 = vmatpush2.msra.mxu0 0.0
    %5596 = vmatprep.subr.mxu0 0.0
    %5597 = vmatpush2.msra.mxu0 0.0
    %5598 = vmatprep.subr.mxu0 0.0
    %5599 = vmatpush2.msra.mxu0 0.0
    %5600 = vmatprep.subr.mxu0 0.0
    %5601 = vmatpush2.msra.mxu0 0.0
    %5602 = vmatprep.subr.mxu0 0.0
    %5603 = vmatpush2.msra.mxu0 0.0
    %5604 = vmatprep.subr.mxu0 0.0
    %5605 = vmatpush2.msra.mxu0 0.0
    %5606 = vmatprep.subr.mxu0 0.0
    %5607 = vmatpush2.msra.mxu0 0.0
    %5608 = vmatprep.subr.mxu0 0.0
    %5609 = vmatpush2.msra.mxu0 0.0
    %5610 = vmatprep.subr.mxu0 0.0
    %5611 = vmatpush2.msra.mxu0 0.0
    %5612 = vmatprep.subr.mxu0 0.0
    %5613 = vmatpush2.msra.mxu0 0.0
    %5614 = vmatprep.subr.mxu0 0.0
    %5615 = vmatpush2.msra.mxu0 0.0
    %5616 = vmatprep.subr.mxu0 0.0
    %5617 = vmatpush2.msra.mxu0 0.0
    %5618 = vmatprep.subr.mxu0 0.0
    %5619 = vmatpush2.msra.mxu0 0.0
    %5620 = vmatprep.subr.mxu0 0.0
    %5621 = vmatpush2.msra.mxu0 0.0
    %5622 = vmatprep.subr.mxu0 0.0
    %5623 = vmatpush2.msra.mxu0 0.0
    %5624 = vmatprep.subr.mxu0 0.0
    %5625 = vmatpush2.msra.mxu0 0.0
    %5626 = vmatprep.mubr.f32.mxu0 0.0
    %5627 = vmatmul.mubr.f32.gmra.mxu0 %v5560
    %v5628 = vpop.f32.mrf.mxu0
    %v5629 = vadd.f32 %v5557, %v5628
    %v5630 = vpop.f32.mrf.mxu0
    %5631 = vdwg.mxu0
    %v5632 = vld [vmem:[%s3] sm:$0xff]
    %v5633 = vsub.f32 %v5629, %v5632
    %v5634 = vld [vmem:[%s4] sm:$0xff]
    %v5635 = vmul.f32 %v5633, %v5633
    %v5636 = vmul.f32 %v5635, %v5634
    %vm5637 = vcmask 64512
    %v5638 = vsel %vm5637, %v5636, 0.0
    %5639 = vadd.xlane.f32.xlu0 %v5638
    %v5640 = vpop.xlane.xlu0 %5639
    %v5641 = vrot.slane %v5640, 4
    %v5642 = vadd.f32 %v5640, %v5641
    %v5643 = vrot.slane %v5642, 2
    %v5644 = vadd.f32 %v5642, %v5643
    %v5645 = vrot.slane %v5644, 1
    %v5646 = vadd.f32 %v5644, %v5645
    %s5647 = vtos %v5646
    %s5648 = sadd.f32 %s5647, 0.0
    %v5649 = vsel %vm5637, %v5634, 0.0
    %5650 = vadd.xlane.f32.xlu0 %v5649
    %v5651 = vpop.xlane.xlu0 %5650
    %v5652 = vrot.slane %v5651, 4
    %v5653 = vadd.f32 %v5651, %v5652
    %v5654 = vrot.slane %v5653, 2
    %v5655 = vadd.f32 %v5653, %v5654
    %v5656 = vrot.slane %v5655, 1
    %v5657 = vadd.f32 %v5655, %v5656
    %s5658 = vtos %v5657
    %s5659 = sadd.f32 %s5658, 0.0
    %s5660 = sld [smem:[#allocation3 + $0x1]]
    %5661 = vst.msk [vmem:[%s469] sm:$0xff] %vm286, %v5434
    %5662 = vst.msk [vmem:[%s469 + $0x8] sm:$0x1] %vm284, %v5435
    %v5663 = vld [vmem:[%s469 + $0x1] sm:$0xff]
    %v5664 = vsel %vm286, %v5663, 0.0
    %5665 = vadd.xlane.f32.xlu0 %v5664
    %v5666 = vpop.xlane.xlu0 %5665
    %v5667 = vmul.f32 %v5666, %v880
    %v5668 = vsub.f32 %v5663, %v5667
    %v5669 = vmul.f32 %v5668, %v5668
    %v5670 = vsel %vm286, %v5669, 0.0
    %5671 = vadd.xlane.f32.xlu0 %v5670
    %v5672 = vpop.xlane.xlu0 %5671
    %v5673 = vmul.f32 %v5672, %v880
    %v5674 = vadd.f32 %v5673, 1e-05
    %v5675 = vrsqrt.pop %v5674
    %v5676 = vmul.f32 %v5668, %v5675
    %s5677 = smul.u32 %s5660, 32
    %s5678 = scalar_lea.vmem %s11, %s5677
    %v5679 = vld [vmem:[%s5678] sm:$0xff]
    %v5680 = vld [vmem:[%s5678 + $0x8] sm:$0xff]
    %v5681 = vld [vmem:[%s5678 + $0x10] sm:$0xff]
    %v5682 = vld [vmem:[%s5678 + $0x18] sm:$0xff]
    %s5683 = scalar_lea.vmem %s12, %s5660
    %v5684 = vld [vmem:[%s5683] sm:$0x1]
    %v5686 = vlaneseq
    %v5687 = vshrl.u32 %v5686, 7
    %v5688 = vsub.s32 0, %v5687
    %v5689 = vrot.slane %v5684, %v5688
    %v5692 = vsel %vm286, %v5676, 0
    %5694 = vmatprep.subr.mxu0 0.0
    %5695 = vmatpush1.msra.mxu0 0.0
    %5696 = vmatprep.subr.mxu0 0.0
    %5697 = vmatpush1.msra.mxu0 0.0
    %5698 = vmatprep.subr.mxu0 0.0
    %5699 = vmatpush1.msra.mxu0 0.0
    %5700 = vmatprep.subr.mxu0 0.0
    %5701 = vmatpush1.msra.mxu0 0.0
    %5702 = vmatprep.subr.mxu0 0.0
    %5703 = vmatpush1.msra.mxu0 0.0
    %5704 = vmatprep.subr.mxu0 0.0
    %5705 = vmatpush1.msra.mxu0 0.0
    %5706 = vmatprep.subr.mxu0 0.0
    %5707 = vmatpush1.msra.mxu0 0.0
    %5708 = vmatprep.subr.mxu0 0.0
    %5709 = vmatpush1.msra.mxu0 0.0
    %5710 = vmatprep.subr.mxu0 0.0
    %5711 = vmatpush1.msra.mxu0 0.0
    %5712 = vmatprep.subr.mxu0 0.0
    %5713 = vmatpush1.msra.mxu0 0.0
    %5714 = vmatprep.subr.mxu0 0.0
    %5715 = vmatpush1.msra.mxu0 0.0
    %5716 = vmatprep.subr.mxu0 0.0
    %5717 = vmatpush1.msra.mxu0 0.0
    %5718 = vmatprep.subr.mxu0 0.0
    %5719 = vmatpush1.msra.mxu0 %v5682
    %5720 = vmatprep.subr.mxu0 0.0
    %5721 = vmatpush1.msra.mxu0 %v5681
    %5722 = vmatprep.subr.mxu0 0.0
    %5723 = vmatpush1.msra.mxu0 %v5680
    %5724 = vmatprep.subr.mxu0 0.0
    %5725 = vmatpush1.msra.mxu0 %v5679
    %5726 = vmatprep.subr.mxu0 0.0
    %5727 = vmatpush2.msra.mxu0 0.0
    %5728 = vmatprep.subr.mxu0 0.0
    %5729 = vmatpush2.msra.mxu0 0.0
    %5730 = vmatprep.subr.mxu0 0.0
    %5731 = vmatpush2.msra.mxu0 0.0
    %5732 = vmatprep.subr.mxu0 0.0
    %5733 = vmatpush2.msra.mxu0 0.0
    %5734 = vmatprep.subr.mxu0 0.0
    %5735 = vmatpush2.msra.mxu0 0.0
    %5736 = vmatprep.subr.mxu0 0.0
    %5737 = vmatpush2.msra.mxu0 0.0
    %5738 = vmatprep.subr.mxu0 0.0
    %5739 = vmatpush2.msra.mxu0 0.0
    %5740 = vmatprep.subr.mxu0 0.0
    %5741 = vmatpush2.msra.mxu0 0.0
    %5742 = vmatprep.subr.mxu0 0.0
    %5743 = vmatpush2.msra.mxu0 0.0
    %5744 = vmatprep.subr.mxu0 0.0
    %5745 = vmatpush2.msra.mxu0 0.0
    %5746 = vmatprep.subr.mxu0 0.0
    %5747 = vmatpush2.msra.mxu0 0.0
    %5748 = vmatprep.subr.mxu0 0.0
    %5749 = vmatpush2.msra.mxu0 0.0
    %5750 = vmatprep.subr.mxu0 0.0
    %5751 = vmatpush2.msra.mxu0 0.0
    %5752 = vmatprep.subr.mxu0 0.0
    %5753 = vmatpush2.msra.mxu0 0.0
    %5754 = vmatprep.subr.mxu0 0.0
    %5755 = vmatpush2.msra.mxu0 0.0
    %5756 = vmatprep.subr.mxu0 0.0
    %5757 = vmatpush2.msra.mxu0 0.0
    %5758 = vmatprep.mubr.f32.mxu0 0.0
    %5759 = vmatmul.mubr.f32.gmra.mxu0 %v5692
    %v5760 = vpop.f32.mrf.mxu0
    %v5761 = vadd.f32 %v5689, %v5760
    %v5762 = vpop.f32.mrf.mxu0
    %5763 = vdwg.mxu0
    %v5764 = vmax.f32 %v5761, 0.0
    %s5765 = smul.u32 %s5660, 64
    %s5766 = scalar_lea.vmem %s13, %s5765
    %v5767 = vld [vmem:[%s5766] sm:$0xff]
    %v5768 = vld [vmem:[%s5766 + $0x8] sm:$0xff]
    %v5769 = vld [vmem:[%s5766 + $0x10] sm:$0xff]
    %v5770 = vld [vmem:[%s5766 + $0x18] sm:$0xff]
    %v5771 = vld [vmem:[%s5766 + $0x20] sm:$0xff]
    %v5772 = vld [vmem:[%s5766 + $0x28] sm:$0xff]
    %v5773 = vld [vmem:[%s5766 + $0x30] sm:$0xff]
    %v5774 = vld [vmem:[%s5766 + $0x38] sm:$0xff]
    %s5775 = scalar_lea.vmem %s14, %s5660
    %v5776 = vld [vmem:[%s5775] sm:$0x1]
    %v5778 = vlaneseq
    %v5779 = vshrl.u32 %v5778, 7
    %v5780 = vsub.s32 0, %v5779
    %v5781 = vrot.slane %v5776, %v5780
    %v5784 = vsel %vm200, %v5764, 0
    %5786 = vmatprep.subr.mxu0 0.0
    %5787 = vmatpush1.msra.mxu0 0.0
    %5788 = vmatprep.subr.mxu0 0.0
    %5789 = vmatpush1.msra.mxu0 0.0
    %5790 = vmatprep.subr.mxu0 0.0
    %5791 = vmatpush1.msra.mxu0 0.0
    %5792 = vmatprep.subr.mxu0 0.0
    %5793 = vmatpush1.msra.mxu0 0.0
    %5794 = vmatprep.subr.mxu0 0.0
    %5795 = vmatpush1.msra.mxu0 0.0
    %5796 = vmatprep.subr.mxu0 0.0
    %5797 = vmatpush1.msra.mxu0 0.0
    %5798 = vmatprep.subr.mxu0 0.0
    %5799 = vmatpush1.msra.mxu0 0.0
    %5800 = vmatprep.subr.mxu0 0.0
    %5801 = vmatpush1.msra.mxu0 0.0
    %5802 = vmatprep.subr.mxu0 0.0
    %5803 = vmatpush1.msra.mxu0 %v5774
    %5804 = vmatprep.subr.mxu0 0.0
    %5805 = vmatpush1.msra.mxu0 %v5773
    %5806 = vmatprep.subr.mxu0 0.0
    %5807 = vmatpush1.msra.mxu0 %v5772
    %5808 = vmatprep.subr.mxu0 0.0
    %5809 = vmatpush1.msra.mxu0 %v5771
    %5810 = vmatprep.subr.mxu0 0.0
    %5811 = vmatpush1.msra.mxu0 %v5770
    %5812 = vmatprep.subr.mxu0 0.0
    %5813 = vmatpush1.msra.mxu0 %v5769
    %5814 = vmatprep.subr.mxu0 0.0
    %5815 = vmatpush1.msra.mxu0 %v5768
    %5816 = vmatprep.subr.mxu0 0.0
    %5817 = vmatpush1.msra.mxu0 %v5767
    %5818 = vmatprep.subr.mxu0 0.0
    %5819 = vmatpush2.msra.mxu0 0.0
    %5820 = vmatprep.subr.mxu0 0.0
    %5821 = vmatpush2.msra.mxu0 0.0
    %5822 = vmatprep.subr.mxu0 0.0
    %5823 = vmatpush2.msra.mxu0 0.0
    %5824 = vmatprep.subr.mxu0 0.0
    %5825 = vmatpush2.msra.mxu0 0.0
    %5826 = vmatprep.subr.mxu0 0.0
    %5827 = vmatpush2.msra.mxu0 0.0
    %5828 = vmatprep.subr.mxu0 0.0
    %5829 = vmatpush2.msra.mxu0 0.0
    %5830 = vmatprep.subr.mxu0 0.0
    %5831 = vmatpush2.msra.mxu0 0.0
    %5832 = vmatprep.subr.mxu0 0.0
    %5833 = vmatpush2.msra.mxu0 0.0
    %5834 = vmatprep.subr.mxu0 0.0
    %5835 = vmatpush2.msra.mxu0 0.0
    %5836 = vmatprep.subr.mxu0 0.0
    %5837 = vmatpush2.msra.mxu0 0.0
    %5838 = vmatprep.subr.mxu0 0.0
    %5839 = vmatpush2.msra.mxu0 0.0
    %5840 = vmatprep.subr.mxu0 0.0
    %5841 = vmatpush2.msra.mxu0 0.0
    %5842 = vmatprep.subr.mxu0 0.0
    %5843 = vmatpush2.msra.mxu0 0.0
    %5844 = vmatprep.subr.mxu0 0.0
    %5845 = vmatpush2.msra.mxu0 0.0
    %5846 = vmatprep.subr.mxu0 0.0
    %5847 = vmatpush2.msra.mxu0 0.0
    %5848 = vmatprep.subr.mxu0 0.0
    %5849 = vmatpush2.msra.mxu0 0.0
    %5850 = vmatprep.mubr.f32.mxu0 0.0
    %5851 = vmatmul.mubr.f32.gmra.mxu0 %v5784
    %v5852 = vpop.f32.mrf.mxu0
    %v5853 = vadd.f32 %v5781, %v5852
    %v5854 = vpop.f32.mrf.mxu0
    %5855 = vdwg.mxu0
    %s5856 = scalar_lea.vmem %s3, 8
    %v5857 = vld [vmem:[%s5856] sm:$0xff]
    %v5858 = vsub.f32 %v5853, %v5857
    %s5859 = scalar_lea.vmem %s4, 8
    %v5860 = vld [vmem:[%s5859] sm:$0xff]
    %v5861 = vmul.f32 %v5858, %v5858
    %v5862 = vmul.f32 %v5861, %v5860
    %v5863 = vsel %vm5637, %v5862, 0.0
    %5864 = vadd.xlane.f32.xlu0 %v5863
    %v5865 = vpop.xlane.xlu0 %5864
    %v5866 = vrot.slane %v5865, 4
    %v5867 = vadd.f32 %v5865, %v5866
    %v5868 = vrot.slane %v5867, 2
    %v5869 = vadd.f32 %v5867, %v5868
    %v5870 = vrot.slane %v5869, 1
    %v5871 = vadd.f32 %v5869, %v5870
    %s5872 = vtos %v5871
    %s5873 = sadd.f32 %s5648, %s5872
    %v5874 = vsel %vm5637, %v5860, 0.0
    %5875 = vadd.xlane.f32.xlu0 %v5874
    %v5876 = vpop.xlane.xlu0 %5875
    %v5877 = vrot.slane %v5876, 4
    %v5878 = vadd.f32 %v5876, %v5877
    %v5879 = vrot.slane %v5878, 2
    %v5880 = vadd.f32 %v5878, %v5879
    %v5881 = vrot.slane %v5880, 1
    %v5882 = vadd.f32 %v5880, %v5881
    %s5883 = vtos %v5882
    %s5884 = sadd.f32 %s5659, %s5883
    %v5885 = vstv %s5884
    %v5886 = vrcp.pop %v5885
    %s5887 = vtos %v5886
    %s5888 = smul.f32 %s5873, %s5887
    %s5889 = scalar_lea.smem [#allocation6], 0
    %5890 = sst [smem:[%s5889]] %s5888
    // Predicated region
    $region114: #{tpu_custom_call.1} parent=1 // pred_check
      _
    $region115: #{tpu_custom_call.1} parent=1 // pred_check_branch
      %5892 = sbr.rel (0) target = $region117
    $region116: #{tpu_custom_call.1} parent=1 // pred_region
      %s5894 = ssub.s32 16, 16
      %5895 = vsyncadd [#allocation4], %s5894
      %5898 = dma.smem_to_hbm [#allocation6], 16, %s27, [#allocation4]
    $region117: #{tpu_custom_call.1} parent=1 // pred_fallthru
      _
    // Predicated region
    $region118: #{tpu_custom_call.1} parent=1 // pred_check
      _
    $region119: #{tpu_custom_call.1} parent=1 // pred_check_branch
      %5900 = sbr.rel (0) target = $region121
    $region120: #{tpu_custom_call.1} parent=1 // pred_region
      %5901 = dma.done [#allocation4], 16
    $region121: #{tpu_custom_call.1} parent=1 // pred_fallthru
      _
    %5902 = sfence
    %5903 = vsyncpa [#allocation4], 1
    %5904 = vsyncpa [#allocation5], 1

</llo_original>
